<compile_context>
chip_gen: v7x
topology: tpu7x:2x2x1
jax: 0.10.0
libtpu: 0.0.40
codegen_flags: <defaults>
</compile_context>

<pallas_src>
import functools

import jax
import jax.numpy as jnp
import numpy as np
from jax.experimental import pallas as pl
from jax.experimental.pallas import tpu as pltpu


# ---------------------------------------------------------------------------
# Helpers
# ---------------------------------------------------------------------------
def _round_up(x, m):
    return (x + m - 1) // m * m


def _vmem_limit_bytes():
    """Generation-aware VMEM ceiling (~half of physical, capped at 48 MiB)."""
    try:
        cap = pltpu.get_tpu_info().vmem_capacity_bytes
    except Exception:
        cap = 64 * 1024 * 1024        # conservative (v7x physical VMEM)
    return int(min(48 * 1024 * 1024, cap // 2))


def _pick_tm(M, cin, cout, itemsize, budget):
    """Row tile for the entry 1x1 matmul, sized against the VMEM budget."""
    per_row = 2 * itemsize * (cin + cout)          # double-buffered in + out
    tm = (budget // per_row) // 256 * 256
    tm = max(256, min(8192, tm))
    # Keep >= 2 (even) grid steps when M allows so both v7x TCs get work.
    if pl.cdiv(M, tm) < 2:
        tm = max(256, _round_up(pl.cdiv(M, 2), 256))
    return tm


def _row_tile(H, W, N):
    """Largest divisor TH of H with TH*W <= 256 (MXU M dim), grid depth >= 2."""
    target = 256
    best = 1
    for th in range(1, H + 1):
        if H % th == 0 and th * W <= target:
            best = th
    if N == 1 and best == H and H > 1:
        for th in range(H - 1, 0, -1):             # force >= 2 row tiles
            if H % th == 0:
                best = th
                break
    return best


# ---------------------------------------------------------------------------
# Kernels
# ---------------------------------------------------------------------------
def _entry_conv1x1_relu_kernel(x_ref, w_ref, b_ref, o_ref):
    # x_ref: (TM, Cin), w_ref: (Cin, Ctot), b_ref: (1, Ctot), o_ref: (TM, Ctot)
    # One matmul for both branch-entry 1x1 convs; single lane-dense store.
    acc = jnp.dot(x_ref[...], w_ref[...], preferred_element_type=jnp.float32)
    o_ref[...] = jnp.maximum(acc + b_ref[...], 0.0).astype(o_ref.dtype)


def _branch_kernel(xp_ref, p2p_ref, p3p_ref,
                   w1_ref, b1_ref, w3_ref, b3_ref,
                   w5_ref, b5_ref, w4_ref, b4_ref,
                   o_ref, *, TH, W):
    # xp_ref : (1, H+2, W+2, Cin)  x padded with -inf (per-image block; DMA'd
    #                              once per image since block idx is const in t)
    # p2p_ref: (1, H+2, W+2, C2_0) zero-padded relu(1x1) output
    # p3p_ref: (1, H+4, W+4, C3_0) zero-padded relu(1x1) output
    # w3_ref : (3, 3*C2_0, c2_1)   kw taps pre-folded into the contraction
    # w5_ref : (5, 5*C3_0, c3_1)
    # o_ref  : (1, TH, W, c1+c2_1+c3_1+c4) — single lane-dense output tile
    t = pl.program_id(1)
    row0 = pl.multiple_of(t * TH, TH)
    cin = xp_ref.shape[-1]
    c2in = p2p_ref.shape[-1]
    c3in = p3p_ref.shape[-1]

    # Shared x row slabs (3 loads, reused by path1 and path4).
    x0 = xp_ref[0, pl.ds(row0 + 0, TH), :, :]          # (TH, W+2, Cin)
    x1 = xp_ref[0, pl.ds(row0 + 1, TH), :, :]
    x2 = xp_ref[0, pl.ds(row0 + 2, TH), :, :]

    # path1: 1x1 conv + ReLU on the interior slice (never touches pad values).
    xin = x1[:, 1:1 + W, :].reshape(TH * W, cin)
    r1 = jnp.maximum(
        jnp.dot(xin, w1_ref[...], preferred_element_type=jnp.float32)
        + b1_ref[...], 0.0)

    # path4: separable 3x3 max (rows, then columns), then 1x1 conv + ReLU.
    rmax = jnp.maximum(jnp.maximum(x0, x1), x2)        # (TH, W+2, Cin)
    pooled = jnp.maximum(jnp.maximum(rmax[:, 0:W, :], rmax[:, 1:1 + W, :]),
                         rmax[:, 2:2 + W, :])          # (TH, W, Cin)
    r4 = jnp.maximum(
        jnp.dot(pooled.reshape(TH * W, cin), w4_ref[...],
                preferred_element_type=jnp.float32) + b4_ref[...], 0.0)

    # path2: 3x3 conv + ReLU, kw taps folded into a 3*C2_0-deep contraction.
    acc2 = jnp.zeros((TH * W, w3_ref.shape[-1]), jnp.float32)
    for kh in range(3):
        slab = p2p_ref[0, pl.ds(row0 + kh, TH), :, :]  # (TH, W+2, C2_0)
        patch = jnp.concatenate(
            [slab[:, kw:kw + W, :] for kw in range(3)], axis=-1
        ).reshape(TH * W, 3 * c2in)
        acc2 = acc2 + jnp.dot(patch, w3_ref[kh],
                              preferred_element_type=jnp.float32)
    r2 = jnp.maximum(acc2 + b3_ref[...], 0.0)

    # path3: 5x5 conv + ReLU, kw taps folded into a 5*C3_0-deep contraction.
    acc3 = jnp.zeros((TH * W, w5_ref.shape[-1]), jnp.float32)
    for kh in range(5):
        slab = p3p_ref[0, pl.ds(row0 + kh, TH), :, :]  # (TH, W+4, C3_0)
        patch = jnp.concatenate(
            [slab[:, kw:kw + W, :] for kw in range(5)], axis=-1
        ).reshape(TH * W, 5 * c3in)
        acc3 = acc3 + jnp.dot(patch, w5_ref[kh],
                              preferred_element_type=jnp.float32)
    r3 = jnp.maximum(acc3 + b5_ref[...], 0.0)

    # Single lane-dense store of the whole channel-concatenated tile
    # (no separate jnp.concatenate pass over HBM afterwards).
    out = jnp.concatenate([r1, r2, r3, r4], axis=-1)   # (TH*W, Ctot)
    o_ref[...] = out.reshape(1, TH, W, out.shape[-1]).astype(o_ref.dtype)


# ---------------------------------------------------------------------------
# Wrappers
# ---------------------------------------------------------------------------
def fused_entry_conv1x1_relu(x_nhwc, w, b, splits):
    """path2_1 + path3_1 1x1 convs + ReLU as one M-tiled, lane-dense matmul."""
    N, H, W, Cin = x_nhwc.shape
    c2_0, c3_0 = splits
    Ctot = c2_0 + c3_0
    M = N * H * W
    itemsize = jnp.dtype(x_nhwc.dtype).itemsize
    limit = _vmem_limit_bytes()
    tm = _pick_tm(M, Cin, Ctot, itemsize, (limit * 3) // 5)
    Mp = pl.cdiv(M, tm) * tm

    x2 = x_nhwc.reshape(M, Cin)
    if Mp != M:
        x2 = jnp.pad(x2, ((0, Mp - M), (0, 0)))

    flops = 2 * M * Cin * Ctot
    bytes_acc = itemsize * M * (Cin + Ctot) + 4 * Cin * Ctot

    out = pl.pallas_call(
        _entry_conv1x1_relu_kernel,
        out_shape=jax.ShapeDtypeStruct((Mp, Ctot), x_nhwc.dtype),
        grid=(Mp // tm,),
        in_specs=[
            pl.BlockSpec((tm, Cin), lambda i: (i, 0)),
            pl.BlockSpec((Cin, Ctot), lambda i: (0, 0)),
            pl.BlockSpec((1, Ctot), lambda i: (0, 0)),
        ],
        out_specs=pl.BlockSpec((tm, Ctot), lambda i: (i, 0)),
        compiler_params=pltpu.CompilerParams(
            dimension_semantics=("parallel",),
            vmem_limit_bytes=limit),
        cost_estimate=pl.CostEstimate(flops=flops, transcendentals=0,
                                      bytes_accessed=bytes_acc),
    )(x2, w, b.reshape(1, Ctot))

    if Mp != M:
        out = out[:M]
    p2_0 = out[:, :c2_0].reshape(N, H, W, c2_0)
    p3_0 = out[:, c2_0:].reshape(N, H, W, c3_0)
    return p2_0, p3_0


def fused_branches(x_pad, p2p, p3p, w1, b1, w3, b3, w5, b5, w4, b4, splits):
    """All four branch tails in one kernel, writing the concat output tile."""
    N, Hp, Wp, Cin = x_pad.shape
    H, W = Hp - 2, Wp - 2
    c1, c2_1, c3_1, c4 = splits
    Ctot = c1 + c2_1 + c3_1 + c4
    C2_0 = p2p.shape[-1]
    C3_0 = p3p.shape[-1]
    TH = _row_tile(H, W, N)

    itemsize = jnp.dtype(x_pad.dtype).itemsize
    M = N * H * W
    flops = 2 * M * (Cin * (c1 + c4) + 9 * C2_0 * c2_1 + 25 * C3_0 * c3_1)
    bytes_acc = itemsize * (x_pad.size + p2p.size + p3p.size + M * Ctot)
    limit = _vmem_limit_bytes()

    kernel = functools.partial(_branch_kernel, TH=TH, W=W)
    return pl.pallas_call(
        kernel,
        out_shape=jax.ShapeDtypeStruct((N, H, W, Ctot), x_pad.dtype),
        grid=(N, H // TH),
        in_specs=[
            pl.BlockSpec((1, H + 2, W + 2, Cin), lambda n, t: (n, 0, 0, 0)),
            pl.BlockSpec((1, H + 2, W + 2, C2_0), lambda n, t: (n, 0, 0, 0)),
            pl.BlockSpec((1, H + 4, W + 4, C3_0), lambda n, t: (n, 0, 0, 0)),
            pl.BlockSpec((Cin, c1), lambda n, t: (0, 0)),
            pl.BlockSpec((1, c1), lambda n, t: (0, 0)),
            pl.BlockSpec((3, 3 * C2_0, c2_1), lambda n, t: (0, 0, 0)),
            pl.BlockSpec((1, c2_1), lambda n, t: (0, 0)),
            pl.BlockSpec((5, 5 * C3_0, c3_1), lambda n, t: (0, 0, 0)),
            pl.BlockSpec((1, c3_1), lambda n, t: (0, 0)),
            pl.BlockSpec((Cin, c4), lambda n, t: (0, 0)),
            pl.BlockSpec((1, c4), lambda n, t: (0, 0)),
        ],
        out_specs=pl.BlockSpec((1, TH, W, Ctot), lambda n, t: (n, t, 0, 0)),
        compiler_params=pltpu.CompilerParams(
            dimension_semantics=("parallel", "parallel"),
            vmem_limit_bytes=limit),
        cost_estimate=pl.CostEstimate(flops=flops, transcendentals=0,
                                      bytes_accessed=bytes_acc),
    )(x_pad, p2p, p3p,
      w1, b1.reshape(1, c1),
      w3, b3.reshape(1, c2_1),
      w5, b5.reshape(1, c3_1),
      w4, b4.reshape(1, c4))


# ---------------------------------------------------------------------------
# Inception forward (NCHW in / NCHW out, matching the PyTorch module)
# ---------------------------------------------------------------------------
def inception_forward(x_nchw, params):
    x = jnp.transpose(x_nchw, (0, 2, 3, 1))           # NCHW -> NHWC

    c1 = params["p1_w"].shape[1]
    c2_0, c2_1 = params["p2_2_w"].shape[2], params["p2_2_w"].shape[3]
    c3_0, c3_1 = params["p3_2_w"].shape[2], params["p3_2_w"].shape[3]
    c4 = params["p4_2_w"].shape[1]

    # Fused branch-entry 1x1 convs (path2_1, path3_1 share the input).
    w_entry = jnp.concatenate([params["p2_1_w"], params["p3_1_w"]], axis=1)
    b_entry = jnp.concatenate([params["p2_1_b"], params["p3_1_b"]], axis=0)
    p2_0, p3_0 = fused_entry_conv1x1_relu(x, w_entry, b_entry, (c2_0, c3_0))

    # TODO(synk): fold these spatial pads into the branch kernel (VMEM halo).
    x_pad = jnp.pad(x, ((0, 0), (1, 1), (1, 1), (0, 0)),
                    constant_values=-jnp.inf)          # -inf: maxpool padding
    p2p = jnp.pad(p2_0, ((0, 0), (1, 1), (1, 1), (0, 0)))
    p3p = jnp.pad(p3_0, ((0, 0), (2, 2), (2, 2), (0, 0)))

    # Fold kw taps into the contraction dim: (K, K, Cin, Cout) -> (K, K*Cin, Cout)
    w3 = params["p2_2_w"].reshape(3, 3 * c2_0, c2_1)
    w5 = params["p3_2_w"].reshape(5, 5 * c3_0, c3_1)

    out = fused_branches(x_pad, p2p, p3p,
                         params["p1_w"], params["p1_b"],
                         w3, params["p2_2_b"],
                         w5, params["p3_2_b"],
                         params["p4_2_w"], params["p4_2_b"],
                         (c1, c2_1, c3_1, c4))
    return jnp.transpose(out, (0, 3, 1, 2))            # NHWC -> NCHW


def init_params(key, in_channels, c1, c2, c3, c4, dtype=jnp.float32):
    ks = jax.random.split(key, 12)
    s = 0.1

    def w1x1(k, cin, cout):
        return (s * jax.random.normal(k, (cin, cout), dtype)).astype(dtype)

    def wkxk(k, K, cin, cout):
        return (s * jax.random.normal(k, (K, K, cin, cout), dtype)).astype(dtype)

    def bias(k, cout):
        return (s * jax.random.normal(k, (cout,), dtype)).astype(dtype)

    return {
        "p1_w": w1x1(ks[0], in_channels, c1),      "p1_b": bias(ks[1], c1),
        "p2_1_w": w1x1(ks[2], in_channels, c2[0]), "p2_1_b": bias(ks[3], c2[0]),
        "p2_2_w": wkxk(ks[4], 3, c2[0], c2[1]),    "p2_2_b": bias(ks[5], c2[1]),
        "p3_1_w": w1x1(ks[6], in_channels, c3[0]), "p3_1_b": bias(ks[7], c3[0]),
        "p3_2_w": wkxk(ks[8], 5, c3[0], c3[1]),    "p3_2_b": bias(ks[9], c3[1]),
        "p4_2_w": w1x1(ks[10], in_channels, c4),   "p4_2_b": bias(ks[11], c4),
    }


# ---------------------------------------------------------------------------
# Pure-JAX reference (for correctness check)
# ---------------------------------------------------------------------------
def _conv_ref(x, w, b, pad):
    if w.ndim == 2:
        w = w[None, None]  # (1,1,Cin,Cout)
    out = jax.lax.conv_general_dilated(
        x, w, window_strides=(1, 1), padding=[(pad, pad), (pad, pad)],
        dimension_numbers=("NHWC", "HWIO", "NHWC"))
    return jnp.maximum(out + b, 0.0)


def _maxpool_ref(x):
    return jax.lax.reduce_window(
        x, -jnp.inf, jax.lax.max, (1, 3, 3, 1), (1, 1, 1, 1),
        [(0, 0), (1, 1), (1, 1), (0, 0)])


def inception_ref(x_nchw, p):
    x = jnp.transpose(x_nchw, (0, 2, 3, 1))
    r1 = _conv_ref(x, p["p1_w"], p["p1_b"], 0)
    r2 = _conv_ref(_conv_ref(x, p["p2_1_w"], p["p2_1_b"], 0),
                   p["p2_2_w"], p["p2_2_b"], 1)
    r3 = _conv_ref(_conv_ref(x, p["p3_1_w"], p["p3_1_b"], 0),
                   p["p3_2_w"], p["p3_2_b"], 2)
    r4 = _conv_ref(_maxpool_ref(x), p["p4_2_w"], p["p4_2_b"], 0)
    return jnp.transpose(jnp.concatenate([r1, r2, r3, r4], -1), (0, 3, 1, 2))


if __name__ == "__main__":
    key = jax.random.PRNGKey(0)
    kx, kp = jax.random.split(key)

    # Small shapes consistent with the module's forward: NCHW input.
    N, Cin, H, W = 2, 4, 16, 16
    c1, c2, c3, c4 = 4, (4, 8), (2, 4), 4

    x = jax.random.normal(kx, (N, Cin, H, W), jnp.float32)
    params = init_params(kp, Cin, c1, c2, c3, c4)

    out = jax.jit(inception_forward)(x, params)
    out = jax.block_until_ready(out)

    expected_channels = c1 + c2[1] + c3[1] + c4
    assert out.shape == (N, expected_channels, H, W), out.shape

    ref = jax.block_until_ready(inception_ref(x, params))
    np.testing.assert_allclose(np.asarray(out), np.asarray(ref),
                               rtol=5e-2, atol=5e-3)

    print("KERNEL_OK")
</pallas_src>

<mosaic_0001>
module attributes {stable_mosaic.version = 11 : i64} {
  func.func @_entry_conv1x1_relu_kernel(%arg0: i32, %arg1: memref<256x4xf32, #tpu.memory_space<vmem>>, %arg2: memref<4x6xf32, #tpu.memory_space<vmem>>, %arg3: memref<1x6xf32, #tpu.memory_space<vmem>>, %arg4: memref<256x6xf32, #tpu.memory_space<vmem>>) attributes {dimension_semantics = [#tpu.dimension_semantics<parallel>], iteration_bounds = array<i64: 2>, scalar_prefetch = 0 : i64, scratch_operands = 0 : i64, tpu.core_type = #tpu.core_type<tc>, window_params = [{transform_indices = @transform_0, window_bounds = array<i64: 256, 4>}, {pipeline_mode = #tpu.pipeline_mode<synchronous>, transform_indices = @transform_1, window_bounds = array<i64: 4, 6>}, {pipeline_mode = #tpu.pipeline_mode<synchronous>, transform_indices = @transform_2, window_bounds = array<i64: 1, 6>}, {transform_indices = @transform_3, window_bounds = array<i64: 256, 6>}]} {
    %c0 = arith.constant 0 : index
    %c0_0 = arith.constant 0 : index
    %0 = vector.load %arg1[%c0, %c0_0] : memref<256x4xf32, #tpu.memory_space<vmem>>, vector<256x4xf32>
    %c0_1 = arith.constant 0 : index
    %c0_2 = arith.constant 0 : index
    %1 = vector.load %arg2[%c0_1, %c0_2] : memref<4x6xf32, #tpu.memory_space<vmem>>, vector<4x6xf32>
    %cst = arith.constant dense<0.000000e+00> : vector<256x6xf32>
    %2 = tpu.matmul %0, %1, %cst {dimension_numbers = #tpu.dot_dimension_numbers<[1], [0], [0], [1], [0, 0, 1, 1], [], []>} : vector<256x4xf32>, vector<4x6xf32>, vector<256x6xf32> -> vector<256x6xf32>
    %c0_3 = arith.constant 0 : index
    %c0_4 = arith.constant 0 : index
    %3 = vector.load %arg3[%c0_3, %c0_4] : memref<1x6xf32, #tpu.memory_space<vmem>>, vector<1x6xf32>
    %4 = vector.broadcast %3 : vector<1x6xf32> to vector<256x6xf32>
    %5 = arith.addf %2, %4 : vector<256x6xf32>
    %cst_5 = arith.constant 0.000000e+00 : f32
    %6 = vector.broadcast %cst_5 : f32 to vector<256x6xf32>
    %7 = arith.maximumf %5, %6 : vector<256x6xf32>
    %c0_6 = arith.constant 0 : index
    %c0_7 = arith.constant 0 : index
    %8 = vector.load %arg4[%c0_6, %c0_7] : memref<256x6xf32, #tpu.memory_space<vmem>>, vector<256x6xf32>
    tpu.vector_store %arg4[%c0_6, %c0_7], %7 {strides = array<i32>} : memref<256x6xf32, #tpu.memory_space<vmem>>, vector<256x6xf32>,
    return
  }
  func.func @transform_0(%arg0: i32) -> (i32, i32) {
    %c0_i32 = arith.constant 0 : i32
    %c0_i32_0 = arith.constant 0 : i32
    return %arg0, %c0_i32 : i32, i32
  }
  func.func @transform_1(%arg0: i32) -> (i32, i32) {
    %c0_i32 = arith.constant 0 : i32
    %c0_i32_0 = arith.constant 0 : i32
    %c0_i32_1 = arith.constant 0 : i32
    return %c0_i32, %c0_i32_0 : i32, i32
  }
  func.func @transform_2(%arg0: i32) -> (i32, i32) {
    %c0_i32 = arith.constant 0 : i32
    %c0_i32_0 = arith.constant 0 : i32
    %c0_i32_1 = arith.constant 0 : i32
    return %c0_i32, %c0_i32_0 : i32, i32
  }
  func.func @transform_3(%arg0: i32) -> (i32, i32) {
    %c0_i32 = arith.constant 0 : i32
    %c0_i32_0 = arith.constant 0 : i32
    return %arg0, %c0_i32 : i32, i32
  }
}

module attributes {stable_mosaic.version = 11 : i64} {
  func.func @_branch_kernel(%arg0: i32, %arg1: i32, %arg2: memref<1x18x18x4xf32, #tpu.memory_space<vmem>>, %arg3: memref<1x18x18x4xf32, #tpu.memory_space<vmem>>, %arg4: memref<1x20x20x2xf32, #tpu.memory_space<vmem>>, %arg5: memref<4x4xf32, #tpu.memory_space<vmem>>, %arg6: memref<1x4xf32, #tpu.memory_space<vmem>>, %arg7: memref<3x12x8xf32, #tpu.memory_space<vmem>>, %arg8: memref<1x8xf32, #tpu.memory_space<vmem>>, %arg9: memref<5x10x4xf32, #tpu.memory_space<vmem>>, %arg10: memref<1x4xf32, #tpu.memory_space<vmem>>, %arg11: memref<4x4xf32, #tpu.memory_space<vmem>>, %arg12: memref<1x4xf32, #tpu.memory_space<vmem>>, %arg13: memref<1x16x16x20xf32, #tpu.memory_space<vmem>>) attributes {dimension_semantics = [#tpu.dimension_semantics<parallel>, #tpu.dimension_semantics<parallel>], iteration_bounds = array<i64: 2, 1>, scalar_prefetch = 0 : i64, scratch_operands = 0 : i64, tpu.core_type = #tpu.core_type<tc>, window_params = [{transform_indices = @transform_0, window_bounds = array<i64: 1, 18, 18, 4>}, {transform_indices = @transform_1, window_bounds = array<i64: 1, 18, 18, 4>}, {transform_indices = @transform_2, window_bounds = array<i64: 1, 20, 20, 2>}, {pipeline_mode = #tpu.pipeline_mode<synchronous>, transform_indices = @transform_3, window_bounds = array<i64: 4, 4>}, {pipeline_mode = #tpu.pipeline_mode<synchronous>, transform_indices = @transform_4, window_bounds = array<i64: 1, 4>}, {pipeline_mode = #tpu.pipeline_mode<synchronous>, transform_indices = @transform_5, window_bounds = array<i64: 3, 12, 8>}, {pipeline_mode = #tpu.pipeline_mode<synchronous>, transform_indices = @transform_6, window_bounds = array<i64: 1, 8>}, {pipeline_mode = #tpu.pipeline_mode<synchronous>, transform_indices = @transform_7, window_bounds = array<i64: 5, 10, 4>}, {pipeline_mode = #tpu.pipeline_mode<synchronous>, transform_indices = @transform_8, window_bounds = array<i64: 1, 4>}, {pipeline_mode = #tpu.pipeline_mode<synchronous>, transform_indices = @transform_9, window_bounds = array<i64: 4, 4>}, {pipeline_mode = #tpu.pipeline_mode<synchronous>, transform_indices = @transform_10, window_bounds = array<i64: 1, 4>}, {transform_indices = @transform_11, window_bounds = array<i64: 1, 16, 16, 20>}]} {
    %c16_i32 = arith.constant 16 : i32
    %0 = arith.muli %arg1, %c16_i32 : i32
    %1 = tpu.assume_multiple %0, 16 : i32
    %c0_i32 = arith.constant 0 : i32
    %2 = arith.addi %1, %c0_i32 : i32
    %c0 = arith.constant 0 : index
    %3 = arith.index_cast %2 : i32 to index
    %c0_0 = arith.constant 0 : index
    %c0_1 = arith.constant 0 : index
    %4 = vector.load %arg2[%c0, %3, %c0_0, %c0_1] : memref<1x18x18x4xf32, #tpu.memory_space<vmem>>, vector<1x16x18x4xf32>
    %5 = vector.shape_cast %4 : vector<1x16x18x4xf32> to vector<16x18x4xf32>
    %c1_i32 = arith.constant 1 : i32
    %6 = arith.addi %1, %c1_i32 : i32
    %c0_2 = arith.constant 0 : index
    %7 = arith.index_cast %6 : i32 to index
    %c0_3 = arith.constant 0 : index
    %c0_4 = arith.constant 0 : index
    %8 = vector.load %arg2[%c0_2, %7, %c0_3, %c0_4] : memref<1x18x18x4xf32, #tpu.memory_space<vmem>>, vector<1x16x18x4xf32>
    %9 = vector.shape_cast %8 : vector<1x16x18x4xf32> to vector<16x18x4xf32>
    %c2_i32 = arith.constant 2 : i32
    %10 = arith.addi %1, %c2_i32 : i32
    %c0_5 = arith.constant 0 : index
    %11 = arith.index_cast %10 : i32 to index
    %c0_6 = arith.constant 0 : index
    %c0_7 = arith.constant 0 : index
    %12 = vector.load %arg2[%c0_5, %11, %c0_6, %c0_7] : memref<1x18x18x4xf32, #tpu.memory_space<vmem>>, vector<1x16x18x4xf32>
    %13 = vector.shape_cast %12 : vector<1x16x18x4xf32> to vector<16x18x4xf32>
    %14 = vector.extract_strided_slice %9 {offsets = [0, 1, 0], sizes = [16, 16, 4], strides = [1, 1, 1]} : vector<16x18x4xf32> to vector<16x16x4xf32>
    %15 = vector.shape_cast %14 : vector<16x16x4xf32> to vector<256x4xf32>
    %c0_8 = arith.constant 0 : index
    %c0_9 = arith.constant 0 : index
    %16 = vector.load %arg5[%c0_8, %c0_9] : memref<4x4xf32, #tpu.memory_space<vmem>>, vector<4x4xf32>
    %cst = arith.constant dense<0.000000e+00> : vector<256x4xf32>
    %17 = tpu.matmul %15, %16, %cst {dimension_numbers = #tpu.dot_dimension_numbers<[1], [0], [0], [1], [0, 0, 1, 1], [], []>} : vector<256x4xf32>, vector<4x4xf32>, vector<256x4xf32> -> vector<256x4xf32>
    %c0_10 = arith.constant 0 : index
    %c0_11 = arith.constant 0 : index
    %18 = vector.load %arg6[%c0_10, %c0_11] : memref<1x4xf32, #tpu.memory_space<vmem>>, vector<1x4xf32>
    %19 = vector.broadcast %18 : vector<1x4xf32> to vector<256x4xf32>
    %20 = arith.addf %17, %19 : vector<256x4xf32>
    %cst_12 = arith.constant 0.000000e+00 : f32
    %21 = vector.broadcast %cst_12 : f32 to vector<256x4xf32>
    %22 = arith.maximumf %20, %21 : vector<256x4xf32>
    %23 = arith.maximumf %5, %9 : vector<16x18x4xf32>
    %24 = arith.maximumf %23, %13 : vector<16x18x4xf32>
    %25 = vector.extract_strided_slice %24 {offsets = [0, 0, 0], sizes = [16, 16, 4], strides = [1, 1, 1]} : vector<16x18x4xf32> to vector<16x16x4xf32>
    %26 = vector.extract_strided_slice %24 {offsets = [0, 1, 0], sizes = [16, 16, 4], strides = [1, 1, 1]} : vector<16x18x4xf32> to vector<16x16x4xf32>
    %27 = arith.maximumf %25, %26 : vector<16x16x4xf32>
    %28 = vector.extract_strided_slice %24 {offsets = [0, 2, 0], sizes = [16, 16, 4], strides = [1, 1, 1]} : vector<16x18x4xf32> to vector<16x16x4xf32>
    %29 = arith.maximumf %27, %28 : vector<16x16x4xf32>
    %30 = vector.shape_cast %29 : vector<16x16x4xf32> to vector<256x4xf32>
    %c0_13 = arith.constant 0 : index
    %c0_14 = arith.constant 0 : index
    %31 = vector.load %arg11[%c0_13, %c0_14] : memref<4x4xf32, #tpu.memory_space<vmem>>, vector<4x4xf32>
    %cst_15 = arith.constant dense<0.000000e+00> : vector<256x4xf32>
    %32 = tpu.matmul %30, %31, %cst_15 {dimension_numbers = #tpu.dot_dimension_numbers<[1], [0], [0], [1], [0, 0, 1, 1], [], []>} : vector<256x4xf32>, vector<4x4xf32>, vector<256x4xf32> -> vector<256x4xf32>
    %c0_16 = arith.constant 0 : index
    %c0_17 = arith.constant 0 : index
    %33 = vector.load %arg12[%c0_16, %c0_17] : memref<1x4xf32, #tpu.memory_space<vmem>>, vector<1x4xf32>
    %34 = vector.broadcast %33 : vector<1x4xf32> to vector<256x4xf32>
    %35 = arith.addf %32, %34 : vector<256x4xf32>
    %cst_18 = arith.constant 0.000000e+00 : f32
    %36 = vector.broadcast %cst_18 : f32 to vector<256x4xf32>
    %37 = arith.maximumf %35, %36 : vector<256x4xf32>
    %cst_19 = arith.constant 0.000000e+00 : f32
    %38 = vector.broadcast %cst_19 : f32 to vector<256x8xf32>
    %c0_i32_20 = arith.constant 0 : i32
    %39 = arith.addi %1, %c0_i32_20 : i32
    %c0_21 = arith.constant 0 : index
    %40 = arith.index_cast %39 : i32 to index
    %c0_22 = arith.constant 0 : index
    %c0_23 = arith.constant 0 : index
    %41 = vector.load %arg3[%c0_21, %40, %c0_22, %c0_23] : memref<1x18x18x4xf32, #tpu.memory_space<vmem>>, vector<1x16x18x4xf32>
    %42 = vector.shape_cast %41 : vector<1x16x18x4xf32> to vector<16x18x4xf32>
    %43 = vector.extract_strided_slice %42 {offsets = [0, 0, 0], sizes = [16, 16, 4], strides = [1, 1, 1]} : vector<16x18x4xf32> to vector<16x16x4xf32>
    %44 = vector.extract_strided_slice %42 {offsets = [0, 1, 0], sizes = [16, 16, 4], strides = [1, 1, 1]} : vector<16x18x4xf32> to vector<16x16x4xf32>
    %45 = vector.extract_strided_slice %42 {offsets = [0, 2, 0], sizes = [16, 16, 4], strides = [1, 1, 1]} : vector<16x18x4xf32> to vector<16x16x4xf32>
    %46 = tpu.concatenate %43, %44, %45 in 2 : vector<16x16x4xf32>, vector<16x16x4xf32>, vector<16x16x4xf32> -> vector<16x16x12xf32>
    %47 = vector.shape_cast %46 : vector<16x16x12xf32> to vector<256x12xf32>
    %c0_24 = arith.constant 0 : index
    %c0_25 = arith.constant 0 : index
    %c0_26 = arith.constant 0 : index
    %48 = vector.load %arg7[%c0_24, %c0_25, %c0_26] : memref<3x12x8xf32, #tpu.memory_space<vmem>>, vector<1x12x8xf32>
    %49 = vector.shape_cast %48 : vector<1x12x8xf32> to vector<12x8xf32>
    %cst_27 = arith.constant dense<0.000000e+00> : vector<256x8xf32>
    %50 = tpu.matmul %47, %49, %cst_27 {dimension_numbers = #tpu.dot_dimension_numbers<[1], [0], [0], [1], [0, 0, 1, 1], [], []>} : vector<256x12xf32>, vector<12x8xf32>, vector<256x8xf32> -> vector<256x8xf32>
    %51 = arith.addf %38, %50 : vector<256x8xf32>
    %c1_i32_28 = arith.constant 1 : i32
    %52 = arith.addi %1, %c1_i32_28 : i32
    %c0_29 = arith.constant 0 : index
    %53 = arith.index_cast %52 : i32 to index
    %c0_30 = arith.constant 0 : index
    %c0_31 = arith.constant 0 : index
    %54 = vector.load %arg3[%c0_29, %53, %c0_30, %c0_31] : memref<1x18x18x4xf32, #tpu.memory_space<vmem>>, vector<1x16x18x4xf32>
    %55 = vector.shape_cast %54 : vector<1x16x18x4xf32> to vector<16x18x4xf32>
    %56 = vector.extract_strided_slice %55 {offsets = [0, 0, 0], sizes = [16, 16, 4], strides = [1, 1, 1]} : vector<16x18x4xf32> to vector<16x16x4xf32>
    %57 = vector.extract_strided_slice %55 {offsets = [0, 1, 0], sizes = [16, 16, 4], strides = [1, 1, 1]} : vector<16x18x4xf32> to vector<16x16x4xf32>
    %58 = vector.extract_strided_slice %55 {offsets = [0, 2, 0], sizes = [16, 16, 4], strides = [1, 1, 1]} : vector<16x18x4xf32> to vector<16x16x4xf32>
    %59 = tpu.concatenate %56, %57, %58 in 2 : vector<16x16x4xf32>, vector<16x16x4xf32>, vector<16x16x4xf32> -> vector<16x16x12xf32>
    %60 = vector.shape_cast %59 : vector<16x16x12xf32> to vector<256x12xf32>
    %c1 = arith.constant 1 : index
    %c0_32 = arith.constant 0 : index
    %c0_33 = arith.constant 0 : index
    %61 = vector.load %arg7[%c1, %c0_32, %c0_33] : memref<3x12x8xf32, #tpu.memory_space<vmem>>, vector<1x12x8xf32>
    %62 = vector.shape_cast %61 : vector<1x12x8xf32> to vector<12x8xf32>
    %cst_34 = arith.constant dense<0.000000e+00> : vector<256x8xf32>
    %63 = tpu.matmul %60, %62, %cst_34 {dimension_numbers = #tpu.dot_dimension_numbers<[1], [0], [0], [1], [0, 0, 1, 1], [], []>} : vector<256x12xf32>, vector<12x8xf32>, vector<256x8xf32> -> vector<256x8xf32>
    %64 = arith.addf %51, %63 : vector<256x8xf32>
    %c2_i32_35 = arith.constant 2 : i32
    %65 = arith.addi %1, %c2_i32_35 : i32
    %c0_36 = arith.constant 0 : index
    %66 = arith.index_cast %65 : i32 to index
    %c0_37 = arith.constant 0 : index
    %c0_38 = arith.constant 0 : index
    %67 = vector.load %arg3[%c0_36, %66, %c0_37, %c0_38] : memref<1x18x18x4xf32, #tpu.memory_space<vmem>>, vector<1x16x18x4xf32>
    %68 = vector.shape_cast %67 : vector<1x16x18x4xf32> to vector<16x18x4xf32>
    %69 = vector.extract_strided_slice %68 {offsets = [0, 0, 0], sizes = [16, 16, 4], strides = [1, 1, 1]} : vector<16x18x4xf32> to vector<16x16x4xf32>
    %70 = vector.extract_strided_slice %68 {offsets = [0, 1, 0], sizes = [16, 16, 4], strides = [1, 1, 1]} : vector<16x18x4xf32> to vector<16x16x4xf32>
    %71 = vector.extract_strided_slice %68 {offsets = [0, 2, 0], sizes = [16, 16, 4], strides = [1, 1, 1]} : vector<16x18x4xf32> to vector<16x16x4xf32>
    %72 = tpu.concatenate %69, %70, %71 in 2 : vector<16x16x4xf32>, vector<16x16x4xf32>, vector<16x16x4xf32> -> vector<16x16x12xf32>
    %73 = vector.shape_cast %72 : vector<16x16x12xf32> to vector<256x12xf32>
    %c2 = arith.constant 2 : index
    %c0_39 = arith.constant 0 : index
    %c0_40 = arith.constant 0 : index
    %74 = vector.load %arg7[%c2, %c0_39, %c0_40] : memref<3x12x8xf32, #tpu.memory_space<vmem>>, vector<1x12x8xf32>
    %75 = vector.shape_cast %74 : vector<1x12x8xf32> to vector<12x8xf32>
    %cst_41 = arith.constant dense<0.000000e+00> : vector<256x8xf32>
    %76 = tpu.matmul %73, %75, %cst_41 {dimension_numbers = #tpu.dot_dimension_numbers<[1], [0], [0], [1], [0, 0, 1, 1], [], []>} : vector<256x12xf32>, vector<12x8xf32>, vector<256x8xf32> -> vector<256x8xf32>
    %77 = arith.addf %64, %76 : vector<256x8xf32>
    %c0_42 = arith.constant 0 : index
    %c0_43 = arith.constant 0 : index
    %78 = vector.load %arg8[%c0_42, %c0_43] : memref<1x8xf32, #tpu.memory_space<vmem>>, vector<1x8xf32>
    %79 = vector.broadcast %78 : vector<1x8xf32> to vector<256x8xf32>
    %80 = arith.addf %77, %79 : vector<256x8xf32>
    %cst_44 = arith.constant 0.000000e+00 : f32
    %81 = vector.broadcast %cst_44 : f32 to vector<256x8xf32>
    %82 = arith.maximumf %80, %81 : vector<256x8xf32>
    %cst_45 = arith.constant 0.000000e+00 : f32
    %83 = vector.broadcast %cst_45 : f32 to vector<256x4xf32>
    %c0_i32_46 = arith.constant 0 : i32
    %84 = arith.addi %1, %c0_i32_46 : i32
    %c0_47 = arith.constant 0 : index
    %85 = arith.index_cast %84 : i32 to index
    %c0_48 = arith.constant 0 : index
    %c0_49 = arith.constant 0 : index
    %86 = vector.load %arg4[%c0_47, %85, %c0_48, %c0_49] : memref<1x20x20x2xf32, #tpu.memory_space<vmem>>, vector<1x16x20x2xf32>
    %87 = vector.shape_cast %86 : vector<1x16x20x2xf32> to vector<16x20x2xf32>
    %88 = vector.extract_strided_slice %87 {offsets = [0, 0, 0], sizes = [16, 16, 2], strides = [1, 1, 1]} : vector<16x20x2xf32> to vector<16x16x2xf32>
    %89 = vector.extract_strided_slice %87 {offsets = [0, 1, 0], sizes = [16, 16, 2], strides = [1, 1, 1]} : vector<16x20x2xf32> to vector<16x16x2xf32>
    %90 = vector.extract_strided_slice %87 {offsets = [0, 2, 0], sizes = [16, 16, 2], strides = [1, 1, 1]} : vector<16x20x2xf32> to vector<16x16x2xf32>
    %91 = vector.extract_strided_slice %87 {offsets = [0, 3, 0], sizes = [16, 16, 2], strides = [1, 1, 1]} : vector<16x20x2xf32> to vector<16x16x2xf32>
    %92 = vector.extract_strided_slice %87 {offsets = [0, 4, 0], sizes = [16, 16, 2], strides = [1, 1, 1]} : vector<16x20x2xf32> to vector<16x16x2xf32>
    %93 = tpu.concatenate %88, %89, %90, %91, %92 in 2 : vector<16x16x2xf32>, vector<16x16x2xf32>, vector<16x16x2xf32>, vector<16x16x2xf32>, vector<16x16x2xf32> -> vector<16x16x10xf32>
    %94 = vector.shape_cast %93 : vector<16x16x10xf32> to vector<256x10xf32>
    %c0_50 = arith.constant 0 : index
    %c0_51 = arith.constant 0 : index
    %c0_52 = arith.constant 0 : index
    %95 = vector.load %arg9[%c0_50, %c0_51, %c0_52] : memref<5x10x4xf32, #tpu.memory_space<vmem>>, vector<1x10x4xf32>
    %96 = vector.shape_cast %95 : vector<1x10x4xf32> to vector<10x4xf32>
    %cst_53 = arith.constant dense<0.000000e+00> : vector<256x4xf32>
    %97 = tpu.matmul %94, %96, %cst_53 {dimension_numbers = #tpu.dot_dimension_numbers<[1], [0], [0], [1], [0, 0, 1, 1], [], []>} : vector<256x10xf32>, vector<10x4xf32>, vector<256x4xf32> -> vector<256x4xf32>
    %98 = arith.addf %83, %97 : vector<256x4xf32>
    %c1_i32_54 = arith.constant 1 : i32
    %99 = arith.addi %1, %c1_i32_54 : i32
    %c0_55 = arith.constant 0 : index
    %100 = arith.index_cast %99 : i32 to index
    %c0_56 = arith.constant 0 : index
    %c0_57 = arith.constant 0 : index
    %101 = vector.load %arg4[%c0_55, %100, %c0_56, %c0_57] : memref<1x20x20x2xf32, #tpu.memory_space<vmem>>, vector<1x16x20x2xf32>
    %102 = vector.shape_cast %101 : vector<1x16x20x2xf32> to vector<16x20x2xf32>
    %103 = vector.extract_strided_slice %102 {offsets = [0, 0, 0], sizes = [16, 16, 2], strides = [1, 1, 1]} : vector<16x20x2xf32> to vector<16x16x2xf32>
    %104 = vector.extract_strided_slice %102 {offsets = [0, 1, 0], sizes = [16, 16, 2], strides = [1, 1, 1]} : vector<16x20x2xf32> to vector<16x16x2xf32>
    %105 = vector.extract_strided_slice %102 {offsets = [0, 2, 0], sizes = [16, 16, 2], strides = [1, 1, 1]} : vector<16x20x2xf32> to vector<16x16x2xf32>
    %106 = vector.extract_strided_slice %102 {offsets = [0, 3, 0], sizes = [16, 16, 2], strides = [1, 1, 1]} : vector<16x20x2xf32> to vector<16x16x2xf32>
    %107 = vector.extract_strided_slice %102 {offsets = [0, 4, 0], sizes = [16, 16, 2], strides = [1, 1, 1]} : vector<16x20x2xf32> to vector<16x16x2xf32>
    %108 = tpu.concatenate %103, %104, %105, %106, %107 in 2 : vector<16x16x2xf32>, vector<16x16x2xf32>, vector<16x16x2xf32>, vector<16x16x2xf32>, vector<16x16x2xf32> -> vector<16x16x10xf32>
    %109 = vector.shape_cast %108 : vector<16x16x10xf32> to vector<256x10xf32>
    %c1_58 = arith.constant 1 : index
    %c0_59 = arith.constant 0 : index
    %c0_60 = arith.constant 0 : index
    %110 = vector.load %arg9[%c1_58, %c0_59, %c0_60] : memref<5x10x4xf32, #tpu.memory_space<vmem>>, vector<1x10x4xf32>
    %111 = vector.shape_cast %110 : vector<1x10x4xf32> to vector<10x4xf32>
    %cst_61 = arith.constant dense<0.000000e+00> : vector<256x4xf32>
    %112 = tpu.matmul %109, %111, %cst_61 {dimension_numbers = #tpu.dot_dimension_numbers<[1], [0], [0], [1], [0, 0, 1, 1], [], []>} : vector<256x10xf32>, vector<10x4xf32>, vector<256x4xf32> -> vector<256x4xf32>
    %113 = arith.addf %98, %112 : vector<256x4xf32>
    %c2_i32_62 = arith.constant 2 : i32
    %114 = arith.addi %1, %c2_i32_62 : i32
    %c0_63 = arith.constant 0 : index
    %115 = arith.index_cast %114 : i32 to index
    %c0_64 = arith.constant 0 : index
    %c0_65 = arith.constant 0 : index
    %116 = vector.load %arg4[%c0_63, %115, %c0_64, %c0_65] : memref<1x20x20x2xf32, #tpu.memory_space<vmem>>, vector<1x16x20x2xf32>
    %117 = vector.shape_cast %116 : vector<1x16x20x2xf32> to vector<16x20x2xf32>
    %118 = vector.extract_strided_slice %117 {offsets = [0, 0, 0], sizes = [16, 16, 2], strides = [1, 1, 1]} : vector<16x20x2xf32> to vector<16x16x2xf32>
    %119 = vector.extract_strided_slice %117 {offsets = [0, 1, 0], sizes = [16, 16, 2], strides = [1, 1, 1]} : vector<16x20x2xf32> to vector<16x16x2xf32>
    %120 = vector.extract_strided_slice %117 {offsets = [0, 2, 0], sizes = [16, 16, 2], strides = [1, 1, 1]} : vector<16x20x2xf32> to vector<16x16x2xf32>
    %121 = vector.extract_strided_slice %117 {offsets = [0, 3, 0], sizes = [16, 16, 2], strides = [1, 1, 1]} : vector<16x20x2xf32> to vector<16x16x2xf32>
    %122 = vector.extract_strided_slice %117 {offsets = [0, 4, 0], sizes = [16, 16, 2], strides = [1, 1, 1]} : vector<16x20x2xf32> to vector<16x16x2xf32>
    %123 = tpu.concatenate %118, %119, %120, %121, %122 in 2 : vector<16x16x2xf32>, vector<16x16x2xf32>, vector<16x16x2xf32>, vector<16x16x2xf32>, vector<16x16x2xf32> -> vector<16x16x10xf32>
    %124 = vector.shape_cast %123 : vector<16x16x10xf32> to vector<256x10xf32>
    %c2_66 = arith.constant 2 : index
    %c0_67 = arith.constant 0 : index
    %c0_68 = arith.constant 0 : index
    %125 = vector.load %arg9[%c2_66, %c0_67, %c0_68] : memref<5x10x4xf32, #tpu.memory_space<vmem>>, vector<1x10x4xf32>
    %126 = vector.shape_cast %125 : vector<1x10x4xf32> to vector<10x4xf32>
    %cst_69 = arith.constant dense<0.000000e+00> : vector<256x4xf32>
    %127 = tpu.matmul %124, %126, %cst_69 {dimension_numbers = #tpu.dot_dimension_numbers<[1], [0], [0], [1], [0, 0, 1, 1], [], []>} : vector<256x10xf32>, vector<10x4xf32>, vector<256x4xf32> -> vector<256x4xf32>
    %128 = arith.addf %113, %127 : vector<256x4xf32>
    %c3_i32 = arith.constant 3 : i32
    %129 = arith.addi %1, %c3_i32 : i32
    %c0_70 = arith.constant 0 : index
    %130 = arith.index_cast %129 : i32 to index
    %c0_71 = arith.constant 0 : index
    %c0_72 = arith.constant 0 : index
    %131 = vector.load %arg4[%c0_70, %130, %c0_71, %c0_72] : memref<1x20x20x2xf32, #tpu.memory_space<vmem>>, vector<1x16x20x2xf32>
    %132 = vector.shape_cast %131 : vector<1x16x20x2xf32> to vector<16x20x2xf32>
    %133 = vector.extract_strided_slice %132 {offsets = [0, 0, 0], sizes = [16, 16, 2], strides = [1, 1, 1]} : vector<16x20x2xf32> to vector<16x16x2xf32>
    %134 = vector.extract_strided_slice %132 {offsets = [0, 1, 0], sizes = [16, 16, 2], strides = [1, 1, 1]} : vector<16x20x2xf32> to vector<16x16x2xf32>
    %135 = vector.extract_strided_slice %132 {offsets = [0, 2, 0], sizes = [16, 16, 2], strides = [1, 1, 1]} : vector<16x20x2xf32> to vector<16x16x2xf32>
    %136 = vector.extract_strided_slice %132 {offsets = [0, 3, 0], sizes = [16, 16, 2], strides = [1, 1, 1]} : vector<16x20x2xf32> to vector<16x16x2xf32>
    %137 = vector.extract_strided_slice %132 {offsets = [0, 4, 0], sizes = [16, 16, 2], strides = [1, 1, 1]} : vector<16x20x2xf32> to vector<16x16x2xf32>
    %138 = tpu.concatenate %133, %134, %135, %136, %137 in 2 : vector<16x16x2xf32>, vector<16x16x2xf32>, vector<16x16x2xf32>, vector<16x16x2xf32>, vector<16x16x2xf32> -> vector<16x16x10xf32>
    %139 = vector.shape_cast %138 : vector<16x16x10xf32> to vector<256x10xf32>
    %c3 = arith.constant 3 : index
    %c0_73 = arith.constant 0 : index
    %c0_74 = arith.constant 0 : index
    %140 = vector.load %arg9[%c3, %c0_73, %c0_74] : memref<5x10x4xf32, #tpu.memory_space<vmem>>, vector<1x10x4xf32>
    %141 = vector.shape_cast %140 : vector<1x10x4xf32> to vector<10x4xf32>
    %cst_75 = arith.constant dense<0.000000e+00> : vector<256x4xf32>
    %142 = tpu.matmul %139, %141, %cst_75 {dimension_numbers = #tpu.dot_dimension_numbers<[1], [0], [0], [1], [0, 0, 1, 1], [], []>} : vector<256x10xf32>, vector<10x4xf32>, vector<256x4xf32> -> vector<256x4xf32>
    %143 = arith.addf %128, %142 : vector<256x4xf32>
    %c4_i32 = arith.constant 4 : i32
    %144 = arith.addi %1, %c4_i32 : i32
    %c0_76 = arith.constant 0 : index
    %145 = arith.index_cast %144 : i32 to index
    %c0_77 = arith.constant 0 : index
    %c0_78 = arith.constant 0 : index
    %146 = vector.load %arg4[%c0_76, %145, %c0_77, %c0_78] : memref<1x20x20x2xf32, #tpu.memory_space<vmem>>, vector<1x16x20x2xf32>
    %147 = vector.shape_cast %146 : vector<1x16x20x2xf32> to vector<16x20x2xf32>
    %148 = vector.extract_strided_slice %147 {offsets = [0, 0, 0], sizes = [16, 16, 2], strides = [1, 1, 1]} : vector<16x20x2xf32> to vector<16x16x2xf32>
    %149 = vector.extract_strided_slice %147 {offsets = [0, 1, 0], sizes = [16, 16, 2], strides = [1, 1, 1]} : vector<16x20x2xf32> to vector<16x16x2xf32>
    %150 = vector.extract_strided_slice %147 {offsets = [0, 2, 0], sizes = [16, 16, 2], strides = [1, 1, 1]} : vector<16x20x2xf32> to vector<16x16x2xf32>
    %151 = vector.extract_strided_slice %147 {offsets = [0, 3, 0], sizes = [16, 16, 2], strides = [1, 1, 1]} : vector<16x20x2xf32> to vector<16x16x2xf32>
    %152 = vector.extract_strided_slice %147 {offsets = [0, 4, 0], sizes = [16, 16, 2], strides = [1, 1, 1]} : vector<16x20x2xf32> to vector<16x16x2xf32>
    %153 = tpu.concatenate %148, %149, %150, %151, %152 in 2 : vector<16x16x2xf32>, vector<16x16x2xf32>, vector<16x16x2xf32>, vector<16x16x2xf32>, vector<16x16x2xf32> -> vector<16x16x10xf32>
    %154 = vector.shape_cast %153 : vector<16x16x10xf32> to vector<256x10xf32>
    %c4 = arith.constant 4 : index
    %c0_79 = arith.constant 0 : index
    %c0_80 = arith.constant 0 : index
    %155 = vector.load %arg9[%c4, %c0_79, %c0_80] : memref<5x10x4xf32, #tpu.memory_space<vmem>>, vector<1x10x4xf32>
    %156 = vector.shape_cast %155 : vector<1x10x4xf32> to vector<10x4xf32>
    %cst_81 = arith.constant dense<0.000000e+00> : vector<256x4xf32>
    %157 = tpu.matmul %154, %156, %cst_81 {dimension_numbers = #tpu.dot_dimension_numbers<[1], [0], [0], [1], [0, 0, 1, 1], [], []>} : vector<256x10xf32>, vector<10x4xf32>, vector<256x4xf32> -> vector<256x4xf32>
    %158 = arith.addf %143, %157 : vector<256x4xf32>
    %c0_82 = arith.constant 0 : index
    %c0_83 = arith.constant 0 : index
    %159 = vector.load %arg10[%c0_82, %c0_83] : memref<1x4xf32, #tpu.memory_space<vmem>>, vector<1x4xf32>
    %160 = vector.broadcast %159 : vector<1x4xf32> to vector<256x4xf32>
    %161 = arith.addf %158, %160 : vector<256x4xf32>
    %cst_84 = arith.constant 0.000000e+00 : f32
    %162 = vector.broadcast %cst_84 : f32 to vector<256x4xf32>
    %163 = arith.maximumf %161, %162 : vector<256x4xf32>
    %164 = tpu.concatenate %22, %82, %163, %37 in 1 : vector<256x4xf32>, vector<256x8xf32>, vector<256x4xf32>, vector<256x4xf32> -> vector<256x20xf32>
    %165 = vector.shape_cast %164 : vector<256x20xf32> to vector<1x16x16x20xf32>
    %c0_85 = arith.constant 0 : index
    %c0_86 = arith.constant 0 : index
    %c0_87 = arith.constant 0 : index
    %c0_88 = arith.constant 0 : index
    %166 = vector.load %arg13[%c0_85, %c0_86, %c0_87, %c0_88] : memref<1x16x16x20xf32, #tpu.memory_space<vmem>>, vector<1x16x16x20xf32>
    tpu.vector_store %arg13[%c0_85, %c0_86, %c0_87, %c0_88], %165 {strides = array<i32>} : memref<1x16x16x20xf32, #tpu.memory_space<vmem>>, vector<1x16x16x20xf32>,
    return
  }
  func.func @transform_0(%arg0: i32, %arg1: i32) -> (i32, i32, i32, i32) {
    %c0_i32 = arith.constant 0 : i32
    %c0_i32_0 = arith.constant 0 : i32
    %c0_i32_1 = arith.constant 0 : i32
    %c0_i32_2 = arith.constant 0 : i32
    return %arg0, %c0_i32, %c0_i32_0, %c0_i32_1 : i32, i32, i32, i32
  }
  func.func @transform_1(%arg0: i32, %arg1: i32) -> (i32, i32, i32, i32) {
    %c0_i32 = arith.constant 0 : i32
    %c0_i32_0 = arith.constant 0 : i32
    %c0_i32_1 = arith.constant 0 : i32
    %c0_i32_2 = arith.constant 0 : i32
    return %arg0, %c0_i32, %c0_i32_0, %c0_i32_1 : i32, i32, i32, i32
  }
  func.func @transform_2(%arg0: i32, %arg1: i32) -> (i32, i32, i32, i32) {
    %c0_i32 = arith.constant 0 : i32
    %c0_i32_0 = arith.constant 0 : i32
    %c0_i32_1 = arith.constant 0 : i32
    %c0_i32_2 = arith.constant 0 : i32
    return %arg0, %c0_i32, %c0_i32_0, %c0_i32_1 : i32, i32, i32, i32
  }
  func.func @transform_3(%arg0: i32, %arg1: i32) -> (i32, i32) {
    %c0_i32 = arith.constant 0 : i32
    %c0_i32_0 = arith.constant 0 : i32
    %c0_i32_1 = arith.constant 0 : i32
    return %c0_i32, %c0_i32_0 : i32, i32
  }
  func.func @transform_4(%arg0: i32, %arg1: i32) -> (i32, i32) {
    %c0_i32 = arith.constant 0 : i32
    %c0_i32_0 = arith.constant 0 : i32
    %c0_i32_1 = arith.constant 0 : i32
    return %c0_i32, %c0_i32_0 : i32, i32
  }
  func.func @transform_5(%arg0: i32, %arg1: i32) -> (i32, i32, i32) {
    %c0_i32 = arith.constant 0 : i32
    %c0_i32_0 = arith.constant 0 : i32
    %c0_i32_1 = arith.constant 0 : i32
    %c0_i32_2 = arith.constant 0 : i32
    return %c0_i32, %c0_i32_0, %c0_i32_1 : i32, i32, i32
  }
  func.func @transform_6(%arg0: i32, %arg1: i32) -> (i32, i32) {
    %c0_i32 = arith.constant 0 : i32
    %c0_i32_0 = arith.constant 0 : i32
    %c0_i32_1 = arith.constant 0 : i32
    return %c0_i32, %c0_i32_0 : i32, i32
  }
  func.func @transform_7(%arg0: i32, %arg1: i32) -> (i32, i32, i32) {
    %c0_i32 = arith.constant 0 : i32
    %c0_i32_0 = arith.constant 0 : i32
    %c0_i32_1 = arith.constant 0 : i32
    %c0_i32_2 = arith.constant 0 : i32
    return %c0_i32, %c0_i32_0, %c0_i32_1 : i32, i32, i32
  }
  func.func @transform_8(%arg0: i32, %arg1: i32) -> (i32, i32) {
    %c0_i32 = arith.constant 0 : i32
    %c0_i32_0 = arith.constant 0 : i32
    %c0_i32_1 = arith.constant 0 : i32
    return %c0_i32, %c0_i32_0 : i32, i32
  }
  func.func @transform_9(%arg0: i32, %arg1: i32) -> (i32, i32) {
    %c0_i32 = arith.constant 0 : i32
    %c0_i32_0 = arith.constant 0 : i32
    %c0_i32_1 = arith.constant 0 : i32
    return %c0_i32, %c0_i32_0 : i32, i32
  }
  func.func @transform_10(%arg0: i32, %arg1: i32) -> (i32, i32) {
    %c0_i32 = arith.constant 0 : i32
    %c0_i32_0 = arith.constant 0 : i32
    %c0_i32_1 = arith.constant 0 : i32
    return %c0_i32, %c0_i32_0 : i32, i32
  }
  func.func @transform_11(%arg0: i32, %arg1: i32) -> (i32, i32, i32, i32) {
    %c0_i32 = arith.constant 0 : i32
    %c0_i32_0 = arith.constant 0 : i32
    %c0_i32_1 = arith.constant 0 : i32
    return %arg0, %arg1, %c0_i32, %c0_i32_0 : i32, i32, i32, i32
  }
}

</mosaic_0001>

<llo_original>
// kernel: inception_forward.2
$region0: #{inception_forward.2}
  #allocation0 [shape = 'u32[]', space=smem, size = 0x4, offset = 0x4, fixed_abs, tag = 'smem constant byte address 0x4 - core index']
  #allocation1 [shape = 'u32[144,128]{1,0:T(1,128)}', space=vmem, size = 0x12000, scoped, tag = 'internal scratch']
  %s0 = inlined_call_operand.vmem [shape: f32[512,4], index: 0, kind: input, shape index: {}]
  %s1 = inlined_call_operand.vmem [shape: f32[4,6], index: 1, kind: input, shape index: {}]
  %s2 = inlined_call_operand.vmem [shape: f32[1,6], index: 2, kind: input, shape index: {}]
  %s3 = inlined_call_operand.vmem [shape: f32[512,6], index: 3, kind: output, shape index: {}]
  %s4 = sld [smem:[#allocation0]]
  $region45: #{inception_forward.2} parent=0
    _
  %s6 = ssub.s32 1, %s4
  %s7 = scalar_select 0, %s6, %s4
  loop: start=0, step=1, limit=4
  $region2: #{inception_forward.2} parent=0 // loop_pre_header
    _
  $region3: #{inception_forward.2} parent=0 // loop_header
    %s9 = sphi 0, %s13
    %p10 = scmp.ge.s32.totalorder %s9, 4
    %s19 = sphi 0, %s21
    %s22 = sphi 0, %s19
    %s23 = sphi 0, %s22
    %s39 = sphi 0, %s23
    %s43 = sphi 0, %s43
    %s45 = sphi 0, %s43
    %s46 = sphi 0, %s45
    %s60 = sphi 0, %s46
    %s64 = sphi 0, %s64
    %s66 = sphi 0, %s64
    %s67 = sphi 0, %s66
    %s81 = sphi 0, %s67
    %s87 = sphi 0, %s89
    %s90 = sphi 0, %s87
    %s91 = sphi 0, %s90
    %s107 = sphi 0, %s91
  $region4: #{inception_forward.2} parent=0 // loop_header_branch
    %12 = sbr.rel (%p10) target = $region8
  $region5: #{inception_forward.2} parent=0 // loop_body
    %s14 = ssub.s32 %s9, 1
    %s15 = ssub.s32 %s9, 2
    %s16 = sadd.s32 %s9, 1
    %s17 = ssub.s32 %s9, %s16
    %p18 = scmp.eq.s32.totalorder %s17, 0
    %s20 = sadd.s32 %s19, 1
    %s21 = scalar_select %p18, %s19, %s20
    %p24 = pneg %p18
    %p25 = scmp.eq.s32.totalorder %s9, 1
    %p26 = por %p24, %p25
    %p27 = scmp.ne.s32.totalorder %s19, %s22
    %p28 = scmp.eq.s32.totalorder %s9, 0
    %p29 = por %p27, %p28
    %p30 = scmp.ne.s32.totalorder %s19, %s22
    %p31 = scmp.eq.s32.totalorder %s14, 1
    %p32 = por %p30, %p31
    %p33 = scmp.ne.s32.totalorder %s22, %s23
    %p34 = scmp.eq.s32.totalorder %s14, 0
    %p35 = por %p33, %p34
    %p36 = scmp.ne.s32.totalorder %s22, %s23
    %p37 = scmp.eq.s32.totalorder %s15, 1
    %p38 = por %p36, %p37
    %p40 = scmp.ne.s32.totalorder %s23, %s39
    %p41 = scmp.eq.s32.totalorder %s15, 0
    %p42 = por %p40, %p41
    %s44 = sadd.s32 %s43, 1
    %p47 = scmp.eq.s32.totalorder %s9, 1
    %p48 = scmp.ne.s32.totalorder %s43, %s45
    %p49 = scmp.eq.s32.totalorder %s9, 0
    %p50 = por %p48, %p49
    %p51 = scmp.ne.s32.totalorder %s43, %s45
    %p52 = scmp.eq.s32.totalorder %s14, 1
    %p53 = por %p51, %p52
    %p54 = scmp.ne.s32.totalorder %s45, %s46
    %p55 = scmp.eq.s32.totalorder %s14, 0
    %p56 = por %p54, %p55
    %p57 = scmp.ne.s32.totalorder %s45, %s46
    %p58 = scmp.eq.s32.totalorder %s15, 1
    %p59 = por %p57, %p58
    %p61 = scmp.ne.s32.totalorder %s46, %s60
    %p62 = scmp.eq.s32.totalorder %s15, 0
    %p63 = por %p61, %p62
    %s65 = sadd.s32 %s64, 1
    %p68 = scmp.eq.s32.totalorder %s9, 1
    %p69 = scmp.ne.s32.totalorder %s64, %s66
    %p70 = scmp.eq.s32.totalorder %s9, 0
    %p71 = por %p69, %p70
    %p72 = scmp.ne.s32.totalorder %s64, %s66
    %p73 = scmp.eq.s32.totalorder %s14, 1
    %p74 = por %p72, %p73
    %p75 = scmp.ne.s32.totalorder %s66, %s67
    %p76 = scmp.eq.s32.totalorder %s14, 0
    %p77 = por %p75, %p76
    %p78 = scmp.ne.s32.totalorder %s66, %s67
    %p79 = scmp.eq.s32.totalorder %s15, 1
    %p80 = por %p78, %p79
    %p82 = scmp.ne.s32.totalorder %s67, %s81
    %p83 = scmp.eq.s32.totalorder %s15, 0
    %p84 = por %p82, %p83
    %s85 = ssub.s32 %s9, %s16
    %p86 = scmp.eq.s32.totalorder %s85, 0
    %s88 = sadd.s32 %s87, 1
    %s89 = scalar_select %p86, %s87, %s88
    %p92 = pneg %p86
    %p93 = scmp.eq.s32.totalorder %s9, 1
    %p94 = por %p92, %p93
    %p95 = scmp.ne.s32.totalorder %s87, %s90
    %p96 = scmp.eq.s32.totalorder %s9, 0
    %p97 = por %p95, %p96
    %p98 = scmp.ne.s32.totalorder %s87, %s90
    %p99 = scmp.eq.s32.totalorder %s14, 1
    %p100 = por %p98, %p99
    %p101 = scmp.ne.s32.totalorder %s90, %s91
    %p102 = scmp.eq.s32.totalorder %s14, 0
    %p103 = por %p101, %p102
    %p104 = scmp.ne.s32.totalorder %s90, %s91
    %p105 = scmp.eq.s32.totalorder %s15, 1
    %p106 = por %p104, %p105
    %p108 = scmp.ne.s32.totalorder %s91, %s107
    %p109 = scmp.eq.s32.totalorder %s15, 0
    %p110 = por %p108, %p109
    %p111 = scmp.le.s32.totalorder 1, %s9
    %p112 = scmp.lt.s32.totalorder %s9, 3
    %p113 = pnand %p111, %p112
    %p114 = pneg %p113
    // Predicated region
    $region9: #{inception_forward.2} parent=5 // pred_check
      _
    $region10: #{inception_forward.2} parent=5 // pred_check_branch
      %116 = sbr.rel (%p113) target = $region12
    $region11: #{inception_forward.2} parent=5 // pred_region
      %s117 = ssub.s32 %s9, 1
      // Predicated region
      $region13: #{inception_forward.2} parent=11 // pred_check
        %p118 = pneg %p56
      $region14: #{inception_forward.2} parent=11 // pred_check_branch
        %120 = sbr.rel (%p118) target = $region16
      $region15: #{inception_forward.2} parent=11 // pred_region
        _
      $region16: #{inception_forward.2} parent=11 // pred_fallthru
        _
      // Predicated region
      $region17: #{inception_forward.2} parent=11 // pred_check
        %p121 = pneg %p77
      $region18: #{inception_forward.2} parent=11 // pred_check_branch
        %123 = sbr.rel (%p121) target = $region20
      $region19: #{inception_forward.2} parent=11 // pred_region
        _
      $region20: #{inception_forward.2} parent=11 // pred_fallthru
        _
    $region12: #{inception_forward.2} parent=5 // pred_fallthru
      _
    %p124 = scmp.lt.s32.totalorder %s9, 2
    // Predicated region
    $region21: #{inception_forward.2} parent=5 // pred_check
      %p125 = pneg %p124
    $region22: #{inception_forward.2} parent=5 // pred_check_branch
      %127 = sbr.rel (%p125) target = $region24
    $region23: #{inception_forward.2} parent=5 // pred_region
      // Predicated region
      $region25: #{inception_forward.2} parent=23 // pred_check
        %p128 = pneg %p29
      $region26: #{inception_forward.2} parent=23 // pred_check_branch
        %130 = sbr.rel (%p128) target = $region28
      $region27: #{inception_forward.2} parent=23 // pred_region
        %s131 = smul.u32 32, %s9
        %p132 = scmp.lt.s32.totalorder %s131, 63
        %s133 = scalar_select %p132, %s131, 63
        %s134 = smul.addr %s133, 8
        %s135 = scalar_lea.vmem %s0, %s134
        %s136 = smul.u32 32, %s9
      $region28: #{inception_forward.2} parent=23 // pred_fallthru
        _
    $region24: #{inception_forward.2} parent=5 // pred_fallthru
      _
    %p137 = scmp.le.s32.totalorder 1, %s9
    %p138 = scmp.lt.s32.totalorder %s9, 3
    %p139 = pnand %p137, %p138
    %p140 = pneg %p139
    // Predicated region
    $region29: #{inception_forward.2} parent=5 // pred_check
      _
    $region30: #{inception_forward.2} parent=5 // pred_check_branch
      %142 = sbr.rel (%p139) target = $region32
    $region31: #{inception_forward.2} parent=5 // pred_region
      %s143 = ssub.s32 %s9, 1
      %s144 = smul.u32 32, %s14
      %p145 = scmp.lt.s32.totalorder %s144, 63
      %s146 = scalar_select %p145, %s144, 63
      %s147 = smul.addr %s146, 8
      %s148 = scalar_lea.vmem %s0, %s147
      %p149 = pneg %p35
      %p150 = pneg %p32
      %p151 = pneg %p56
      %p152 = pneg %p53
      %p153 = pneg %p77
      %p154 = pneg %p74
      %p155 = pneg %p103
      %p156 = pneg %p100
      %s157 = smul.u32 32, %s14
      %p158 = scmp.lt.s32.totalorder %s157, 63
      %s159 = scalar_select %p158, %s157, 63
      %s160 = smul.addr %s159, 8
      %s161 = scalar_lea.vmem %s3, %s160
      %s162 = smul.u32 32, %s14
      %p163 = scmp.lt.s32.totalorder %s162, 63
      %s164 = scalar_select %p163, %s162, 63
      %s165 = smul.addr %s164, 8
      %s166 = scalar_lea.vmem %s0, %s165
      %s167 = smul.u32 32, %s14
      %s168 = smul.u32 32, %s14
      %p169 = scmp.lt.s32.totalorder %s168, 63
      %s170 = scalar_select %p169, %s168, 63
      %s171 = smul.addr %s170, 8
      %s172 = scalar_lea.vmem %s3, %s171
      %s173 = smul.u32 32, %s14
      %v174 = vld [vmem:[%s166] sm:$0xff]
      %v175 = vld [vmem:[%s166 + $0x8] sm:$0xff]
      %v176 = vld [vmem:[%s166 + $0x10] sm:$0xff]
      %v177 = vld [vmem:[%s166 + $0x18] sm:$0xff]
      %v178 = vld [vmem:[%s166 + $0x20] sm:$0xff]
      %v179 = vld [vmem:[%s166 + $0x28] sm:$0xff]
      %v180 = vld [vmem:[%s166 + $0x30] sm:$0xff]
      %v181 = vld [vmem:[%s166 + $0x38] sm:$0xff]
      %v182 = vld [vmem:[%s166 + $0x40] sm:$0xff]
      %v183 = vld [vmem:[%s166 + $0x48] sm:$0xff]
      %v184 = vld [vmem:[%s166 + $0x50] sm:$0xff]
      %v185 = vld [vmem:[%s166 + $0x58] sm:$0xff]
      %v186 = vld [vmem:[%s166 + $0x60] sm:$0xff]
      %v187 = vld [vmem:[%s166 + $0x68] sm:$0xff]
      %v188 = vld [vmem:[%s166 + $0x70] sm:$0xff]
      %v189 = vld [vmem:[%s166 + $0x78] sm:$0xff]
      %v190 = vld [vmem:[%s166 + $0x80] sm:$0xff]
      %v191 = vld [vmem:[%s166 + $0x88] sm:$0xff]
      %v192 = vld [vmem:[%s166 + $0x90] sm:$0xff]
      %v193 = vld [vmem:[%s166 + $0x98] sm:$0xff]
      %v194 = vld [vmem:[%s166 + $0xa0] sm:$0xff]
      %v195 = vld [vmem:[%s166 + $0xa8] sm:$0xff]
      %v196 = vld [vmem:[%s166 + $0xb0] sm:$0xff]
      %v197 = vld [vmem:[%s166 + $0xb8] sm:$0xff]
      %v198 = vld [vmem:[%s166 + $0xc0] sm:$0xff]
      %v199 = vld [vmem:[%s166 + $0xc8] sm:$0xff]
      %v200 = vld [vmem:[%s166 + $0xd0] sm:$0xff]
      %v201 = vld [vmem:[%s166 + $0xd8] sm:$0xff]
      %v202 = vld [vmem:[%s166 + $0xe0] sm:$0xff]
      %v203 = vld [vmem:[%s166 + $0xe8] sm:$0xff]
      %v204 = vld [vmem:[%s166 + $0xf0] sm:$0xff]
      %v205 = vld [vmem:[%s166 + $0xf8] sm:$0xff]
      %v206 = vld [vmem:[%s1] sm:$0xf]
      %v207 = vld [vmem:[%s2] sm:$0x1]
      %v209 = vlaneseq
      %v210 = vshrl.u32 %v209, 7
      %v211 = vsub.s32 0, %v210
      %v212 = vrot.slane %v207, %v211
      %vm214 = vcmask 31744
      %v216 = vsel %vm214, %v174, 0
      %v219 = vsel %vm214, %v175, 0
      %v222 = vsel %vm214, %v176, 0
      %v225 = vsel %vm214, %v177, 0
      %v228 = vsel %vm214, %v178, 0
      %v231 = vsel %vm214, %v179, 0
      %v234 = vsel %vm214, %v180, 0
      %v237 = vsel %vm214, %v181, 0
      %v240 = vsel %vm214, %v182, 0
      %v243 = vsel %vm214, %v183, 0
      %v246 = vsel %vm214, %v184, 0
      %v249 = vsel %vm214, %v185, 0
      %v252 = vsel %vm214, %v186, 0
      %v255 = vsel %vm214, %v187, 0
      %v258 = vsel %vm214, %v188, 0
      %v261 = vsel %vm214, %v189, 0
      %v264 = vsel %vm214, %v190, 0
      %v267 = vsel %vm214, %v191, 0
      %v270 = vsel %vm214, %v192, 0
      %v273 = vsel %vm214, %v193, 0
      %v276 = vsel %vm214, %v194, 0
      %v279 = vsel %vm214, %v195, 0
      %v282 = vsel %vm214, %v196, 0
      %v285 = vsel %vm214, %v197, 0
      %v288 = vsel %vm214, %v198, 0
      %v291 = vsel %vm214, %v199, 0
      %v294 = vsel %vm214, %v200, 0
      %v297 = vsel %vm214, %v201, 0
      %v300 = vsel %vm214, %v202, 0
      %v303 = vsel %vm214, %v203, 0
      %v306 = vsel %vm214, %v204, 0
      %v309 = vsel %vm214, %v205, 0
      %vm311 = vcmask 1043456
      %v313 = vsel %vm311, %v206, 0
      %315 = vmatprep.subr.mxu0 0.0
      %316 = vmatpush1.msra.mxu0 %v313
      %317 = vmatprep.subr.mxu0 0.0
      %318 = vmatpush1.msra.mxu0 0.0
      %319 = vmatprep.subr.mxu0 0.0
      %320 = vmatpush1.msra.mxu0 0.0
      %321 = vmatprep.subr.mxu0 0.0
      %322 = vmatpush1.msra.mxu0 0.0
      %323 = vmatprep.subr.mxu0 0.0
      %324 = vmatpush1.msra.mxu0 0.0
      %325 = vmatprep.subr.mxu0 0.0
      %326 = vmatpush1.msra.mxu0 0.0
      %327 = vmatprep.subr.mxu0 0.0
      %328 = vmatpush1.msra.mxu0 0.0
      %329 = vmatprep.subr.mxu0 0.0
      %330 = vmatpush1.msra.mxu0 0.0
      %331 = vmatprep.subr.mxu0 0.0
      %332 = vmatpush1.msra.mxu0 0.0
      %333 = vmatprep.subr.mxu0 0.0
      %334 = vmatpush1.msra.mxu0 0.0
      %335 = vmatprep.subr.mxu0 0.0
      %336 = vmatpush1.msra.mxu0 0.0
      %337 = vmatprep.subr.mxu0 0.0
      %338 = vmatpush1.msra.mxu0 0.0
      %339 = vmatprep.subr.mxu0 0.0
      %340 = vmatpush1.msra.mxu0 0.0
      %341 = vmatprep.subr.mxu0 0.0
      %342 = vmatpush1.msra.mxu0 0.0
      %343 = vmatprep.subr.mxu0 0.0
      %344 = vmatpush1.msra.mxu0 0.0
      %345 = vmatprep.subr.mxu0 0.0
      %346 = vmatpush1.msra.mxu0 0.0
      %347 = vmatprep.subr.mxu0 0.0
      %348 = vmatpush1.msra.mxu0 0.0
      %349 = vmatprep.subr.mxu0 0.0
      %350 = vmatpush1.msra.mxu0 0.0
      %351 = vmatprep.subr.mxu0 0.0
      %352 = vmatpush1.msra.mxu0 0.0
      %353 = vmatprep.subr.mxu0 0.0
      %354 = vmatpush1.msra.mxu0 0.0
      %355 = vmatprep.subr.mxu0 0.0
      %356 = vmatpush1.msra.mxu0 0.0
      %357 = vmatprep.subr.mxu0 0.0
      %358 = vmatpush1.msra.mxu0 0.0
      %359 = vmatprep.subr.mxu0 0.0
      %360 = vmatpush1.msra.mxu0 0.0
      %361 = vmatprep.subr.mxu0 0.0
      %362 = vmatpush1.msra.mxu0 0.0
      %363 = vmatprep.subr.mxu0 0.0
      %364 = vmatpush1.msra.mxu0 0.0
      %365 = vmatprep.subr.mxu0 0.0
      %366 = vmatpush1.msra.mxu0 0.0
      %367 = vmatprep.subr.mxu0 0.0
      %368 = vmatpush1.msra.mxu0 0.0
      %369 = vmatprep.subr.mxu0 0.0
      %370 = vmatpush1.msra.mxu0 0.0
      %371 = vmatprep.subr.mxu0 0.0
      %372 = vmatpush1.msra.mxu0 0.0
      %373 = vmatprep.subr.mxu0 0.0
      %374 = vmatpush1.msra.mxu0 0.0
      %375 = vmatprep.subr.mxu0 0.0
      %376 = vmatpush1.msra.mxu0 0.0
      %377 = vmatprep.subr.mxu0 0.0
      %378 = vmatpush1.msra.mxu0 0.0
      %379 = vmatprep.mubr.f32.mxu0 0.0
      %380 = vmatmul.mubr.f32.gmra.mrb[0].mxu0 %v216
      %v381 = vpop.f32.mrb[0].mxu0
      %v382 = vadd.f32 %v212, %v381
      %v383 = vpop.f32.mrb[0].mxu0
      %384 = vmatprep.mubr.f32.mxu0 0.0
      %385 = vmatmul.mubr.f32.gmra.mrb[0].mxu0 %v219
      %v386 = vpop.f32.mrb[0].mxu0
      %v387 = vadd.f32 %v212, %v386
      %v388 = vpop.f32.mrb[0].mxu0
      %389 = vmatprep.mubr.f32.mxu0 0.0
      %390 = vmatmul.mubr.f32.gmra.mrb[0].mxu0 %v222
      %v391 = vpop.f32.mrb[0].mxu0
      %v392 = vadd.f32 %v212, %v391
      %v393 = vpop.f32.mrb[0].mxu0
      %394 = vmatprep.mubr.f32.mxu0 0.0
      %395 = vmatmul.mubr.f32.gmra.mrb[0].mxu0 %v225
      %v396 = vpop.f32.mrb[0].mxu0
      %v397 = vadd.f32 %v212, %v396
      %v398 = vpop.f32.mrb[0].mxu0
      %399 = vmatprep.mubr.f32.mxu0 0.0
      %400 = vmatmul.mubr.f32.gmra.mrb[0].mxu0 %v228
      %v401 = vpop.f32.mrb[0].mxu0
      %v402 = vadd.f32 %v212, %v401
      %v403 = vpop.f32.mrb[0].mxu0
      %404 = vmatprep.mubr.f32.mxu0 0.0
      %405 = vmatmul.mubr.f32.gmra.mrb[0].mxu0 %v231
      %v406 = vpop.f32.mrb[0].mxu0
      %v407 = vadd.f32 %v212, %v406
      %v408 = vpop.f32.mrb[0].mxu0
      %409 = vmatprep.mubr.f32.mxu0 0.0
      %410 = vmatmul.mubr.f32.gmra.mrb[0].mxu0 %v234
      %v411 = vpop.f32.mrb[0].mxu0
      %v412 = vadd.f32 %v212, %v411
      %v413 = vpop.f32.mrb[0].mxu0
      %414 = vmatprep.mubr.f32.mxu0 0.0
      %415 = vmatmul.mubr.f32.gmra.mrb[0].mxu0 %v237
      %v416 = vpop.f32.mrb[0].mxu0
      %v417 = vadd.f32 %v212, %v416
      %v418 = vpop.f32.mrb[0].mxu0
      %419 = vmatprep.mubr.f32.mxu0 0.0
      %420 = vmatmul.mubr.f32.gmra.mrb[0].mxu0 %v240
      %v421 = vpop.f32.mrb[0].mxu0
      %v422 = vadd.f32 %v212, %v421
      %v423 = vpop.f32.mrb[0].mxu0
      %424 = vmatprep.mubr.f32.mxu0 0.0
      %425 = vmatmul.mubr.f32.gmra.mrb[0].mxu0 %v243
      %v426 = vpop.f32.mrb[0].mxu0
      %v427 = vadd.f32 %v212, %v426
      %v428 = vpop.f32.mrb[0].mxu0
      %429 = vmatprep.mubr.f32.mxu0 0.0
      %430 = vmatmul.mubr.f32.gmra.mrb[0].mxu0 %v246
      %v431 = vpop.f32.mrb[0].mxu0
      %v432 = vadd.f32 %v212, %v431
      %v433 = vpop.f32.mrb[0].mxu0
      %434 = vmatprep.mubr.f32.mxu0 0.0
      %435 = vmatmul.mubr.f32.gmra.mrb[0].mxu0 %v249
      %v436 = vpop.f32.mrb[0].mxu0
      %v437 = vadd.f32 %v212, %v436
      %v438 = vpop.f32.mrb[0].mxu0
      %439 = vmatprep.mubr.f32.mxu0 0.0
      %440 = vmatmul.mubr.f32.gmra.mrb[0].mxu0 %v252
      %v441 = vpop.f32.mrb[0].mxu0
      %v442 = vadd.f32 %v212, %v441
      %v443 = vpop.f32.mrb[0].mxu0
      %444 = vmatprep.mubr.f32.mxu0 0.0
      %445 = vmatmul.mubr.f32.gmra.mrb[0].mxu0 %v255
      %v446 = vpop.f32.mrb[0].mxu0
      %v447 = vadd.f32 %v212, %v446
      %v448 = vpop.f32.mrb[0].mxu0
      %449 = vmatprep.mubr.f32.mxu0 0.0
      %450 = vmatmul.mubr.f32.gmra.mrb[0].mxu0 %v258
      %v451 = vpop.f32.mrb[0].mxu0
      %v452 = vadd.f32 %v212, %v451
      %v453 = vpop.f32.mrb[0].mxu0
      %454 = vmatprep.mubr.f32.mxu0 0.0
      %455 = vmatmul.mubr.f32.gmra.mrb[0].mxu0 %v261
      %v456 = vpop.f32.mrb[0].mxu0
      %v457 = vadd.f32 %v212, %v456
      %v458 = vpop.f32.mrb[0].mxu0
      %459 = vmatprep.mubr.f32.mxu0 0.0
      %460 = vmatmul.mubr.f32.gmra.mrb[0].mxu0 %v264
      %v461 = vpop.f32.mrb[0].mxu0
      %v462 = vadd.f32 %v212, %v461
      %v463 = vpop.f32.mrb[0].mxu0
      %464 = vmatprep.mubr.f32.mxu0 0.0
      %465 = vmatmul.mubr.f32.gmra.mrb[0].mxu0 %v267
      %v466 = vpop.f32.mrb[0].mxu0
      %v467 = vadd.f32 %v212, %v466
      %v468 = vpop.f32.mrb[0].mxu0
      %469 = vmatprep.mubr.f32.mxu0 0.0
      %470 = vmatmul.mubr.f32.gmra.mrb[0].mxu0 %v270
      %v471 = vpop.f32.mrb[0].mxu0
      %v472 = vadd.f32 %v212, %v471
      %v473 = vpop.f32.mrb[0].mxu0
      %474 = vmatprep.mubr.f32.mxu0 0.0
      %475 = vmatmul.mubr.f32.gmra.mrb[0].mxu0 %v273
      %v476 = vpop.f32.mrb[0].mxu0
      %v477 = vadd.f32 %v212, %v476
      %v478 = vpop.f32.mrb[0].mxu0
      %479 = vmatprep.mubr.f32.mxu0 0.0
      %480 = vmatmul.mubr.f32.gmra.mrb[0].mxu0 %v276
      %v481 = vpop.f32.mrb[0].mxu0
      %v482 = vadd.f32 %v212, %v481
      %v483 = vpop.f32.mrb[0].mxu0
      %484 = vmatprep.mubr.f32.mxu0 0.0
      %485 = vmatmul.mubr.f32.gmra.mrb[0].mxu0 %v279
      %v486 = vpop.f32.mrb[0].mxu0
      %v487 = vadd.f32 %v212, %v486
      %v488 = vpop.f32.mrb[0].mxu0
      %489 = vmatprep.mubr.f32.mxu0 0.0
      %490 = vmatmul.mubr.f32.gmra.mrb[0].mxu0 %v282
      %v491 = vpop.f32.mrb[0].mxu0
      %v492 = vadd.f32 %v212, %v491
      %v493 = vpop.f32.mrb[0].mxu0
      %494 = vmatprep.mubr.f32.mxu0 0.0
      %495 = vmatmul.mubr.f32.gmra.mrb[0].mxu0 %v285
      %v496 = vpop.f32.mrb[0].mxu0
      %v497 = vadd.f32 %v212, %v496
      %v498 = vpop.f32.mrb[0].mxu0
      %499 = vmatprep.mubr.f32.mxu0 0.0
      %500 = vmatmul.mubr.f32.gmra.mrb[0].mxu0 %v288
      %v501 = vpop.f32.mrb[0].mxu0
      %v502 = vadd.f32 %v212, %v501
      %v503 = vpop.f32.mrb[0].mxu0
      %504 = vmatprep.mubr.f32.mxu0 0.0
      %505 = vmatmul.mubr.f32.gmra.mrb[0].mxu0 %v291
      %v506 = vpop.f32.mrb[0].mxu0
      %v507 = vadd.f32 %v212, %v506
      %v508 = vpop.f32.mrb[0].mxu0
      %509 = vmatprep.mubr.f32.mxu0 0.0
      %510 = vmatmul.mubr.f32.gmra.mrb[0].mxu0 %v294
      %v511 = vpop.f32.mrb[0].mxu0
      %v512 = vadd.f32 %v212, %v511
      %v513 = vpop.f32.mrb[0].mxu0
      %514 = vmatprep.mubr.f32.mxu0 0.0
      %515 = vmatmul.mubr.f32.gmra.mrb[0].mxu0 %v297
      %v516 = vpop.f32.mrb[0].mxu0
      %v517 = vadd.f32 %v212, %v516
      %v518 = vpop.f32.mrb[0].mxu0
      %519 = vmatprep.mubr.f32.mxu0 0.0
      %520 = vmatmul.mubr.f32.gmra.mrb[0].mxu0 %v300
      %v521 = vpop.f32.mrb[0].mxu0
      %v522 = vadd.f32 %v212, %v521
      %v523 = vpop.f32.mrb[0].mxu0
      %524 = vmatprep.mubr.f32.mxu0 0.0
      %525 = vmatmul.mubr.f32.gmra.mrb[0].mxu0 %v303
      %v526 = vpop.f32.mrb[0].mxu0
      %v527 = vadd.f32 %v212, %v526
      %v528 = vpop.f32.mrb[0].mxu0
      %529 = vmatprep.mubr.f32.mxu0 0.0
      %530 = vmatmul.mubr.f32.gmra.mrb[0].mxu0 %v306
      %v531 = vpop.f32.mrb[0].mxu0
      %v532 = vadd.f32 %v212, %v531
      %v533 = vpop.f32.mrb[0].mxu0
      %534 = vmatprep.mubr.f32.mxu0 0.0
      %535 = vmatmul.mubr.f32.gmra.mrb[0].mxu0 %v309
      %v536 = vpop.f32.mrb[0].mxu0
      %v537 = vadd.f32 %v212, %v536
      %v538 = vpop.f32.mrb[0].mxu0
      %539 = vdwg.mxu0
      %v540 = vmax.f32 %v382, 0.0
      %v541 = vmax.f32 %v387, 0.0
      %v542 = vmax.f32 %v392, 0.0
      %v543 = vmax.f32 %v397, 0.0
      %v544 = vmax.f32 %v402, 0.0
      %v545 = vmax.f32 %v407, 0.0
      %v546 = vmax.f32 %v412, 0.0
      %v547 = vmax.f32 %v417, 0.0
      %v548 = vmax.f32 %v422, 0.0
      %v549 = vmax.f32 %v427, 0.0
      %v550 = vmax.f32 %v432, 0.0
      %v551 = vmax.f32 %v437, 0.0
      %v552 = vmax.f32 %v442, 0.0
      %v553 = vmax.f32 %v447, 0.0
      %v554 = vmax.f32 %v452, 0.0
      %v555 = vmax.f32 %v457, 0.0
      %v556 = vmax.f32 %v462, 0.0
      %v557 = vmax.f32 %v467, 0.0
      %v558 = vmax.f32 %v472, 0.0
      %v559 = vmax.f32 %v477, 0.0
      %v560 = vmax.f32 %v482, 0.0
      %v561 = vmax.f32 %v487, 0.0
      %v562 = vmax.f32 %v492, 0.0
      %v563 = vmax.f32 %v497, 0.0
      %v564 = vmax.f32 %v502, 0.0
      %v565 = vmax.f32 %v507, 0.0
      %v566 = vmax.f32 %v512, 0.0
      %v567 = vmax.f32 %v517, 0.0
      %v568 = vmax.f32 %v522, 0.0
      %v569 = vmax.f32 %v527, 0.0
      %v570 = vmax.f32 %v532, 0.0
      %v571 = vmax.f32 %v537, 0.0
      %vm572 = vcmask 48128
      %573 = vst.msk [vmem:[%s172] sm:$0xff] %vm572, %v540
      %574 = vst.msk [vmem:[%s172 + $0x8] sm:$0xff] %vm572, %v541
      %575 = vst.msk [vmem:[%s172 + $0x10] sm:$0xff] %vm572, %v542
      %576 = vst.msk [vmem:[%s172 + $0x18] sm:$0xff] %vm572, %v543
      %577 = vst.msk [vmem:[%s172 + $0x20] sm:$0xff] %vm572, %v544
      %578 = vst.msk [vmem:[%s172 + $0x28] sm:$0xff] %vm572, %v545
      %579 = vst.msk [vmem:[%s172 + $0x30] sm:$0xff] %vm572, %v546
      %580 = vst.msk [vmem:[%s172 + $0x38] sm:$0xff] %vm572, %v547
      %581 = vst.msk [vmem:[%s172 + $0x40] sm:$0xff] %vm572, %v548
      %582 = vst.msk [vmem:[%s172 + $0x48] sm:$0xff] %vm572, %v549
      %583 = vst.msk [vmem:[%s172 + $0x50] sm:$0xff] %vm572, %v550
      %584 = vst.msk [vmem:[%s172 + $0x58] sm:$0xff] %vm572, %v551
      %585 = vst.msk [vmem:[%s172 + $0x60] sm:$0xff] %vm572, %v552
      %586 = vst.msk [vmem:[%s172 + $0x68] sm:$0xff] %vm572, %v553
      %587 = vst.msk [vmem:[%s172 + $0x70] sm:$0xff] %vm572, %v554
      %588 = vst.msk [vmem:[%s172 + $0x78] sm:$0xff] %vm572, %v555
      %589 = vst.msk [vmem:[%s172 + $0x80] sm:$0xff] %vm572, %v556
      %590 = vst.msk [vmem:[%s172 + $0x88] sm:$0xff] %vm572, %v557
      %591 = vst.msk [vmem:[%s172 + $0x90] sm:$0xff] %vm572, %v558
      %592 = vst.msk [vmem:[%s172 + $0x98] sm:$0xff] %vm572, %v559
      %593 = vst.msk [vmem:[%s172 + $0xa0] sm:$0xff] %vm572, %v560
      %594 = vst.msk [vmem:[%s172 + $0xa8] sm:$0xff] %vm572, %v561
      %595 = vst.msk [vmem:[%s172 + $0xb0] sm:$0xff] %vm572, %v562
      %596 = vst.msk [vmem:[%s172 + $0xb8] sm:$0xff] %vm572, %v563
      %597 = vst.msk [vmem:[%s172 + $0xc0] sm:$0xff] %vm572, %v564
      %598 = vst.msk [vmem:[%s172 + $0xc8] sm:$0xff] %vm572, %v565
      %599 = vst.msk [vmem:[%s172 + $0xd0] sm:$0xff] %vm572, %v566
      %600 = vst.msk [vmem:[%s172 + $0xd8] sm:$0xff] %vm572, %v567
      %601 = vst.msk [vmem:[%s172 + $0xe0] sm:$0xff] %vm572, %v568
      %602 = vst.msk [vmem:[%s172 + $0xe8] sm:$0xff] %vm572, %v569
      %603 = vst.msk [vmem:[%s172 + $0xf0] sm:$0xff] %vm572, %v570
      %604 = vst.msk [vmem:[%s172 + $0xf8] sm:$0xff] %vm572, %v571
      %s605 = smul.u32 32, %s14
      %p606 = scmp.lt.s32.totalorder %s605, 63
      %s607 = scalar_select %p606, %s605, 63
      %s608 = smul.addr %s607, 8
      %s609 = scalar_lea.vmem %s3, %s608
      // Predicated region
      $region33: #{inception_forward.2} parent=31 // pred_check
        %p610 = pneg %p100
      $region34: #{inception_forward.2} parent=31 // pred_check_branch
        %612 = sbr.rel (%p610) target = $region36
      $region35: #{inception_forward.2} parent=31 // pred_region
        %s613 = smul.u32 32, %s14
      $region36: #{inception_forward.2} parent=31 // pred_fallthru
        _
    $region32: #{inception_forward.2} parent=5 // pred_fallthru
      _
    %p614 = scmp.le.s32.totalorder 2, %s9
    // Predicated region
    $region37: #{inception_forward.2} parent=5 // pred_check
      %p615 = pneg %p614
    $region38: #{inception_forward.2} parent=5 // pred_check_branch
      %617 = sbr.rel (%p615) target = $region40
    $region39: #{inception_forward.2} parent=5 // pred_region
      %s618 = ssub.s32 %s9, 2
      // Predicated region
      $region41: #{inception_forward.2} parent=39 // pred_check
        %p619 = pneg %p106
      $region42: #{inception_forward.2} parent=39 // pred_check_branch
        %621 = sbr.rel (%p619) target = $region44
      $region43: #{inception_forward.2} parent=39 // pred_region
        %s622 = smul.u32 32, %s15
        %p623 = scmp.lt.s32.totalorder %s622, 63
        %s624 = scalar_select %p623, %s622, 63
        %s625 = smul.addr %s624, 8
        %s626 = scalar_lea.vmem %s3, %s625
      $region44: #{inception_forward.2} parent=39 // pred_fallthru
        _
    $region40: #{inception_forward.2} parent=5 // pred_fallthru
      _
  $region6: #{inception_forward.2} parent=0 // loop_footer
    %s13 = sadd.s32 1, %s9
  $region7: #{inception_forward.2} parent=0 // loop_footer_branch
    %8 = sbr.rel target = $region3
  $region8: #{inception_forward.2} parent=0 // loop_exit
    _

// kernel: inception_forward.3
$region0: #{inception_forward.3}
  #allocation0 [shape = 'u32[]', space=smem, size = 0x4, offset = 0x4, fixed_abs, tag = 'smem constant byte address 0x4 - core index']
  #allocation1 [shape = 'u32[144,128]{1,0:T(1,128)}', space=vmem, size = 0x12000, scoped, tag = 'internal scratch']
  %s0 = inlined_call_operand.vmem [shape: f32[2,18,18,4], index: 0, kind: input, shape index: {}]
  %s1 = inlined_call_operand.vmem [shape: f32[2,18,18,4], index: 1, kind: input, shape index: {}]
  %s2 = inlined_call_operand.vmem [shape: f32[2,20,20,2], index: 2, kind: input, shape index: {}]
  %s3 = inlined_call_operand.vmem [shape: f32[4,4], index: 3, kind: input, shape index: {}]
  %s4 = inlined_call_operand.vmem [shape: f32[1,4], index: 4, kind: input, shape index: {}]
  %s5 = inlined_call_operand.vmem [shape: f32[3,12,8], index: 5, kind: input, shape index: {}]
  %s6 = inlined_call_operand.vmem [shape: f32[1,8], index: 6, kind: input, shape index: {}]
  %s7 = inlined_call_operand.vmem [shape: f32[5,10,4], index: 7, kind: input, shape index: {}]
  %s8 = inlined_call_operand.vmem [shape: f32[1,4], index: 8, kind: input, shape index: {}]
  %s9 = inlined_call_operand.vmem [shape: f32[4,4], index: 9, kind: input, shape index: {}]
  %s10 = inlined_call_operand.vmem [shape: f32[1,4], index: 10, kind: input, shape index: {}]
  %s11 = inlined_call_operand.hbm [shape: f32[2,16,16,20], index: 11, kind: output, shape index: {}]
  %s12 = sld [smem:[#allocation0]]
  $region77: #{inception_forward.3} parent=0
    _
  %s14 = ssub.s32 1, %s12
  %s15 = scalar_select 0, %s14, %s12
  $region1: #{inception_forward.3} parent=0
    #allocation2 [shape = 'u8[262144]{0}', space=vmem, size = 0x40000, scoped, tag = 'output window, operand 0']
    #allocation3 [shape = 's32[2]{0}', space=sflag, size = 0x8, scoped, tag = 'scoped memory for inception_forward.3']
    %16 = vsyncpa [#allocation3], 0
    %s17 = scalar_lea.sflag [#allocation3], 1
    %18 = vsyncpa %s17, 0
    loop: start=0, step=1, limit=4
    $region2: #{inception_forward.3} parent=1 // loop_pre_header
      _
    $region3: #{inception_forward.3} parent=1 // loop_header
      %s20 = sphi 0, %s24
      %p21 = scmp.ge.s32.totalorder %s20, 4
      %s27 = sphi 0, %s39
      %s28 = sphi 0, %s35
      %s29 = sphi 0, %s27
      %s30 = sphi 0, %s28
      %s31 = sphi 0, %s29
      %s32 = sphi 0, %s30
      %s42 = sphi 0, %s44
      %s45 = sphi 0, %s42
      %s46 = sphi 0, %s45
      %s62 = sphi 0, %s46
      %s68 = sphi 0, %s70
      %s71 = sphi 0, %s68
      %s72 = sphi 0, %s71
      %s88 = sphi 0, %s72
      %s94 = sphi 0, %s96
      %s97 = sphi 0, %s94
      %s98 = sphi 0, %s97
      %s114 = sphi 0, %s98
      %s118 = sphi 0, %s118
      %s120 = sphi 0, %s118
      %s121 = sphi 0, %s120
      %s135 = sphi 0, %s121
      %s139 = sphi 0, %s139
      %s141 = sphi 0, %s139
      %s142 = sphi 0, %s141
      %s156 = sphi 0, %s142
      %s160 = sphi 0, %s160
      %s162 = sphi 0, %s160
      %s163 = sphi 0, %s162
      %s177 = sphi 0, %s163
      %s181 = sphi 0, %s181
      %s183 = sphi 0, %s181
      %s184 = sphi 0, %s183
      %s198 = sphi 0, %s184
      %s202 = sphi 0, %s202
      %s204 = sphi 0, %s202
      %s205 = sphi 0, %s204
      %s219 = sphi 0, %s205
      %s223 = sphi 0, %s223
      %s225 = sphi 0, %s223
      %s226 = sphi 0, %s225
      %s240 = sphi 0, %s226
      %s244 = sphi 0, %s244
      %s246 = sphi 0, %s244
      %s247 = sphi 0, %s246
      %s261 = sphi 0, %s247
      %s265 = sphi 0, %s265
      %s267 = sphi 0, %s265
      %s268 = sphi 0, %s267
      %s282 = sphi 0, %s268
      %s290 = sphi 0, %s292
      %s293 = sphi 0, %s290
      %s294 = sphi 0, %s293
      %s310 = sphi 0, %s294
    $region4: #{inception_forward.3} parent=1 // loop_header_branch
      %23 = sbr.rel (%p21) target = $region8
    $region5: #{inception_forward.3} parent=1 // loop_body
      %s25 = ssub.s32 %s20, 1
      %s26 = ssub.s32 %s20, 2
      %s33 = sadd.s32 1, %s28
      %p34 = scmp.ge.s32.totalorder %s33, 1
      %s35 = scalar_select %p34, 0, %s33
      %s36 = sadd.s32 1, %s27
      %s37 = scalar_select %p34, %s36, %s27
      %p38 = scmp.ge.s32.totalorder %s37, 2
      %s39 = scalar_select %p38, 0, %s37
      %s40 = ssub.s32 %s27, %s39
      %p41 = scmp.eq.s32.totalorder %s40, 0
      %s43 = sadd.s32 %s42, 1
      %s44 = scalar_select %p41, %s42, %s43
      %p47 = pneg %p41
      %p48 = scmp.eq.s32.totalorder %s20, 1
      %p49 = por %p47, %p48
      %p50 = scmp.ne.s32.totalorder %s42, %s45
      %p51 = scmp.eq.s32.totalorder %s20, 0
      %p52 = por %p50, %p51
      %p53 = scmp.ne.s32.totalorder %s42, %s45
      %p54 = scmp.eq.s32.totalorder %s25, 1
      %p55 = por %p53, %p54
      %p56 = scmp.ne.s32.totalorder %s45, %s46
      %p57 = scmp.eq.s32.totalorder %s25, 0
      %p58 = por %p56, %p57
      %p59 = scmp.ne.s32.totalorder %s45, %s46
      %p60 = scmp.eq.s32.totalorder %s26, 1
      %p61 = por %p59, %p60
      %p63 = scmp.ne.s32.totalorder %s46, %s62
      %p64 = scmp.eq.s32.totalorder %s26, 0
      %p65 = por %p63, %p64
      %s66 = ssub.s32 %s27, %s39
      %p67 = scmp.eq.s32.totalorder %s66, 0
      %s69 = sadd.s32 %s68, 1
      %s70 = scalar_select %p67, %s68, %s69
      %p73 = pneg %p67
      %p74 = scmp.eq.s32.totalorder %s20, 1
      %p75 = por %p73, %p74
      %p76 = scmp.ne.s32.totalorder %s68, %s71
      %p77 = scmp.eq.s32.totalorder %s20, 0
      %p78 = por %p76, %p77
      %p79 = scmp.ne.s32.totalorder %s68, %s71
      %p80 = scmp.eq.s32.totalorder %s25, 1
      %p81 = por %p79, %p80
      %p82 = scmp.ne.s32.totalorder %s71, %s72
      %p83 = scmp.eq.s32.totalorder %s25, 0
      %p84 = por %p82, %p83
      %p85 = scmp.ne.s32.totalorder %s71, %s72
      %p86 = scmp.eq.s32.totalorder %s26, 1
      %p87 = por %p85, %p86
      %p89 = scmp.ne.s32.totalorder %s72, %s88
      %p90 = scmp.eq.s32.totalorder %s26, 0
      %p91 = por %p89, %p90
      %s92 = ssub.s32 %s27, %s39
      %p93 = scmp.eq.s32.totalorder %s92, 0
      %s95 = sadd.s32 %s94, 1
      %s96 = scalar_select %p93, %s94, %s95
      %p99 = pneg %p93
      %p100 = scmp.eq.s32.totalorder %s20, 1
      %p101 = por %p99, %p100
      %p102 = scmp.ne.s32.totalorder %s94, %s97
      %p103 = scmp.eq.s32.totalorder %s20, 0
      %p104 = por %p102, %p103
      %p105 = scmp.ne.s32.totalorder %s94, %s97
      %p106 = scmp.eq.s32.totalorder %s25, 1
      %p107 = por %p105, %p106
      %p108 = scmp.ne.s32.totalorder %s97, %s98
      %p109 = scmp.eq.s32.totalorder %s25, 0
      %p110 = por %p108, %p109
      %p111 = scmp.ne.s32.totalorder %s97, %s98
      %p112 = scmp.eq.s32.totalorder %s26, 1
      %p113 = por %p111, %p112
      %p115 = scmp.ne.s32.totalorder %s98, %s114
      %p116 = scmp.eq.s32.totalorder %s26, 0
      %p117 = por %p115, %p116
      %s119 = sadd.s32 %s118, 1
      %p122 = scmp.eq.s32.totalorder %s20, 1
      %p123 = scmp.ne.s32.totalorder %s118, %s120
      %p124 = scmp.eq.s32.totalorder %s20, 0
      %p125 = por %p123, %p124
      %p126 = scmp.ne.s32.totalorder %s118, %s120
      %p127 = scmp.eq.s32.totalorder %s25, 1
      %p128 = por %p126, %p127
      %p129 = scmp.ne.s32.totalorder %s120, %s121
      %p130 = scmp.eq.s32.totalorder %s25, 0
      %p131 = por %p129, %p130
      %p132 = scmp.ne.s32.totalorder %s120, %s121
      %p133 = scmp.eq.s32.totalorder %s26, 1
      %p134 = por %p132, %p133
      %p136 = scmp.ne.s32.totalorder %s121, %s135
      %p137 = scmp.eq.s32.totalorder %s26, 0
      %p138 = por %p136, %p137
      %s140 = sadd.s32 %s139, 1
      %p143 = scmp.eq.s32.totalorder %s20, 1
      %p144 = scmp.ne.s32.totalorder %s139, %s141
      %p145 = scmp.eq.s32.totalorder %s20, 0
      %p146 = por %p144, %p145
      %p147 = scmp.ne.s32.totalorder %s139, %s141
      %p148 = scmp.eq.s32.totalorder %s25, 1
      %p149 = por %p147, %p148
      %p150 = scmp.ne.s32.totalorder %s141, %s142
      %p151 = scmp.eq.s32.totalorder %s25, 0
      %p152 = por %p150, %p151
      %p153 = scmp.ne.s32.totalorder %s141, %s142
      %p154 = scmp.eq.s32.totalorder %s26, 1
      %p155 = por %p153, %p154
      %p157 = scmp.ne.s32.totalorder %s142, %s156
      %p158 = scmp.eq.s32.totalorder %s26, 0
      %p159 = por %p157, %p158
      %s161 = sadd.s32 %s160, 1
      %p164 = scmp.eq.s32.totalorder %s20, 1
      %p165 = scmp.ne.s32.totalorder %s160, %s162
      %p166 = scmp.eq.s32.totalorder %s20, 0
      %p167 = por %p165, %p166
      %p168 = scmp.ne.s32.totalorder %s160, %s162
      %p169 = scmp.eq.s32.totalorder %s25, 1
      %p170 = por %p168, %p169
      %p171 = scmp.ne.s32.totalorder %s162, %s163
      %p172 = scmp.eq.s32.totalorder %s25, 0
      %p173 = por %p171, %p172
      %p174 = scmp.ne.s32.totalorder %s162, %s163
      %p175 = scmp.eq.s32.totalorder %s26, 1
      %p176 = por %p174, %p175
      %p178 = scmp.ne.s32.totalorder %s163, %s177
      %p179 = scmp.eq.s32.totalorder %s26, 0
      %p180 = por %p178, %p179
      %s182 = sadd.s32 %s181, 1
      %p185 = scmp.eq.s32.totalorder %s20, 1
      %p186 = scmp.ne.s32.totalorder %s181, %s183
      %p187 = scmp.eq.s32.totalorder %s20, 0
      %p188 = por %p186, %p187
      %p189 = scmp.ne.s32.totalorder %s181, %s183
      %p190 = scmp.eq.s32.totalorder %s25, 1
      %p191 = por %p189, %p190
      %p192 = scmp.ne.s32.totalorder %s183, %s184
      %p193 = scmp.eq.s32.totalorder %s25, 0
      %p194 = por %p192, %p193
      %p195 = scmp.ne.s32.totalorder %s183, %s184
      %p196 = scmp.eq.s32.totalorder %s26, 1
      %p197 = por %p195, %p196
      %p199 = scmp.ne.s32.totalorder %s184, %s198
      %p200 = scmp.eq.s32.totalorder %s26, 0
      %p201 = por %p199, %p200
      %s203 = sadd.s32 %s202, 1
      %p206 = scmp.eq.s32.totalorder %s20, 1
      %p207 = scmp.ne.s32.totalorder %s202, %s204
      %p208 = scmp.eq.s32.totalorder %s20, 0
      %p209 = por %p207, %p208
      %p210 = scmp.ne.s32.totalorder %s202, %s204
      %p211 = scmp.eq.s32.totalorder %s25, 1
      %p212 = por %p210, %p211
      %p213 = scmp.ne.s32.totalorder %s204, %s205
      %p214 = scmp.eq.s32.totalorder %s25, 0
      %p215 = por %p213, %p214
      %p216 = scmp.ne.s32.totalorder %s204, %s205
      %p217 = scmp.eq.s32.totalorder %s26, 1
      %p218 = por %p216, %p217
      %p220 = scmp.ne.s32.totalorder %s205, %s219
      %p221 = scmp.eq.s32.totalorder %s26, 0
      %p222 = por %p220, %p221
      %s224 = sadd.s32 %s223, 1
      %p227 = scmp.eq.s32.totalorder %s20, 1
      %p228 = scmp.ne.s32.totalorder %s223, %s225
      %p229 = scmp.eq.s32.totalorder %s20, 0
      %p230 = por %p228, %p229
      %p231 = scmp.ne.s32.totalorder %s223, %s225
      %p232 = scmp.eq.s32.totalorder %s25, 1
      %p233 = por %p231, %p232
      %p234 = scmp.ne.s32.totalorder %s225, %s226
      %p235 = scmp.eq.s32.totalorder %s25, 0
      %p236 = por %p234, %p235
      %p237 = scmp.ne.s32.totalorder %s225, %s226
      %p238 = scmp.eq.s32.totalorder %s26, 1
      %p239 = por %p237, %p238
      %p241 = scmp.ne.s32.totalorder %s226, %s240
      %p242 = scmp.eq.s32.totalorder %s26, 0
      %p243 = por %p241, %p242
      %s245 = sadd.s32 %s244, 1
      %p248 = scmp.eq.s32.totalorder %s20, 1
      %p249 = scmp.ne.s32.totalorder %s244, %s246
      %p250 = scmp.eq.s32.totalorder %s20, 0
      %p251 = por %p249, %p250
      %p252 = scmp.ne.s32.totalorder %s244, %s246
      %p253 = scmp.eq.s32.totalorder %s25, 1
      %p254 = por %p252, %p253
      %p255 = scmp.ne.s32.totalorder %s246, %s247
      %p256 = scmp.eq.s32.totalorder %s25, 0
      %p257 = por %p255, %p256
      %p258 = scmp.ne.s32.totalorder %s246, %s247
      %p259 = scmp.eq.s32.totalorder %s26, 1
      %p260 = por %p258, %p259
      %p262 = scmp.ne.s32.totalorder %s247, %s261
      %p263 = scmp.eq.s32.totalorder %s26, 0
      %p264 = por %p262, %p263
      %s266 = sadd.s32 %s265, 1
      %p269 = scmp.eq.s32.totalorder %s20, 1
      %p270 = scmp.ne.s32.totalorder %s265, %s267
      %p271 = scmp.eq.s32.totalorder %s20, 0
      %p272 = por %p270, %p271
      %p273 = scmp.ne.s32.totalorder %s265, %s267
      %p274 = scmp.eq.s32.totalorder %s25, 1
      %p275 = por %p273, %p274
      %p276 = scmp.ne.s32.totalorder %s267, %s268
      %p277 = scmp.eq.s32.totalorder %s25, 0
      %p278 = por %p276, %p277
      %p279 = scmp.ne.s32.totalorder %s267, %s268
      %p280 = scmp.eq.s32.totalorder %s26, 1
      %p281 = por %p279, %p280
      %p283 = scmp.ne.s32.totalorder %s268, %s282
      %p284 = scmp.eq.s32.totalorder %s26, 0
      %p285 = por %p283, %p284
      %s286 = ssub.s32 %s27, %s39
      %s287 = ssub.s32 %s28, %s35
      %s288 = sor.u32 %s286, %s287
      %p289 = scmp.eq.s32.totalorder %s288, 0
      %s291 = sadd.s32 %s290, 1
      %s292 = scalar_select %p289, %s290, %s291
      %p295 = pneg %p289
      %p296 = scmp.eq.s32.totalorder %s20, 1
      %p297 = por %p295, %p296
      %p298 = scmp.ne.s32.totalorder %s290, %s293
      %p299 = scmp.eq.s32.totalorder %s20, 0
      %p300 = por %p298, %p299
      %p301 = scmp.ne.s32.totalorder %s290, %s293
      %p302 = scmp.eq.s32.totalorder %s25, 1
      %p303 = por %p301, %p302
      %p304 = scmp.ne.s32.totalorder %s293, %s294
      %p305 = scmp.eq.s32.totalorder %s25, 0
      %p306 = por %p304, %p305
      %p307 = scmp.ne.s32.totalorder %s293, %s294
      %p308 = scmp.eq.s32.totalorder %s26, 1
      %p309 = por %p307, %p308
      %p311 = scmp.ne.s32.totalorder %s294, %s310
      %p312 = scmp.eq.s32.totalorder %s26, 0
      %p313 = por %p311, %p312
      %p314 = scmp.le.s32.totalorder 1, %s20
      %p315 = scmp.lt.s32.totalorder %s20, 3
      %p316 = pnand %p314, %p315
      %p317 = pneg %p316
      // Predicated region
      $region9: #{inception_forward.3} parent=5 // pred_check
        _
      $region10: #{inception_forward.3} parent=5 // pred_check_branch
        %319 = sbr.rel (%p316) target = $region12
      $region11: #{inception_forward.3} parent=5 // pred_region
        %s320 = ssub.s32 %s20, 1
        // Predicated region
        $region13: #{inception_forward.3} parent=11 // pred_check
          %p321 = pneg %p131
        $region14: #{inception_forward.3} parent=11 // pred_check_branch
          %323 = sbr.rel (%p321) target = $region16
        $region15: #{inception_forward.3} parent=11 // pred_region
          _
        $region16: #{inception_forward.3} parent=11 // pred_fallthru
          _
        // Predicated region
        $region17: #{inception_forward.3} parent=11 // pred_check
          %p324 = pneg %p152
        $region18: #{inception_forward.3} parent=11 // pred_check_branch
          %326 = sbr.rel (%p324) target = $region20
        $region19: #{inception_forward.3} parent=11 // pred_region
          _
        $region20: #{inception_forward.3} parent=11 // pred_fallthru
          _
        // Predicated region
        $region21: #{inception_forward.3} parent=11 // pred_check
          %p327 = pneg %p173
        $region22: #{inception_forward.3} parent=11 // pred_check_branch
          %329 = sbr.rel (%p327) target = $region24
        $region23: #{inception_forward.3} parent=11 // pred_region
          _
        $region24: #{inception_forward.3} parent=11 // pred_fallthru
          _
        // Predicated region
        $region25: #{inception_forward.3} parent=11 // pred_check
          %p330 = pneg %p194
        $region26: #{inception_forward.3} parent=11 // pred_check_branch
          %332 = sbr.rel (%p330) target = $region28
        $region27: #{inception_forward.3} parent=11 // pred_region
          _
        $region28: #{inception_forward.3} parent=11 // pred_fallthru
          _
        // Predicated region
        $region29: #{inception_forward.3} parent=11 // pred_check
          %p333 = pneg %p215
        $region30: #{inception_forward.3} parent=11 // pred_check_branch
          %335 = sbr.rel (%p333) target = $region32
        $region31: #{inception_forward.3} parent=11 // pred_region
          _
        $region32: #{inception_forward.3} parent=11 // pred_fallthru
          _
        // Predicated region
        $region33: #{inception_forward.3} parent=11 // pred_check
          %p336 = pneg %p236
        $region34: #{inception_forward.3} parent=11 // pred_check_branch
          %338 = sbr.rel (%p336) target = $region36
        $region35: #{inception_forward.3} parent=11 // pred_region
          _
        $region36: #{inception_forward.3} parent=11 // pred_fallthru
          _
        // Predicated region
        $region37: #{inception_forward.3} parent=11 // pred_check
          %p339 = pneg %p257
        $region38: #{inception_forward.3} parent=11 // pred_check_branch
          %341 = sbr.rel (%p339) target = $region40
        $region39: #{inception_forward.3} parent=11 // pred_region
          _
        $region40: #{inception_forward.3} parent=11 // pred_fallthru
          _
        // Predicated region
        $region41: #{inception_forward.3} parent=11 // pred_check
          %p342 = pneg %p278
        $region42: #{inception_forward.3} parent=11 // pred_check_branch
          %344 = sbr.rel (%p342) target = $region44
        $region43: #{inception_forward.3} parent=11 // pred_region
          _
        $region44: #{inception_forward.3} parent=11 // pred_fallthru
          _
      $region12: #{inception_forward.3} parent=5 // pred_fallthru
        _
      %p345 = scmp.lt.s32.totalorder %s20, 2
      // Predicated region
      $region45: #{inception_forward.3} parent=5 // pred_check
        %p346 = pneg %p345
      $region46: #{inception_forward.3} parent=5 // pred_check_branch
        %348 = sbr.rel (%p346) target = $region48
      $region47: #{inception_forward.3} parent=5 // pred_region
        // Predicated region
        $region49: #{inception_forward.3} parent=47 // pred_check
          %p349 = pneg %p52
        $region50: #{inception_forward.3} parent=47 // pred_check_branch
          %351 = sbr.rel (%p349) target = $region52
        $region51: #{inception_forward.3} parent=47 // pred_region
          %p352 = scmp.lt.s32.totalorder %s27, 1
          %s353 = scalar_select %p352, %s27, 1
          %s354 = smul.addr %s353, 54
          %s355 = smul.addr %s354, 8
          %s356 = scalar_lea.vmem %s0, %s355
        $region52: #{inception_forward.3} parent=47 // pred_fallthru
          _
        // Predicated region
        $region53: #{inception_forward.3} parent=47 // pred_check
          %p357 = pneg %p78
        $region54: #{inception_forward.3} parent=47 // pred_check_branch
          %359 = sbr.rel (%p357) target = $region56
        $region55: #{inception_forward.3} parent=47 // pred_region
          %p360 = scmp.lt.s32.totalorder %s27, 1
          %s361 = scalar_select %p360, %s27, 1
          %s362 = smul.addr %s361, 54
          %s363 = smul.addr %s362, 8
          %s364 = scalar_lea.vmem %s1, %s363
        $region56: #{inception_forward.3} parent=47 // pred_fallthru
          _
        // Predicated region
        $region57: #{inception_forward.3} parent=47 // pred_check
          %p365 = pneg %p104
        $region58: #{inception_forward.3} parent=47 // pred_check_branch
          %367 = sbr.rel (%p365) target = $region60
        $region59: #{inception_forward.3} parent=47 // pred_region
          %p368 = scmp.lt.s32.totalorder %s27, 1
          %s369 = scalar_select %p368, %s27, 1
          %s370 = smul.addr %s369, 60
          %s371 = smul.addr %s370, 8
          %s372 = scalar_lea.vmem %s2, %s371
        $region60: #{inception_forward.3} parent=47 // pred_fallthru
          _
      $region48: #{inception_forward.3} parent=5 // pred_fallthru
        _
      %p373 = scmp.le.s32.totalorder 1, %s20
      %p374 = scmp.lt.s32.totalorder %s20, 3
      %p375 = pnand %p373, %p374
      %p376 = pneg %p375
      // Predicated region
      $region61: #{inception_forward.3} parent=5 // pred_check
        _
      $region62: #{inception_forward.3} parent=5 // pred_check_branch
        %378 = sbr.rel (%p375) target = $region64
      $region63: #{inception_forward.3} parent=5 // pred_region
        %s379 = ssub.s32 %s20, 1
        %p380 = scmp.lt.s32.totalorder %s29, 1
        %s381 = scalar_select %p380, %s29, 1
        %s382 = smul.addr %s381, 54
        %s383 = smul.addr %s382, 8
        %s384 = scalar_lea.vmem %s0, %s383
        %p385 = pneg %p58
        %p386 = pneg %p55
        %p387 = scmp.lt.s32.totalorder %s29, 1
        %s388 = scalar_select %p387, %s29, 1
        %s389 = smul.addr %s388, 54
        %s390 = smul.addr %s389, 8
        %s391 = scalar_lea.vmem %s1, %s390
        %p392 = pneg %p84
        %p393 = pneg %p81
        %p394 = scmp.lt.s32.totalorder %s29, 1
        %s395 = scalar_select %p394, %s29, 1
        %s396 = smul.addr %s395, 60
        %s397 = smul.addr %s396, 8
        %s398 = scalar_lea.vmem %s2, %s397
        %p399 = pneg %p110
        %p400 = pneg %p107
        %p401 = pneg %p131
        %p402 = pneg %p128
        %p403 = pneg %p152
        %p404 = pneg %p149
        %p405 = pneg %p173
        %p406 = pneg %p170
        %p407 = pneg %p194
        %p408 = pneg %p191
        %p409 = pneg %p215
        %p410 = pneg %p212
        %p411 = pneg %p236
        %p412 = pneg %p233
        %p413 = pneg %p257
        %p414 = pneg %p254
        %p415 = pneg %p278
        %p416 = pneg %p275
        %p417 = pneg %p306
        %p418 = pneg %p303
        %s419 = sand.u32 %s293, 1
        %s420 = scalar_lea.sflag [#allocation3], %s419
        %s421 = sand.u32 %s293, 1
        %s422 = smul.addr %s421, 256
        %s423 = scalar_lea.vmem [#allocation2], %s422
        %p424 = scmp.lt.s32.totalorder %s29, 1
        %s425 = scalar_select %p424, %s29, 1
        %s426 = smul.addr %s425, 54
        %s427 = smul.addr %s426, 8
        %s428 = scalar_lea.vmem %s0, %s427
        %p429 = scmp.lt.s32.totalorder %s29, 1
        %s430 = scalar_select %p429, %s29, 1
        %s431 = smul.addr %s430, 54
        %s432 = smul.addr %s431, 8
        %s433 = scalar_lea.vmem %s1, %s432
        %p434 = scmp.lt.s32.totalorder %s29, 1
        %s435 = scalar_select %p434, %s29, 1
        %s436 = smul.addr %s435, 60
        %s437 = smul.addr %s436, 8
        %s438 = scalar_lea.vmem %s2, %s437
        %s439 = smul.u32 16, %s30
        %s440 = smul.u32 %s30, 16
        %s441 = smul.u32 %s440, 24
        %s442 = scalar_lea.vmem %s428, %s441
        %v443 = vld [vmem:[%s442] sm:$0xff]
        %v444 = vld [vmem:[%s442 + $0x8] sm:$0xff]
        %v445 = vld [vmem:[%s442 + $0x10] sm:$0x3]
        %v446 = vld [vmem:[%s442 + $0x18] sm:$0xff]
        %v447 = vld [vmem:[%s442 + $0x20] sm:$0xff]
        %v448 = vld [vmem:[%s442 + $0x28] sm:$0x3]
        %v449 = vld [vmem:[%s442 + $0x30] sm:$0xff]
        %v450 = vld [vmem:[%s442 + $0x38] sm:$0xff]
        %v451 = vld [vmem:[%s442 + $0x40] sm:$0x3]
        %v452 = vld [vmem:[%s442 + $0x48] sm:$0xff]
        %v453 = vld [vmem:[%s442 + $0x50] sm:$0xff]
        %v454 = vld [vmem:[%s442 + $0x58] sm:$0x3]
        %v455 = vld [vmem:[%s442 + $0x60] sm:$0xff]
        %v456 = vld [vmem:[%s442 + $0x68] sm:$0xff]
        %v457 = vld [vmem:[%s442 + $0x70] sm:$0x3]
        %v458 = vld [vmem:[%s442 + $0x78] sm:$0xff]
        %v459 = vld [vmem:[%s442 + $0x80] sm:$0xff]
        %v460 = vld [vmem:[%s442 + $0x88] sm:$0x3]
        %v461 = vld [vmem:[%s442 + $0x90] sm:$0xff]
        %v462 = vld [vmem:[%s442 + $0x98] sm:$0xff]
        %v463 = vld [vmem:[%s442 + $0xa0] sm:$0x3]
        %v464 = vld [vmem:[%s442 + $0xa8] sm:$0xff]
        %v465 = vld [vmem:[%s442 + $0xb0] sm:$0xff]
        %v466 = vld [vmem:[%s442 + $0xb8] sm:$0x3]
        %v467 = vld [vmem:[%s442 + $0xc0] sm:$0xff]
        %v468 = vld [vmem:[%s442 + $0xc8] sm:$0xff]
        %v469 = vld [vmem:[%s442 + $0xd0] sm:$0x3]
        %v470 = vld [vmem:[%s442 + $0xd8] sm:$0xff]
        %v471 = vld [vmem:[%s442 + $0xe0] sm:$0xff]
        %v472 = vld [vmem:[%s442 + $0xe8] sm:$0x3]
        %v473 = vld [vmem:[%s442 + $0xf0] sm:$0xff]
        %v474 = vld [vmem:[%s442 + $0xf8] sm:$0xff]
        %v475 = vld [vmem:[%s442 + $0x100] sm:$0x3]
        %v476 = vld [vmem:[%s442 + $0x108] sm:$0xff]
        %v477 = vld [vmem:[%s442 + $0x110] sm:$0xff]
        %v478 = vld [vmem:[%s442 + $0x118] sm:$0x3]
        %v479 = vld [vmem:[%s442 + $0x120] sm:$0xff]
        %v480 = vld [vmem:[%s442 + $0x128] sm:$0xff]
        %v481 = vld [vmem:[%s442 + $0x130] sm:$0x3]
        %v482 = vld [vmem:[%s442 + $0x138] sm:$0xff]
        %v483 = vld [vmem:[%s442 + $0x140] sm:$0xff]
        %v484 = vld [vmem:[%s442 + $0x148] sm:$0x3]
        %v485 = vld [vmem:[%s442 + $0x150] sm:$0xff]
        %v486 = vld [vmem:[%s442 + $0x158] sm:$0xff]
        %v487 = vld [vmem:[%s442 + $0x160] sm:$0x3]
        %v488 = vld [vmem:[%s442 + $0x168] sm:$0xff]
        %v489 = vld [vmem:[%s442 + $0x170] sm:$0xff]
        %v490 = vld [vmem:[%s442 + $0x178] sm:$0x3]
        %s491 = sadd.s32 %s440, 1
        %s492 = smul.u32 %s491, 24
        %s493 = scalar_lea.vmem %s428, %s492
        %v494 = vld [vmem:[%s493] sm:$0xff]
        %v495 = vld [vmem:[%s493 + $0x8] sm:$0xff]
        %v496 = vld [vmem:[%s493 + $0x10] sm:$0x3]
        %v497 = vld [vmem:[%s493 + $0x18] sm:$0xff]
        %v498 = vld [vmem:[%s493 + $0x20] sm:$0xff]
        %v499 = vld [vmem:[%s493 + $0x28] sm:$0x3]
        %v500 = vld [vmem:[%s493 + $0x30] sm:$0xff]
        %v501 = vld [vmem:[%s493 + $0x38] sm:$0xff]
        %v502 = vld [vmem:[%s493 + $0x40] sm:$0x3]
        %v503 = vld [vmem:[%s493 + $0x48] sm:$0xff]
        %v504 = vld [vmem:[%s493 + $0x50] sm:$0xff]
        %v505 = vld [vmem:[%s493 + $0x58] sm:$0x3]
        %v506 = vld [vmem:[%s493 + $0x60] sm:$0xff]
        %v507 = vld [vmem:[%s493 + $0x68] sm:$0xff]
        %v508 = vld [vmem:[%s493 + $0x70] sm:$0x3]
        %v509 = vld [vmem:[%s493 + $0x78] sm:$0xff]
        %v510 = vld [vmem:[%s493 + $0x80] sm:$0xff]
        %v511 = vld [vmem:[%s493 + $0x88] sm:$0x3]
        %v512 = vld [vmem:[%s493 + $0x90] sm:$0xff]
        %v513 = vld [vmem:[%s493 + $0x98] sm:$0xff]
        %v514 = vld [vmem:[%s493 + $0xa0] sm:$0x3]
        %v515 = vld [vmem:[%s493 + $0xa8] sm:$0xff]
        %v516 = vld [vmem:[%s493 + $0xb0] sm:$0xff]
        %v517 = vld [vmem:[%s493 + $0xb8] sm:$0x3]
        %v518 = vld [vmem:[%s493 + $0xc0] sm:$0xff]
        %v519 = vld [vmem:[%s493 + $0xc8] sm:$0xff]
        %v520 = vld [vmem:[%s493 + $0xd0] sm:$0x3]
        %v521 = vld [vmem:[%s493 + $0xd8] sm:$0xff]
        %v522 = vld [vmem:[%s493 + $0xe0] sm:$0xff]
        %v523 = vld [vmem:[%s493 + $0xe8] sm:$0x3]
        %v524 = vld [vmem:[%s493 + $0xf0] sm:$0xff]
        %v525 = vld [vmem:[%s493 + $0xf8] sm:$0xff]
        %v526 = vld [vmem:[%s493 + $0x100] sm:$0x3]
        %v527 = vld [vmem:[%s493 + $0x108] sm:$0xff]
        %v528 = vld [vmem:[%s493 + $0x110] sm:$0xff]
        %v529 = vld [vmem:[%s493 + $0x118] sm:$0x3]
        %v530 = vld [vmem:[%s493 + $0x120] sm:$0xff]
        %v531 = vld [vmem:[%s493 + $0x128] sm:$0xff]
        %v532 = vld [vmem:[%s493 + $0x130] sm:$0x3]
        %v533 = vld [vmem:[%s493 + $0x138] sm:$0xff]
        %v534 = vld [vmem:[%s493 + $0x140] sm:$0xff]
        %v535 = vld [vmem:[%s493 + $0x148] sm:$0x3]
        %v536 = vld [vmem:[%s493 + $0x150] sm:$0xff]
        %v537 = vld [vmem:[%s493 + $0x158] sm:$0xff]
        %v538 = vld [vmem:[%s493 + $0x160] sm:$0x3]
        %v539 = vld [vmem:[%s493 + $0x168] sm:$0xff]
        %v540 = vld [vmem:[%s493 + $0x170] sm:$0xff]
        %v541 = vld [vmem:[%s493 + $0x178] sm:$0x3]
        %s542 = sadd.s32 %s440, 2
        %s543 = smul.u32 %s542, 24
        %s544 = scalar_lea.vmem %s428, %s543
        %v545 = vld [vmem:[%s544] sm:$0xff]
        %v546 = vld [vmem:[%s544 + $0x8] sm:$0xff]
        %v547 = vld [vmem:[%s544 + $0x10] sm:$0x3]
        %v548 = vld [vmem:[%s544 + $0x18] sm:$0xff]
        %v549 = vld [vmem:[%s544 + $0x20] sm:$0xff]
        %v550 = vld [vmem:[%s544 + $0x28] sm:$0x3]
        %v551 = vld [vmem:[%s544 + $0x30] sm:$0xff]
        %v552 = vld [vmem:[%s544 + $0x38] sm:$0xff]
        %v553 = vld [vmem:[%s544 + $0x40] sm:$0x3]
        %v554 = vld [vmem:[%s544 + $0x48] sm:$0xff]
        %v555 = vld [vmem:[%s544 + $0x50] sm:$0xff]
        %v556 = vld [vmem:[%s544 + $0x58] sm:$0x3]
        %v557 = vld [vmem:[%s544 + $0x60] sm:$0xff]
        %v558 = vld [vmem:[%s544 + $0x68] sm:$0xff]
        %v559 = vld [vmem:[%s544 + $0x70] sm:$0x3]
        %v560 = vld [vmem:[%s544 + $0x78] sm:$0xff]
        %v561 = vld [vmem:[%s544 + $0x80] sm:$0xff]
        %v562 = vld [vmem:[%s544 + $0x88] sm:$0x3]
        %v563 = vld [vmem:[%s544 + $0x90] sm:$0xff]
        %v564 = vld [vmem:[%s544 + $0x98] sm:$0xff]
        %v565 = vld [vmem:[%s544 + $0xa0] sm:$0x3]
        %v566 = vld [vmem:[%s544 + $0xa8] sm:$0xff]
        %v567 = vld [vmem:[%s544 + $0xb0] sm:$0xff]
        %v568 = vld [vmem:[%s544 + $0xb8] sm:$0x3]
        %v569 = vld [vmem:[%s544 + $0xc0] sm:$0xff]
        %v570 = vld [vmem:[%s544 + $0xc8] sm:$0xff]
        %v571 = vld [vmem:[%s544 + $0xd0] sm:$0x3]
        %v572 = vld [vmem:[%s544 + $0xd8] sm:$0xff]
        %v573 = vld [vmem:[%s544 + $0xe0] sm:$0xff]
        %v574 = vld [vmem:[%s544 + $0xe8] sm:$0x3]
        %v575 = vld [vmem:[%s544 + $0xf0] sm:$0xff]
        %v576 = vld [vmem:[%s544 + $0xf8] sm:$0xff]
        %v577 = vld [vmem:[%s544 + $0x100] sm:$0x3]
        %v578 = vld [vmem:[%s544 + $0x108] sm:$0xff]
        %v579 = vld [vmem:[%s544 + $0x110] sm:$0xff]
        %v580 = vld [vmem:[%s544 + $0x118] sm:$0x3]
        %v581 = vld [vmem:[%s544 + $0x120] sm:$0xff]
        %v582 = vld [vmem:[%s544 + $0x128] sm:$0xff]
        %v583 = vld [vmem:[%s544 + $0x130] sm:$0x3]
        %v584 = vld [vmem:[%s544 + $0x138] sm:$0xff]
        %v585 = vld [vmem:[%s544 + $0x140] sm:$0xff]
        %v586 = vld [vmem:[%s544 + $0x148] sm:$0x3]
        %v587 = vld [vmem:[%s544 + $0x150] sm:$0xff]
        %v588 = vld [vmem:[%s544 + $0x158] sm:$0xff]
        %v589 = vld [vmem:[%s544 + $0x160] sm:$0x3]
        %v590 = vld [vmem:[%s544 + $0x168] sm:$0xff]
        %v591 = vld [vmem:[%s544 + $0x170] sm:$0xff]
        %v592 = vld [vmem:[%s544 + $0x178] sm:$0x3]
        %vm641 = vcmask 1046528
        %v642 = vrot.slane %v494, 1
        %v643 = vrot.slane %v495, 1
        %v644 = vsel %vm641, %v642, %v643
        %v645 = vrot.slane %v496, 1
        %v646 = vsel %vm641, %v643, %v645
        %v647 = vrot.slane %v497, 1
        %v648 = vrot.slane %v498, 1
        %v649 = vsel %vm641, %v647, %v648
        %v650 = vrot.slane %v499, 1
        %v651 = vsel %vm641, %v648, %v650
        %v652 = vrot.slane %v500, 1
        %v653 = vrot.slane %v501, 1
        %v654 = vsel %vm641, %v652, %v653
        %v655 = vrot.slane %v502, 1
        %v656 = vsel %vm641, %v653, %v655
        %v657 = vrot.slane %v503, 1
        %v658 = vrot.slane %v504, 1
        %v659 = vsel %vm641, %v657, %v658
        %v660 = vrot.slane %v505, 1
        %v661 = vsel %vm641, %v658, %v660
        %v662 = vrot.slane %v506, 1
        %v663 = vrot.slane %v507, 1
        %v664 = vsel %vm641, %v662, %v663
        %v665 = vrot.slane %v508, 1
        %v666 = vsel %vm641, %v663, %v665
        %v667 = vrot.slane %v509, 1
        %v668 = vrot.slane %v510, 1
        %v669 = vsel %vm641, %v667, %v668
        %v670 = vrot.slane %v511, 1
        %v671 = vsel %vm641, %v668, %v670
        %v672 = vrot.slane %v512, 1
        %v673 = vrot.slane %v513, 1
        %v674 = vsel %vm641, %v672, %v673
        %v675 = vrot.slane %v514, 1
        %v676 = vsel %vm641, %v673, %v675
        %v677 = vrot.slane %v515, 1
        %v678 = vrot.slane %v516, 1
        %v679 = vsel %vm641, %v677, %v678
        %v680 = vrot.slane %v517, 1
        %v681 = vsel %vm641, %v678, %v680
        %v682 = vrot.slane %v518, 1
        %v683 = vrot.slane %v519, 1
        %v684 = vsel %vm641, %v682, %v683
        %v685 = vrot.slane %v520, 1
        %v686 = vsel %vm641, %v683, %v685
        %v687 = vrot.slane %v521, 1
        %v688 = vrot.slane %v522, 1
        %v689 = vsel %vm641, %v687, %v688
        %v690 = vrot.slane %v523, 1
        %v691 = vsel %vm641, %v688, %v690
        %v692 = vrot.slane %v524, 1
        %v693 = vrot.slane %v525, 1
        %v694 = vsel %vm641, %v692, %v693
        %v695 = vrot.slane %v526, 1
        %v696 = vsel %vm641, %v693, %v695
        %v697 = vrot.slane %v527, 1
        %v698 = vrot.slane %v528, 1
        %v699 = vsel %vm641, %v697, %v698
        %v700 = vrot.slane %v529, 1
        %v701 = vsel %vm641, %v698, %v700
        %v702 = vrot.slane %v530, 1
        %v703 = vrot.slane %v531, 1
        %v704 = vsel %vm641, %v702, %v703
        %v705 = vrot.slane %v532, 1
        %v706 = vsel %vm641, %v703, %v705
        %v707 = vrot.slane %v533, 1
        %v708 = vrot.slane %v534, 1
        %v709 = vsel %vm641, %v707, %v708
        %v710 = vrot.slane %v535, 1
        %v711 = vsel %vm641, %v708, %v710
        %v712 = vrot.slane %v536, 1
        %v713 = vrot.slane %v537, 1
        %v714 = vsel %vm641, %v712, %v713
        %v715 = vrot.slane %v538, 1
        %v716 = vsel %vm641, %v713, %v715
        %v717 = vrot.slane %v539, 1
        %v718 = vrot.slane %v540, 1
        %v719 = vsel %vm641, %v717, %v718
        %v720 = vrot.slane %v541, 1
        %v721 = vsel %vm641, %v718, %v720
        %v722 = vld [vmem:[%s3] sm:$0xf]
        %v723 = vld [vmem:[%s4] sm:$0x1]
        %v725 = vlaneseq
        %v726 = vshrl.u32 %v725, 7
        %v727 = vsub.s32 0, %v726
        %v728 = vrot.slane %v723, %v727
        %vm730 = vcmask 31744
        %v731 = vsel %vm730, %v644, 0
        %v733 = vsel %vm730, %v646, 0
        %v735 = vsel %vm730, %v649, 0
        %v737 = vsel %vm730, %v651, 0
        %v739 = vsel %vm730, %v654, 0
        %v741 = vsel %vm730, %v656, 0
        %v743 = vsel %vm730, %v659, 0
        %v745 = vsel %vm730, %v661, 0
        %v747 = vsel %vm730, %v664, 0
        %v749 = vsel %vm730, %v666, 0
        %v751 = vsel %vm730, %v669, 0
        %v753 = vsel %vm730, %v671, 0
        %v755 = vsel %vm730, %v674, 0
        %v757 = vsel %vm730, %v676, 0
        %v759 = vsel %vm730, %v679, 0
        %v761 = vsel %vm730, %v681, 0
        %v763 = vsel %vm730, %v684, 0
        %v765 = vsel %vm730, %v686, 0
        %v767 = vsel %vm730, %v689, 0
        %v769 = vsel %vm730, %v691, 0
        %v771 = vsel %vm730, %v694, 0
        %v773 = vsel %vm730, %v696, 0
        %v775 = vsel %vm730, %v699, 0
        %v777 = vsel %vm730, %v701, 0
        %v779 = vsel %vm730, %v704, 0
        %v781 = vsel %vm730, %v706, 0
        %v783 = vsel %vm730, %v709, 0
        %v785 = vsel %vm730, %v711, 0
        %v787 = vsel %vm730, %v714, 0
        %v789 = vsel %vm730, %v716, 0
        %v791 = vsel %vm730, %v719, 0
        %v793 = vsel %vm730, %v721, 0
        %vm795 = vcmask 1043456
        %v797 = vsel %vm795, %v722, 0
        %799 = vmatprep.subr.mxu0 0.0
        %800 = vmatpush1.msra.mxu0 %v797
        %801 = vmatprep.subr.mxu0 0.0
        %802 = vmatpush1.msra.mxu0 0.0
        %803 = vmatprep.subr.mxu0 0.0
        %804 = vmatpush1.msra.mxu0 0.0
        %805 = vmatprep.subr.mxu0 0.0
        %806 = vmatpush1.msra.mxu0 0.0
        %807 = vmatprep.subr.mxu0 0.0
        %808 = vmatpush1.msra.mxu0 0.0
        %809 = vmatprep.subr.mxu0 0.0
        %810 = vmatpush1.msra.mxu0 0.0
        %811 = vmatprep.subr.mxu0 0.0
        %812 = vmatpush1.msra.mxu0 0.0
        %813 = vmatprep.subr.mxu0 0.0
        %814 = vmatpush1.msra.mxu0 0.0
        %815 = vmatprep.subr.mxu0 0.0
        %816 = vmatpush1.msra.mxu0 0.0
        %817 = vmatprep.subr.mxu0 0.0
        %818 = vmatpush1.msra.mxu0 0.0
        %819 = vmatprep.subr.mxu0 0.0
        %820 = vmatpush1.msra.mxu0 0.0
        %821 = vmatprep.subr.mxu0 0.0
        %822 = vmatpush1.msra.mxu0 0.0
        %823 = vmatprep.subr.mxu0 0.0
        %824 = vmatpush1.msra.mxu0 0.0
        %825 = vmatprep.subr.mxu0 0.0
        %826 = vmatpush1.msra.mxu0 0.0
        %827 = vmatprep.subr.mxu0 0.0
        %828 = vmatpush1.msra.mxu0 0.0
        %829 = vmatprep.subr.mxu0 0.0
        %830 = vmatpush1.msra.mxu0 0.0
        %831 = vmatprep.subr.mxu0 0.0
        %832 = vmatpush1.msra.mxu0 0.0
        %833 = vmatprep.subr.mxu0 0.0
        %834 = vmatpush1.msra.mxu0 0.0
        %835 = vmatprep.subr.mxu0 0.0
        %836 = vmatpush1.msra.mxu0 0.0
        %837 = vmatprep.subr.mxu0 0.0
        %838 = vmatpush1.msra.mxu0 0.0
        %839 = vmatprep.subr.mxu0 0.0
        %840 = vmatpush1.msra.mxu0 0.0
        %841 = vmatprep.subr.mxu0 0.0
        %842 = vmatpush1.msra.mxu0 0.0
        %843 = vmatprep.subr.mxu0 0.0
        %844 = vmatpush1.msra.mxu0 0.0
        %845 = vmatprep.subr.mxu0 0.0
        %846 = vmatpush1.msra.mxu0 0.0
        %847 = vmatprep.subr.mxu0 0.0
        %848 = vmatpush1.msra.mxu0 0.0
        %849 = vmatprep.subr.mxu0 0.0
        %850 = vmatpush1.msra.mxu0 0.0
        %851 = vmatprep.subr.mxu0 0.0
        %852 = vmatpush1.msra.mxu0 0.0
        %853 = vmatprep.subr.mxu0 0.0
        %854 = vmatpush1.msra.mxu0 0.0
        %855 = vmatprep.subr.mxu0 0.0
        %856 = vmatpush1.msra.mxu0 0.0
        %857 = vmatprep.subr.mxu0 0.0
        %858 = vmatpush1.msra.mxu0 0.0
        %859 = vmatprep.subr.mxu0 0.0
        %860 = vmatpush1.msra.mxu0 0.0
        %861 = vmatprep.subr.mxu0 0.0
        %862 = vmatpush1.msra.mxu0 0.0
        %863 = vmatprep.mubr.f32.mxu0 0.0
        %864 = vmatmul.mubr.f32.gmra.mrb[0].mxu0 %v731
        %v865 = vpop.f32.mrb[0].mxu0
        %v866 = vadd.f32 %v728, %v865
        %v867 = vpop.f32.mrb[0].mxu0
        %868 = vmatprep.mubr.f32.mxu0 0.0
        %869 = vmatmul.mubr.f32.gmra.mrb[0].mxu0 %v733
        %v870 = vpop.f32.mrb[0].mxu0
        %v871 = vadd.f32 %v728, %v870
        %v872 = vpop.f32.mrb[0].mxu0
        %873 = vmatprep.mubr.f32.mxu0 0.0
        %874 = vmatmul.mubr.f32.gmra.mrb[0].mxu0 %v735
        %v875 = vpop.f32.mrb[0].mxu0
        %v876 = vadd.f32 %v728, %v875
        %v877 = vpop.f32.mrb[0].mxu0
        %878 = vmatprep.mubr.f32.mxu0 0.0
        %879 = vmatmul.mubr.f32.gmra.mrb[0].mxu0 %v737
        %v880 = vpop.f32.mrb[0].mxu0
        %v881 = vadd.f32 %v728, %v880
        %v882 = vpop.f32.mrb[0].mxu0
        %883 = vmatprep.mubr.f32.mxu0 0.0
        %884 = vmatmul.mubr.f32.gmra.mrb[0].mxu0 %v739
        %v885 = vpop.f32.mrb[0].mxu0
        %v886 = vadd.f32 %v728, %v885
        %v887 = vpop.f32.mrb[0].mxu0
        %888 = vmatprep.mubr.f32.mxu0 0.0
        %889 = vmatmul.mubr.f32.gmra.mrb[0].mxu0 %v741
        %v890 = vpop.f32.mrb[0].mxu0
        %v891 = vadd.f32 %v728, %v890
        %v892 = vpop.f32.mrb[0].mxu0
        %893 = vmatprep.mubr.f32.mxu0 0.0
        %894 = vmatmul.mubr.f32.gmra.mrb[0].mxu0 %v743
        %v895 = vpop.f32.mrb[0].mxu0
        %v896 = vadd.f32 %v728, %v895
        %v897 = vpop.f32.mrb[0].mxu0
        %898 = vmatprep.mubr.f32.mxu0 0.0
        %899 = vmatmul.mubr.f32.gmra.mrb[0].mxu0 %v745
        %v900 = vpop.f32.mrb[0].mxu0
        %v901 = vadd.f32 %v728, %v900
        %v902 = vpop.f32.mrb[0].mxu0
        %903 = vmatprep.mubr.f32.mxu0 0.0
        %904 = vmatmul.mubr.f32.gmra.mrb[0].mxu0 %v747
        %v905 = vpop.f32.mrb[0].mxu0
        %v906 = vadd.f32 %v728, %v905
        %v907 = vpop.f32.mrb[0].mxu0
        %908 = vmatprep.mubr.f32.mxu0 0.0
        %909 = vmatmul.mubr.f32.gmra.mrb[0].mxu0 %v749
        %v910 = vpop.f32.mrb[0].mxu0
        %v911 = vadd.f32 %v728, %v910
        %v912 = vpop.f32.mrb[0].mxu0
        %913 = vmatprep.mubr.f32.mxu0 0.0
        %914 = vmatmul.mubr.f32.gmra.mrb[0].mxu0 %v751
        %v915 = vpop.f32.mrb[0].mxu0
        %v916 = vadd.f32 %v728, %v915
        %v917 = vpop.f32.mrb[0].mxu0
        %918 = vmatprep.mubr.f32.mxu0 0.0
        %919 = vmatmul.mubr.f32.gmra.mrb[0].mxu0 %v753
        %v920 = vpop.f32.mrb[0].mxu0
        %v921 = vadd.f32 %v728, %v920
        %v922 = vpop.f32.mrb[0].mxu0
        %923 = vmatprep.mubr.f32.mxu0 0.0
        %924 = vmatmul.mubr.f32.gmra.mrb[0].mxu0 %v755
        %v925 = vpop.f32.mrb[0].mxu0
        %v926 = vadd.f32 %v728, %v925
        %v927 = vpop.f32.mrb[0].mxu0
        %928 = vmatprep.mubr.f32.mxu0 0.0
        %929 = vmatmul.mubr.f32.gmra.mrb[0].mxu0 %v757
        %v930 = vpop.f32.mrb[0].mxu0
        %v931 = vadd.f32 %v728, %v930
        %v932 = vpop.f32.mrb[0].mxu0
        %933 = vmatprep.mubr.f32.mxu0 0.0
        %934 = vmatmul.mubr.f32.gmra.mrb[0].mxu0 %v759
        %v935 = vpop.f32.mrb[0].mxu0
        %v936 = vadd.f32 %v728, %v935
        %v937 = vpop.f32.mrb[0].mxu0
        %938 = vmatprep.mubr.f32.mxu0 0.0
        %939 = vmatmul.mubr.f32.gmra.mrb[0].mxu0 %v761
        %v940 = vpop.f32.mrb[0].mxu0
        %v941 = vadd.f32 %v728, %v940
        %v942 = vpop.f32.mrb[0].mxu0
        %943 = vmatprep.mubr.f32.mxu0 0.0
        %944 = vmatmul.mubr.f32.gmra.mrb[0].mxu0 %v763
        %v945 = vpop.f32.mrb[0].mxu0
        %v946 = vadd.f32 %v728, %v945
        %v947 = vpop.f32.mrb[0].mxu0
        %948 = vmatprep.mubr.f32.mxu0 0.0
        %949 = vmatmul.mubr.f32.gmra.mrb[0].mxu0 %v765
        %v950 = vpop.f32.mrb[0].mxu0
        %v951 = vadd.f32 %v728, %v950
        %v952 = vpop.f32.mrb[0].mxu0
        %953 = vmatprep.mubr.f32.mxu0 0.0
        %954 = vmatmul.mubr.f32.gmra.mrb[0].mxu0 %v767
        %v955 = vpop.f32.mrb[0].mxu0
        %v956 = vadd.f32 %v728, %v955
        %v957 = vpop.f32.mrb[0].mxu0
        %958 = vmatprep.mubr.f32.mxu0 0.0
        %959 = vmatmul.mubr.f32.gmra.mrb[0].mxu0 %v769
        %v960 = vpop.f32.mrb[0].mxu0
        %v961 = vadd.f32 %v728, %v960
        %v962 = vpop.f32.mrb[0].mxu0
        %963 = vmatprep.mubr.f32.mxu0 0.0
        %964 = vmatmul.mubr.f32.gmra.mrb[0].mxu0 %v771
        %v965 = vpop.f32.mrb[0].mxu0
        %v966 = vadd.f32 %v728, %v965
        %v967 = vpop.f32.mrb[0].mxu0
        %968 = vmatprep.mubr.f32.mxu0 0.0
        %969 = vmatmul.mubr.f32.gmra.mrb[0].mxu0 %v773
        %v970 = vpop.f32.mrb[0].mxu0
        %v971 = vadd.f32 %v728, %v970
        %v972 = vpop.f32.mrb[0].mxu0
        %973 = vmatprep.mubr.f32.mxu0 0.0
        %974 = vmatmul.mubr.f32.gmra.mrb[0].mxu0 %v775
        %v975 = vpop.f32.mrb[0].mxu0
        %v976 = vadd.f32 %v728, %v975
        %v977 = vpop.f32.mrb[0].mxu0
        %978 = vmatprep.mubr.f32.mxu0 0.0
        %979 = vmatmul.mubr.f32.gmra.mrb[0].mxu0 %v777
        %v980 = vpop.f32.mrb[0].mxu0
        %v981 = vadd.f32 %v728, %v980
        %v982 = vpop.f32.mrb[0].mxu0
        %983 = vmatprep.mubr.f32.mxu0 0.0
        %984 = vmatmul.mubr.f32.gmra.mrb[0].mxu0 %v779
        %v985 = vpop.f32.mrb[0].mxu0
        %v986 = vadd.f32 %v728, %v985
        %v987 = vpop.f32.mrb[0].mxu0
        %988 = vmatprep.mubr.f32.mxu0 0.0
        %989 = vmatmul.mubr.f32.gmra.mrb[0].mxu0 %v781
        %v990 = vpop.f32.mrb[0].mxu0
        %v991 = vadd.f32 %v728, %v990
        %v992 = vpop.f32.mrb[0].mxu0
        %993 = vmatprep.mubr.f32.mxu0 0.0
        %994 = vmatmul.mubr.f32.gmra.mrb[0].mxu0 %v783
        %v995 = vpop.f32.mrb[0].mxu0
        %v996 = vadd.f32 %v728, %v995
        %v997 = vpop.f32.mrb[0].mxu0
        %998 = vmatprep.mubr.f32.mxu0 0.0
        %999 = vmatmul.mubr.f32.gmra.mrb[0].mxu0 %v785
        %v1000 = vpop.f32.mrb[0].mxu0
        %v1001 = vadd.f32 %v728, %v1000
        %v1002 = vpop.f32.mrb[0].mxu0
        %1003 = vmatprep.mubr.f32.mxu0 0.0
        %1004 = vmatmul.mubr.f32.gmra.mrb[0].mxu0 %v787
        %v1005 = vpop.f32.mrb[0].mxu0
        %v1006 = vadd.f32 %v728, %v1005
        %v1007 = vpop.f32.mrb[0].mxu0
        %1008 = vmatprep.mubr.f32.mxu0 0.0
        %1009 = vmatmul.mubr.f32.gmra.mrb[0].mxu0 %v789
        %v1010 = vpop.f32.mrb[0].mxu0
        %v1011 = vadd.f32 %v728, %v1010
        %v1012 = vpop.f32.mrb[0].mxu0
        %1013 = vmatprep.mubr.f32.mxu0 0.0
        %1014 = vmatmul.mubr.f32.gmra.mrb[0].mxu0 %v791
        %v1015 = vpop.f32.mrb[0].mxu0
        %v1016 = vadd.f32 %v728, %v1015
        %v1017 = vpop.f32.mrb[0].mxu0
        %1018 = vmatprep.mubr.f32.mxu0 0.0
        %1019 = vmatmul.mubr.f32.gmra.mrb[0].mxu0 %v793
        %v1020 = vpop.f32.mrb[0].mxu0
        %v1021 = vadd.f32 %v728, %v1020
        %v1022 = vpop.f32.mrb[0].mxu0
        %1023 = vdwg.mxu0
        %v1024 = vmax.f32 %v866, 0.0
        %v1025 = vmax.f32 %v871, 0.0
        %v1026 = vmax.f32 %v876, 0.0
        %v1027 = vmax.f32 %v881, 0.0
        %v1028 = vmax.f32 %v886, 0.0
        %v1029 = vmax.f32 %v891, 0.0
        %v1030 = vmax.f32 %v896, 0.0
        %v1031 = vmax.f32 %v901, 0.0
        %v1032 = vmax.f32 %v906, 0.0
        %v1033 = vmax.f32 %v911, 0.0
        %v1034 = vmax.f32 %v916, 0.0
        %v1035 = vmax.f32 %v921, 0.0
        %v1036 = vmax.f32 %v926, 0.0
        %v1037 = vmax.f32 %v931, 0.0
        %v1038 = vmax.f32 %v936, 0.0
        %v1039 = vmax.f32 %v941, 0.0
        %v1040 = vmax.f32 %v946, 0.0
        %v1041 = vmax.f32 %v951, 0.0
        %v1042 = vmax.f32 %v956, 0.0
        %v1043 = vmax.f32 %v961, 0.0
        %v1044 = vmax.f32 %v966, 0.0
        %v1045 = vmax.f32 %v971, 0.0
        %v1046 = vmax.f32 %v976, 0.0
        %v1047 = vmax.f32 %v981, 0.0
        %v1048 = vmax.f32 %v986, 0.0
        %v1049 = vmax.f32 %v991, 0.0
        %v1050 = vmax.f32 %v996, 0.0
        %v1051 = vmax.f32 %v1001, 0.0
        %v1052 = vmax.f32 %v1006, 0.0
        %v1053 = vmax.f32 %v1011, 0.0
        %v1054 = vmax.f32 %v1016, 0.0
        %v1055 = vmax.f32 %v1021, 0.0
        %v1056 = vmax.f32 %v443, %v494
        %v1057 = vmax.f32 %v444, %v495
        %v1058 = vmax.f32 %v445, %v496
        %v1059 = vmax.f32 %v446, %v497
        %v1060 = vmax.f32 %v447, %v498
        %v1061 = vmax.f32 %v448, %v499
        %v1062 = vmax.f32 %v449, %v500
        %v1063 = vmax.f32 %v450, %v501
        %v1064 = vmax.f32 %v451, %v502
        %v1065 = vmax.f32 %v452, %v503
        %v1066 = vmax.f32 %v453, %v504
        %v1067 = vmax.f32 %v454, %v505
        %v1068 = vmax.f32 %v455, %v506
        %v1069 = vmax.f32 %v456, %v507
        %v1070 = vmax.f32 %v457, %v508
        %v1071 = vmax.f32 %v458, %v509
        %v1072 = vmax.f32 %v459, %v510
        %v1073 = vmax.f32 %v460, %v511
        %v1074 = vmax.f32 %v461, %v512
        %v1075 = vmax.f32 %v462, %v513
        %v1076 = vmax.f32 %v463, %v514
        %v1077 = vmax.f32 %v464, %v515
        %v1078 = vmax.f32 %v465, %v516
        %v1079 = vmax.f32 %v466, %v517
        %v1080 = vmax.f32 %v467, %v518
        %v1081 = vmax.f32 %v468, %v519
        %v1082 = vmax.f32 %v469, %v520
        %v1083 = vmax.f32 %v470, %v521
        %v1084 = vmax.f32 %v471, %v522
        %v1085 = vmax.f32 %v472, %v523
        %v1086 = vmax.f32 %v473, %v524
        %v1087 = vmax.f32 %v474, %v525
        %v1088 = vmax.f32 %v475, %v526
        %v1089 = vmax.f32 %v476, %v527
        %v1090 = vmax.f32 %v477, %v528
        %v1091 = vmax.f32 %v478, %v529
        %v1092 = vmax.f32 %v479, %v530
        %v1093 = vmax.f32 %v480, %v531
        %v1094 = vmax.f32 %v481, %v532
        %v1095 = vmax.f32 %v482, %v533
        %v1096 = vmax.f32 %v483, %v534
        %v1097 = vmax.f32 %v484, %v535
        %v1098 = vmax.f32 %v485, %v536
        %v1099 = vmax.f32 %v486, %v537
        %v1100 = vmax.f32 %v487, %v538
        %v1101 = vmax.f32 %v488, %v539
        %v1102 = vmax.f32 %v489, %v540
        %v1103 = vmax.f32 %v490, %v541
        %v1104 = vmax.f32 %v1056, %v545
        %v1105 = vmax.f32 %v1057, %v546
        %v1106 = vmax.f32 %v1058, %v547
        %v1107 = vmax.f32 %v1059, %v548
        %v1108 = vmax.f32 %v1060, %v549
        %v1109 = vmax.f32 %v1061, %v550
        %v1110 = vmax.f32 %v1062, %v551
        %v1111 = vmax.f32 %v1063, %v552
        %v1112 = vmax.f32 %v1064, %v553
        %v1113 = vmax.f32 %v1065, %v554
        %v1114 = vmax.f32 %v1066, %v555
        %v1115 = vmax.f32 %v1067, %v556
        %v1116 = vmax.f32 %v1068, %v557
        %v1117 = vmax.f32 %v1069, %v558
        %v1118 = vmax.f32 %v1070, %v559
        %v1119 = vmax.f32 %v1071, %v560
        %v1120 = vmax.f32 %v1072, %v561
        %v1121 = vmax.f32 %v1073, %v562
        %v1122 = vmax.f32 %v1074, %v563
        %v1123 = vmax.f32 %v1075, %v564
        %v1124 = vmax.f32 %v1076, %v565
        %v1125 = vmax.f32 %v1077, %v566
        %v1126 = vmax.f32 %v1078, %v567
        %v1127 = vmax.f32 %v1079, %v568
        %v1128 = vmax.f32 %v1080, %v569
        %v1129 = vmax.f32 %v1081, %v570
        %v1130 = vmax.f32 %v1082, %v571
        %v1131 = vmax.f32 %v1083, %v572
        %v1132 = vmax.f32 %v1084, %v573
        %v1133 = vmax.f32 %v1085, %v574
        %v1134 = vmax.f32 %v1086, %v575
        %v1135 = vmax.f32 %v1087, %v576
        %v1136 = vmax.f32 %v1088, %v577
        %v1137 = vmax.f32 %v1089, %v578
        %v1138 = vmax.f32 %v1090, %v579
        %v1139 = vmax.f32 %v1091, %v580
        %v1140 = vmax.f32 %v1092, %v581
        %v1141 = vmax.f32 %v1093, %v582
        %v1142 = vmax.f32 %v1094, %v583
        %v1143 = vmax.f32 %v1095, %v584
        %v1144 = vmax.f32 %v1096, %v585
        %v1145 = vmax.f32 %v1097, %v586
        %v1146 = vmax.f32 %v1098, %v587
        %v1147 = vmax.f32 %v1099, %v588
        %v1148 = vmax.f32 %v1100, %v589
        %v1149 = vmax.f32 %v1101, %v590
        %v1150 = vmax.f32 %v1102, %v591
        %v1151 = vmax.f32 %v1103, %v592
        %v1200 = vrot.slane %v1104, 1
        %v1201 = vrot.slane %v1105, 1
        %v1202 = vsel %vm641, %v1200, %v1201
        %v1203 = vrot.slane %v1106, 1
        %v1204 = vsel %vm641, %v1201, %v1203
        %v1205 = vrot.slane %v1107, 1
        %v1206 = vrot.slane %v1108, 1
        %v1207 = vsel %vm641, %v1205, %v1206
        %v1208 = vrot.slane %v1109, 1
        %v1209 = vsel %vm641, %v1206, %v1208
        %v1210 = vrot.slane %v1110, 1
        %v1211 = vrot.slane %v1111, 1
        %v1212 = vsel %vm641, %v1210, %v1211
        %v1213 = vrot.slane %v1112, 1
        %v1214 = vsel %vm641, %v1211, %v1213
        %v1215 = vrot.slane %v1113, 1
        %v1216 = vrot.slane %v1114, 1
        %v1217 = vsel %vm641, %v1215, %v1216
        %v1218 = vrot.slane %v1115, 1
        %v1219 = vsel %vm641, %v1216, %v1218
        %v1220 = vrot.slane %v1116, 1
        %v1221 = vrot.slane %v1117, 1
        %v1222 = vsel %vm641, %v1220, %v1221
        %v1223 = vrot.slane %v1118, 1
        %v1224 = vsel %vm641, %v1221, %v1223
        %v1225 = vrot.slane %v1119, 1
        %v1226 = vrot.slane %v1120, 1
        %v1227 = vsel %vm641, %v1225, %v1226
        %v1228 = vrot.slane %v1121, 1
        %v1229 = vsel %vm641, %v1226, %v1228
        %v1230 = vrot.slane %v1122, 1
        %v1231 = vrot.slane %v1123, 1
        %v1232 = vsel %vm641, %v1230, %v1231
        %v1233 = vrot.slane %v1124, 1
        %v1234 = vsel %vm641, %v1231, %v1233
        %v1235 = vrot.slane %v1125, 1
        %v1236 = vrot.slane %v1126, 1
        %v1237 = vsel %vm641, %v1235, %v1236
        %v1238 = vrot.slane %v1127, 1
        %v1239 = vsel %vm641, %v1236, %v1238
        %v1240 = vrot.slane %v1128, 1
        %v1241 = vrot.slane %v1129, 1
        %v1242 = vsel %vm641, %v1240, %v1241
        %v1243 = vrot.slane %v1130, 1
        %v1244 = vsel %vm641, %v1241, %v1243
        %v1245 = vrot.slane %v1131, 1
        %v1246 = vrot.slane %v1132, 1
        %v1247 = vsel %vm641, %v1245, %v1246
        %v1248 = vrot.slane %v1133, 1
        %v1249 = vsel %vm641, %v1246, %v1248
        %v1250 = vrot.slane %v1134, 1
        %v1251 = vrot.slane %v1135, 1
        %v1252 = vsel %vm641, %v1250, %v1251
        %v1253 = vrot.slane %v1136, 1
        %v1254 = vsel %vm641, %v1251, %v1253
        %v1255 = vrot.slane %v1137, 1
        %v1256 = vrot.slane %v1138, 1
        %v1257 = vsel %vm641, %v1255, %v1256
        %v1258 = vrot.slane %v1139, 1
        %v1259 = vsel %vm641, %v1256, %v1258
        %v1260 = vrot.slane %v1140, 1
        %v1261 = vrot.slane %v1141, 1
        %v1262 = vsel %vm641, %v1260, %v1261
        %v1263 = vrot.slane %v1142, 1
        %v1264 = vsel %vm641, %v1261, %v1263
        %v1265 = vrot.slane %v1143, 1
        %v1266 = vrot.slane %v1144, 1
        %v1267 = vsel %vm641, %v1265, %v1266
        %v1268 = vrot.slane %v1145, 1
        %v1269 = vsel %vm641, %v1266, %v1268
        %v1270 = vrot.slane %v1146, 1
        %v1271 = vrot.slane %v1147, 1
        %v1272 = vsel %vm641, %v1270, %v1271
        %v1273 = vrot.slane %v1148, 1
        %v1274 = vsel %vm641, %v1271, %v1273
        %v1275 = vrot.slane %v1149, 1
        %v1276 = vrot.slane %v1150, 1
        %v1277 = vsel %vm641, %v1275, %v1276
        %v1278 = vrot.slane %v1151, 1
        %v1279 = vsel %vm641, %v1276, %v1278
        %v1312 = vmax.f32 %v1104, %v1202
        %v1313 = vmax.f32 %v1105, %v1204
        %v1314 = vmax.f32 %v1107, %v1207
        %v1315 = vmax.f32 %v1108, %v1209
        %v1316 = vmax.f32 %v1110, %v1212
        %v1317 = vmax.f32 %v1111, %v1214
        %v1318 = vmax.f32 %v1113, %v1217
        %v1319 = vmax.f32 %v1114, %v1219
        %v1320 = vmax.f32 %v1116, %v1222
        %v1321 = vmax.f32 %v1117, %v1224
        %v1322 = vmax.f32 %v1119, %v1227
        %v1323 = vmax.f32 %v1120, %v1229
        %v1324 = vmax.f32 %v1122, %v1232
        %v1325 = vmax.f32 %v1123, %v1234
        %v1326 = vmax.f32 %v1125, %v1237
        %v1327 = vmax.f32 %v1126, %v1239
        %v1328 = vmax.f32 %v1128, %v1242
        %v1329 = vmax.f32 %v1129, %v1244
        %v1330 = vmax.f32 %v1131, %v1247
        %v1331 = vmax.f32 %v1132, %v1249
        %v1332 = vmax.f32 %v1134, %v1252
        %v1333 = vmax.f32 %v1135, %v1254
        %v1334 = vmax.f32 %v1137, %v1257
        %v1335 = vmax.f32 %v1138, %v1259
        %v1336 = vmax.f32 %v1140, %v1262
        %v1337 = vmax.f32 %v1141, %v1264
        %v1338 = vmax.f32 %v1143, %v1267
        %v1339 = vmax.f32 %v1144, %v1269
        %v1340 = vmax.f32 %v1146, %v1272
        %v1341 = vmax.f32 %v1147, %v1274
        %v1342 = vmax.f32 %v1149, %v1277
        %v1343 = vmax.f32 %v1150, %v1279
        %vm1344 = vcmask 1045504
        %v1345 = vrot.slane %v1104, 2
        %v1346 = vrot.slane %v1105, 2
        %v1347 = vsel %vm1344, %v1345, %v1346
        %v1348 = vrot.slane %v1106, 2
        %v1349 = vsel %vm1344, %v1346, %v1348
        %v1350 = vrot.slane %v1107, 2
        %v1351 = vrot.slane %v1108, 2
        %v1352 = vsel %vm1344, %v1350, %v1351
        %v1353 = vrot.slane %v1109, 2
        %v1354 = vsel %vm1344, %v1351, %v1353
        %v1355 = vrot.slane %v1110, 2
        %v1356 = vrot.slane %v1111, 2
        %v1357 = vsel %vm1344, %v1355, %v1356
        %v1358 = vrot.slane %v1112, 2
        %v1359 = vsel %vm1344, %v1356, %v1358
        %v1360 = vrot.slane %v1113, 2
        %v1361 = vrot.slane %v1114, 2
        %v1362 = vsel %vm1344, %v1360, %v1361
        %v1363 = vrot.slane %v1115, 2
        %v1364 = vsel %vm1344, %v1361, %v1363
        %v1365 = vrot.slane %v1116, 2
        %v1366 = vrot.slane %v1117, 2
        %v1367 = vsel %vm1344, %v1365, %v1366
        %v1368 = vrot.slane %v1118, 2
        %v1369 = vsel %vm1344, %v1366, %v1368
        %v1370 = vrot.slane %v1119, 2
        %v1371 = vrot.slane %v1120, 2
        %v1372 = vsel %vm1344, %v1370, %v1371
        %v1373 = vrot.slane %v1121, 2
        %v1374 = vsel %vm1344, %v1371, %v1373
        %v1375 = vrot.slane %v1122, 2
        %v1376 = vrot.slane %v1123, 2
        %v1377 = vsel %vm1344, %v1375, %v1376
        %v1378 = vrot.slane %v1124, 2
        %v1379 = vsel %vm1344, %v1376, %v1378
        %v1380 = vrot.slane %v1125, 2
        %v1381 = vrot.slane %v1126, 2
        %v1382 = vsel %vm1344, %v1380, %v1381
        %v1383 = vrot.slane %v1127, 2
        %v1384 = vsel %vm1344, %v1381, %v1383
        %v1385 = vrot.slane %v1128, 2
        %v1386 = vrot.slane %v1129, 2
        %v1387 = vsel %vm1344, %v1385, %v1386
        %v1388 = vrot.slane %v1130, 2
        %v1389 = vsel %vm1344, %v1386, %v1388
        %v1390 = vrot.slane %v1131, 2
        %v1391 = vrot.slane %v1132, 2
        %v1392 = vsel %vm1344, %v1390, %v1391
        %v1393 = vrot.slane %v1133, 2
        %v1394 = vsel %vm1344, %v1391, %v1393
        %v1395 = vrot.slane %v1134, 2
        %v1396 = vrot.slane %v1135, 2
        %v1397 = vsel %vm1344, %v1395, %v1396
        %v1398 = vrot.slane %v1136, 2
        %v1399 = vsel %vm1344, %v1396, %v1398
        %v1400 = vrot.slane %v1137, 2
        %v1401 = vrot.slane %v1138, 2
        %v1402 = vsel %vm1344, %v1400, %v1401
        %v1403 = vrot.slane %v1139, 2
        %v1404 = vsel %vm1344, %v1401, %v1403
        %v1405 = vrot.slane %v1140, 2
        %v1406 = vrot.slane %v1141, 2
        %v1407 = vsel %vm1344, %v1405, %v1406
        %v1408 = vrot.slane %v1142, 2
        %v1409 = vsel %vm1344, %v1406, %v1408
        %v1410 = vrot.slane %v1143, 2
        %v1411 = vrot.slane %v1144, 2
        %v1412 = vsel %vm1344, %v1410, %v1411
        %v1413 = vrot.slane %v1145, 2
        %v1414 = vsel %vm1344, %v1411, %v1413
        %v1415 = vrot.slane %v1146, 2
        %v1416 = vrot.slane %v1147, 2
        %v1417 = vsel %vm1344, %v1415, %v1416
        %v1418 = vrot.slane %v1148, 2
        %v1419 = vsel %vm1344, %v1416, %v1418
        %v1420 = vrot.slane %v1149, 2
        %v1421 = vrot.slane %v1150, 2
        %v1422 = vsel %vm1344, %v1420, %v1421
        %v1423 = vrot.slane %v1151, 2
        %v1424 = vsel %vm1344, %v1421, %v1423
        %v1457 = vmax.f32 %v1312, %v1347
        %v1458 = vmax.f32 %v1313, %v1349
        %v1459 = vmax.f32 %v1314, %v1352
        %v1460 = vmax.f32 %v1315, %v1354
        %v1461 = vmax.f32 %v1316, %v1357
        %v1462 = vmax.f32 %v1317, %v1359
        %v1463 = vmax.f32 %v1318, %v1362
        %v1464 = vmax.f32 %v1319, %v1364
        %v1465 = vmax.f32 %v1320, %v1367
        %v1466 = vmax.f32 %v1321, %v1369
        %v1467 = vmax.f32 %v1322, %v1372
        %v1468 = vmax.f32 %v1323, %v1374
        %v1469 = vmax.f32 %v1324, %v1377
        %v1470 = vmax.f32 %v1325, %v1379
        %v1471 = vmax.f32 %v1326, %v1382
        %v1472 = vmax.f32 %v1327, %v1384
        %v1473 = vmax.f32 %v1328, %v1387
        %v1474 = vmax.f32 %v1329, %v1389
        %v1475 = vmax.f32 %v1330, %v1392
        %v1476 = vmax.f32 %v1331, %v1394
        %v1477 = vmax.f32 %v1332, %v1397
        %v1478 = vmax.f32 %v1333, %v1399
        %v1479 = vmax.f32 %v1334, %v1402
        %v1480 = vmax.f32 %v1335, %v1404
        %v1481 = vmax.f32 %v1336, %v1407
        %v1482 = vmax.f32 %v1337, %v1409
        %v1483 = vmax.f32 %v1338, %v1412
        %v1484 = vmax.f32 %v1339, %v1414
        %v1485 = vmax.f32 %v1340, %v1417
        %v1486 = vmax.f32 %v1341, %v1419
        %v1487 = vmax.f32 %v1342, %v1422
        %v1488 = vmax.f32 %v1343, %v1424
        %v1489 = vld [vmem:[%s9] sm:$0xf]
        %v1490 = vld [vmem:[%s10] sm:$0x1]
        %v1492 = vlaneseq
        %v1493 = vshrl.u32 %v1492, 7
        %v1494 = vsub.s32 0, %v1493
        %v1495 = vrot.slane %v1490, %v1494
        %v1498 = vsel %vm730, %v1457, 0
        %v1501 = vsel %vm730, %v1458, 0
        %v1504 = vsel %vm730, %v1459, 0
        %v1507 = vsel %vm730, %v1460, 0
        %v1510 = vsel %vm730, %v1461, 0
        %v1513 = vsel %vm730, %v1462, 0
        %v1516 = vsel %vm730, %v1463, 0
        %v1519 = vsel %vm730, %v1464, 0
        %v1522 = vsel %vm730, %v1465, 0
        %v1525 = vsel %vm730, %v1466, 0
        %v1528 = vsel %vm730, %v1467, 0
        %v1531 = vsel %vm730, %v1468, 0
        %v1534 = vsel %vm730, %v1469, 0
        %v1537 = vsel %vm730, %v1470, 0
        %v1540 = vsel %vm730, %v1471, 0
        %v1543 = vsel %vm730, %v1472, 0
        %v1546 = vsel %vm730, %v1473, 0
        %v1549 = vsel %vm730, %v1474, 0
        %v1552 = vsel %vm730, %v1475, 0
        %v1555 = vsel %vm730, %v1476, 0
        %v1558 = vsel %vm730, %v1477, 0
        %v1561 = vsel %vm730, %v1478, 0
        %v1564 = vsel %vm730, %v1479, 0
        %v1567 = vsel %vm730, %v1480, 0
        %v1570 = vsel %vm730, %v1481, 0
        %v1573 = vsel %vm730, %v1482, 0
        %v1576 = vsel %vm730, %v1483, 0
        %v1579 = vsel %vm730, %v1484, 0
        %v1582 = vsel %vm730, %v1485, 0
        %v1585 = vsel %vm730, %v1486, 0
        %v1588 = vsel %vm730, %v1487, 0
        %v1591 = vsel %vm730, %v1488, 0
        %v1594 = vsel %vm795, %v1489, 0
        %1596 = vmatprep.subr.mxu0 0.0
        %1597 = vmatpush1.msra.mxu0 %v1594
        %1598 = vmatprep.subr.mxu0 0.0
        %1599 = vmatpush1.msra.mxu0 0.0
        %1600 = vmatprep.subr.mxu0 0.0
        %1601 = vmatpush1.msra.mxu0 0.0
        %1602 = vmatprep.subr.mxu0 0.0
        %1603 = vmatpush1.msra.mxu0 0.0
        %1604 = vmatprep.subr.mxu0 0.0
        %1605 = vmatpush1.msra.mxu0 0.0
        %1606 = vmatprep.subr.mxu0 0.0
        %1607 = vmatpush1.msra.mxu0 0.0
        %1608 = vmatprep.subr.mxu0 0.0
        %1609 = vmatpush1.msra.mxu0 0.0
        %1610 = vmatprep.subr.mxu0 0.0
        %1611 = vmatpush1.msra.mxu0 0.0
        %1612 = vmatprep.subr.mxu0 0.0
        %1613 = vmatpush1.msra.mxu0 0.0
        %1614 = vmatprep.subr.mxu0 0.0
        %1615 = vmatpush1.msra.mxu0 0.0
        %1616 = vmatprep.subr.mxu0 0.0
        %1617 = vmatpush1.msra.mxu0 0.0
        %1618 = vmatprep.subr.mxu0 0.0
        %1619 = vmatpush1.msra.mxu0 0.0
        %1620 = vmatprep.subr.mxu0 0.0
        %1621 = vmatpush1.msra.mxu0 0.0
        %1622 = vmatprep.subr.mxu0 0.0
        %1623 = vmatpush1.msra.mxu0 0.0
        %1624 = vmatprep.subr.mxu0 0.0
        %1625 = vmatpush1.msra.mxu0 0.0
        %1626 = vmatprep.subr.mxu0 0.0
        %1627 = vmatpush1.msra.mxu0 0.0
        %1628 = vmatprep.subr.mxu0 0.0
        %1629 = vmatpush1.msra.mxu0 0.0
        %1630 = vmatprep.subr.mxu0 0.0
        %1631 = vmatpush1.msra.mxu0 0.0
        %1632 = vmatprep.subr.mxu0 0.0
        %1633 = vmatpush1.msra.mxu0 0.0
        %1634 = vmatprep.subr.mxu0 0.0
        %1635 = vmatpush1.msra.mxu0 0.0
        %1636 = vmatprep.subr.mxu0 0.0
        %1637 = vmatpush1.msra.mxu0 0.0
        %1638 = vmatprep.subr.mxu0 0.0
        %1639 = vmatpush1.msra.mxu0 0.0
        %1640 = vmatprep.subr.mxu0 0.0
        %1641 = vmatpush1.msra.mxu0 0.0
        %1642 = vmatprep.subr.mxu0 0.0
        %1643 = vmatpush1.msra.mxu0 0.0
        %1644 = vmatprep.subr.mxu0 0.0
        %1645 = vmatpush1.msra.mxu0 0.0
        %1646 = vmatprep.subr.mxu0 0.0
        %1647 = vmatpush1.msra.mxu0 0.0
        %1648 = vmatprep.subr.mxu0 0.0
        %1649 = vmatpush1.msra.mxu0 0.0
        %1650 = vmatprep.subr.mxu0 0.0
        %1651 = vmatpush1.msra.mxu0 0.0
        %1652 = vmatprep.subr.mxu0 0.0
        %1653 = vmatpush1.msra.mxu0 0.0
        %1654 = vmatprep.subr.mxu0 0.0
        %1655 = vmatpush1.msra.mxu0 0.0
        %1656 = vmatprep.subr.mxu0 0.0
        %1657 = vmatpush1.msra.mxu0 0.0
        %1658 = vmatprep.subr.mxu0 0.0
        %1659 = vmatpush1.msra.mxu0 0.0
        %1660 = vmatprep.mubr.f32.mxu0 0.0
        %1661 = vmatmul.mubr.f32.gmra.mrb[0].mxu0 %v1498
        %v1662 = vpop.f32.mrb[0].mxu0
        %v1663 = vadd.f32 %v1495, %v1662
        %v1664 = vpop.f32.mrb[0].mxu0
        %1665 = vmatprep.mubr.f32.mxu0 0.0
        %1666 = vmatmul.mubr.f32.gmra.mrb[0].mxu0 %v1501
        %v1667 = vpop.f32.mrb[0].mxu0
        %v1668 = vadd.f32 %v1495, %v1667
        %v1669 = vpop.f32.mrb[0].mxu0
        %1670 = vmatprep.mubr.f32.mxu0 0.0
        %1671 = vmatmul.mubr.f32.gmra.mrb[0].mxu0 %v1504
        %v1672 = vpop.f32.mrb[0].mxu0
        %v1673 = vadd.f32 %v1495, %v1672
        %v1674 = vpop.f32.mrb[0].mxu0
        %1675 = vmatprep.mubr.f32.mxu0 0.0
        %1676 = vmatmul.mubr.f32.gmra.mrb[0].mxu0 %v1507
        %v1677 = vpop.f32.mrb[0].mxu0
        %v1678 = vadd.f32 %v1495, %v1677
        %v1679 = vpop.f32.mrb[0].mxu0
        %1680 = vmatprep.mubr.f32.mxu0 0.0
        %1681 = vmatmul.mubr.f32.gmra.mrb[0].mxu0 %v1510
        %v1682 = vpop.f32.mrb[0].mxu0
        %v1683 = vadd.f32 %v1495, %v1682
        %v1684 = vpop.f32.mrb[0].mxu0
        %1685 = vmatprep.mubr.f32.mxu0 0.0
        %1686 = vmatmul.mubr.f32.gmra.mrb[0].mxu0 %v1513
        %v1687 = vpop.f32.mrb[0].mxu0
        %v1688 = vadd.f32 %v1495, %v1687
        %v1689 = vpop.f32.mrb[0].mxu0
        %1690 = vmatprep.mubr.f32.mxu0 0.0
        %1691 = vmatmul.mubr.f32.gmra.mrb[0].mxu0 %v1516
        %v1692 = vpop.f32.mrb[0].mxu0
        %v1693 = vadd.f32 %v1495, %v1692
        %v1694 = vpop.f32.mrb[0].mxu0
        %1695 = vmatprep.mubr.f32.mxu0 0.0
        %1696 = vmatmul.mubr.f32.gmra.mrb[0].mxu0 %v1519
        %v1697 = vpop.f32.mrb[0].mxu0
        %v1698 = vadd.f32 %v1495, %v1697
        %v1699 = vpop.f32.mrb[0].mxu0
        %1700 = vmatprep.mubr.f32.mxu0 0.0
        %1701 = vmatmul.mubr.f32.gmra.mrb[0].mxu0 %v1522
        %v1702 = vpop.f32.mrb[0].mxu0
        %v1703 = vadd.f32 %v1495, %v1702
        %v1704 = vpop.f32.mrb[0].mxu0
        %1705 = vmatprep.mubr.f32.mxu0 0.0
        %1706 = vmatmul.mubr.f32.gmra.mrb[0].mxu0 %v1525
        %v1707 = vpop.f32.mrb[0].mxu0
        %v1708 = vadd.f32 %v1495, %v1707
        %v1709 = vpop.f32.mrb[0].mxu0
        %1710 = vmatprep.mubr.f32.mxu0 0.0
        %1711 = vmatmul.mubr.f32.gmra.mrb[0].mxu0 %v1528
        %v1712 = vpop.f32.mrb[0].mxu0
        %v1713 = vadd.f32 %v1495, %v1712
        %v1714 = vpop.f32.mrb[0].mxu0
        %1715 = vmatprep.mubr.f32.mxu0 0.0
        %1716 = vmatmul.mubr.f32.gmra.mrb[0].mxu0 %v1531
        %v1717 = vpop.f32.mrb[0].mxu0
        %v1718 = vadd.f32 %v1495, %v1717
        %v1719 = vpop.f32.mrb[0].mxu0
        %1720 = vmatprep.mubr.f32.mxu0 0.0
        %1721 = vmatmul.mubr.f32.gmra.mrb[0].mxu0 %v1534
        %v1722 = vpop.f32.mrb[0].mxu0
        %v1723 = vadd.f32 %v1495, %v1722
        %v1724 = vpop.f32.mrb[0].mxu0
        %1725 = vmatprep.mubr.f32.mxu0 0.0
        %1726 = vmatmul.mubr.f32.gmra.mrb[0].mxu0 %v1537
        %v1727 = vpop.f32.mrb[0].mxu0
        %v1728 = vadd.f32 %v1495, %v1727
        %v1729 = vpop.f32.mrb[0].mxu0
        %1730 = vmatprep.mubr.f32.mxu0 0.0
        %1731 = vmatmul.mubr.f32.gmra.mrb[0].mxu0 %v1540
        %v1732 = vpop.f32.mrb[0].mxu0
        %v1733 = vadd.f32 %v1495, %v1732
        %v1734 = vpop.f32.mrb[0].mxu0
        %1735 = vmatprep.mubr.f32.mxu0 0.0
        %1736 = vmatmul.mubr.f32.gmra.mrb[0].mxu0 %v1543
        %v1737 = vpop.f32.mrb[0].mxu0
        %v1738 = vadd.f32 %v1495, %v1737
        %v1739 = vpop.f32.mrb[0].mxu0
        %1740 = vmatprep.mubr.f32.mxu0 0.0
        %1741 = vmatmul.mubr.f32.gmra.mrb[0].mxu0 %v1546
        %v1742 = vpop.f32.mrb[0].mxu0
        %v1743 = vadd.f32 %v1495, %v1742
        %v1744 = vpop.f32.mrb[0].mxu0
        %1745 = vmatprep.mubr.f32.mxu0 0.0
        %1746 = vmatmul.mubr.f32.gmra.mrb[0].mxu0 %v1549
        %v1747 = vpop.f32.mrb[0].mxu0
        %v1748 = vadd.f32 %v1495, %v1747
        %v1749 = vpop.f32.mrb[0].mxu0
        %1750 = vmatprep.mubr.f32.mxu0 0.0
        %1751 = vmatmul.mubr.f32.gmra.mrb[0].mxu0 %v1552
        %v1752 = vpop.f32.mrb[0].mxu0
        %v1753 = vadd.f32 %v1495, %v1752
        %v1754 = vpop.f32.mrb[0].mxu0
        %1755 = vmatprep.mubr.f32.mxu0 0.0
        %1756 = vmatmul.mubr.f32.gmra.mrb[0].mxu0 %v1555
        %v1757 = vpop.f32.mrb[0].mxu0
        %v1758 = vadd.f32 %v1495, %v1757
        %v1759 = vpop.f32.mrb[0].mxu0
        %1760 = vmatprep.mubr.f32.mxu0 0.0
        %1761 = vmatmul.mubr.f32.gmra.mrb[0].mxu0 %v1558
        %v1762 = vpop.f32.mrb[0].mxu0
        %v1763 = vadd.f32 %v1495, %v1762
        %v1764 = vpop.f32.mrb[0].mxu0
        %1765 = vmatprep.mubr.f32.mxu0 0.0
        %1766 = vmatmul.mubr.f32.gmra.mrb[0].mxu0 %v1561
        %v1767 = vpop.f32.mrb[0].mxu0
        %v1768 = vadd.f32 %v1495, %v1767
        %v1769 = vpop.f32.mrb[0].mxu0
        %1770 = vmatprep.mubr.f32.mxu0 0.0
        %1771 = vmatmul.mubr.f32.gmra.mrb[0].mxu0 %v1564
        %v1772 = vpop.f32.mrb[0].mxu0
        %v1773 = vadd.f32 %v1495, %v1772
        %v1774 = vpop.f32.mrb[0].mxu0
        %1775 = vmatprep.mubr.f32.mxu0 0.0
        %1776 = vmatmul.mubr.f32.gmra.mrb[0].mxu0 %v1567
        %v1777 = vpop.f32.mrb[0].mxu0
        %v1778 = vadd.f32 %v1495, %v1777
        %v1779 = vpop.f32.mrb[0].mxu0
        %1780 = vmatprep.mubr.f32.mxu0 0.0
        %1781 = vmatmul.mubr.f32.gmra.mrb[0].mxu0 %v1570
        %v1782 = vpop.f32.mrb[0].mxu0
        %v1783 = vadd.f32 %v1495, %v1782
        %v1784 = vpop.f32.mrb[0].mxu0
        %1785 = vmatprep.mubr.f32.mxu0 0.0
        %1786 = vmatmul.mubr.f32.gmra.mrb[0].mxu0 %v1573
        %v1787 = vpop.f32.mrb[0].mxu0
        %v1788 = vadd.f32 %v1495, %v1787
        %v1789 = vpop.f32.mrb[0].mxu0
        %1790 = vmatprep.mubr.f32.mxu0 0.0
        %1791 = vmatmul.mubr.f32.gmra.mrb[0].mxu0 %v1576
        %v1792 = vpop.f32.mrb[0].mxu0
        %v1793 = vadd.f32 %v1495, %v1792
        %v1794 = vpop.f32.mrb[0].mxu0
        %1795 = vmatprep.mubr.f32.mxu0 0.0
        %1796 = vmatmul.mubr.f32.gmra.mrb[0].mxu0 %v1579
        %v1797 = vpop.f32.mrb[0].mxu0
        %v1798 = vadd.f32 %v1495, %v1797
        %v1799 = vpop.f32.mrb[0].mxu0
        %1800 = vmatprep.mubr.f32.mxu0 0.0
        %1801 = vmatmul.mubr.f32.gmra.mrb[0].mxu0 %v1582
        %v1802 = vpop.f32.mrb[0].mxu0
        %v1803 = vadd.f32 %v1495, %v1802
        %v1804 = vpop.f32.mrb[0].mxu0
        %1805 = vmatprep.mubr.f32.mxu0 0.0
        %1806 = vmatmul.mubr.f32.gmra.mrb[0].mxu0 %v1585
        %v1807 = vpop.f32.mrb[0].mxu0
        %v1808 = vadd.f32 %v1495, %v1807
        %v1809 = vpop.f32.mrb[0].mxu0
        %1810 = vmatprep.mubr.f32.mxu0 0.0
        %1811 = vmatmul.mubr.f32.gmra.mrb[0].mxu0 %v1588
        %v1812 = vpop.f32.mrb[0].mxu0
        %v1813 = vadd.f32 %v1495, %v1812
        %v1814 = vpop.f32.mrb[0].mxu0
        %1815 = vmatprep.mubr.f32.mxu0 0.0
        %1816 = vmatmul.mubr.f32.gmra.mrb[0].mxu0 %v1591
        %v1817 = vpop.f32.mrb[0].mxu0
        %v1818 = vadd.f32 %v1495, %v1817
        %v1819 = vpop.f32.mrb[0].mxu0
        %1820 = vdwg.mxu0
        %v1821 = vmax.f32 %v1663, 0.0
        %v1822 = vmax.f32 %v1668, 0.0
        %v1823 = vmax.f32 %v1673, 0.0
        %v1824 = vmax.f32 %v1678, 0.0
        %v1825 = vmax.f32 %v1683, 0.0
        %v1826 = vmax.f32 %v1688, 0.0
        %v1827 = vmax.f32 %v1693, 0.0
        %v1828 = vmax.f32 %v1698, 0.0
        %v1829 = vmax.f32 %v1703, 0.0
        %v1830 = vmax.f32 %v1708, 0.0
        %v1831 = vmax.f32 %v1713, 0.0
        %v1832 = vmax.f32 %v1718, 0.0
        %v1833 = vmax.f32 %v1723, 0.0
        %v1834 = vmax.f32 %v1728, 0.0
        %v1835 = vmax.f32 %v1733, 0.0
        %v1836 = vmax.f32 %v1738, 0.0
        %v1837 = vmax.f32 %v1743, 0.0
        %v1838 = vmax.f32 %v1748, 0.0
        %v1839 = vmax.f32 %v1753, 0.0
        %v1840 = vmax.f32 %v1758, 0.0
        %v1841 = vmax.f32 %v1763, 0.0
        %v1842 = vmax.f32 %v1768, 0.0
        %v1843 = vmax.f32 %v1773, 0.0
        %v1844 = vmax.f32 %v1778, 0.0
        %v1845 = vmax.f32 %v1783, 0.0
        %v1846 = vmax.f32 %v1788, 0.0
        %v1847 = vmax.f32 %v1793, 0.0
        %v1848 = vmax.f32 %v1798, 0.0
        %v1849 = vmax.f32 %v1803, 0.0
        %v1850 = vmax.f32 %v1808, 0.0
        %v1851 = vmax.f32 %v1813, 0.0
        %v1852 = vmax.f32 %v1818, 0.0
        %s1853 = scalar_lea.vmem %s433, %s441
        %v1854 = vld [vmem:[%s1853] sm:$0xff]
        %v1855 = vld [vmem:[%s1853 + $0x8] sm:$0xff]
        %v1856 = vld [vmem:[%s1853 + $0x10] sm:$0x3]
        %v1857 = vld [vmem:[%s1853 + $0x18] sm:$0xff]
        %v1858 = vld [vmem:[%s1853 + $0x20] sm:$0xff]
        %v1859 = vld [vmem:[%s1853 + $0x28] sm:$0x3]
        %v1860 = vld [vmem:[%s1853 + $0x30] sm:$0xff]
        %v1861 = vld [vmem:[%s1853 + $0x38] sm:$0xff]
        %v1862 = vld [vmem:[%s1853 + $0x40] sm:$0x3]
        %v1863 = vld [vmem:[%s1853 + $0x48] sm:$0xff]
        %v1864 = vld [vmem:[%s1853 + $0x50] sm:$0xff]
        %v1865 = vld [vmem:[%s1853 + $0x58] sm:$0x3]
        %v1866 = vld [vmem:[%s1853 + $0x60] sm:$0xff]
        %v1867 = vld [vmem:[%s1853 + $0x68] sm:$0xff]
        %v1868 = vld [vmem:[%s1853 + $0x70] sm:$0x3]
        %v1869 = vld [vmem:[%s1853 + $0x78] sm:$0xff]
        %v1870 = vld [vmem:[%s1853 + $0x80] sm:$0xff]
        %v1871 = vld [vmem:[%s1853 + $0x88] sm:$0x3]
        %v1872 = vld [vmem:[%s1853 + $0x90] sm:$0xff]
        %v1873 = vld [vmem:[%s1853 + $0x98] sm:$0xff]
        %v1874 = vld [vmem:[%s1853 + $0xa0] sm:$0x3]
        %v1875 = vld [vmem:[%s1853 + $0xa8] sm:$0xff]
        %v1876 = vld [vmem:[%s1853 + $0xb0] sm:$0xff]
        %v1877 = vld [vmem:[%s1853 + $0xb8] sm:$0x3]
        %v1878 = vld [vmem:[%s1853 + $0xc0] sm:$0xff]
        %v1879 = vld [vmem:[%s1853 + $0xc8] sm:$0xff]
        %v1880 = vld [vmem:[%s1853 + $0xd0] sm:$0x3]
        %v1881 = vld [vmem:[%s1853 + $0xd8] sm:$0xff]
        %v1882 = vld [vmem:[%s1853 + $0xe0] sm:$0xff]
        %v1883 = vld [vmem:[%s1853 + $0xe8] sm:$0x3]
        %v1884 = vld [vmem:[%s1853 + $0xf0] sm:$0xff]
        %v1885 = vld [vmem:[%s1853 + $0xf8] sm:$0xff]
        %v1886 = vld [vmem:[%s1853 + $0x100] sm:$0x3]
        %v1887 = vld [vmem:[%s1853 + $0x108] sm:$0xff]
        %v1888 = vld [vmem:[%s1853 + $0x110] sm:$0xff]
        %v1889 = vld [vmem:[%s1853 + $0x118] sm:$0x3]
        %v1890 = vld [vmem:[%s1853 + $0x120] sm:$0xff]
        %v1891 = vld [vmem:[%s1853 + $0x128] sm:$0xff]
        %v1892 = vld [vmem:[%s1853 + $0x130] sm:$0x3]
        %v1893 = vld [vmem:[%s1853 + $0x138] sm:$0xff]
        %v1894 = vld [vmem:[%s1853 + $0x140] sm:$0xff]
        %v1895 = vld [vmem:[%s1853 + $0x148] sm:$0x3]
        %v1896 = vld [vmem:[%s1853 + $0x150] sm:$0xff]
        %v1897 = vld [vmem:[%s1853 + $0x158] sm:$0xff]
        %v1898 = vld [vmem:[%s1853 + $0x160] sm:$0x3]
        %v1899 = vld [vmem:[%s1853 + $0x168] sm:$0xff]
        %v1900 = vld [vmem:[%s1853 + $0x170] sm:$0xff]
        %v1901 = vld [vmem:[%s1853 + $0x178] sm:$0x3]
        %v1950 = vrot.slane %v1854, 1
        %v1951 = vrot.slane %v1855, 1
        %v1952 = vsel %vm641, %v1950, %v1951
        %v1953 = vrot.slane %v1856, 1
        %v1954 = vsel %vm641, %v1951, %v1953
        %v1955 = vrot.slane %v1857, 1
        %v1956 = vrot.slane %v1858, 1
        %v1957 = vsel %vm641, %v1955, %v1956
        %v1958 = vrot.slane %v1859, 1
        %v1959 = vsel %vm641, %v1956, %v1958
        %v1960 = vrot.slane %v1860, 1
        %v1961 = vrot.slane %v1861, 1
        %v1962 = vsel %vm641, %v1960, %v1961
        %v1963 = vrot.slane %v1862, 1
        %v1964 = vsel %vm641, %v1961, %v1963
        %v1965 = vrot.slane %v1863, 1
        %v1966 = vrot.slane %v1864, 1
        %v1967 = vsel %vm641, %v1965, %v1966
        %v1968 = vrot.slane %v1865, 1
        %v1969 = vsel %vm641, %v1966, %v1968
        %v1970 = vrot.slane %v1866, 1
        %v1971 = vrot.slane %v1867, 1
        %v1972 = vsel %vm641, %v1970, %v1971
        %v1973 = vrot.slane %v1868, 1
        %v1974 = vsel %vm641, %v1971, %v1973
        %v1975 = vrot.slane %v1869, 1
        %v1976 = vrot.slane %v1870, 1
        %v1977 = vsel %vm641, %v1975, %v1976
        %v1978 = vrot.slane %v1871, 1
        %v1979 = vsel %vm641, %v1976, %v1978
        %v1980 = vrot.slane %v1872, 1
        %v1981 = vrot.slane %v1873, 1
        %v1982 = vsel %vm641, %v1980, %v1981
        %v1983 = vrot.slane %v1874, 1
        %v1984 = vsel %vm641, %v1981, %v1983
        %v1985 = vrot.slane %v1875, 1
        %v1986 = vrot.slane %v1876, 1
        %v1987 = vsel %vm641, %v1985, %v1986
        %v1988 = vrot.slane %v1877, 1
        %v1989 = vsel %vm641, %v1986, %v1988
        %v1990 = vrot.slane %v1878, 1
        %v1991 = vrot.slane %v1879, 1
        %v1992 = vsel %vm641, %v1990, %v1991
        %v1993 = vrot.slane %v1880, 1
        %v1994 = vsel %vm641, %v1991, %v1993
        %v1995 = vrot.slane %v1881, 1
        %v1996 = vrot.slane %v1882, 1
        %v1997 = vsel %vm641, %v1995, %v1996
        %v1998 = vrot.slane %v1883, 1
        %v1999 = vsel %vm641, %v1996, %v1998
        %v2000 = vrot.slane %v1884, 1
        %v2001 = vrot.slane %v1885, 1
        %v2002 = vsel %vm641, %v2000, %v2001
        %v2003 = vrot.slane %v1886, 1
        %v2004 = vsel %vm641, %v2001, %v2003
        %v2005 = vrot.slane %v1887, 1
        %v2006 = vrot.slane %v1888, 1
        %v2007 = vsel %vm641, %v2005, %v2006
        %v2008 = vrot.slane %v1889, 1
        %v2009 = vsel %vm641, %v2006, %v2008
        %v2010 = vrot.slane %v1890, 1
        %v2011 = vrot.slane %v1891, 1
        %v2012 = vsel %vm641, %v2010, %v2011
        %v2013 = vrot.slane %v1892, 1
        %v2014 = vsel %vm641, %v2011, %v2013
        %v2015 = vrot.slane %v1893, 1
        %v2016 = vrot.slane %v1894, 1
        %v2017 = vsel %vm641, %v2015, %v2016
        %v2018 = vrot.slane %v1895, 1
        %v2019 = vsel %vm641, %v2016, %v2018
        %v2020 = vrot.slane %v1896, 1
        %v2021 = vrot.slane %v1897, 1
        %v2022 = vsel %vm641, %v2020, %v2021
        %v2023 = vrot.slane %v1898, 1
        %v2024 = vsel %vm641, %v2021, %v2023
        %v2025 = vrot.slane %v1899, 1
        %v2026 = vrot.slane %v1900, 1
        %v2027 = vsel %vm641, %v2025, %v2026
        %v2028 = vrot.slane %v1901, 1
        %v2029 = vsel %vm641, %v2026, %v2028
        %2030 = vrot.lane.b32.xlu0 %v1952, 4
        %v2031 = vpop.permute.xlu0 %2030
        %2032 = vrot.lane.b32.xlu0 %v1954, 4
        %v2033 = vpop.permute.xlu0 %2032
        %2034 = vrot.lane.b32.xlu0 %v1957, 4
        %v2035 = vpop.permute.xlu0 %2034
        %2036 = vrot.lane.b32.xlu0 %v1959, 4
        %v2037 = vpop.permute.xlu0 %2036
        %2038 = vrot.lane.b32.xlu0 %v1962, 4
        %v2039 = vpop.permute.xlu0 %2038
        %2040 = vrot.lane.b32.xlu0 %v1964, 4
        %v2041 = vpop.permute.xlu0 %2040
        %2042 = vrot.lane.b32.xlu0 %v1967, 4
        %v2043 = vpop.permute.xlu0 %2042
        %2044 = vrot.lane.b32.xlu0 %v1969, 4
        %v2045 = vpop.permute.xlu0 %2044
        %2046 = vrot.lane.b32.xlu0 %v1972, 4
        %v2047 = vpop.permute.xlu0 %2046
        %2048 = vrot.lane.b32.xlu0 %v1974, 4
        %v2049 = vpop.permute.xlu0 %2048
        %2050 = vrot.lane.b32.xlu0 %v1977, 4
        %v2051 = vpop.permute.xlu0 %2050
        %2052 = vrot.lane.b32.xlu0 %v1979, 4
        %v2053 = vpop.permute.xlu0 %2052
        %2054 = vrot.lane.b32.xlu0 %v1982, 4
        %v2055 = vpop.permute.xlu0 %2054
        %2056 = vrot.lane.b32.xlu0 %v1984, 4
        %v2057 = vpop.permute.xlu0 %2056
        %2058 = vrot.lane.b32.xlu0 %v1987, 4
        %v2059 = vpop.permute.xlu0 %2058
        %2060 = vrot.lane.b32.xlu0 %v1989, 4
        %v2061 = vpop.permute.xlu0 %2060
        %2062 = vrot.lane.b32.xlu0 %v1992, 4
        %v2063 = vpop.permute.xlu0 %2062
        %2064 = vrot.lane.b32.xlu0 %v1994, 4
        %v2065 = vpop.permute.xlu0 %2064
        %2066 = vrot.lane.b32.xlu0 %v1997, 4
        %v2067 = vpop.permute.xlu0 %2066
        %2068 = vrot.lane.b32.xlu0 %v1999, 4
        %v2069 = vpop.permute.xlu0 %2068
        %2070 = vrot.lane.b32.xlu0 %v2002, 4
        %v2071 = vpop.permute.xlu0 %2070
        %2072 = vrot.lane.b32.xlu0 %v2004, 4
        %v2073 = vpop.permute.xlu0 %2072
        %2074 = vrot.lane.b32.xlu0 %v2007, 4
        %v2075 = vpop.permute.xlu0 %2074
        %2076 = vrot.lane.b32.xlu0 %v2009, 4
        %v2077 = vpop.permute.xlu0 %2076
        %2078 = vrot.lane.b32.xlu0 %v2012, 4
        %v2079 = vpop.permute.xlu0 %2078
        %2080 = vrot.lane.b32.xlu0 %v2014, 4
        %v2081 = vpop.permute.xlu0 %2080
        %2082 = vrot.lane.b32.xlu0 %v2017, 4
        %v2083 = vpop.permute.xlu0 %2082
        %2084 = vrot.lane.b32.xlu0 %v2019, 4
        %v2085 = vpop.permute.xlu0 %2084
        %2086 = vrot.lane.b32.xlu0 %v2022, 4
        %v2087 = vpop.permute.xlu0 %2086
        %2088 = vrot.lane.b32.xlu0 %v2024, 4
        %v2089 = vpop.permute.xlu0 %2088
        %2090 = vrot.lane.b32.xlu0 %v2027, 4
        %v2091 = vpop.permute.xlu0 %2090
        %2092 = vrot.lane.b32.xlu0 %v2029, 4
        %v2093 = vpop.permute.xlu0 %2092
        %v2126 = vrot.slane %v1854, 2
        %v2127 = vrot.slane %v1855, 2
        %v2128 = vsel %vm1344, %v2126, %v2127
        %v2129 = vrot.slane %v1856, 2
        %v2130 = vsel %vm1344, %v2127, %v2129
        %v2131 = vrot.slane %v1857, 2
        %v2132 = vrot.slane %v1858, 2
        %v2133 = vsel %vm1344, %v2131, %v2132
        %v2134 = vrot.slane %v1859, 2
        %v2135 = vsel %vm1344, %v2132, %v2134
        %v2136 = vrot.slane %v1860, 2
        %v2137 = vrot.slane %v1861, 2
        %v2138 = vsel %vm1344, %v2136, %v2137
        %v2139 = vrot.slane %v1862, 2
        %v2140 = vsel %vm1344, %v2137, %v2139
        %v2141 = vrot.slane %v1863, 2
        %v2142 = vrot.slane %v1864, 2
        %v2143 = vsel %vm1344, %v2141, %v2142
        %v2144 = vrot.slane %v1865, 2
        %v2145 = vsel %vm1344, %v2142, %v2144
        %v2146 = vrot.slane %v1866, 2
        %v2147 = vrot.slane %v1867, 2
        %v2148 = vsel %vm1344, %v2146, %v2147
        %v2149 = vrot.slane %v1868, 2
        %v2150 = vsel %vm1344, %v2147, %v2149
        %v2151 = vrot.slane %v1869, 2
        %v2152 = vrot.slane %v1870, 2
        %v2153 = vsel %vm1344, %v2151, %v2152
        %v2154 = vrot.slane %v1871, 2
        %v2155 = vsel %vm1344, %v2152, %v2154
        %v2156 = vrot.slane %v1872, 2
        %v2157 = vrot.slane %v1873, 2
        %v2158 = vsel %vm1344, %v2156, %v2157
        %v2159 = vrot.slane %v1874, 2
        %v2160 = vsel %vm1344, %v2157, %v2159
        %v2161 = vrot.slane %v1875, 2
        %v2162 = vrot.slane %v1876, 2
        %v2163 = vsel %vm1344, %v2161, %v2162
        %v2164 = vrot.slane %v1877, 2
        %v2165 = vsel %vm1344, %v2162, %v2164
        %v2166 = vrot.slane %v1878, 2
        %v2167 = vrot.slane %v1879, 2
        %v2168 = vsel %vm1344, %v2166, %v2167
        %v2169 = vrot.slane %v1880, 2
        %v2170 = vsel %vm1344, %v2167, %v2169
        %v2171 = vrot.slane %v1881, 2
        %v2172 = vrot.slane %v1882, 2
        %v2173 = vsel %vm1344, %v2171, %v2172
        %v2174 = vrot.slane %v1883, 2
        %v2175 = vsel %vm1344, %v2172, %v2174
        %v2176 = vrot.slane %v1884, 2
        %v2177 = vrot.slane %v1885, 2
        %v2178 = vsel %vm1344, %v2176, %v2177
        %v2179 = vrot.slane %v1886, 2
        %v2180 = vsel %vm1344, %v2177, %v2179
        %v2181 = vrot.slane %v1887, 2
        %v2182 = vrot.slane %v1888, 2
        %v2183 = vsel %vm1344, %v2181, %v2182
        %v2184 = vrot.slane %v1889, 2
        %v2185 = vsel %vm1344, %v2182, %v2184
        %v2186 = vrot.slane %v1890, 2
        %v2187 = vrot.slane %v1891, 2
        %v2188 = vsel %vm1344, %v2186, %v2187
        %v2189 = vrot.slane %v1892, 2
        %v2190 = vsel %vm1344, %v2187, %v2189
        %v2191 = vrot.slane %v1893, 2
        %v2192 = vrot.slane %v1894, 2
        %v2193 = vsel %vm1344, %v2191, %v2192
        %v2194 = vrot.slane %v1895, 2
        %v2195 = vsel %vm1344, %v2192, %v2194
        %v2196 = vrot.slane %v1896, 2
        %v2197 = vrot.slane %v1897, 2
        %v2198 = vsel %vm1344, %v2196, %v2197
        %v2199 = vrot.slane %v1898, 2
        %v2200 = vsel %vm1344, %v2197, %v2199
        %v2201 = vrot.slane %v1899, 2
        %v2202 = vrot.slane %v1900, 2
        %v2203 = vsel %vm1344, %v2201, %v2202
        %v2204 = vrot.slane %v1901, 2
        %v2205 = vsel %vm1344, %v2202, %v2204
        %2206 = vrot.lane.b32.xlu0 %v2128, 8
        %v2207 = vpop.permute.xlu0 %2206
        %2208 = vrot.lane.b32.xlu0 %v2130, 8
        %v2209 = vpop.permute.xlu0 %2208
        %2210 = vrot.lane.b32.xlu0 %v2133, 8
        %v2211 = vpop.permute.xlu0 %2210
        %2212 = vrot.lane.b32.xlu0 %v2135, 8
        %v2213 = vpop.permute.xlu0 %2212
        %2214 = vrot.lane.b32.xlu0 %v2138, 8
        %v2215 = vpop.permute.xlu0 %2214
        %2216 = vrot.lane.b32.xlu0 %v2140, 8
        %v2217 = vpop.permute.xlu0 %2216
        %2218 = vrot.lane.b32.xlu0 %v2143, 8
        %v2219 = vpop.permute.xlu0 %2218
        %2220 = vrot.lane.b32.xlu0 %v2145, 8
        %v2221 = vpop.permute.xlu0 %2220
        %2222 = vrot.lane.b32.xlu0 %v2148, 8
        %v2223 = vpop.permute.xlu0 %2222
        %2224 = vrot.lane.b32.xlu0 %v2150, 8
        %v2225 = vpop.permute.xlu0 %2224
        %2226 = vrot.lane.b32.xlu0 %v2153, 8
        %v2227 = vpop.permute.xlu0 %2226
        %2228 = vrot.lane.b32.xlu0 %v2155, 8
        %v2229 = vpop.permute.xlu0 %2228
        %2230 = vrot.lane.b32.xlu0 %v2158, 8
        %v2231 = vpop.permute.xlu0 %2230
        %2232 = vrot.lane.b32.xlu0 %v2160, 8
        %v2233 = vpop.permute.xlu0 %2232
        %2234 = vrot.lane.b32.xlu0 %v2163, 8
        %v2235 = vpop.permute.xlu0 %2234
        %2236 = vrot.lane.b32.xlu0 %v2165, 8
        %v2237 = vpop.permute.xlu0 %2236
        %2238 = vrot.lane.b32.xlu0 %v2168, 8
        %v2239 = vpop.permute.xlu0 %2238
        %2240 = vrot.lane.b32.xlu0 %v2170, 8
        %v2241 = vpop.permute.xlu0 %2240
        %2242 = vrot.lane.b32.xlu0 %v2173, 8
        %v2243 = vpop.permute.xlu0 %2242
        %2244 = vrot.lane.b32.xlu0 %v2175, 8
        %v2245 = vpop.permute.xlu0 %2244
        %2246 = vrot.lane.b32.xlu0 %v2178, 8
        %v2247 = vpop.permute.xlu0 %2246
        %2248 = vrot.lane.b32.xlu0 %v2180, 8
        %v2249 = vpop.permute.xlu0 %2248
        %2250 = vrot.lane.b32.xlu0 %v2183, 8
        %v2251 = vpop.permute.xlu0 %2250
        %2252 = vrot.lane.b32.xlu0 %v2185, 8
        %v2253 = vpop.permute.xlu0 %2252
        %2254 = vrot.lane.b32.xlu0 %v2188, 8
        %v2255 = vpop.permute.xlu0 %2254
        %2256 = vrot.lane.b32.xlu0 %v2190, 8
        %v2257 = vpop.permute.xlu0 %2256
        %2258 = vrot.lane.b32.xlu0 %v2193, 8
        %v2259 = vpop.permute.xlu0 %2258
        %2260 = vrot.lane.b32.xlu0 %v2195, 8
        %v2261 = vpop.permute.xlu0 %2260
        %2262 = vrot.lane.b32.xlu0 %v2198, 8
        %v2263 = vpop.permute.xlu0 %2262
        %2264 = vrot.lane.b32.xlu0 %v2200, 8
        %v2265 = vpop.permute.xlu0 %2264
        %2266 = vrot.lane.b32.xlu0 %v2203, 8
        %v2267 = vpop.permute.xlu0 %2266
        %2268 = vrot.lane.b32.xlu0 %v2205, 8
        %v2269 = vpop.permute.xlu0 %2268
        %v2302 = vsel %vm730, %v1854, %v2031
        %v2303 = vsel %vm730, %v1855, %v2033
        %v2304 = vsel %vm730, %v1857, %v2035
        %v2305 = vsel %vm730, %v1858, %v2037
        %v2306 = vsel %vm730, %v1860, %v2039
        %v2307 = vsel %vm730, %v1861, %v2041
        %v2308 = vsel %vm730, %v1863, %v2043
        %v2309 = vsel %vm730, %v1864, %v2045
        %v2310 = vsel %vm730, %v1866, %v2047
        %v2311 = vsel %vm730, %v1867, %v2049
        %v2312 = vsel %vm730, %v1869, %v2051
        %v2313 = vsel %vm730, %v1870, %v2053
        %v2314 = vsel %vm730, %v1872, %v2055
        %v2315 = vsel %vm730, %v1873, %v2057
        %v2316 = vsel %vm730, %v1875, %v2059
        %v2317 = vsel %vm730, %v1876, %v2061
        %v2318 = vsel %vm730, %v1878, %v2063
        %v2319 = vsel %vm730, %v1879, %v2065
        %v2320 = vsel %vm730, %v1881, %v2067
        %v2321 = vsel %vm730, %v1882, %v2069
        %v2322 = vsel %vm730, %v1884, %v2071
        %v2323 = vsel %vm730, %v1885, %v2073
        %v2324 = vsel %vm730, %v1887, %v2075
        %v2325 = vsel %vm730, %v1888, %v2077
        %v2326 = vsel %vm730, %v1890, %v2079
        %v2327 = vsel %vm730, %v1891, %v2081
        %v2328 = vsel %vm730, %v1893, %v2083
        %v2329 = vsel %vm730, %v1894, %v2085
        %v2330 = vsel %vm730, %v1896, %v2087
        %v2331 = vsel %vm730, %v1897, %v2089
        %v2332 = vsel %vm730, %v1899, %v2091
        %v2333 = vsel %vm730, %v1900, %v2093
        %vm2334 = vcmask 64512
        %v2335 = vsel %vm2334, %v2302, %v2207
        %v2336 = vsel %vm2334, %v2303, %v2209
        %v2337 = vsel %vm2334, %v2304, %v2211
        %v2338 = vsel %vm2334, %v2305, %v2213
        %v2339 = vsel %vm2334, %v2306, %v2215
        %v2340 = vsel %vm2334, %v2307, %v2217
        %v2341 = vsel %vm2334, %v2308, %v2219
        %v2342 = vsel %vm2334, %v2309, %v2221
        %v2343 = vsel %vm2334, %v2310, %v2223
        %v2344 = vsel %vm2334, %v2311, %v2225
        %v2345 = vsel %vm2334, %v2312, %v2227
        %v2346 = vsel %vm2334, %v2313, %v2229
        %v2347 = vsel %vm2334, %v2314, %v2231
        %v2348 = vsel %vm2334, %v2315, %v2233
        %v2349 = vsel %vm2334, %v2316, %v2235
        %v2350 = vsel %vm2334, %v2317, %v2237
        %v2351 = vsel %vm2334, %v2318, %v2239
        %v2352 = vsel %vm2334, %v2319, %v2241
        %v2353 = vsel %vm2334, %v2320, %v2243
        %v2354 = vsel %vm2334, %v2321, %v2245
        %v2355 = vsel %vm2334, %v2322, %v2247
        %v2356 = vsel %vm2334, %v2323, %v2249
        %v2357 = vsel %vm2334, %v2324, %v2251
        %v2358 = vsel %vm2334, %v2325, %v2253
        %v2359 = vsel %vm2334, %v2326, %v2255
        %v2360 = vsel %vm2334, %v2327, %v2257
        %v2361 = vsel %vm2334, %v2328, %v2259
        %v2362 = vsel %vm2334, %v2329, %v2261
        %v2363 = vsel %vm2334, %v2330, %v2263
        %v2364 = vsel %vm2334, %v2331, %v2265
        %v2365 = vsel %vm2334, %v2332, %v2267
        %v2366 = vsel %vm2334, %v2333, %v2269
        %v2367 = vld [vmem:[%s5] sm:$0xff]
        %v2368 = vld [vmem:[%s5 + $0x8] sm:$0xf]
        %s2369 = scalar_lea.vmem %s433, %s492
        %v2370 = vld [vmem:[%s2369] sm:$0xff]
        %v2371 = vld [vmem:[%s2369 + $0x8] sm:$0xff]
        %v2372 = vld [vmem:[%s2369 + $0x10] sm:$0x3]
        %v2373 = vld [vmem:[%s2369 + $0x18] sm:$0xff]
        %v2374 = vld [vmem:[%s2369 + $0x20] sm:$0xff]
        %v2375 = vld [vmem:[%s2369 + $0x28] sm:$0x3]
        %v2376 = vld [vmem:[%s2369 + $0x30] sm:$0xff]
        %v2377 = vld [vmem:[%s2369 + $0x38] sm:$0xff]
        %v2378 = vld [vmem:[%s2369 + $0x40] sm:$0x3]
        %v2379 = vld [vmem:[%s2369 + $0x48] sm:$0xff]
        %v2380 = vld [vmem:[%s2369 + $0x50] sm:$0xff]
        %v2381 = vld [vmem:[%s2369 + $0x58] sm:$0x3]
        %v2382 = vld [vmem:[%s2369 + $0x60] sm:$0xff]
        %v2383 = vld [vmem:[%s2369 + $0x68] sm:$0xff]
        %v2384 = vld [vmem:[%s2369 + $0x70] sm:$0x3]
        %v2385 = vld [vmem:[%s2369 + $0x78] sm:$0xff]
        %v2386 = vld [vmem:[%s2369 + $0x80] sm:$0xff]
        %v2387 = vld [vmem:[%s2369 + $0x88] sm:$0x3]
        %v2388 = vld [vmem:[%s2369 + $0x90] sm:$0xff]
        %v2389 = vld [vmem:[%s2369 + $0x98] sm:$0xff]
        %v2390 = vld [vmem:[%s2369 + $0xa0] sm:$0x3]
        %v2391 = vld [vmem:[%s2369 + $0xa8] sm:$0xff]
        %v2392 = vld [vmem:[%s2369 + $0xb0] sm:$0xff]
        %v2393 = vld [vmem:[%s2369 + $0xb8] sm:$0x3]
        %v2394 = vld [vmem:[%s2369 + $0xc0] sm:$0xff]
        %v2395 = vld [vmem:[%s2369 + $0xc8] sm:$0xff]
        %v2396 = vld [vmem:[%s2369 + $0xd0] sm:$0x3]
        %v2397 = vld [vmem:[%s2369 + $0xd8] sm:$0xff]
        %v2398 = vld [vmem:[%s2369 + $0xe0] sm:$0xff]
        %v2399 = vld [vmem:[%s2369 + $0xe8] sm:$0x3]
        %v2400 = vld [vmem:[%s2369 + $0xf0] sm:$0xff]
        %v2401 = vld [vmem:[%s2369 + $0xf8] sm:$0xff]
        %v2402 = vld [vmem:[%s2369 + $0x100] sm:$0x3]
        %v2403 = vld [vmem:[%s2369 + $0x108] sm:$0xff]
        %v2404 = vld [vmem:[%s2369 + $0x110] sm:$0xff]
        %v2405 = vld [vmem:[%s2369 + $0x118] sm:$0x3]
        %v2406 = vld [vmem:[%s2369 + $0x120] sm:$0xff]
        %v2407 = vld [vmem:[%s2369 + $0x128] sm:$0xff]
        %v2408 = vld [vmem:[%s2369 + $0x130] sm:$0x3]
        %v2409 = vld [vmem:[%s2369 + $0x138] sm:$0xff]
        %v2410 = vld [vmem:[%s2369 + $0x140] sm:$0xff]
        %v2411 = vld [vmem:[%s2369 + $0x148] sm:$0x3]
        %v2412 = vld [vmem:[%s2369 + $0x150] sm:$0xff]
        %v2413 = vld [vmem:[%s2369 + $0x158] sm:$0xff]
        %v2414 = vld [vmem:[%s2369 + $0x160] sm:$0x3]
        %v2415 = vld [vmem:[%s2369 + $0x168] sm:$0xff]
        %v2416 = vld [vmem:[%s2369 + $0x170] sm:$0xff]
        %v2417 = vld [vmem:[%s2369 + $0x178] sm:$0x3]
        %v2466 = vrot.slane %v2370, 1
        %v2467 = vrot.slane %v2371, 1
        %v2468 = vsel %vm641, %v2466, %v2467
        %v2469 = vrot.slane %v2372, 1
        %v2470 = vsel %vm641, %v2467, %v2469
        %v2471 = vrot.slane %v2373, 1
        %v2472 = vrot.slane %v2374, 1
        %v2473 = vsel %vm641, %v2471, %v2472
        %v2474 = vrot.slane %v2375, 1
        %v2475 = vsel %vm641, %v2472, %v2474
        %v2476 = vrot.slane %v2376, 1
        %v2477 = vrot.slane %v2377, 1
        %v2478 = vsel %vm641, %v2476, %v2477
        %v2479 = vrot.slane %v2378, 1
        %v2480 = vsel %vm641, %v2477, %v2479
        %v2481 = vrot.slane %v2379, 1
        %v2482 = vrot.slane %v2380, 1
        %v2483 = vsel %vm641, %v2481, %v2482
        %v2484 = vrot.slane %v2381, 1
        %v2485 = vsel %vm641, %v2482, %v2484
        %v2486 = vrot.slane %v2382, 1
        %v2487 = vrot.slane %v2383, 1
        %v2488 = vsel %vm641, %v2486, %v2487
        %v2489 = vrot.slane %v2384, 1
        %v2490 = vsel %vm641, %v2487, %v2489
        %v2491 = vrot.slane %v2385, 1
        %v2492 = vrot.slane %v2386, 1
        %v2493 = vsel %vm641, %v2491, %v2492
        %v2494 = vrot.slane %v2387, 1
        %v2495 = vsel %vm641, %v2492, %v2494
        %v2496 = vrot.slane %v2388, 1
        %v2497 = vrot.slane %v2389, 1
        %v2498 = vsel %vm641, %v2496, %v2497
        %v2499 = vrot.slane %v2390, 1
        %v2500 = vsel %vm641, %v2497, %v2499
        %v2501 = vrot.slane %v2391, 1
        %v2502 = vrot.slane %v2392, 1
        %v2503 = vsel %vm641, %v2501, %v2502
        %v2504 = vrot.slane %v2393, 1
        %v2505 = vsel %vm641, %v2502, %v2504
        %v2506 = vrot.slane %v2394, 1
        %v2507 = vrot.slane %v2395, 1
        %v2508 = vsel %vm641, %v2506, %v2507
        %v2509 = vrot.slane %v2396, 1
        %v2510 = vsel %vm641, %v2507, %v2509
        %v2511 = vrot.slane %v2397, 1
        %v2512 = vrot.slane %v2398, 1
        %v2513 = vsel %vm641, %v2511, %v2512
        %v2514 = vrot.slane %v2399, 1
        %v2515 = vsel %vm641, %v2512, %v2514
        %v2516 = vrot.slane %v2400, 1
        %v2517 = vrot.slane %v2401, 1
        %v2518 = vsel %vm641, %v2516, %v2517
        %v2519 = vrot.slane %v2402, 1
        %v2520 = vsel %vm641, %v2517, %v2519
        %v2521 = vrot.slane %v2403, 1
        %v2522 = vrot.slane %v2404, 1
        %v2523 = vsel %vm641, %v2521, %v2522
        %v2524 = vrot.slane %v2405, 1
        %v2525 = vsel %vm641, %v2522, %v2524
        %v2526 = vrot.slane %v2406, 1
        %v2527 = vrot.slane %v2407, 1
        %v2528 = vsel %vm641, %v2526, %v2527
        %v2529 = vrot.slane %v2408, 1
        %v2530 = vsel %vm641, %v2527, %v2529
        %v2531 = vrot.slane %v2409, 1
        %v2532 = vrot.slane %v2410, 1
        %v2533 = vsel %vm641, %v2531, %v2532
        %v2534 = vrot.slane %v2411, 1
        %v2535 = vsel %vm641, %v2532, %v2534
        %v2536 = vrot.slane %v2412, 1
        %v2537 = vrot.slane %v2413, 1
        %v2538 = vsel %vm641, %v2536, %v2537
        %v2539 = vrot.slane %v2414, 1
        %v2540 = vsel %vm641, %v2537, %v2539
        %v2541 = vrot.slane %v2415, 1
        %v2542 = vrot.slane %v2416, 1
        %v2543 = vsel %vm641, %v2541, %v2542
        %v2544 = vrot.slane %v2417, 1
        %v2545 = vsel %vm641, %v2542, %v2544
        %2546 = vrot.lane.b32.xlu0 %v2468, 4
        %v2547 = vpop.permute.xlu0 %2546
        %2548 = vrot.lane.b32.xlu0 %v2470, 4
        %v2549 = vpop.permute.xlu0 %2548
        %2550 = vrot.lane.b32.xlu0 %v2473, 4
        %v2551 = vpop.permute.xlu0 %2550
        %2552 = vrot.lane.b32.xlu0 %v2475, 4
        %v2553 = vpop.permute.xlu0 %2552
        %2554 = vrot.lane.b32.xlu0 %v2478, 4
        %v2555 = vpop.permute.xlu0 %2554
        %2556 = vrot.lane.b32.xlu0 %v2480, 4
        %v2557 = vpop.permute.xlu0 %2556
        %2558 = vrot.lane.b32.xlu0 %v2483, 4
        %v2559 = vpop.permute.xlu0 %2558
        %2560 = vrot.lane.b32.xlu0 %v2485, 4
        %v2561 = vpop.permute.xlu0 %2560
        %2562 = vrot.lane.b32.xlu0 %v2488, 4
        %v2563 = vpop.permute.xlu0 %2562
        %2564 = vrot.lane.b32.xlu0 %v2490, 4
        %v2565 = vpop.permute.xlu0 %2564
        %2566 = vrot.lane.b32.xlu0 %v2493, 4
        %v2567 = vpop.permute.xlu0 %2566
        %2568 = vrot.lane.b32.xlu0 %v2495, 4
        %v2569 = vpop.permute.xlu0 %2568
        %2570 = vrot.lane.b32.xlu0 %v2498, 4
        %v2571 = vpop.permute.xlu0 %2570
        %2572 = vrot.lane.b32.xlu0 %v2500, 4
        %v2573 = vpop.permute.xlu0 %2572
        %2574 = vrot.lane.b32.xlu0 %v2503, 4
        %v2575 = vpop.permute.xlu0 %2574
        %2576 = vrot.lane.b32.xlu0 %v2505, 4
        %v2577 = vpop.permute.xlu0 %2576
        %2578 = vrot.lane.b32.xlu0 %v2508, 4
        %v2579 = vpop.permute.xlu0 %2578
        %2580 = vrot.lane.b32.xlu0 %v2510, 4
        %v2581 = vpop.permute.xlu0 %2580
        %2582 = vrot.lane.b32.xlu0 %v2513, 4
        %v2583 = vpop.permute.xlu0 %2582
        %2584 = vrot.lane.b32.xlu0 %v2515, 4
        %v2585 = vpop.permute.xlu0 %2584
        %2586 = vrot.lane.b32.xlu0 %v2518, 4
        %v2587 = vpop.permute.xlu0 %2586
        %2588 = vrot.lane.b32.xlu0 %v2520, 4
        %v2589 = vpop.permute.xlu0 %2588
        %2590 = vrot.lane.b32.xlu0 %v2523, 4
        %v2591 = vpop.permute.xlu0 %2590
        %2592 = vrot.lane.b32.xlu0 %v2525, 4
        %v2593 = vpop.permute.xlu0 %2592
        %2594 = vrot.lane.b32.xlu0 %v2528, 4
        %v2595 = vpop.permute.xlu0 %2594
        %2596 = vrot.lane.b32.xlu0 %v2530, 4
        %v2597 = vpop.permute.xlu0 %2596
        %2598 = vrot.lane.b32.xlu0 %v2533, 4
        %v2599 = vpop.permute.xlu0 %2598
        %2600 = vrot.lane.b32.xlu0 %v2535, 4
        %v2601 = vpop.permute.xlu0 %2600
        %2602 = vrot.lane.b32.xlu0 %v2538, 4
        %v2603 = vpop.permute.xlu0 %2602
        %2604 = vrot.lane.b32.xlu0 %v2540, 4
        %v2605 = vpop.permute.xlu0 %2604
        %2606 = vrot.lane.b32.xlu0 %v2543, 4
        %v2607 = vpop.permute.xlu0 %2606
        %2608 = vrot.lane.b32.xlu0 %v2545, 4
        %v2609 = vpop.permute.xlu0 %2608
        %v2642 = vrot.slane %v2370, 2
        %v2643 = vrot.slane %v2371, 2
        %v2644 = vsel %vm1344, %v2642, %v2643
        %v2645 = vrot.slane %v2372, 2
        %v2646 = vsel %vm1344, %v2643, %v2645
        %v2647 = vrot.slane %v2373, 2
        %v2648 = vrot.slane %v2374, 2
        %v2649 = vsel %vm1344, %v2647, %v2648
        %v2650 = vrot.slane %v2375, 2
        %v2651 = vsel %vm1344, %v2648, %v2650
        %v2652 = vrot.slane %v2376, 2
        %v2653 = vrot.slane %v2377, 2
        %v2654 = vsel %vm1344, %v2652, %v2653
        %v2655 = vrot.slane %v2378, 2
        %v2656 = vsel %vm1344, %v2653, %v2655
        %v2657 = vrot.slane %v2379, 2
        %v2658 = vrot.slane %v2380, 2
        %v2659 = vsel %vm1344, %v2657, %v2658
        %v2660 = vrot.slane %v2381, 2
        %v2661 = vsel %vm1344, %v2658, %v2660
        %v2662 = vrot.slane %v2382, 2
        %v2663 = vrot.slane %v2383, 2
        %v2664 = vsel %vm1344, %v2662, %v2663
        %v2665 = vrot.slane %v2384, 2
        %v2666 = vsel %vm1344, %v2663, %v2665
        %v2667 = vrot.slane %v2385, 2
        %v2668 = vrot.slane %v2386, 2
        %v2669 = vsel %vm1344, %v2667, %v2668
        %v2670 = vrot.slane %v2387, 2
        %v2671 = vsel %vm1344, %v2668, %v2670
        %v2672 = vrot.slane %v2388, 2
        %v2673 = vrot.slane %v2389, 2
        %v2674 = vsel %vm1344, %v2672, %v2673
        %v2675 = vrot.slane %v2390, 2
        %v2676 = vsel %vm1344, %v2673, %v2675
        %v2677 = vrot.slane %v2391, 2
        %v2678 = vrot.slane %v2392, 2
        %v2679 = vsel %vm1344, %v2677, %v2678
        %v2680 = vrot.slane %v2393, 2
        %v2681 = vsel %vm1344, %v2678, %v2680
        %v2682 = vrot.slane %v2394, 2
        %v2683 = vrot.slane %v2395, 2
        %v2684 = vsel %vm1344, %v2682, %v2683
        %v2685 = vrot.slane %v2396, 2
        %v2686 = vsel %vm1344, %v2683, %v2685
        %v2687 = vrot.slane %v2397, 2
        %v2688 = vrot.slane %v2398, 2
        %v2689 = vsel %vm1344, %v2687, %v2688
        %v2690 = vrot.slane %v2399, 2
        %v2691 = vsel %vm1344, %v2688, %v2690
        %v2692 = vrot.slane %v2400, 2
        %v2693 = vrot.slane %v2401, 2
        %v2694 = vsel %vm1344, %v2692, %v2693
        %v2695 = vrot.slane %v2402, 2
        %v2696 = vsel %vm1344, %v2693, %v2695
        %v2697 = vrot.slane %v2403, 2
        %v2698 = vrot.slane %v2404, 2
        %v2699 = vsel %vm1344, %v2697, %v2698
        %v2700 = vrot.slane %v2405, 2
        %v2701 = vsel %vm1344, %v2698, %v2700
        %v2702 = vrot.slane %v2406, 2
        %v2703 = vrot.slane %v2407, 2
        %v2704 = vsel %vm1344, %v2702, %v2703
        %v2705 = vrot.slane %v2408, 2
        %v2706 = vsel %vm1344, %v2703, %v2705
        %v2707 = vrot.slane %v2409, 2
        %v2708 = vrot.slane %v2410, 2
        %v2709 = vsel %vm1344, %v2707, %v2708
        %v2710 = vrot.slane %v2411, 2
        %v2711 = vsel %vm1344, %v2708, %v2710
        %v2712 = vrot.slane %v2412, 2
        %v2713 = vrot.slane %v2413, 2
        %v2714 = vsel %vm1344, %v2712, %v2713
        %v2715 = vrot.slane %v2414, 2
        %v2716 = vsel %vm1344, %v2713, %v2715
        %v2717 = vrot.slane %v2415, 2
        %v2718 = vrot.slane %v2416, 2
        %v2719 = vsel %vm1344, %v2717, %v2718
        %v2720 = vrot.slane %v2417, 2
        %v2721 = vsel %vm1344, %v2718, %v2720
        %2722 = vrot.lane.b32.xlu0 %v2644, 8
        %v2723 = vpop.permute.xlu0 %2722
        %2724 = vrot.lane.b32.xlu0 %v2646, 8
        %v2725 = vpop.permute.xlu0 %2724
        %2726 = vrot.lane.b32.xlu0 %v2649, 8
        %v2727 = vpop.permute.xlu0 %2726
        %2728 = vrot.lane.b32.xlu0 %v2651, 8
        %v2729 = vpop.permute.xlu0 %2728
        %2730 = vrot.lane.b32.xlu0 %v2654, 8
        %v2731 = vpop.permute.xlu0 %2730
        %2732 = vrot.lane.b32.xlu0 %v2656, 8
        %v2733 = vpop.permute.xlu0 %2732
        %2734 = vrot.lane.b32.xlu0 %v2659, 8
        %v2735 = vpop.permute.xlu0 %2734
        %2736 = vrot.lane.b32.xlu0 %v2661, 8
        %v2737 = vpop.permute.xlu0 %2736
        %2738 = vrot.lane.b32.xlu0 %v2664, 8
        %v2739 = vpop.permute.xlu0 %2738
        %2740 = vrot.lane.b32.xlu0 %v2666, 8
        %v2741 = vpop.permute.xlu0 %2740
        %2742 = vrot.lane.b32.xlu0 %v2669, 8
        %v2743 = vpop.permute.xlu0 %2742
        %2744 = vrot.lane.b32.xlu0 %v2671, 8
        %v2745 = vpop.permute.xlu0 %2744
        %2746 = vrot.lane.b32.xlu0 %v2674, 8
        %v2747 = vpop.permute.xlu0 %2746
        %2748 = vrot.lane.b32.xlu0 %v2676, 8
        %v2749 = vpop.permute.xlu0 %2748
        %2750 = vrot.lane.b32.xlu0 %v2679, 8
        %v2751 = vpop.permute.xlu0 %2750
        %2752 = vrot.lane.b32.xlu0 %v2681, 8
        %v2753 = vpop.permute.xlu0 %2752
        %2754 = vrot.lane.b32.xlu0 %v2684, 8
        %v2755 = vpop.permute.xlu0 %2754
        %2756 = vrot.lane.b32.xlu0 %v2686, 8
        %v2757 = vpop.permute.xlu0 %2756
        %2758 = vrot.lane.b32.xlu0 %v2689, 8
        %v2759 = vpop.permute.xlu0 %2758
        %2760 = vrot.lane.b32.xlu0 %v2691, 8
        %v2761 = vpop.permute.xlu0 %2760
        %2762 = vrot.lane.b32.xlu0 %v2694, 8
        %v2763 = vpop.permute.xlu0 %2762
        %2764 = vrot.lane.b32.xlu0 %v2696, 8
        %v2765 = vpop.permute.xlu0 %2764
        %2766 = vrot.lane.b32.xlu0 %v2699, 8
        %v2767 = vpop.permute.xlu0 %2766
        %2768 = vrot.lane.b32.xlu0 %v2701, 8
        %v2769 = vpop.permute.xlu0 %2768
        %2770 = vrot.lane.b32.xlu0 %v2704, 8
        %v2771 = vpop.permute.xlu0 %2770
        %2772 = vrot.lane.b32.xlu0 %v2706, 8
        %v2773 = vpop.permute.xlu0 %2772
        %2774 = vrot.lane.b32.xlu0 %v2709, 8
        %v2775 = vpop.permute.xlu0 %2774
        %2776 = vrot.lane.b32.xlu0 %v2711, 8
        %v2777 = vpop.permute.xlu0 %2776
        %2778 = vrot.lane.b32.xlu0 %v2714, 8
        %v2779 = vpop.permute.xlu0 %2778
        %2780 = vrot.lane.b32.xlu0 %v2716, 8
        %v2781 = vpop.permute.xlu0 %2780
        %2782 = vrot.lane.b32.xlu0 %v2719, 8
        %v2783 = vpop.permute.xlu0 %2782
        %2784 = vrot.lane.b32.xlu0 %v2721, 8
        %v2785 = vpop.permute.xlu0 %2784
        %v2818 = vsel %vm730, %v2370, %v2547
        %v2819 = vsel %vm730, %v2371, %v2549
        %v2820 = vsel %vm730, %v2373, %v2551
        %v2821 = vsel %vm730, %v2374, %v2553
        %v2822 = vsel %vm730, %v2376, %v2555
        %v2823 = vsel %vm730, %v2377, %v2557
        %v2824 = vsel %vm730, %v2379, %v2559
        %v2825 = vsel %vm730, %v2380, %v2561
        %v2826 = vsel %vm730, %v2382, %v2563
        %v2827 = vsel %vm730, %v2383, %v2565
        %v2828 = vsel %vm730, %v2385, %v2567
        %v2829 = vsel %vm730, %v2386, %v2569
        %v2830 = vsel %vm730, %v2388, %v2571
        %v2831 = vsel %vm730, %v2389, %v2573
        %v2832 = vsel %vm730, %v2391, %v2575
        %v2833 = vsel %vm730, %v2392, %v2577
        %v2834 = vsel %vm730, %v2394, %v2579
        %v2835 = vsel %vm730, %v2395, %v2581
        %v2836 = vsel %vm730, %v2397, %v2583
        %v2837 = vsel %vm730, %v2398, %v2585
        %v2838 = vsel %vm730, %v2400, %v2587
        %v2839 = vsel %vm730, %v2401, %v2589
        %v2840 = vsel %vm730, %v2403, %v2591
        %v2841 = vsel %vm730, %v2404, %v2593
        %v2842 = vsel %vm730, %v2406, %v2595
        %v2843 = vsel %vm730, %v2407, %v2597
        %v2844 = vsel %vm730, %v2409, %v2599
        %v2845 = vsel %vm730, %v2410, %v2601
        %v2846 = vsel %vm730, %v2412, %v2603
        %v2847 = vsel %vm730, %v2413, %v2605
        %v2848 = vsel %vm730, %v2415, %v2607
        %v2849 = vsel %vm730, %v2416, %v2609
        %v2850 = vsel %vm2334, %v2818, %v2723
        %v2851 = vsel %vm2334, %v2819, %v2725
        %v2852 = vsel %vm2334, %v2820, %v2727
        %v2853 = vsel %vm2334, %v2821, %v2729
        %v2854 = vsel %vm2334, %v2822, %v2731
        %v2855 = vsel %vm2334, %v2823, %v2733
        %v2856 = vsel %vm2334, %v2824, %v2735
        %v2857 = vsel %vm2334, %v2825, %v2737
        %v2858 = vsel %vm2334, %v2826, %v2739
        %v2859 = vsel %vm2334, %v2827, %v2741
        %v2860 = vsel %vm2334, %v2828, %v2743
        %v2861 = vsel %vm2334, %v2829, %v2745
        %v2862 = vsel %vm2334, %v2830, %v2747
        %v2863 = vsel %vm2334, %v2831, %v2749
        %v2864 = vsel %vm2334, %v2832, %v2751
        %v2865 = vsel %vm2334, %v2833, %v2753
        %v2866 = vsel %vm2334, %v2834, %v2755
        %v2867 = vsel %vm2334, %v2835, %v2757
        %v2868 = vsel %vm2334, %v2836, %v2759
        %v2869 = vsel %vm2334, %v2837, %v2761
        %v2870 = vsel %vm2334, %v2838, %v2763
        %v2871 = vsel %vm2334, %v2839, %v2765
        %v2872 = vsel %vm2334, %v2840, %v2767
        %v2873 = vsel %vm2334, %v2841, %v2769
        %v2874 = vsel %vm2334, %v2842, %v2771
        %v2875 = vsel %vm2334, %v2843, %v2773
        %v2876 = vsel %vm2334, %v2844, %v2775
        %v2877 = vsel %vm2334, %v2845, %v2777
        %v2878 = vsel %vm2334, %v2846, %v2779
        %v2879 = vsel %vm2334, %v2847, %v2781
        %v2880 = vsel %vm2334, %v2848, %v2783
        %v2881 = vsel %vm2334, %v2849, %v2785
        %s2882 = scalar_lea.vmem %s5, 16
        %v2883 = vld [vmem:[%s2882] sm:$0xff]
        %v2884 = vld [vmem:[%s2882 + $0x8] sm:$0xf]
        %vm2885 = vcmask 97280
        %v2887 = vsel %vm2885, %v2850, 0
        %v2890 = vsel %vm2885, %v2851, 0
        %v2893 = vsel %vm2885, %v2852, 0
        %v2896 = vsel %vm2885, %v2853, 0
        %v2899 = vsel %vm2885, %v2854, 0
        %v2902 = vsel %vm2885, %v2855, 0
        %v2905 = vsel %vm2885, %v2856, 0
        %v2908 = vsel %vm2885, %v2857, 0
        %v2911 = vsel %vm2885, %v2858, 0
        %v2914 = vsel %vm2885, %v2859, 0
        %v2917 = vsel %vm2885, %v2860, 0
        %v2920 = vsel %vm2885, %v2861, 0
        %v2923 = vsel %vm2885, %v2862, 0
        %v2926 = vsel %vm2885, %v2863, 0
        %v2929 = vsel %vm2885, %v2864, 0
        %v2932 = vsel %vm2885, %v2865, 0
        %v2935 = vsel %vm2885, %v2866, 0
        %v2938 = vsel %vm2885, %v2867, 0
        %v2941 = vsel %vm2885, %v2868, 0
        %v2944 = vsel %vm2885, %v2869, 0
        %v2947 = vsel %vm2885, %v2870, 0
        %v2950 = vsel %vm2885, %v2871, 0
        %v2953 = vsel %vm2885, %v2872, 0
        %v2956 = vsel %vm2885, %v2873, 0
        %v2959 = vsel %vm2885, %v2874, 0
        %v2962 = vsel %vm2885, %v2875, 0
        %v2965 = vsel %vm2885, %v2876, 0
        %v2968 = vsel %vm2885, %v2877, 0
        %v2971 = vsel %vm2885, %v2878, 0
        %v2974 = vsel %vm2885, %v2879, 0
        %v2977 = vsel %vm2885, %v2880, 0
        %v2980 = vsel %vm2885, %v2881, 0
        %v2983 = vsel %vm795, %v2884, 0
        %2985 = vmatprep.subr.mxu0 0.0
        %2986 = vmatpush1.msra.mxu0 %v2883
        %2987 = vmatprep.subr.mxu0 0.0
        %2988 = vmatpush1.msra.mxu0 %v2983
        %2989 = vmatprep.subr.mxu0 0.0
        %2990 = vmatpush1.msra.mxu0 0.0
        %2991 = vmatprep.subr.mxu0 0.0
        %2992 = vmatpush1.msra.mxu0 0.0
        %2993 = vmatprep.subr.mxu0 0.0
        %2994 = vmatpush1.msra.mxu0 0.0
        %2995 = vmatprep.subr.mxu0 0.0
        %2996 = vmatpush1.msra.mxu0 0.0
        %2997 = vmatprep.subr.mxu0 0.0
        %2998 = vmatpush1.msra.mxu0 0.0
        %2999 = vmatprep.subr.mxu0 0.0
        %3000 = vmatpush1.msra.mxu0 0.0
        %3001 = vmatprep.subr.mxu0 0.0
        %3002 = vmatpush1.msra.mxu0 0.0
        %3003 = vmatprep.subr.mxu0 0.0
        %3004 = vmatpush1.msra.mxu0 0.0
        %3005 = vmatprep.subr.mxu0 0.0
        %3006 = vmatpush1.msra.mxu0 0.0
        %3007 = vmatprep.subr.mxu0 0.0
        %3008 = vmatpush1.msra.mxu0 0.0
        %3009 = vmatprep.subr.mxu0 0.0
        %3010 = vmatpush1.msra.mxu0 0.0
        %3011 = vmatprep.subr.mxu0 0.0
        %3012 = vmatpush1.msra.mxu0 0.0
        %3013 = vmatprep.subr.mxu0 0.0
        %3014 = vmatpush1.msra.mxu0 0.0
        %3015 = vmatprep.subr.mxu0 0.0
        %3016 = vmatpush1.msra.mxu0 0.0
        %3017 = vmatprep.subr.mxu0 0.0
        %3018 = vmatpush1.msra.mxu0 0.0
        %3019 = vmatprep.subr.mxu0 0.0
        %3020 = vmatpush1.msra.mxu0 0.0
        %3021 = vmatprep.subr.mxu0 0.0
        %3022 = vmatpush1.msra.mxu0 0.0
        %3023 = vmatprep.subr.mxu0 0.0
        %3024 = vmatpush1.msra.mxu0 0.0
        %3025 = vmatprep.subr.mxu0 0.0
        %3026 = vmatpush1.msra.mxu0 0.0
        %3027 = vmatprep.subr.mxu0 0.0
        %3028 = vmatpush1.msra.mxu0 0.0
        %3029 = vmatprep.subr.mxu0 0.0
        %3030 = vmatpush1.msra.mxu0 0.0
        %3031 = vmatprep.subr.mxu0 0.0
        %3032 = vmatpush1.msra.mxu0 0.0
        %3033 = vmatprep.subr.mxu0 0.0
        %3034 = vmatpush1.msra.mxu0 0.0
        %3035 = vmatprep.subr.mxu0 0.0
        %3036 = vmatpush1.msra.mxu0 0.0
        %3037 = vmatprep.subr.mxu0 0.0
        %3038 = vmatpush1.msra.mxu0 0.0
        %3039 = vmatprep.subr.mxu0 0.0
        %3040 = vmatpush1.msra.mxu0 0.0
        %3041 = vmatprep.subr.mxu0 0.0
        %3042 = vmatpush1.msra.mxu0 0.0
        %3043 = vmatprep.subr.mxu0 0.0
        %3044 = vmatpush1.msra.mxu0 0.0
        %3045 = vmatprep.subr.mxu0 0.0
        %3046 = vmatpush1.msra.mxu0 0.0
        %3047 = vmatprep.subr.mxu0 0.0
        %3048 = vmatpush1.msra.mxu0 0.0
        %3049 = vmatprep.mubr.f32.mxu0 0.0
        %3050 = vmatmul.mubr.f32.gmra.mrb[0].mxu0 %v2887
        %v3051 = vpop.f32.mrb[0].mxu0
        %v3052 = vadd.f32 0.0, %v3051
        %v3053 = vpop.f32.mrb[0].mxu0
        %3054 = vmatprep.mubr.f32.mxu0 0.0
        %3055 = vmatmul.mubr.f32.gmra.mrb[0].mxu0 %v2890
        %v3056 = vpop.f32.mrb[0].mxu0
        %v3057 = vadd.f32 0.0, %v3056
        %v3058 = vpop.f32.mrb[0].mxu0
        %3059 = vmatprep.mubr.f32.mxu0 0.0
        %3060 = vmatmul.mubr.f32.gmra.mrb[0].mxu0 %v2893
        %v3061 = vpop.f32.mrb[0].mxu0
        %v3062 = vadd.f32 0.0, %v3061
        %v3063 = vpop.f32.mrb[0].mxu0
        %3064 = vmatprep.mubr.f32.mxu0 0.0
        %3065 = vmatmul.mubr.f32.gmra.mrb[0].mxu0 %v2896
        %v3066 = vpop.f32.mrb[0].mxu0
        %v3067 = vadd.f32 0.0, %v3066
        %v3068 = vpop.f32.mrb[0].mxu0
        %3069 = vmatprep.mubr.f32.mxu0 0.0
        %3070 = vmatmul.mubr.f32.gmra.mrb[0].mxu0 %v2899
        %v3071 = vpop.f32.mrb[0].mxu0
        %v3072 = vadd.f32 0.0, %v3071
        %v3073 = vpop.f32.mrb[0].mxu0
        %3074 = vmatprep.mubr.f32.mxu0 0.0
        %3075 = vmatmul.mubr.f32.gmra.mrb[0].mxu0 %v2902
        %v3076 = vpop.f32.mrb[0].mxu0
        %v3077 = vadd.f32 0.0, %v3076
        %v3078 = vpop.f32.mrb[0].mxu0
        %3079 = vmatprep.mubr.f32.mxu0 0.0
        %3080 = vmatmul.mubr.f32.gmra.mrb[0].mxu0 %v2905
        %v3081 = vpop.f32.mrb[0].mxu0
        %v3082 = vadd.f32 0.0, %v3081
        %v3083 = vpop.f32.mrb[0].mxu0
        %3084 = vmatprep.mubr.f32.mxu0 0.0
        %3085 = vmatmul.mubr.f32.gmra.mrb[0].mxu0 %v2908
        %v3086 = vpop.f32.mrb[0].mxu0
        %v3087 = vadd.f32 0.0, %v3086
        %v3088 = vpop.f32.mrb[0].mxu0
        %3089 = vmatprep.mubr.f32.mxu0 0.0
        %3090 = vmatmul.mubr.f32.gmra.mrb[0].mxu0 %v2911
        %v3091 = vpop.f32.mrb[0].mxu0
        %v3092 = vadd.f32 0.0, %v3091
        %v3093 = vpop.f32.mrb[0].mxu0
        %3094 = vmatprep.mubr.f32.mxu0 0.0
        %3095 = vmatmul.mubr.f32.gmra.mrb[0].mxu0 %v2914
        %v3096 = vpop.f32.mrb[0].mxu0
        %v3097 = vadd.f32 0.0, %v3096
        %v3098 = vpop.f32.mrb[0].mxu0
        %3099 = vmatprep.mubr.f32.mxu0 0.0
        %3100 = vmatmul.mubr.f32.gmra.mrb[0].mxu0 %v2917
        %v3101 = vpop.f32.mrb[0].mxu0
        %v3102 = vadd.f32 0.0, %v3101
        %v3103 = vpop.f32.mrb[0].mxu0
        %3104 = vmatprep.mubr.f32.mxu0 0.0
        %3105 = vmatmul.mubr.f32.gmra.mrb[0].mxu0 %v2920
        %v3106 = vpop.f32.mrb[0].mxu0
        %v3107 = vadd.f32 0.0, %v3106
        %v3108 = vpop.f32.mrb[0].mxu0
        %3109 = vmatprep.mubr.f32.mxu0 0.0
        %3110 = vmatmul.mubr.f32.gmra.mrb[0].mxu0 %v2923
        %v3111 = vpop.f32.mrb[0].mxu0
        %v3112 = vadd.f32 0.0, %v3111
        %v3113 = vpop.f32.mrb[0].mxu0
        %3114 = vmatprep.mubr.f32.mxu0 0.0
        %3115 = vmatmul.mubr.f32.gmra.mrb[0].mxu0 %v2926
        %v3116 = vpop.f32.mrb[0].mxu0
        %v3117 = vadd.f32 0.0, %v3116
        %v3118 = vpop.f32.mrb[0].mxu0
        %3119 = vmatprep.mubr.f32.mxu0 0.0
        %3120 = vmatmul.mubr.f32.gmra.mrb[0].mxu0 %v2929
        %v3121 = vpop.f32.mrb[0].mxu0
        %v3122 = vadd.f32 0.0, %v3121
        %v3123 = vpop.f32.mrb[0].mxu0
        %3124 = vmatprep.mubr.f32.mxu0 0.0
        %3125 = vmatmul.mubr.f32.gmra.mrb[0].mxu0 %v2932
        %v3126 = vpop.f32.mrb[0].mxu0
        %v3127 = vadd.f32 0.0, %v3126
        %v3128 = vpop.f32.mrb[0].mxu0
        %3129 = vmatprep.mubr.f32.mxu0 0.0
        %3130 = vmatmul.mubr.f32.gmra.mrb[0].mxu0 %v2935
        %v3131 = vpop.f32.mrb[0].mxu0
        %v3132 = vadd.f32 0.0, %v3131
        %v3133 = vpop.f32.mrb[0].mxu0
        %3134 = vmatprep.mubr.f32.mxu0 0.0
        %3135 = vmatmul.mubr.f32.gmra.mrb[0].mxu0 %v2938
        %v3136 = vpop.f32.mrb[0].mxu0
        %v3137 = vadd.f32 0.0, %v3136
        %v3138 = vpop.f32.mrb[0].mxu0
        %3139 = vmatprep.mubr.f32.mxu0 0.0
        %3140 = vmatmul.mubr.f32.gmra.mrb[0].mxu0 %v2941
        %v3141 = vpop.f32.mrb[0].mxu0
        %v3142 = vadd.f32 0.0, %v3141
        %v3143 = vpop.f32.mrb[0].mxu0
        %3144 = vmatprep.mubr.f32.mxu0 0.0
        %3145 = vmatmul.mubr.f32.gmra.mrb[0].mxu0 %v2944
        %v3146 = vpop.f32.mrb[0].mxu0
        %v3147 = vadd.f32 0.0, %v3146
        %v3148 = vpop.f32.mrb[0].mxu0
        %3149 = vmatprep.mubr.f32.mxu0 0.0
        %3150 = vmatmul.mubr.f32.gmra.mrb[0].mxu0 %v2947
        %v3151 = vpop.f32.mrb[0].mxu0
        %v3152 = vadd.f32 0.0, %v3151
        %v3153 = vpop.f32.mrb[0].mxu0
        %3154 = vmatprep.mubr.f32.mxu0 0.0
        %3155 = vmatmul.mubr.f32.gmra.mrb[0].mxu0 %v2950
        %v3156 = vpop.f32.mrb[0].mxu0
        %v3157 = vadd.f32 0.0, %v3156
        %v3158 = vpop.f32.mrb[0].mxu0
        %3159 = vmatprep.mubr.f32.mxu0 0.0
        %3160 = vmatmul.mubr.f32.gmra.mrb[0].mxu0 %v2953
        %v3161 = vpop.f32.mrb[0].mxu0
        %v3162 = vadd.f32 0.0, %v3161
        %v3163 = vpop.f32.mrb[0].mxu0
        %3164 = vmatprep.mubr.f32.mxu0 0.0
        %3165 = vmatmul.mubr.f32.gmra.mrb[0].mxu0 %v2956
        %v3166 = vpop.f32.mrb[0].mxu0
        %v3167 = vadd.f32 0.0, %v3166
        %v3168 = vpop.f32.mrb[0].mxu0
        %3169 = vmatprep.mubr.f32.mxu0 0.0
        %3170 = vmatmul.mubr.f32.gmra.mrb[0].mxu0 %v2959
        %v3171 = vpop.f32.mrb[0].mxu0
        %v3172 = vadd.f32 0.0, %v3171
        %v3173 = vpop.f32.mrb[0].mxu0
        %3174 = vmatprep.mubr.f32.mxu0 0.0
        %3175 = vmatmul.mubr.f32.gmra.mrb[0].mxu0 %v2962
        %v3176 = vpop.f32.mrb[0].mxu0
        %v3177 = vadd.f32 0.0, %v3176
        %v3178 = vpop.f32.mrb[0].mxu0
        %3179 = vmatprep.mubr.f32.mxu0 0.0
        %3180 = vmatmul.mubr.f32.gmra.mrb[0].mxu0 %v2965
        %v3181 = vpop.f32.mrb[0].mxu0
        %v3182 = vadd.f32 0.0, %v3181
        %v3183 = vpop.f32.mrb[0].mxu0
        %3184 = vmatprep.mubr.f32.mxu0 0.0
        %3185 = vmatmul.mubr.f32.gmra.mrb[0].mxu0 %v2968
        %v3186 = vpop.f32.mrb[0].mxu0
        %v3187 = vadd.f32 0.0, %v3186
        %v3188 = vpop.f32.mrb[0].mxu0
        %3189 = vmatprep.mubr.f32.mxu0 0.0
        %3190 = vmatmul.mubr.f32.gmra.mrb[0].mxu0 %v2971
        %v3191 = vpop.f32.mrb[0].mxu0
        %v3192 = vadd.f32 0.0, %v3191
        %v3193 = vpop.f32.mrb[0].mxu0
        %3194 = vmatprep.mubr.f32.mxu0 0.0
        %3195 = vmatmul.mubr.f32.gmra.mrb[0].mxu0 %v2974
        %v3196 = vpop.f32.mrb[0].mxu0
        %v3197 = vadd.f32 0.0, %v3196
        %v3198 = vpop.f32.mrb[0].mxu0
        %3199 = vmatprep.mubr.f32.mxu0 0.0
        %3200 = vmatmul.mubr.f32.gmra.mrb[0].mxu0 %v2977
        %v3201 = vpop.f32.mrb[0].mxu0
        %v3202 = vadd.f32 0.0, %v3201
        %v3203 = vpop.f32.mrb[0].mxu0
        %3204 = vmatprep.mubr.f32.mxu0 0.0
        %3205 = vmatmul.mubr.f32.gmra.mrb[0].mxu0 %v2980
        %v3206 = vpop.f32.mrb[0].mxu0
        %v3207 = vadd.f32 0.0, %v3206
        %v3208 = vpop.f32.mrb[0].mxu0
        %3209 = vdwg.mxu0
        %v3211 = vsel %vm2885, %v2335, 0
        %v3214 = vsel %vm2885, %v2336, 0
        %v3217 = vsel %vm2885, %v2337, 0
        %v3220 = vsel %vm2885, %v2338, 0
        %v3223 = vsel %vm2885, %v2339, 0
        %v3226 = vsel %vm2885, %v2340, 0
        %v3229 = vsel %vm2885, %v2341, 0
        %v3232 = vsel %vm2885, %v2342, 0
        %v3235 = vsel %vm2885, %v2343, 0
        %v3238 = vsel %vm2885, %v2344, 0
        %v3241 = vsel %vm2885, %v2345, 0
        %v3244 = vsel %vm2885, %v2346, 0
        %v3247 = vsel %vm2885, %v2347, 0
        %v3250 = vsel %vm2885, %v2348, 0
        %v3253 = vsel %vm2885, %v2349, 0
        %v3256 = vsel %vm2885, %v2350, 0
        %v3259 = vsel %vm2885, %v2351, 0
        %v3262 = vsel %vm2885, %v2352, 0
        %v3265 = vsel %vm2885, %v2353, 0
        %v3268 = vsel %vm2885, %v2354, 0
        %v3271 = vsel %vm2885, %v2355, 0
        %v3274 = vsel %vm2885, %v2356, 0
        %v3277 = vsel %vm2885, %v2357, 0
        %v3280 = vsel %vm2885, %v2358, 0
        %v3283 = vsel %vm2885, %v2359, 0
        %v3286 = vsel %vm2885, %v2360, 0
        %v3289 = vsel %vm2885, %v2361, 0
        %v3292 = vsel %vm2885, %v2362, 0
        %v3295 = vsel %vm2885, %v2363, 0
        %v3298 = vsel %vm2885, %v2364, 0
        %v3301 = vsel %vm2885, %v2365, 0
        %v3304 = vsel %vm2885, %v2366, 0
        %v3307 = vsel %vm795, %v2368, 0
        %3309 = vmatprep.subr.mxu0 0.0
        %3310 = vmatpush1.msra.mxu0 %v2367
        %3311 = vmatprep.subr.mxu0 0.0
        %3312 = vmatpush1.msra.mxu0 %v3307
        %3313 = vmatprep.subr.mxu0 0.0
        %3314 = vmatpush1.msra.mxu0 0.0
        %3315 = vmatprep.subr.mxu0 0.0
        %3316 = vmatpush1.msra.mxu0 0.0
        %3317 = vmatprep.subr.mxu0 0.0
        %3318 = vmatpush1.msra.mxu0 0.0
        %3319 = vmatprep.subr.mxu0 0.0
        %3320 = vmatpush1.msra.mxu0 0.0
        %3321 = vmatprep.subr.mxu0 0.0
        %3322 = vmatpush1.msra.mxu0 0.0
        %3323 = vmatprep.subr.mxu0 0.0
        %3324 = vmatpush1.msra.mxu0 0.0
        %3325 = vmatprep.subr.mxu0 0.0
        %3326 = vmatpush1.msra.mxu0 0.0
        %3327 = vmatprep.subr.mxu0 0.0
        %3328 = vmatpush1.msra.mxu0 0.0
        %3329 = vmatprep.subr.mxu0 0.0
        %3330 = vmatpush1.msra.mxu0 0.0
        %3331 = vmatprep.subr.mxu0 0.0
        %3332 = vmatpush1.msra.mxu0 0.0
        %3333 = vmatprep.subr.mxu0 0.0
        %3334 = vmatpush1.msra.mxu0 0.0
        %3335 = vmatprep.subr.mxu0 0.0
        %3336 = vmatpush1.msra.mxu0 0.0
        %3337 = vmatprep.subr.mxu0 0.0
        %3338 = vmatpush1.msra.mxu0 0.0
        %3339 = vmatprep.subr.mxu0 0.0
        %3340 = vmatpush1.msra.mxu0 0.0
        %3341 = vmatprep.subr.mxu0 0.0
        %3342 = vmatpush1.msra.mxu0 0.0
        %3343 = vmatprep.subr.mxu0 0.0
        %3344 = vmatpush1.msra.mxu0 0.0
        %3345 = vmatprep.subr.mxu0 0.0
        %3346 = vmatpush1.msra.mxu0 0.0
        %3347 = vmatprep.subr.mxu0 0.0
        %3348 = vmatpush1.msra.mxu0 0.0
        %3349 = vmatprep.subr.mxu0 0.0
        %3350 = vmatpush1.msra.mxu0 0.0
        %3351 = vmatprep.subr.mxu0 0.0
        %3352 = vmatpush1.msra.mxu0 0.0
        %3353 = vmatprep.subr.mxu0 0.0
        %3354 = vmatpush1.msra.mxu0 0.0
        %3355 = vmatprep.subr.mxu0 0.0
        %3356 = vmatpush1.msra.mxu0 0.0
        %3357 = vmatprep.subr.mxu0 0.0
        %3358 = vmatpush1.msra.mxu0 0.0
        %3359 = vmatprep.subr.mxu0 0.0
        %3360 = vmatpush1.msra.mxu0 0.0
        %3361 = vmatprep.subr.mxu0 0.0
        %3362 = vmatpush1.msra.mxu0 0.0
        %3363 = vmatprep.subr.mxu0 0.0
        %3364 = vmatpush1.msra.mxu0 0.0
        %3365 = vmatprep.subr.mxu0 0.0
        %3366 = vmatpush1.msra.mxu0 0.0
        %3367 = vmatprep.subr.mxu0 0.0
        %3368 = vmatpush1.msra.mxu0 0.0
        %3369 = vmatprep.subr.mxu0 0.0
        %3370 = vmatpush1.msra.mxu0 0.0
        %3371 = vmatprep.subr.mxu0 0.0
        %3372 = vmatpush1.msra.mxu0 0.0
        %3373 = vmatprep.mubr.f32.mxu0 0.0
        %3374 = vmatmul.mubr.f32.gmra.mrb[0].mxu0 %v3211
        %v3375 = vpop.f32.mrb[0].mxu0
        %v3376 = vadd.f32 %v3052, %v3375
        %v3377 = vpop.f32.mrb[0].mxu0
        %3378 = vmatprep.mubr.f32.mxu0 0.0
        %3379 = vmatmul.mubr.f32.gmra.mrb[0].mxu0 %v3214
        %v3380 = vpop.f32.mrb[0].mxu0
        %v3381 = vadd.f32 %v3057, %v3380
        %v3382 = vpop.f32.mrb[0].mxu0
        %3383 = vmatprep.mubr.f32.mxu0 0.0
        %3384 = vmatmul.mubr.f32.gmra.mrb[0].mxu0 %v3217
        %v3385 = vpop.f32.mrb[0].mxu0
        %v3386 = vadd.f32 %v3062, %v3385
        %v3387 = vpop.f32.mrb[0].mxu0
        %3388 = vmatprep.mubr.f32.mxu0 0.0
        %3389 = vmatmul.mubr.f32.gmra.mrb[0].mxu0 %v3220
        %v3390 = vpop.f32.mrb[0].mxu0
        %v3391 = vadd.f32 %v3067, %v3390
        %v3392 = vpop.f32.mrb[0].mxu0
        %3393 = vmatprep.mubr.f32.mxu0 0.0
        %3394 = vmatmul.mubr.f32.gmra.mrb[0].mxu0 %v3223
        %v3395 = vpop.f32.mrb[0].mxu0
        %v3396 = vadd.f32 %v3072, %v3395
        %v3397 = vpop.f32.mrb[0].mxu0
        %3398 = vmatprep.mubr.f32.mxu0 0.0
        %3399 = vmatmul.mubr.f32.gmra.mrb[0].mxu0 %v3226
        %v3400 = vpop.f32.mrb[0].mxu0
        %v3401 = vadd.f32 %v3077, %v3400
        %v3402 = vpop.f32.mrb[0].mxu0
        %3403 = vmatprep.mubr.f32.mxu0 0.0
        %3404 = vmatmul.mubr.f32.gmra.mrb[0].mxu0 %v3229
        %v3405 = vpop.f32.mrb[0].mxu0
        %v3406 = vadd.f32 %v3082, %v3405
        %v3407 = vpop.f32.mrb[0].mxu0
        %3408 = vmatprep.mubr.f32.mxu0 0.0
        %3409 = vmatmul.mubr.f32.gmra.mrb[0].mxu0 %v3232
        %v3410 = vpop.f32.mrb[0].mxu0
        %v3411 = vadd.f32 %v3087, %v3410
        %v3412 = vpop.f32.mrb[0].mxu0
        %3413 = vmatprep.mubr.f32.mxu0 0.0
        %3414 = vmatmul.mubr.f32.gmra.mrb[0].mxu0 %v3235
        %v3415 = vpop.f32.mrb[0].mxu0
        %v3416 = vadd.f32 %v3092, %v3415
        %v3417 = vpop.f32.mrb[0].mxu0
        %3418 = vmatprep.mubr.f32.mxu0 0.0
        %3419 = vmatmul.mubr.f32.gmra.mrb[0].mxu0 %v3238
        %v3420 = vpop.f32.mrb[0].mxu0
        %v3421 = vadd.f32 %v3097, %v3420
        %v3422 = vpop.f32.mrb[0].mxu0
        %3423 = vmatprep.mubr.f32.mxu0 0.0
        %3424 = vmatmul.mubr.f32.gmra.mrb[0].mxu0 %v3241
        %v3425 = vpop.f32.mrb[0].mxu0
        %v3426 = vadd.f32 %v3102, %v3425
        %v3427 = vpop.f32.mrb[0].mxu0
        %3428 = vmatprep.mubr.f32.mxu0 0.0
        %3429 = vmatmul.mubr.f32.gmra.mrb[0].mxu0 %v3244
        %v3430 = vpop.f32.mrb[0].mxu0
        %v3431 = vadd.f32 %v3107, %v3430
        %v3432 = vpop.f32.mrb[0].mxu0
        %3433 = vmatprep.mubr.f32.mxu0 0.0
        %3434 = vmatmul.mubr.f32.gmra.mrb[0].mxu0 %v3247
        %v3435 = vpop.f32.mrb[0].mxu0
        %v3436 = vadd.f32 %v3112, %v3435
        %v3437 = vpop.f32.mrb[0].mxu0
        %3438 = vmatprep.mubr.f32.mxu0 0.0
        %3439 = vmatmul.mubr.f32.gmra.mrb[0].mxu0 %v3250
        %v3440 = vpop.f32.mrb[0].mxu0
        %v3441 = vadd.f32 %v3117, %v3440
        %v3442 = vpop.f32.mrb[0].mxu0
        %3443 = vmatprep.mubr.f32.mxu0 0.0
        %3444 = vmatmul.mubr.f32.gmra.mrb[0].mxu0 %v3253
        %v3445 = vpop.f32.mrb[0].mxu0
        %v3446 = vadd.f32 %v3122, %v3445
        %v3447 = vpop.f32.mrb[0].mxu0
        %3448 = vmatprep.mubr.f32.mxu0 0.0
        %3449 = vmatmul.mubr.f32.gmra.mrb[0].mxu0 %v3256
        %v3450 = vpop.f32.mrb[0].mxu0
        %v3451 = vadd.f32 %v3127, %v3450
        %v3452 = vpop.f32.mrb[0].mxu0
        %3453 = vmatprep.mubr.f32.mxu0 0.0
        %3454 = vmatmul.mubr.f32.gmra.mrb[0].mxu0 %v3259
        %v3455 = vpop.f32.mrb[0].mxu0
        %v3456 = vadd.f32 %v3132, %v3455
        %v3457 = vpop.f32.mrb[0].mxu0
        %3458 = vmatprep.mubr.f32.mxu0 0.0
        %3459 = vmatmul.mubr.f32.gmra.mrb[0].mxu0 %v3262
        %v3460 = vpop.f32.mrb[0].mxu0
        %v3461 = vadd.f32 %v3137, %v3460
        %v3462 = vpop.f32.mrb[0].mxu0
        %3463 = vmatprep.mubr.f32.mxu0 0.0
        %3464 = vmatmul.mubr.f32.gmra.mrb[0].mxu0 %v3265
        %v3465 = vpop.f32.mrb[0].mxu0
        %v3466 = vadd.f32 %v3142, %v3465
        %v3467 = vpop.f32.mrb[0].mxu0
        %3468 = vmatprep.mubr.f32.mxu0 0.0
        %3469 = vmatmul.mubr.f32.gmra.mrb[0].mxu0 %v3268
        %v3470 = vpop.f32.mrb[0].mxu0
        %v3471 = vadd.f32 %v3147, %v3470
        %v3472 = vpop.f32.mrb[0].mxu0
        %3473 = vmatprep.mubr.f32.mxu0 0.0
        %3474 = vmatmul.mubr.f32.gmra.mrb[0].mxu0 %v3271
        %v3475 = vpop.f32.mrb[0].mxu0
        %v3476 = vadd.f32 %v3152, %v3475
        %v3477 = vpop.f32.mrb[0].mxu0
        %3478 = vmatprep.mubr.f32.mxu0 0.0
        %3479 = vmatmul.mubr.f32.gmra.mrb[0].mxu0 %v3274
        %v3480 = vpop.f32.mrb[0].mxu0
        %v3481 = vadd.f32 %v3157, %v3480
        %v3482 = vpop.f32.mrb[0].mxu0
        %3483 = vmatprep.mubr.f32.mxu0 0.0
        %3484 = vmatmul.mubr.f32.gmra.mrb[0].mxu0 %v3277
        %v3485 = vpop.f32.mrb[0].mxu0
        %v3486 = vadd.f32 %v3162, %v3485
        %v3487 = vpop.f32.mrb[0].mxu0
        %3488 = vmatprep.mubr.f32.mxu0 0.0
        %3489 = vmatmul.mubr.f32.gmra.mrb[0].mxu0 %v3280
        %v3490 = vpop.f32.mrb[0].mxu0
        %v3491 = vadd.f32 %v3167, %v3490
        %v3492 = vpop.f32.mrb[0].mxu0
        %3493 = vmatprep.mubr.f32.mxu0 0.0
        %3494 = vmatmul.mubr.f32.gmra.mrb[0].mxu0 %v3283
        %v3495 = vpop.f32.mrb[0].mxu0
        %v3496 = vadd.f32 %v3172, %v3495
        %v3497 = vpop.f32.mrb[0].mxu0
        %3498 = vmatprep.mubr.f32.mxu0 0.0
        %3499 = vmatmul.mubr.f32.gmra.mrb[0].mxu0 %v3286
        %v3500 = vpop.f32.mrb[0].mxu0
        %v3501 = vadd.f32 %v3177, %v3500
        %v3502 = vpop.f32.mrb[0].mxu0
        %3503 = vmatprep.mubr.f32.mxu0 0.0
        %3504 = vmatmul.mubr.f32.gmra.mrb[0].mxu0 %v3289
        %v3505 = vpop.f32.mrb[0].mxu0
        %v3506 = vadd.f32 %v3182, %v3505
        %v3507 = vpop.f32.mrb[0].mxu0
        %3508 = vmatprep.mubr.f32.mxu0 0.0
        %3509 = vmatmul.mubr.f32.gmra.mrb[0].mxu0 %v3292
        %v3510 = vpop.f32.mrb[0].mxu0
        %v3511 = vadd.f32 %v3187, %v3510
        %v3512 = vpop.f32.mrb[0].mxu0
        %3513 = vmatprep.mubr.f32.mxu0 0.0
        %3514 = vmatmul.mubr.f32.gmra.mrb[0].mxu0 %v3295
        %v3515 = vpop.f32.mrb[0].mxu0
        %v3516 = vadd.f32 %v3192, %v3515
        %v3517 = vpop.f32.mrb[0].mxu0
        %3518 = vmatprep.mubr.f32.mxu0 0.0
        %3519 = vmatmul.mubr.f32.gmra.mrb[0].mxu0 %v3298
        %v3520 = vpop.f32.mrb[0].mxu0
        %v3521 = vadd.f32 %v3197, %v3520
        %v3522 = vpop.f32.mrb[0].mxu0
        %3523 = vmatprep.mubr.f32.mxu0 0.0
        %3524 = vmatmul.mubr.f32.gmra.mrb[0].mxu0 %v3301
        %v3525 = vpop.f32.mrb[0].mxu0
        %v3526 = vadd.f32 %v3202, %v3525
        %v3527 = vpop.f32.mrb[0].mxu0
        %3528 = vmatprep.mubr.f32.mxu0 0.0
        %3529 = vmatmul.mubr.f32.gmra.mrb[0].mxu0 %v3304
        %v3530 = vpop.f32.mrb[0].mxu0
        %v3531 = vadd.f32 %v3207, %v3530
        %v3532 = vpop.f32.mrb[0].mxu0
        %3533 = vdwg.mxu0
        %s3534 = scalar_lea.vmem %s433, %s543
        %v3535 = vld [vmem:[%s3534] sm:$0xff]
        %v3536 = vld [vmem:[%s3534 + $0x8] sm:$0xff]
        %v3537 = vld [vmem:[%s3534 + $0x10] sm:$0x3]
        %v3538 = vld [vmem:[%s3534 + $0x18] sm:$0xff]
        %v3539 = vld [vmem:[%s3534 + $0x20] sm:$0xff]
        %v3540 = vld [vmem:[%s3534 + $0x28] sm:$0x3]
        %v3541 = vld [vmem:[%s3534 + $0x30] sm:$0xff]
        %v3542 = vld [vmem:[%s3534 + $0x38] sm:$0xff]
        %v3543 = vld [vmem:[%s3534 + $0x40] sm:$0x3]
        %v3544 = vld [vmem:[%s3534 + $0x48] sm:$0xff]
        %v3545 = vld [vmem:[%s3534 + $0x50] sm:$0xff]
        %v3546 = vld [vmem:[%s3534 + $0x58] sm:$0x3]
        %v3547 = vld [vmem:[%s3534 + $0x60] sm:$0xff]
        %v3548 = vld [vmem:[%s3534 + $0x68] sm:$0xff]
        %v3549 = vld [vmem:[%s3534 + $0x70] sm:$0x3]
        %v3550 = vld [vmem:[%s3534 + $0x78] sm:$0xff]
        %v3551 = vld [vmem:[%s3534 + $0x80] sm:$0xff]
        %v3552 = vld [vmem:[%s3534 + $0x88] sm:$0x3]
        %v3553 = vld [vmem:[%s3534 + $0x90] sm:$0xff]
        %v3554 = vld [vmem:[%s3534 + $0x98] sm:$0xff]
        %v3555 = vld [vmem:[%s3534 + $0xa0] sm:$0x3]
        %v3556 = vld [vmem:[%s3534 + $0xa8] sm:$0xff]
        %v3557 = vld [vmem:[%s3534 + $0xb0] sm:$0xff]
        %v3558 = vld [vmem:[%s3534 + $0xb8] sm:$0x3]
        %v3559 = vld [vmem:[%s3534 + $0xc0] sm:$0xff]
        %v3560 = vld [vmem:[%s3534 + $0xc8] sm:$0xff]
        %v3561 = vld [vmem:[%s3534 + $0xd0] sm:$0x3]
        %v3562 = vld [vmem:[%s3534 + $0xd8] sm:$0xff]
        %v3563 = vld [vmem:[%s3534 + $0xe0] sm:$0xff]
        %v3564 = vld [vmem:[%s3534 + $0xe8] sm:$0x3]
        %v3565 = vld [vmem:[%s3534 + $0xf0] sm:$0xff]
        %v3566 = vld [vmem:[%s3534 + $0xf8] sm:$0xff]
        %v3567 = vld [vmem:[%s3534 + $0x100] sm:$0x3]
        %v3568 = vld [vmem:[%s3534 + $0x108] sm:$0xff]
        %v3569 = vld [vmem:[%s3534 + $0x110] sm:$0xff]
        %v3570 = vld [vmem:[%s3534 + $0x118] sm:$0x3]
        %v3571 = vld [vmem:[%s3534 + $0x120] sm:$0xff]
        %v3572 = vld [vmem:[%s3534 + $0x128] sm:$0xff]
        %v3573 = vld [vmem:[%s3534 + $0x130] sm:$0x3]
        %v3574 = vld [vmem:[%s3534 + $0x138] sm:$0xff]
        %v3575 = vld [vmem:[%s3534 + $0x140] sm:$0xff]
        %v3576 = vld [vmem:[%s3534 + $0x148] sm:$0x3]
        %v3577 = vld [vmem:[%s3534 + $0x150] sm:$0xff]
        %v3578 = vld [vmem:[%s3534 + $0x158] sm:$0xff]
        %v3579 = vld [vmem:[%s3534 + $0x160] sm:$0x3]
        %v3580 = vld [vmem:[%s3534 + $0x168] sm:$0xff]
        %v3581 = vld [vmem:[%s3534 + $0x170] sm:$0xff]
        %v3582 = vld [vmem:[%s3534 + $0x178] sm:$0x3]
        %v3631 = vrot.slane %v3535, 1
        %v3632 = vrot.slane %v3536, 1
        %v3633 = vsel %vm641, %v3631, %v3632
        %v3634 = vrot.slane %v3537, 1
        %v3635 = vsel %vm641, %v3632, %v3634
        %v3636 = vrot.slane %v3538, 1
        %v3637 = vrot.slane %v3539, 1
        %v3638 = vsel %vm641, %v3636, %v3637
        %v3639 = vrot.slane %v3540, 1
        %v3640 = vsel %vm641, %v3637, %v3639
        %v3641 = vrot.slane %v3541, 1
        %v3642 = vrot.slane %v3542, 1
        %v3643 = vsel %vm641, %v3641, %v3642
        %v3644 = vrot.slane %v3543, 1
        %v3645 = vsel %vm641, %v3642, %v3644
        %v3646 = vrot.slane %v3544, 1
        %v3647 = vrot.slane %v3545, 1
        %v3648 = vsel %vm641, %v3646, %v3647
        %v3649 = vrot.slane %v3546, 1
        %v3650 = vsel %vm641, %v3647, %v3649
        %v3651 = vrot.slane %v3547, 1
        %v3652 = vrot.slane %v3548, 1
        %v3653 = vsel %vm641, %v3651, %v3652
        %v3654 = vrot.slane %v3549, 1
        %v3655 = vsel %vm641, %v3652, %v3654
        %v3656 = vrot.slane %v3550, 1
        %v3657 = vrot.slane %v3551, 1
        %v3658 = vsel %vm641, %v3656, %v3657
        %v3659 = vrot.slane %v3552, 1
        %v3660 = vsel %vm641, %v3657, %v3659
        %v3661 = vrot.slane %v3553, 1
        %v3662 = vrot.slane %v3554, 1
        %v3663 = vsel %vm641, %v3661, %v3662
        %v3664 = vrot.slane %v3555, 1
        %v3665 = vsel %vm641, %v3662, %v3664
        %v3666 = vrot.slane %v3556, 1
        %v3667 = vrot.slane %v3557, 1
        %v3668 = vsel %vm641, %v3666, %v3667
        %v3669 = vrot.slane %v3558, 1
        %v3670 = vsel %vm641, %v3667, %v3669
        %v3671 = vrot.slane %v3559, 1
        %v3672 = vrot.slane %v3560, 1
        %v3673 = vsel %vm641, %v3671, %v3672
        %v3674 = vrot.slane %v3561, 1
        %v3675 = vsel %vm641, %v3672, %v3674
        %v3676 = vrot.slane %v3562, 1
        %v3677 = vrot.slane %v3563, 1
        %v3678 = vsel %vm641, %v3676, %v3677
        %v3679 = vrot.slane %v3564, 1
        %v3680 = vsel %vm641, %v3677, %v3679
        %v3681 = vrot.slane %v3565, 1
        %v3682 = vrot.slane %v3566, 1
        %v3683 = vsel %vm641, %v3681, %v3682
        %v3684 = vrot.slane %v3567, 1
        %v3685 = vsel %vm641, %v3682, %v3684
        %v3686 = vrot.slane %v3568, 1
        %v3687 = vrot.slane %v3569, 1
        %v3688 = vsel %vm641, %v3686, %v3687
        %v3689 = vrot.slane %v3570, 1
        %v3690 = vsel %vm641, %v3687, %v3689
        %v3691 = vrot.slane %v3571, 1
        %v3692 = vrot.slane %v3572, 1
        %v3693 = vsel %vm641, %v3691, %v3692
        %v3694 = vrot.slane %v3573, 1
        %v3695 = vsel %vm641, %v3692, %v3694
        %v3696 = vrot.slane %v3574, 1
        %v3697 = vrot.slane %v3575, 1
        %v3698 = vsel %vm641, %v3696, %v3697
        %v3699 = vrot.slane %v3576, 1
        %v3700 = vsel %vm641, %v3697, %v3699
        %v3701 = vrot.slane %v3577, 1
        %v3702 = vrot.slane %v3578, 1
        %v3703 = vsel %vm641, %v3701, %v3702
        %v3704 = vrot.slane %v3579, 1
        %v3705 = vsel %vm641, %v3702, %v3704
        %v3706 = vrot.slane %v3580, 1
        %v3707 = vrot.slane %v3581, 1
        %v3708 = vsel %vm641, %v3706, %v3707
        %v3709 = vrot.slane %v3582, 1
        %v3710 = vsel %vm641, %v3707, %v3709
        %3711 = vrot.lane.b32.xlu0 %v3633, 4
        %v3712 = vpop.permute.xlu0 %3711
        %3713 = vrot.lane.b32.xlu0 %v3635, 4
        %v3714 = vpop.permute.xlu0 %3713
        %3715 = vrot.lane.b32.xlu0 %v3638, 4
        %v3716 = vpop.permute.xlu0 %3715
        %3717 = vrot.lane.b32.xlu0 %v3640, 4
        %v3718 = vpop.permute.xlu0 %3717
        %3719 = vrot.lane.b32.xlu0 %v3643, 4
        %v3720 = vpop.permute.xlu0 %3719
        %3721 = vrot.lane.b32.xlu0 %v3645, 4
        %v3722 = vpop.permute.xlu0 %3721
        %3723 = vrot.lane.b32.xlu0 %v3648, 4
        %v3724 = vpop.permute.xlu0 %3723
        %3725 = vrot.lane.b32.xlu0 %v3650, 4
        %v3726 = vpop.permute.xlu0 %3725
        %3727 = vrot.lane.b32.xlu0 %v3653, 4
        %v3728 = vpop.permute.xlu0 %3727
        %3729 = vrot.lane.b32.xlu0 %v3655, 4
        %v3730 = vpop.permute.xlu0 %3729
        %3731 = vrot.lane.b32.xlu0 %v3658, 4
        %v3732 = vpop.permute.xlu0 %3731
        %3733 = vrot.lane.b32.xlu0 %v3660, 4
        %v3734 = vpop.permute.xlu0 %3733
        %3735 = vrot.lane.b32.xlu0 %v3663, 4
        %v3736 = vpop.permute.xlu0 %3735
        %3737 = vrot.lane.b32.xlu0 %v3665, 4
        %v3738 = vpop.permute.xlu0 %3737
        %3739 = vrot.lane.b32.xlu0 %v3668, 4
        %v3740 = vpop.permute.xlu0 %3739
        %3741 = vrot.lane.b32.xlu0 %v3670, 4
        %v3742 = vpop.permute.xlu0 %3741
        %3743 = vrot.lane.b32.xlu0 %v3673, 4
        %v3744 = vpop.permute.xlu0 %3743
        %3745 = vrot.lane.b32.xlu0 %v3675, 4
        %v3746 = vpop.permute.xlu0 %3745
        %3747 = vrot.lane.b32.xlu0 %v3678, 4
        %v3748 = vpop.permute.xlu0 %3747
        %3749 = vrot.lane.b32.xlu0 %v3680, 4
        %v3750 = vpop.permute.xlu0 %3749
        %3751 = vrot.lane.b32.xlu0 %v3683, 4
        %v3752 = vpop.permute.xlu0 %3751
        %3753 = vrot.lane.b32.xlu0 %v3685, 4
        %v3754 = vpop.permute.xlu0 %3753
        %3755 = vrot.lane.b32.xlu0 %v3688, 4
        %v3756 = vpop.permute.xlu0 %3755
        %3757 = vrot.lane.b32.xlu0 %v3690, 4
        %v3758 = vpop.permute.xlu0 %3757
        %3759 = vrot.lane.b32.xlu0 %v3693, 4
        %v3760 = vpop.permute.xlu0 %3759
        %3761 = vrot.lane.b32.xlu0 %v3695, 4
        %v3762 = vpop.permute.xlu0 %3761
        %3763 = vrot.lane.b32.xlu0 %v3698, 4
        %v3764 = vpop.permute.xlu0 %3763
        %3765 = vrot.lane.b32.xlu0 %v3700, 4
        %v3766 = vpop.permute.xlu0 %3765
        %3767 = vrot.lane.b32.xlu0 %v3703, 4
        %v3768 = vpop.permute.xlu0 %3767
        %3769 = vrot.lane.b32.xlu0 %v3705, 4
        %v3770 = vpop.permute.xlu0 %3769
        %3771 = vrot.lane.b32.xlu0 %v3708, 4
        %v3772 = vpop.permute.xlu0 %3771
        %3773 = vrot.lane.b32.xlu0 %v3710, 4
        %v3774 = vpop.permute.xlu0 %3773
        %v3807 = vrot.slane %v3535, 2
        %v3808 = vrot.slane %v3536, 2
        %v3809 = vsel %vm1344, %v3807, %v3808
        %v3810 = vrot.slane %v3537, 2
        %v3811 = vsel %vm1344, %v3808, %v3810
        %v3812 = vrot.slane %v3538, 2
        %v3813 = vrot.slane %v3539, 2
        %v3814 = vsel %vm1344, %v3812, %v3813
        %v3815 = vrot.slane %v3540, 2
        %v3816 = vsel %vm1344, %v3813, %v3815
        %v3817 = vrot.slane %v3541, 2
        %v3818 = vrot.slane %v3542, 2
        %v3819 = vsel %vm1344, %v3817, %v3818
        %v3820 = vrot.slane %v3543, 2
        %v3821 = vsel %vm1344, %v3818, %v3820
        %v3822 = vrot.slane %v3544, 2
        %v3823 = vrot.slane %v3545, 2
        %v3824 = vsel %vm1344, %v3822, %v3823
        %v3825 = vrot.slane %v3546, 2
        %v3826 = vsel %vm1344, %v3823, %v3825
        %v3827 = vrot.slane %v3547, 2
        %v3828 = vrot.slane %v3548, 2
        %v3829 = vsel %vm1344, %v3827, %v3828
        %v3830 = vrot.slane %v3549, 2
        %v3831 = vsel %vm1344, %v3828, %v3830
        %v3832 = vrot.slane %v3550, 2
        %v3833 = vrot.slane %v3551, 2
        %v3834 = vsel %vm1344, %v3832, %v3833
        %v3835 = vrot.slane %v3552, 2
        %v3836 = vsel %vm1344, %v3833, %v3835
        %v3837 = vrot.slane %v3553, 2
        %v3838 = vrot.slane %v3554, 2
        %v3839 = vsel %vm1344, %v3837, %v3838
        %v3840 = vrot.slane %v3555, 2
        %v3841 = vsel %vm1344, %v3838, %v3840
        %v3842 = vrot.slane %v3556, 2
        %v3843 = vrot.slane %v3557, 2
        %v3844 = vsel %vm1344, %v3842, %v3843
        %v3845 = vrot.slane %v3558, 2
        %v3846 = vsel %vm1344, %v3843, %v3845
        %v3847 = vrot.slane %v3559, 2
        %v3848 = vrot.slane %v3560, 2
        %v3849 = vsel %vm1344, %v3847, %v3848
        %v3850 = vrot.slane %v3561, 2
        %v3851 = vsel %vm1344, %v3848, %v3850
        %v3852 = vrot.slane %v3562, 2
        %v3853 = vrot.slane %v3563, 2
        %v3854 = vsel %vm1344, %v3852, %v3853
        %v3855 = vrot.slane %v3564, 2
        %v3856 = vsel %vm1344, %v3853, %v3855
        %v3857 = vrot.slane %v3565, 2
        %v3858 = vrot.slane %v3566, 2
        %v3859 = vsel %vm1344, %v3857, %v3858
        %v3860 = vrot.slane %v3567, 2
        %v3861 = vsel %vm1344, %v3858, %v3860
        %v3862 = vrot.slane %v3568, 2
        %v3863 = vrot.slane %v3569, 2
        %v3864 = vsel %vm1344, %v3862, %v3863
        %v3865 = vrot.slane %v3570, 2
        %v3866 = vsel %vm1344, %v3863, %v3865
        %v3867 = vrot.slane %v3571, 2
        %v3868 = vrot.slane %v3572, 2
        %v3869 = vsel %vm1344, %v3867, %v3868
        %v3870 = vrot.slane %v3573, 2
        %v3871 = vsel %vm1344, %v3868, %v3870
        %v3872 = vrot.slane %v3574, 2
        %v3873 = vrot.slane %v3575, 2
        %v3874 = vsel %vm1344, %v3872, %v3873
        %v3875 = vrot.slane %v3576, 2
        %v3876 = vsel %vm1344, %v3873, %v3875
        %v3877 = vrot.slane %v3577, 2
        %v3878 = vrot.slane %v3578, 2
        %v3879 = vsel %vm1344, %v3877, %v3878
        %v3880 = vrot.slane %v3579, 2
        %v3881 = vsel %vm1344, %v3878, %v3880
        %v3882 = vrot.slane %v3580, 2
        %v3883 = vrot.slane %v3581, 2
        %v3884 = vsel %vm1344, %v3882, %v3883
        %v3885 = vrot.slane %v3582, 2
        %v3886 = vsel %vm1344, %v3883, %v3885
        %3887 = vrot.lane.b32.xlu0 %v3809, 8
        %v3888 = vpop.permute.xlu0 %3887
        %3889 = vrot.lane.b32.xlu0 %v3811, 8
        %v3890 = vpop.permute.xlu0 %3889
        %3891 = vrot.lane.b32.xlu0 %v3814, 8
        %v3892 = vpop.permute.xlu0 %3891
        %3893 = vrot.lane.b32.xlu0 %v3816, 8
        %v3894 = vpop.permute.xlu0 %3893
        %3895 = vrot.lane.b32.xlu0 %v3819, 8
        %v3896 = vpop.permute.xlu0 %3895
        %3897 = vrot.lane.b32.xlu0 %v3821, 8
        %v3898 = vpop.permute.xlu0 %3897
        %3899 = vrot.lane.b32.xlu0 %v3824, 8
        %v3900 = vpop.permute.xlu0 %3899
        %3901 = vrot.lane.b32.xlu0 %v3826, 8
        %v3902 = vpop.permute.xlu0 %3901
        %3903 = vrot.lane.b32.xlu0 %v3829, 8
        %v3904 = vpop.permute.xlu0 %3903
        %3905 = vrot.lane.b32.xlu0 %v3831, 8
        %v3906 = vpop.permute.xlu0 %3905
        %3907 = vrot.lane.b32.xlu0 %v3834, 8
        %v3908 = vpop.permute.xlu0 %3907
        %3909 = vrot.lane.b32.xlu0 %v3836, 8
        %v3910 = vpop.permute.xlu0 %3909
        %3911 = vrot.lane.b32.xlu0 %v3839, 8
        %v3912 = vpop.permute.xlu0 %3911
        %3913 = vrot.lane.b32.xlu0 %v3841, 8
        %v3914 = vpop.permute.xlu0 %3913
        %3915 = vrot.lane.b32.xlu0 %v3844, 8
        %v3916 = vpop.permute.xlu0 %3915
        %3917 = vrot.lane.b32.xlu0 %v3846, 8
        %v3918 = vpop.permute.xlu0 %3917
        %3919 = vrot.lane.b32.xlu0 %v3849, 8
        %v3920 = vpop.permute.xlu0 %3919
        %3921 = vrot.lane.b32.xlu0 %v3851, 8
        %v3922 = vpop.permute.xlu0 %3921
        %3923 = vrot.lane.b32.xlu0 %v3854, 8
        %v3924 = vpop.permute.xlu0 %3923
        %3925 = vrot.lane.b32.xlu0 %v3856, 8
        %v3926 = vpop.permute.xlu0 %3925
        %3927 = vrot.lane.b32.xlu0 %v3859, 8
        %v3928 = vpop.permute.xlu0 %3927
        %3929 = vrot.lane.b32.xlu0 %v3861, 8
        %v3930 = vpop.permute.xlu0 %3929
        %3931 = vrot.lane.b32.xlu0 %v3864, 8
        %v3932 = vpop.permute.xlu0 %3931
        %3933 = vrot.lane.b32.xlu0 %v3866, 8
        %v3934 = vpop.permute.xlu0 %3933
        %3935 = vrot.lane.b32.xlu0 %v3869, 8
        %v3936 = vpop.permute.xlu0 %3935
        %3937 = vrot.lane.b32.xlu0 %v3871, 8
        %v3938 = vpop.permute.xlu0 %3937
        %3939 = vrot.lane.b32.xlu0 %v3874, 8
        %v3940 = vpop.permute.xlu0 %3939
        %3941 = vrot.lane.b32.xlu0 %v3876, 8
        %v3942 = vpop.permute.xlu0 %3941
        %3943 = vrot.lane.b32.xlu0 %v3879, 8
        %v3944 = vpop.permute.xlu0 %3943
        %3945 = vrot.lane.b32.xlu0 %v3881, 8
        %v3946 = vpop.permute.xlu0 %3945
        %3947 = vrot.lane.b32.xlu0 %v3884, 8
        %v3948 = vpop.permute.xlu0 %3947
        %3949 = vrot.lane.b32.xlu0 %v3886, 8
        %v3950 = vpop.permute.xlu0 %3949
        %v3983 = vsel %vm730, %v3535, %v3712
        %v3984 = vsel %vm730, %v3536, %v3714
        %v3985 = vsel %vm730, %v3538, %v3716
        %v3986 = vsel %vm730, %v3539, %v3718
        %v3987 = vsel %vm730, %v3541, %v3720
        %v3988 = vsel %vm730, %v3542, %v3722
        %v3989 = vsel %vm730, %v3544, %v3724
        %v3990 = vsel %vm730, %v3545, %v3726
        %v3991 = vsel %vm730, %v3547, %v3728
        %v3992 = vsel %vm730, %v3548, %v3730
        %v3993 = vsel %vm730, %v3550, %v3732
        %v3994 = vsel %vm730, %v3551, %v3734
        %v3995 = vsel %vm730, %v3553, %v3736
        %v3996 = vsel %vm730, %v3554, %v3738
        %v3997 = vsel %vm730, %v3556, %v3740
        %v3998 = vsel %vm730, %v3557, %v3742
        %v3999 = vsel %vm730, %v3559, %v3744
        %v4000 = vsel %vm730, %v3560, %v3746
        %v4001 = vsel %vm730, %v3562, %v3748
        %v4002 = vsel %vm730, %v3563, %v3750
        %v4003 = vsel %vm730, %v3565, %v3752
        %v4004 = vsel %vm730, %v3566, %v3754
        %v4005 = vsel %vm730, %v3568, %v3756
        %v4006 = vsel %vm730, %v3569, %v3758
        %v4007 = vsel %vm730, %v3571, %v3760
        %v4008 = vsel %vm730, %v3572, %v3762
        %v4009 = vsel %vm730, %v3574, %v3764
        %v4010 = vsel %vm730, %v3575, %v3766
        %v4011 = vsel %vm730, %v3577, %v3768
        %v4012 = vsel %vm730, %v3578, %v3770
        %v4013 = vsel %vm730, %v3580, %v3772
        %v4014 = vsel %vm730, %v3581, %v3774
        %v4015 = vsel %vm2334, %v3983, %v3888
        %v4016 = vsel %vm2334, %v3984, %v3890
        %v4017 = vsel %vm2334, %v3985, %v3892
        %v4018 = vsel %vm2334, %v3986, %v3894
        %v4019 = vsel %vm2334, %v3987, %v3896
        %v4020 = vsel %vm2334, %v3988, %v3898
        %v4021 = vsel %vm2334, %v3989, %v3900
        %v4022 = vsel %vm2334, %v3990, %v3902
        %v4023 = vsel %vm2334, %v3991, %v3904
        %v4024 = vsel %vm2334, %v3992, %v3906
        %v4025 = vsel %vm2334, %v3993, %v3908
        %v4026 = vsel %vm2334, %v3994, %v3910
        %v4027 = vsel %vm2334, %v3995, %v3912
        %v4028 = vsel %vm2334, %v3996, %v3914
        %v4029 = vsel %vm2334, %v3997, %v3916
        %v4030 = vsel %vm2334, %v3998, %v3918
        %v4031 = vsel %vm2334, %v3999, %v3920
        %v4032 = vsel %vm2334, %v4000, %v3922
        %v4033 = vsel %vm2334, %v4001, %v3924
        %v4034 = vsel %vm2334, %v4002, %v3926
        %v4035 = vsel %vm2334, %v4003, %v3928
        %v4036 = vsel %vm2334, %v4004, %v3930
        %v4037 = vsel %vm2334, %v4005, %v3932
        %v4038 = vsel %vm2334, %v4006, %v3934
        %v4039 = vsel %vm2334, %v4007, %v3936
        %v4040 = vsel %vm2334, %v4008, %v3938
        %v4041 = vsel %vm2334, %v4009, %v3940
        %v4042 = vsel %vm2334, %v4010, %v3942
        %v4043 = vsel %vm2334, %v4011, %v3944
        %v4044 = vsel %vm2334, %v4012, %v3946
        %v4045 = vsel %vm2334, %v4013, %v3948
        %v4046 = vsel %vm2334, %v4014, %v3950
        %s4047 = scalar_lea.vmem %s5, 32
        %v4048 = vld [vmem:[%s4047] sm:$0xff]
        %v4049 = vld [vmem:[%s4047 + $0x8] sm:$0xf]
        %v4051 = vsel %vm2885, %v4015, 0
        %v4054 = vsel %vm2885, %v4016, 0
        %v4057 = vsel %vm2885, %v4017, 0
        %v4060 = vsel %vm2885, %v4018, 0
        %v4063 = vsel %vm2885, %v4019, 0
        %v4066 = vsel %vm2885, %v4020, 0
        %v4069 = vsel %vm2885, %v4021, 0
        %v4072 = vsel %vm2885, %v4022, 0
        %v4075 = vsel %vm2885, %v4023, 0
        %v4078 = vsel %vm2885, %v4024, 0
        %v4081 = vsel %vm2885, %v4025, 0
        %v4084 = vsel %vm2885, %v4026, 0
        %v4087 = vsel %vm2885, %v4027, 0
        %v4090 = vsel %vm2885, %v4028, 0
        %v4093 = vsel %vm2885, %v4029, 0
        %v4096 = vsel %vm2885, %v4030, 0
        %v4099 = vsel %vm2885, %v4031, 0
        %v4102 = vsel %vm2885, %v4032, 0
        %v4105 = vsel %vm2885, %v4033, 0
        %v4108 = vsel %vm2885, %v4034, 0
        %v4111 = vsel %vm2885, %v4035, 0
        %v4114 = vsel %vm2885, %v4036, 0
        %v4117 = vsel %vm2885, %v4037, 0
        %v4120 = vsel %vm2885, %v4038, 0
        %v4123 = vsel %vm2885, %v4039, 0
        %v4126 = vsel %vm2885, %v4040, 0
        %v4129 = vsel %vm2885, %v4041, 0
        %v4132 = vsel %vm2885, %v4042, 0
        %v4135 = vsel %vm2885, %v4043, 0
        %v4138 = vsel %vm2885, %v4044, 0
        %v4141 = vsel %vm2885, %v4045, 0
        %v4144 = vsel %vm2885, %v4046, 0
        %v4147 = vsel %vm795, %v4049, 0
        %4149 = vmatprep.subr.mxu0 0.0
        %4150 = vmatpush1.msra.mxu0 %v4048
        %4151 = vmatprep.subr.mxu0 0.0
        %4152 = vmatpush1.msra.mxu0 %v4147
        %4153 = vmatprep.subr.mxu0 0.0
        %4154 = vmatpush1.msra.mxu0 0.0
        %4155 = vmatprep.subr.mxu0 0.0
        %4156 = vmatpush1.msra.mxu0 0.0
        %4157 = vmatprep.subr.mxu0 0.0
        %4158 = vmatpush1.msra.mxu0 0.0
        %4159 = vmatprep.subr.mxu0 0.0
        %4160 = vmatpush1.msra.mxu0 0.0
        %4161 = vmatprep.subr.mxu0 0.0
        %4162 = vmatpush1.msra.mxu0 0.0
        %4163 = vmatprep.subr.mxu0 0.0
        %4164 = vmatpush1.msra.mxu0 0.0
        %4165 = vmatprep.subr.mxu0 0.0
        %4166 = vmatpush1.msra.mxu0 0.0
        %4167 = vmatprep.subr.mxu0 0.0
        %4168 = vmatpush1.msra.mxu0 0.0
        %4169 = vmatprep.subr.mxu0 0.0
        %4170 = vmatpush1.msra.mxu0 0.0
        %4171 = vmatprep.subr.mxu0 0.0
        %4172 = vmatpush1.msra.mxu0 0.0
        %4173 = vmatprep.subr.mxu0 0.0
        %4174 = vmatpush1.msra.mxu0 0.0
        %4175 = vmatprep.subr.mxu0 0.0
        %4176 = vmatpush1.msra.mxu0 0.0
        %4177 = vmatprep.subr.mxu0 0.0
        %4178 = vmatpush1.msra.mxu0 0.0
        %4179 = vmatprep.subr.mxu0 0.0
        %4180 = vmatpush1.msra.mxu0 0.0
        %4181 = vmatprep.subr.mxu0 0.0
        %4182 = vmatpush1.msra.mxu0 0.0
        %4183 = vmatprep.subr.mxu0 0.0
        %4184 = vmatpush1.msra.mxu0 0.0
        %4185 = vmatprep.subr.mxu0 0.0
        %4186 = vmatpush1.msra.mxu0 0.0
        %4187 = vmatprep.subr.mxu0 0.0
        %4188 = vmatpush1.msra.mxu0 0.0
        %4189 = vmatprep.subr.mxu0 0.0
        %4190 = vmatpush1.msra.mxu0 0.0
        %4191 = vmatprep.subr.mxu0 0.0
        %4192 = vmatpush1.msra.mxu0 0.0
        %4193 = vmatprep.subr.mxu0 0.0
        %4194 = vmatpush1.msra.mxu0 0.0
        %4195 = vmatprep.subr.mxu0 0.0
        %4196 = vmatpush1.msra.mxu0 0.0
        %4197 = vmatprep.subr.mxu0 0.0
        %4198 = vmatpush1.msra.mxu0 0.0
        %4199 = vmatprep.subr.mxu0 0.0
        %4200 = vmatpush1.msra.mxu0 0.0
        %4201 = vmatprep.subr.mxu0 0.0
        %4202 = vmatpush1.msra.mxu0 0.0
        %4203 = vmatprep.subr.mxu0 0.0
        %4204 = vmatpush1.msra.mxu0 0.0
        %4205 = vmatprep.subr.mxu0 0.0
        %4206 = vmatpush1.msra.mxu0 0.0
        %4207 = vmatprep.subr.mxu0 0.0
        %4208 = vmatpush1.msra.mxu0 0.0
        %4209 = vmatprep.subr.mxu0 0.0
        %4210 = vmatpush1.msra.mxu0 0.0
        %4211 = vmatprep.subr.mxu0 0.0
        %4212 = vmatpush1.msra.mxu0 0.0
        %4213 = vmatprep.mubr.f32.mxu0 0.0
        %4214 = vmatmul.mubr.f32.gmra.mrb[0].mxu0 %v4051
        %v4215 = vpop.f32.mrb[0].mxu0
        %v4216 = vadd.f32 0.0, %v4215
        %v4217 = vpop.f32.mrb[0].mxu0
        %4218 = vmatprep.mubr.f32.mxu0 0.0
        %4219 = vmatmul.mubr.f32.gmra.mrb[0].mxu0 %v4054
        %v4220 = vpop.f32.mrb[0].mxu0
        %v4221 = vadd.f32 0.0, %v4220
        %v4222 = vpop.f32.mrb[0].mxu0
        %4223 = vmatprep.mubr.f32.mxu0 0.0
        %4224 = vmatmul.mubr.f32.gmra.mrb[0].mxu0 %v4057
        %v4225 = vpop.f32.mrb[0].mxu0
        %v4226 = vadd.f32 0.0, %v4225
        %v4227 = vpop.f32.mrb[0].mxu0
        %4228 = vmatprep.mubr.f32.mxu0 0.0
        %4229 = vmatmul.mubr.f32.gmra.mrb[0].mxu0 %v4060
        %v4230 = vpop.f32.mrb[0].mxu0
        %v4231 = vadd.f32 0.0, %v4230
        %v4232 = vpop.f32.mrb[0].mxu0
        %4233 = vmatprep.mubr.f32.mxu0 0.0
        %4234 = vmatmul.mubr.f32.gmra.mrb[0].mxu0 %v4063
        %v4235 = vpop.f32.mrb[0].mxu0
        %v4236 = vadd.f32 0.0, %v4235
        %v4237 = vpop.f32.mrb[0].mxu0
        %4238 = vmatprep.mubr.f32.mxu0 0.0
        %4239 = vmatmul.mubr.f32.gmra.mrb[0].mxu0 %v4066
        %v4240 = vpop.f32.mrb[0].mxu0
        %v4241 = vadd.f32 0.0, %v4240
        %v4242 = vpop.f32.mrb[0].mxu0
        %4243 = vmatprep.mubr.f32.mxu0 0.0
        %4244 = vmatmul.mubr.f32.gmra.mrb[0].mxu0 %v4069
        %v4245 = vpop.f32.mrb[0].mxu0
        %v4246 = vadd.f32 0.0, %v4245
        %v4247 = vpop.f32.mrb[0].mxu0
        %4248 = vmatprep.mubr.f32.mxu0 0.0
        %4249 = vmatmul.mubr.f32.gmra.mrb[0].mxu0 %v4072
        %v4250 = vpop.f32.mrb[0].mxu0
        %v4251 = vadd.f32 0.0, %v4250
        %v4252 = vpop.f32.mrb[0].mxu0
        %4253 = vmatprep.mubr.f32.mxu0 0.0
        %4254 = vmatmul.mubr.f32.gmra.mrb[0].mxu0 %v4075
        %v4255 = vpop.f32.mrb[0].mxu0
        %v4256 = vadd.f32 0.0, %v4255
        %v4257 = vpop.f32.mrb[0].mxu0
        %4258 = vmatprep.mubr.f32.mxu0 0.0
        %4259 = vmatmul.mubr.f32.gmra.mrb[0].mxu0 %v4078
        %v4260 = vpop.f32.mrb[0].mxu0
        %v4261 = vadd.f32 0.0, %v4260
        %v4262 = vpop.f32.mrb[0].mxu0
        %4263 = vmatprep.mubr.f32.mxu0 0.0
        %4264 = vmatmul.mubr.f32.gmra.mrb[0].mxu0 %v4081
        %v4265 = vpop.f32.mrb[0].mxu0
        %v4266 = vadd.f32 0.0, %v4265
        %v4267 = vpop.f32.mrb[0].mxu0
        %4268 = vmatprep.mubr.f32.mxu0 0.0
        %4269 = vmatmul.mubr.f32.gmra.mrb[0].mxu0 %v4084
        %v4270 = vpop.f32.mrb[0].mxu0
        %v4271 = vadd.f32 0.0, %v4270
        %v4272 = vpop.f32.mrb[0].mxu0
        %4273 = vmatprep.mubr.f32.mxu0 0.0
        %4274 = vmatmul.mubr.f32.gmra.mrb[0].mxu0 %v4087
        %v4275 = vpop.f32.mrb[0].mxu0
        %v4276 = vadd.f32 0.0, %v4275
        %v4277 = vpop.f32.mrb[0].mxu0
        %4278 = vmatprep.mubr.f32.mxu0 0.0
        %4279 = vmatmul.mubr.f32.gmra.mrb[0].mxu0 %v4090
        %v4280 = vpop.f32.mrb[0].mxu0
        %v4281 = vadd.f32 0.0, %v4280
        %v4282 = vpop.f32.mrb[0].mxu0
        %4283 = vmatprep.mubr.f32.mxu0 0.0
        %4284 = vmatmul.mubr.f32.gmra.mrb[0].mxu0 %v4093
        %v4285 = vpop.f32.mrb[0].mxu0
        %v4286 = vadd.f32 0.0, %v4285
        %v4287 = vpop.f32.mrb[0].mxu0
        %4288 = vmatprep.mubr.f32.mxu0 0.0
        %4289 = vmatmul.mubr.f32.gmra.mrb[0].mxu0 %v4096
        %v4290 = vpop.f32.mrb[0].mxu0
        %v4291 = vadd.f32 0.0, %v4290
        %v4292 = vpop.f32.mrb[0].mxu0
        %4293 = vmatprep.mubr.f32.mxu0 0.0
        %4294 = vmatmul.mubr.f32.gmra.mrb[0].mxu0 %v4099
        %v4295 = vpop.f32.mrb[0].mxu0
        %v4296 = vadd.f32 0.0, %v4295
        %v4297 = vpop.f32.mrb[0].mxu0
        %4298 = vmatprep.mubr.f32.mxu0 0.0
        %4299 = vmatmul.mubr.f32.gmra.mrb[0].mxu0 %v4102
        %v4300 = vpop.f32.mrb[0].mxu0
        %v4301 = vadd.f32 0.0, %v4300
        %v4302 = vpop.f32.mrb[0].mxu0
        %4303 = vmatprep.mubr.f32.mxu0 0.0
        %4304 = vmatmul.mubr.f32.gmra.mrb[0].mxu0 %v4105
        %v4305 = vpop.f32.mrb[0].mxu0
        %v4306 = vadd.f32 0.0, %v4305
        %v4307 = vpop.f32.mrb[0].mxu0
        %4308 = vmatprep.mubr.f32.mxu0 0.0
        %4309 = vmatmul.mubr.f32.gmra.mrb[0].mxu0 %v4108
        %v4310 = vpop.f32.mrb[0].mxu0
        %v4311 = vadd.f32 0.0, %v4310
        %v4312 = vpop.f32.mrb[0].mxu0
        %4313 = vmatprep.mubr.f32.mxu0 0.0
        %4314 = vmatmul.mubr.f32.gmra.mrb[0].mxu0 %v4111
        %v4315 = vpop.f32.mrb[0].mxu0
        %v4316 = vadd.f32 0.0, %v4315
        %v4317 = vpop.f32.mrb[0].mxu0
        %4318 = vmatprep.mubr.f32.mxu0 0.0
        %4319 = vmatmul.mubr.f32.gmra.mrb[0].mxu0 %v4114
        %v4320 = vpop.f32.mrb[0].mxu0
        %v4321 = vadd.f32 0.0, %v4320
        %v4322 = vpop.f32.mrb[0].mxu0
        %4323 = vmatprep.mubr.f32.mxu0 0.0
        %4324 = vmatmul.mubr.f32.gmra.mrb[0].mxu0 %v4117
        %v4325 = vpop.f32.mrb[0].mxu0
        %v4326 = vadd.f32 0.0, %v4325
        %v4327 = vpop.f32.mrb[0].mxu0
        %4328 = vmatprep.mubr.f32.mxu0 0.0
        %4329 = vmatmul.mubr.f32.gmra.mrb[0].mxu0 %v4120
        %v4330 = vpop.f32.mrb[0].mxu0
        %v4331 = vadd.f32 0.0, %v4330
        %v4332 = vpop.f32.mrb[0].mxu0
        %4333 = vmatprep.mubr.f32.mxu0 0.0
        %4334 = vmatmul.mubr.f32.gmra.mrb[0].mxu0 %v4123
        %v4335 = vpop.f32.mrb[0].mxu0
        %v4336 = vadd.f32 0.0, %v4335
        %v4337 = vpop.f32.mrb[0].mxu0
        %4338 = vmatprep.mubr.f32.mxu0 0.0
        %4339 = vmatmul.mubr.f32.gmra.mrb[0].mxu0 %v4126
        %v4340 = vpop.f32.mrb[0].mxu0
        %v4341 = vadd.f32 0.0, %v4340
        %v4342 = vpop.f32.mrb[0].mxu0
        %4343 = vmatprep.mubr.f32.mxu0 0.0
        %4344 = vmatmul.mubr.f32.gmra.mrb[0].mxu0 %v4129
        %v4345 = vpop.f32.mrb[0].mxu0
        %v4346 = vadd.f32 0.0, %v4345
        %v4347 = vpop.f32.mrb[0].mxu0
        %4348 = vmatprep.mubr.f32.mxu0 0.0
        %4349 = vmatmul.mubr.f32.gmra.mrb[0].mxu0 %v4132
        %v4350 = vpop.f32.mrb[0].mxu0
        %v4351 = vadd.f32 0.0, %v4350
        %v4352 = vpop.f32.mrb[0].mxu0
        %4353 = vmatprep.mubr.f32.mxu0 0.0
        %4354 = vmatmul.mubr.f32.gmra.mrb[0].mxu0 %v4135
        %v4355 = vpop.f32.mrb[0].mxu0
        %v4356 = vadd.f32 0.0, %v4355
        %v4357 = vpop.f32.mrb[0].mxu0
        %4358 = vmatprep.mubr.f32.mxu0 0.0
        %4359 = vmatmul.mubr.f32.gmra.mrb[0].mxu0 %v4138
        %v4360 = vpop.f32.mrb[0].mxu0
        %v4361 = vadd.f32 0.0, %v4360
        %v4362 = vpop.f32.mrb[0].mxu0
        %4363 = vmatprep.mubr.f32.mxu0 0.0
        %4364 = vmatmul.mubr.f32.gmra.mrb[0].mxu0 %v4141
        %v4365 = vpop.f32.mrb[0].mxu0
        %v4366 = vadd.f32 0.0, %v4365
        %v4367 = vpop.f32.mrb[0].mxu0
        %4368 = vmatprep.mubr.f32.mxu0 0.0
        %4369 = vmatmul.mubr.f32.gmra.mrb[0].mxu0 %v4144
        %v4370 = vpop.f32.mrb[0].mxu0
        %v4371 = vadd.f32 0.0, %v4370
        %v4372 = vpop.f32.mrb[0].mxu0
        %4373 = vdwg.mxu0
        %v4374 = vadd.f32 %v3376, %v4216
        %v4375 = vadd.f32 %v3381, %v4221
        %v4376 = vadd.f32 %v3386, %v4226
        %v4377 = vadd.f32 %v3391, %v4231
        %v4378 = vadd.f32 %v3396, %v4236
        %v4379 = vadd.f32 %v3401, %v4241
        %v4380 = vadd.f32 %v3406, %v4246
        %v4381 = vadd.f32 %v3411, %v4251
        %v4382 = vadd.f32 %v3416, %v4256
        %v4383 = vadd.f32 %v3421, %v4261
        %v4384 = vadd.f32 %v3426, %v4266
        %v4385 = vadd.f32 %v3431, %v4271
        %v4386 = vadd.f32 %v3436, %v4276
        %v4387 = vadd.f32 %v3441, %v4281
        %v4388 = vadd.f32 %v3446, %v4286
        %v4389 = vadd.f32 %v3451, %v4291
        %v4390 = vadd.f32 %v3456, %v4296
        %v4391 = vadd.f32 %v3461, %v4301
        %v4392 = vadd.f32 %v3466, %v4306
        %v4393 = vadd.f32 %v3471, %v4311
        %v4394 = vadd.f32 %v3476, %v4316
        %v4395 = vadd.f32 %v3481, %v4321
        %v4396 = vadd.f32 %v3486, %v4326
        %v4397 = vadd.f32 %v3491, %v4331
        %v4398 = vadd.f32 %v3496, %v4336
        %v4399 = vadd.f32 %v3501, %v4341
        %v4400 = vadd.f32 %v3506, %v4346
        %v4401 = vadd.f32 %v3511, %v4351
        %v4402 = vadd.f32 %v3516, %v4356
        %v4403 = vadd.f32 %v3521, %v4361
        %v4404 = vadd.f32 %v3526, %v4366
        %v4405 = vadd.f32 %v3531, %v4371
        %v4406 = vld [vmem:[%s6] sm:$0x1]
        %v4408 = vlaneseq
        %v4409 = vshrl.u32 %v4408, 7
        %v4410 = vsub.s32 0, %v4409
        %v4411 = vrot.slane %v4406, %v4410
        %v4413 = vadd.f32 %v4374, %v4411
        %v4414 = vadd.f32 %v4375, %v4411
        %v4415 = vadd.f32 %v4376, %v4411
        %v4416 = vadd.f32 %v4377, %v4411
        %v4417 = vadd.f32 %v4378, %v4411
        %v4418 = vadd.f32 %v4379, %v4411
        %v4419 = vadd.f32 %v4380, %v4411
        %v4420 = vadd.f32 %v4381, %v4411
        %v4421 = vadd.f32 %v4382, %v4411
        %v4422 = vadd.f32 %v4383, %v4411
        %v4423 = vadd.f32 %v4384, %v4411
        %v4424 = vadd.f32 %v4385, %v4411
        %v4425 = vadd.f32 %v4386, %v4411
        %v4426 = vadd.f32 %v4387, %v4411
        %v4427 = vadd.f32 %v4388, %v4411
        %v4428 = vadd.f32 %v4389, %v4411
        %v4429 = vadd.f32 %v4390, %v4411
        %v4430 = vadd.f32 %v4391, %v4411
        %v4431 = vadd.f32 %v4392, %v4411
        %v4432 = vadd.f32 %v4393, %v4411
        %v4433 = vadd.f32 %v4394, %v4411
        %v4434 = vadd.f32 %v4395, %v4411
        %v4435 = vadd.f32 %v4396, %v4411
        %v4436 = vadd.f32 %v4397, %v4411
        %v4437 = vadd.f32 %v4398, %v4411
        %v4438 = vadd.f32 %v4399, %v4411
        %v4439 = vadd.f32 %v4400, %v4411
        %v4440 = vadd.f32 %v4401, %v4411
        %v4441 = vadd.f32 %v4402, %v4411
        %v4442 = vadd.f32 %v4403, %v4411
        %v4443 = vadd.f32 %v4404, %v4411
        %v4444 = vadd.f32 %v4405, %v4411
        %v4445 = vmax.f32 %v4413, 0.0
        %v4446 = vmax.f32 %v4414, 0.0
        %v4447 = vmax.f32 %v4415, 0.0
        %v4448 = vmax.f32 %v4416, 0.0
        %v4449 = vmax.f32 %v4417, 0.0
        %v4450 = vmax.f32 %v4418, 0.0
        %v4451 = vmax.f32 %v4419, 0.0
        %v4452 = vmax.f32 %v4420, 0.0
        %v4453 = vmax.f32 %v4421, 0.0
        %v4454 = vmax.f32 %v4422, 0.0
        %v4455 = vmax.f32 %v4423, 0.0
        %v4456 = vmax.f32 %v4424, 0.0
        %v4457 = vmax.f32 %v4425, 0.0
        %v4458 = vmax.f32 %v4426, 0.0
        %v4459 = vmax.f32 %v4427, 0.0
        %v4460 = vmax.f32 %v4428, 0.0
        %v4461 = vmax.f32 %v4429, 0.0
        %v4462 = vmax.f32 %v4430, 0.0
        %v4463 = vmax.f32 %v4431, 0.0
        %v4464 = vmax.f32 %v4432, 0.0
        %v4465 = vmax.f32 %v4433, 0.0
        %v4466 = vmax.f32 %v4434, 0.0
        %v4467 = vmax.f32 %v4435, 0.0
        %v4468 = vmax.f32 %v4436, 0.0
        %v4469 = vmax.f32 %v4437, 0.0
        %v4470 = vmax.f32 %v4438, 0.0
        %v4471 = vmax.f32 %v4439, 0.0
        %v4472 = vmax.f32 %v4440, 0.0
        %v4473 = vmax.f32 %v4441, 0.0
        %v4474 = vmax.f32 %v4442, 0.0
        %v4475 = vmax.f32 %v4443, 0.0
        %v4476 = vmax.f32 %v4444, 0.0
        %s4477 = scalar_lea.vmem %s438, %s441
        %v4478 = vld [vmem:[%s4477] sm:$0xff]
        %v4479 = vld [vmem:[%s4477 + $0x8] sm:$0xff]
        %v4480 = vld [vmem:[%s4477 + $0x10] sm:$0xf]
        %v4481 = vld [vmem:[%s4477 + $0x18] sm:$0xff]
        %v4482 = vld [vmem:[%s4477 + $0x20] sm:$0xff]
        %v4483 = vld [vmem:[%s4477 + $0x28] sm:$0xf]
        %v4484 = vld [vmem:[%s4477 + $0x30] sm:$0xff]
        %v4485 = vld [vmem:[%s4477 + $0x38] sm:$0xff]
        %v4486 = vld [vmem:[%s4477 + $0x40] sm:$0xf]
        %v4487 = vld [vmem:[%s4477 + $0x48] sm:$0xff]
        %v4488 = vld [vmem:[%s4477 + $0x50] sm:$0xff]
        %v4489 = vld [vmem:[%s4477 + $0x58] sm:$0xf]
        %v4490 = vld [vmem:[%s4477 + $0x60] sm:$0xff]
        %v4491 = vld [vmem:[%s4477 + $0x68] sm:$0xff]
        %v4492 = vld [vmem:[%s4477 + $0x70] sm:$0xf]
        %v4493 = vld [vmem:[%s4477 + $0x78] sm:$0xff]
        %v4494 = vld [vmem:[%s4477 + $0x80] sm:$0xff]
        %v4495 = vld [vmem:[%s4477 + $0x88] sm:$0xf]
        %v4496 = vld [vmem:[%s4477 + $0x90] sm:$0xff]
        %v4497 = vld [vmem:[%s4477 + $0x98] sm:$0xff]
        %v4498 = vld [vmem:[%s4477 + $0xa0] sm:$0xf]
        %v4499 = vld [vmem:[%s4477 + $0xa8] sm:$0xff]
        %v4500 = vld [vmem:[%s4477 + $0xb0] sm:$0xff]
        %v4501 = vld [vmem:[%s4477 + $0xb8] sm:$0xf]
        %v4502 = vld [vmem:[%s4477 + $0xc0] sm:$0xff]
        %v4503 = vld [vmem:[%s4477 + $0xc8] sm:$0xff]
        %v4504 = vld [vmem:[%s4477 + $0xd0] sm:$0xf]
        %v4505 = vld [vmem:[%s4477 + $0xd8] sm:$0xff]
        %v4506 = vld [vmem:[%s4477 + $0xe0] sm:$0xff]
        %v4507 = vld [vmem:[%s4477 + $0xe8] sm:$0xf]
        %v4508 = vld [vmem:[%s4477 + $0xf0] sm:$0xff]
        %v4509 = vld [vmem:[%s4477 + $0xf8] sm:$0xff]
        %v4510 = vld [vmem:[%s4477 + $0x100] sm:$0xf]
        %v4511 = vld [vmem:[%s4477 + $0x108] sm:$0xff]
        %v4512 = vld [vmem:[%s4477 + $0x110] sm:$0xff]
        %v4513 = vld [vmem:[%s4477 + $0x118] sm:$0xf]
        %v4514 = vld [vmem:[%s4477 + $0x120] sm:$0xff]
        %v4515 = vld [vmem:[%s4477 + $0x128] sm:$0xff]
        %v4516 = vld [vmem:[%s4477 + $0x130] sm:$0xf]
        %v4517 = vld [vmem:[%s4477 + $0x138] sm:$0xff]
        %v4518 = vld [vmem:[%s4477 + $0x140] sm:$0xff]
        %v4519 = vld [vmem:[%s4477 + $0x148] sm:$0xf]
        %v4520 = vld [vmem:[%s4477 + $0x150] sm:$0xff]
        %v4521 = vld [vmem:[%s4477 + $0x158] sm:$0xff]
        %v4522 = vld [vmem:[%s4477 + $0x160] sm:$0xf]
        %v4523 = vld [vmem:[%s4477 + $0x168] sm:$0xff]
        %v4524 = vld [vmem:[%s4477 + $0x170] sm:$0xff]
        %v4525 = vld [vmem:[%s4477 + $0x178] sm:$0xf]
        %v4574 = vrot.slane %v4478, 1
        %v4575 = vrot.slane %v4479, 1
        %v4576 = vsel %vm641, %v4574, %v4575
        %v4577 = vrot.slane %v4480, 1
        %v4578 = vsel %vm641, %v4575, %v4577
        %v4579 = vrot.slane %v4481, 1
        %v4580 = vrot.slane %v4482, 1
        %v4581 = vsel %vm641, %v4579, %v4580
        %v4582 = vrot.slane %v4483, 1
        %v4583 = vsel %vm641, %v4580, %v4582
        %v4584 = vrot.slane %v4484, 1
        %v4585 = vrot.slane %v4485, 1
        %v4586 = vsel %vm641, %v4584, %v4585
        %v4587 = vrot.slane %v4486, 1
        %v4588 = vsel %vm641, %v4585, %v4587
        %v4589 = vrot.slane %v4487, 1
        %v4590 = vrot.slane %v4488, 1
        %v4591 = vsel %vm641, %v4589, %v4590
        %v4592 = vrot.slane %v4489, 1
        %v4593 = vsel %vm641, %v4590, %v4592
        %v4594 = vrot.slane %v4490, 1
        %v4595 = vrot.slane %v4491, 1
        %v4596 = vsel %vm641, %v4594, %v4595
        %v4597 = vrot.slane %v4492, 1
        %v4598 = vsel %vm641, %v4595, %v4597
        %v4599 = vrot.slane %v4493, 1
        %v4600 = vrot.slane %v4494, 1
        %v4601 = vsel %vm641, %v4599, %v4600
        %v4602 = vrot.slane %v4495, 1
        %v4603 = vsel %vm641, %v4600, %v4602
        %v4604 = vrot.slane %v4496, 1
        %v4605 = vrot.slane %v4497, 1
        %v4606 = vsel %vm641, %v4604, %v4605
        %v4607 = vrot.slane %v4498, 1
        %v4608 = vsel %vm641, %v4605, %v4607
        %v4609 = vrot.slane %v4499, 1
        %v4610 = vrot.slane %v4500, 1
        %v4611 = vsel %vm641, %v4609, %v4610
        %v4612 = vrot.slane %v4501, 1
        %v4613 = vsel %vm641, %v4610, %v4612
        %v4614 = vrot.slane %v4502, 1
        %v4615 = vrot.slane %v4503, 1
        %v4616 = vsel %vm641, %v4614, %v4615
        %v4617 = vrot.slane %v4504, 1
        %v4618 = vsel %vm641, %v4615, %v4617
        %v4619 = vrot.slane %v4505, 1
        %v4620 = vrot.slane %v4506, 1
        %v4621 = vsel %vm641, %v4619, %v4620
        %v4622 = vrot.slane %v4507, 1
        %v4623 = vsel %vm641, %v4620, %v4622
        %v4624 = vrot.slane %v4508, 1
        %v4625 = vrot.slane %v4509, 1
        %v4626 = vsel %vm641, %v4624, %v4625
        %v4627 = vrot.slane %v4510, 1
        %v4628 = vsel %vm641, %v4625, %v4627
        %v4629 = vrot.slane %v4511, 1
        %v4630 = vrot.slane %v4512, 1
        %v4631 = vsel %vm641, %v4629, %v4630
        %v4632 = vrot.slane %v4513, 1
        %v4633 = vsel %vm641, %v4630, %v4632
        %v4634 = vrot.slane %v4514, 1
        %v4635 = vrot.slane %v4515, 1
        %v4636 = vsel %vm641, %v4634, %v4635
        %v4637 = vrot.slane %v4516, 1
        %v4638 = vsel %vm641, %v4635, %v4637
        %v4639 = vrot.slane %v4517, 1
        %v4640 = vrot.slane %v4518, 1
        %v4641 = vsel %vm641, %v4639, %v4640
        %v4642 = vrot.slane %v4519, 1
        %v4643 = vsel %vm641, %v4640, %v4642
        %v4644 = vrot.slane %v4520, 1
        %v4645 = vrot.slane %v4521, 1
        %v4646 = vsel %vm641, %v4644, %v4645
        %v4647 = vrot.slane %v4522, 1
        %v4648 = vsel %vm641, %v4645, %v4647
        %v4649 = vrot.slane %v4523, 1
        %v4650 = vrot.slane %v4524, 1
        %v4651 = vsel %vm641, %v4649, %v4650
        %v4652 = vrot.slane %v4525, 1
        %v4653 = vsel %vm641, %v4650, %v4652
        %4654 = vrot.lane.b32.xlu0 %v4576, 2
        %v4655 = vpop.permute.xlu0 %4654
        %4656 = vrot.lane.b32.xlu0 %v4578, 2
        %v4657 = vpop.permute.xlu0 %4656
        %4658 = vrot.lane.b32.xlu0 %v4581, 2
        %v4659 = vpop.permute.xlu0 %4658
        %4660 = vrot.lane.b32.xlu0 %v4583, 2
        %v4661 = vpop.permute.xlu0 %4660
        %4662 = vrot.lane.b32.xlu0 %v4586, 2
        %v4663 = vpop.permute.xlu0 %4662
        %4664 = vrot.lane.b32.xlu0 %v4588, 2
        %v4665 = vpop.permute.xlu0 %4664
        %4666 = vrot.lane.b32.xlu0 %v4591, 2
        %v4667 = vpop.permute.xlu0 %4666
        %4668 = vrot.lane.b32.xlu0 %v4593, 2
        %v4669 = vpop.permute.xlu0 %4668
        %4670 = vrot.lane.b32.xlu0 %v4596, 2
        %v4671 = vpop.permute.xlu0 %4670
        %4672 = vrot.lane.b32.xlu0 %v4598, 2
        %v4673 = vpop.permute.xlu0 %4672
        %4674 = vrot.lane.b32.xlu0 %v4601, 2
        %v4675 = vpop.permute.xlu0 %4674
        %4676 = vrot.lane.b32.xlu0 %v4603, 2
        %v4677 = vpop.permute.xlu0 %4676
        %4678 = vrot.lane.b32.xlu0 %v4606, 2
        %v4679 = vpop.permute.xlu0 %4678
        %4680 = vrot.lane.b32.xlu0 %v4608, 2
        %v4681 = vpop.permute.xlu0 %4680
        %4682 = vrot.lane.b32.xlu0 %v4611, 2
        %v4683 = vpop.permute.xlu0 %4682
        %4684 = vrot.lane.b32.xlu0 %v4613, 2
        %v4685 = vpop.permute.xlu0 %4684
        %4686 = vrot.lane.b32.xlu0 %v4616, 2
        %v4687 = vpop.permute.xlu0 %4686
        %4688 = vrot.lane.b32.xlu0 %v4618, 2
        %v4689 = vpop.permute.xlu0 %4688
        %4690 = vrot.lane.b32.xlu0 %v4621, 2
        %v4691 = vpop.permute.xlu0 %4690
        %4692 = vrot.lane.b32.xlu0 %v4623, 2
        %v4693 = vpop.permute.xlu0 %4692
        %4694 = vrot.lane.b32.xlu0 %v4626, 2
        %v4695 = vpop.permute.xlu0 %4694
        %4696 = vrot.lane.b32.xlu0 %v4628, 2
        %v4697 = vpop.permute.xlu0 %4696
        %4698 = vrot.lane.b32.xlu0 %v4631, 2
        %v4699 = vpop.permute.xlu0 %4698
        %4700 = vrot.lane.b32.xlu0 %v4633, 2
        %v4701 = vpop.permute.xlu0 %4700
        %4702 = vrot.lane.b32.xlu0 %v4636, 2
        %v4703 = vpop.permute.xlu0 %4702
        %4704 = vrot.lane.b32.xlu0 %v4638, 2
        %v4705 = vpop.permute.xlu0 %4704
        %4706 = vrot.lane.b32.xlu0 %v4641, 2
        %v4707 = vpop.permute.xlu0 %4706
        %4708 = vrot.lane.b32.xlu0 %v4643, 2
        %v4709 = vpop.permute.xlu0 %4708
        %4710 = vrot.lane.b32.xlu0 %v4646, 2
        %v4711 = vpop.permute.xlu0 %4710
        %4712 = vrot.lane.b32.xlu0 %v4648, 2
        %v4713 = vpop.permute.xlu0 %4712
        %4714 = vrot.lane.b32.xlu0 %v4651, 2
        %v4715 = vpop.permute.xlu0 %4714
        %4716 = vrot.lane.b32.xlu0 %v4653, 2
        %v4717 = vpop.permute.xlu0 %4716
        %v4750 = vrot.slane %v4478, 2
        %v4751 = vrot.slane %v4479, 2
        %v4752 = vsel %vm1344, %v4750, %v4751
        %v4753 = vrot.slane %v4480, 2
        %v4754 = vsel %vm1344, %v4751, %v4753
        %v4755 = vrot.slane %v4481, 2
        %v4756 = vrot.slane %v4482, 2
        %v4757 = vsel %vm1344, %v4755, %v4756
        %v4758 = vrot.slane %v4483, 2
        %v4759 = vsel %vm1344, %v4756, %v4758
        %v4760 = vrot.slane %v4484, 2
        %v4761 = vrot.slane %v4485, 2
        %v4762 = vsel %vm1344, %v4760, %v4761
        %v4763 = vrot.slane %v4486, 2
        %v4764 = vsel %vm1344, %v4761, %v4763
        %v4765 = vrot.slane %v4487, 2
        %v4766 = vrot.slane %v4488, 2
        %v4767 = vsel %vm1344, %v4765, %v4766
        %v4768 = vrot.slane %v4489, 2
        %v4769 = vsel %vm1344, %v4766, %v4768
        %v4770 = vrot.slane %v4490, 2
        %v4771 = vrot.slane %v4491, 2
        %v4772 = vsel %vm1344, %v4770, %v4771
        %v4773 = vrot.slane %v4492, 2
        %v4774 = vsel %vm1344, %v4771, %v4773
        %v4775 = vrot.slane %v4493, 2
        %v4776 = vrot.slane %v4494, 2
        %v4777 = vsel %vm1344, %v4775, %v4776
        %v4778 = vrot.slane %v4495, 2
        %v4779 = vsel %vm1344, %v4776, %v4778
        %v4780 = vrot.slane %v4496, 2
        %v4781 = vrot.slane %v4497, 2
        %v4782 = vsel %vm1344, %v4780, %v4781
        %v4783 = vrot.slane %v4498, 2
        %v4784 = vsel %vm1344, %v4781, %v4783
        %v4785 = vrot.slane %v4499, 2
        %v4786 = vrot.slane %v4500, 2
        %v4787 = vsel %vm1344, %v4785, %v4786
        %v4788 = vrot.slane %v4501, 2
        %v4789 = vsel %vm1344, %v4786, %v4788
        %v4790 = vrot.slane %v4502, 2
        %v4791 = vrot.slane %v4503, 2
        %v4792 = vsel %vm1344, %v4790, %v4791
        %v4793 = vrot.slane %v4504, 2
        %v4794 = vsel %vm1344, %v4791, %v4793
        %v4795 = vrot.slane %v4505, 2
        %v4796 = vrot.slane %v4506, 2
        %v4797 = vsel %vm1344, %v4795, %v4796
        %v4798 = vrot.slane %v4507, 2
        %v4799 = vsel %vm1344, %v4796, %v4798
        %v4800 = vrot.slane %v4508, 2
        %v4801 = vrot.slane %v4509, 2
        %v4802 = vsel %vm1344, %v4800, %v4801
        %v4803 = vrot.slane %v4510, 2
        %v4804 = vsel %vm1344, %v4801, %v4803
        %v4805 = vrot.slane %v4511, 2
        %v4806 = vrot.slane %v4512, 2
        %v4807 = vsel %vm1344, %v4805, %v4806
        %v4808 = vrot.slane %v4513, 2
        %v4809 = vsel %vm1344, %v4806, %v4808
        %v4810 = vrot.slane %v4514, 2
        %v4811 = vrot.slane %v4515, 2
        %v4812 = vsel %vm1344, %v4810, %v4811
        %v4813 = vrot.slane %v4516, 2
        %v4814 = vsel %vm1344, %v4811, %v4813
        %v4815 = vrot.slane %v4517, 2
        %v4816 = vrot.slane %v4518, 2
        %v4817 = vsel %vm1344, %v4815, %v4816
        %v4818 = vrot.slane %v4519, 2
        %v4819 = vsel %vm1344, %v4816, %v4818
        %v4820 = vrot.slane %v4520, 2
        %v4821 = vrot.slane %v4521, 2
        %v4822 = vsel %vm1344, %v4820, %v4821
        %v4823 = vrot.slane %v4522, 2
        %v4824 = vsel %vm1344, %v4821, %v4823
        %v4825 = vrot.slane %v4523, 2
        %v4826 = vrot.slane %v4524, 2
        %v4827 = vsel %vm1344, %v4825, %v4826
        %v4828 = vrot.slane %v4525, 2
        %v4829 = vsel %vm1344, %v4826, %v4828
        %4830 = vrot.lane.b32.xlu0 %v4752, 4
        %v4831 = vpop.permute.xlu0 %4830
        %4832 = vrot.lane.b32.xlu0 %v4754, 4
        %v4833 = vpop.permute.xlu0 %4832
        %4834 = vrot.lane.b32.xlu0 %v4757, 4
        %v4835 = vpop.permute.xlu0 %4834
        %4836 = vrot.lane.b32.xlu0 %v4759, 4
        %v4837 = vpop.permute.xlu0 %4836
        %4838 = vrot.lane.b32.xlu0 %v4762, 4
        %v4839 = vpop.permute.xlu0 %4838
        %4840 = vrot.lane.b32.xlu0 %v4764, 4
        %v4841 = vpop.permute.xlu0 %4840
        %4842 = vrot.lane.b32.xlu0 %v4767, 4
        %v4843 = vpop.permute.xlu0 %4842
        %4844 = vrot.lane.b32.xlu0 %v4769, 4
        %v4845 = vpop.permute.xlu0 %4844
        %4846 = vrot.lane.b32.xlu0 %v4772, 4
        %v4847 = vpop.permute.xlu0 %4846
        %4848 = vrot.lane.b32.xlu0 %v4774, 4
        %v4849 = vpop.permute.xlu0 %4848
        %4850 = vrot.lane.b32.xlu0 %v4777, 4
        %v4851 = vpop.permute.xlu0 %4850
        %4852 = vrot.lane.b32.xlu0 %v4779, 4
        %v4853 = vpop.permute.xlu0 %4852
        %4854 = vrot.lane.b32.xlu0 %v4782, 4
        %v4855 = vpop.permute.xlu0 %4854
        %4856 = vrot.lane.b32.xlu0 %v4784, 4
        %v4857 = vpop.permute.xlu0 %4856
        %4858 = vrot.lane.b32.xlu0 %v4787, 4
        %v4859 = vpop.permute.xlu0 %4858
        %4860 = vrot.lane.b32.xlu0 %v4789, 4
        %v4861 = vpop.permute.xlu0 %4860
        %4862 = vrot.lane.b32.xlu0 %v4792, 4
        %v4863 = vpop.permute.xlu0 %4862
        %4864 = vrot.lane.b32.xlu0 %v4794, 4
        %v4865 = vpop.permute.xlu0 %4864
        %4866 = vrot.lane.b32.xlu0 %v4797, 4
        %v4867 = vpop.permute.xlu0 %4866
        %4868 = vrot.lane.b32.xlu0 %v4799, 4
        %v4869 = vpop.permute.xlu0 %4868
        %4870 = vrot.lane.b32.xlu0 %v4802, 4
        %v4871 = vpop.permute.xlu0 %4870
        %4872 = vrot.lane.b32.xlu0 %v4804, 4
        %v4873 = vpop.permute.xlu0 %4872
        %4874 = vrot.lane.b32.xlu0 %v4807, 4
        %v4875 = vpop.permute.xlu0 %4874
        %4876 = vrot.lane.b32.xlu0 %v4809, 4
        %v4877 = vpop.permute.xlu0 %4876
        %4878 = vrot.lane.b32.xlu0 %v4812, 4
        %v4879 = vpop.permute.xlu0 %4878
        %4880 = vrot.lane.b32.xlu0 %v4814, 4
        %v4881 = vpop.permute.xlu0 %4880
        %4882 = vrot.lane.b32.xlu0 %v4817, 4
        %v4883 = vpop.permute.xlu0 %4882
        %4884 = vrot.lane.b32.xlu0 %v4819, 4
        %v4885 = vpop.permute.xlu0 %4884
        %4886 = vrot.lane.b32.xlu0 %v4822, 4
        %v4887 = vpop.permute.xlu0 %4886
        %4888 = vrot.lane.b32.xlu0 %v4824, 4
        %v4889 = vpop.permute.xlu0 %4888
        %4890 = vrot.lane.b32.xlu0 %v4827, 4
        %v4891 = vpop.permute.xlu0 %4890
        %4892 = vrot.lane.b32.xlu0 %v4829, 4
        %v4893 = vpop.permute.xlu0 %4892
        %vm4926 = vcmask 1044480
        %v4927 = vrot.slane %v4478, 3
        %v4928 = vrot.slane %v4479, 3
        %v4929 = vsel %vm4926, %v4927, %v4928
        %v4930 = vrot.slane %v4480, 3
        %v4931 = vsel %vm4926, %v4928, %v4930
        %v4932 = vrot.slane %v4481, 3
        %v4933 = vrot.slane %v4482, 3
        %v4934 = vsel %vm4926, %v4932, %v4933
        %v4935 = vrot.slane %v4483, 3
        %v4936 = vsel %vm4926, %v4933, %v4935
        %v4937 = vrot.slane %v4484, 3
        %v4938 = vrot.slane %v4485, 3
        %v4939 = vsel %vm4926, %v4937, %v4938
        %v4940 = vrot.slane %v4486, 3
        %v4941 = vsel %vm4926, %v4938, %v4940
        %v4942 = vrot.slane %v4487, 3
        %v4943 = vrot.slane %v4488, 3
        %v4944 = vsel %vm4926, %v4942, %v4943
        %v4945 = vrot.slane %v4489, 3
        %v4946 = vsel %vm4926, %v4943, %v4945
        %v4947 = vrot.slane %v4490, 3
        %v4948 = vrot.slane %v4491, 3
        %v4949 = vsel %vm4926, %v4947, %v4948
        %v4950 = vrot.slane %v4492, 3
        %v4951 = vsel %vm4926, %v4948, %v4950
        %v4952 = vrot.slane %v4493, 3
        %v4953 = vrot.slane %v4494, 3
        %v4954 = vsel %vm4926, %v4952, %v4953
        %v4955 = vrot.slane %v4495, 3
        %v4956 = vsel %vm4926, %v4953, %v4955
        %v4957 = vrot.slane %v4496, 3
        %v4958 = vrot.slane %v4497, 3
        %v4959 = vsel %vm4926, %v4957, %v4958
        %v4960 = vrot.slane %v4498, 3
        %v4961 = vsel %vm4926, %v4958, %v4960
        %v4962 = vrot.slane %v4499, 3
        %v4963 = vrot.slane %v4500, 3
        %v4964 = vsel %vm4926, %v4962, %v4963
        %v4965 = vrot.slane %v4501, 3
        %v4966 = vsel %vm4926, %v4963, %v4965
        %v4967 = vrot.slane %v4502, 3
        %v4968 = vrot.slane %v4503, 3
        %v4969 = vsel %vm4926, %v4967, %v4968
        %v4970 = vrot.slane %v4504, 3
        %v4971 = vsel %vm4926, %v4968, %v4970
        %v4972 = vrot.slane %v4505, 3
        %v4973 = vrot.slane %v4506, 3
        %v4974 = vsel %vm4926, %v4972, %v4973
        %v4975 = vrot.slane %v4507, 3
        %v4976 = vsel %vm4926, %v4973, %v4975
        %v4977 = vrot.slane %v4508, 3
        %v4978 = vrot.slane %v4509, 3
        %v4979 = vsel %vm4926, %v4977, %v4978
        %v4980 = vrot.slane %v4510, 3
        %v4981 = vsel %vm4926, %v4978, %v4980
        %v4982 = vrot.slane %v4511, 3
        %v4983 = vrot.slane %v4512, 3
        %v4984 = vsel %vm4926, %v4982, %v4983
        %v4985 = vrot.slane %v4513, 3
        %v4986 = vsel %vm4926, %v4983, %v4985
        %v4987 = vrot.slane %v4514, 3
        %v4988 = vrot.slane %v4515, 3
        %v4989 = vsel %vm4926, %v4987, %v4988
        %v4990 = vrot.slane %v4516, 3
        %v4991 = vsel %vm4926, %v4988, %v4990
        %v4992 = vrot.slane %v4517, 3
        %v4993 = vrot.slane %v4518, 3
        %v4994 = vsel %vm4926, %v4992, %v4993
        %v4995 = vrot.slane %v4519, 3
        %v4996 = vsel %vm4926, %v4993, %v4995
        %v4997 = vrot.slane %v4520, 3
        %v4998 = vrot.slane %v4521, 3
        %v4999 = vsel %vm4926, %v4997, %v4998
        %v5000 = vrot.slane %v4522, 3
        %v5001 = vsel %vm4926, %v4998, %v5000
        %v5002 = vrot.slane %v4523, 3
        %v5003 = vrot.slane %v4524, 3
        %v5004 = vsel %vm4926, %v5002, %v5003
        %v5005 = vrot.slane %v4525, 3
        %v5006 = vsel %vm4926, %v5003, %v5005
        %5007 = vrot.lane.b32.xlu0 %v4929, 6
        %v5008 = vpop.permute.xlu0 %5007
        %5009 = vrot.lane.b32.xlu0 %v4931, 6
        %v5010 = vpop.permute.xlu0 %5009
        %5011 = vrot.lane.b32.xlu0 %v4934, 6
        %v5012 = vpop.permute.xlu0 %5011
        %5013 = vrot.lane.b32.xlu0 %v4936, 6
        %v5014 = vpop.permute.xlu0 %5013
        %5015 = vrot.lane.b32.xlu0 %v4939, 6
        %v5016 = vpop.permute.xlu0 %5015
        %5017 = vrot.lane.b32.xlu0 %v4941, 6
        %v5018 = vpop.permute.xlu0 %5017
        %5019 = vrot.lane.b32.xlu0 %v4944, 6
        %v5020 = vpop.permute.xlu0 %5019
        %5021 = vrot.lane.b32.xlu0 %v4946, 6
        %v5022 = vpop.permute.xlu0 %5021
        %5023 = vrot.lane.b32.xlu0 %v4949, 6
        %v5024 = vpop.permute.xlu0 %5023
        %5025 = vrot.lane.b32.xlu0 %v4951, 6
        %v5026 = vpop.permute.xlu0 %5025
        %5027 = vrot.lane.b32.xlu0 %v4954, 6
        %v5028 = vpop.permute.xlu0 %5027
        %5029 = vrot.lane.b32.xlu0 %v4956, 6
        %v5030 = vpop.permute.xlu0 %5029
        %5031 = vrot.lane.b32.xlu0 %v4959, 6
        %v5032 = vpop.permute.xlu0 %5031
        %5033 = vrot.lane.b32.xlu0 %v4961, 6
        %v5034 = vpop.permute.xlu0 %5033
        %5035 = vrot.lane.b32.xlu0 %v4964, 6
        %v5036 = vpop.permute.xlu0 %5035
        %5037 = vrot.lane.b32.xlu0 %v4966, 6
        %v5038 = vpop.permute.xlu0 %5037
        %5039 = vrot.lane.b32.xlu0 %v4969, 6
        %v5040 = vpop.permute.xlu0 %5039
        %5041 = vrot.lane.b32.xlu0 %v4971, 6
        %v5042 = vpop.permute.xlu0 %5041
        %5043 = vrot.lane.b32.xlu0 %v4974, 6
        %v5044 = vpop.permute.xlu0 %5043
        %5045 = vrot.lane.b32.xlu0 %v4976, 6
        %v5046 = vpop.permute.xlu0 %5045
        %5047 = vrot.lane.b32.xlu0 %v4979, 6
        %v5048 = vpop.permute.xlu0 %5047
        %5049 = vrot.lane.b32.xlu0 %v4981, 6
        %v5050 = vpop.permute.xlu0 %5049
        %5051 = vrot.lane.b32.xlu0 %v4984, 6
        %v5052 = vpop.permute.xlu0 %5051
        %5053 = vrot.lane.b32.xlu0 %v4986, 6
        %v5054 = vpop.permute.xlu0 %5053
        %5055 = vrot.lane.b32.xlu0 %v4989, 6
        %v5056 = vpop.permute.xlu0 %5055
        %5057 = vrot.lane.b32.xlu0 %v4991, 6
        %v5058 = vpop.permute.xlu0 %5057
        %5059 = vrot.lane.b32.xlu0 %v4994, 6
        %v5060 = vpop.permute.xlu0 %5059
        %5061 = vrot.lane.b32.xlu0 %v4996, 6
        %v5062 = vpop.permute.xlu0 %5061
        %5063 = vrot.lane.b32.xlu0 %v4999, 6
        %v5064 = vpop.permute.xlu0 %5063
        %5065 = vrot.lane.b32.xlu0 %v5001, 6
        %v5066 = vpop.permute.xlu0 %5065
        %5067 = vrot.lane.b32.xlu0 %v5004, 6
        %v5068 = vpop.permute.xlu0 %5067
        %5069 = vrot.lane.b32.xlu0 %v5006, 6
        %v5070 = vpop.permute.xlu0 %5069
        %v5103 = vrot.slane %v4478, 4
        %v5104 = vrot.slane %v4479, 4
        %v5105 = vsel %vm795, %v5103, %v5104
        %v5106 = vrot.slane %v4480, 4
        %v5107 = vsel %vm795, %v5104, %v5106
        %v5108 = vrot.slane %v4481, 4
        %v5109 = vrot.slane %v4482, 4
        %v5110 = vsel %vm795, %v5108, %v5109
        %v5111 = vrot.slane %v4483, 4
        %v5112 = vsel %vm795, %v5109, %v5111
        %v5113 = vrot.slane %v4484, 4
        %v5114 = vrot.slane %v4485, 4
        %v5115 = vsel %vm795, %v5113, %v5114
        %v5116 = vrot.slane %v4486, 4
        %v5117 = vsel %vm795, %v5114, %v5116
        %v5118 = vrot.slane %v4487, 4
        %v5119 = vrot.slane %v4488, 4
        %v5120 = vsel %vm795, %v5118, %v5119
        %v5121 = vrot.slane %v4489, 4
        %v5122 = vsel %vm795, %v5119, %v5121
        %v5123 = vrot.slane %v4490, 4
        %v5124 = vrot.slane %v4491, 4
        %v5125 = vsel %vm795, %v5123, %v5124
        %v5126 = vrot.slane %v4492, 4
        %v5127 = vsel %vm795, %v5124, %v5126
        %v5128 = vrot.slane %v4493, 4
        %v5129 = vrot.slane %v4494, 4
        %v5130 = vsel %vm795, %v5128, %v5129
        %v5131 = vrot.slane %v4495, 4
        %v5132 = vsel %vm795, %v5129, %v5131
        %v5133 = vrot.slane %v4496, 4
        %v5134 = vrot.slane %v4497, 4
        %v5135 = vsel %vm795, %v5133, %v5134
        %v5136 = vrot.slane %v4498, 4
        %v5137 = vsel %vm795, %v5134, %v5136
        %v5138 = vrot.slane %v4499, 4
        %v5139 = vrot.slane %v4500, 4
        %v5140 = vsel %vm795, %v5138, %v5139
        %v5141 = vrot.slane %v4501, 4
        %v5142 = vsel %vm795, %v5139, %v5141
        %v5143 = vrot.slane %v4502, 4
        %v5144 = vrot.slane %v4503, 4
        %v5145 = vsel %vm795, %v5143, %v5144
        %v5146 = vrot.slane %v4504, 4
        %v5147 = vsel %vm795, %v5144, %v5146
        %v5148 = vrot.slane %v4505, 4
        %v5149 = vrot.slane %v4506, 4
        %v5150 = vsel %vm795, %v5148, %v5149
        %v5151 = vrot.slane %v4507, 4
        %v5152 = vsel %vm795, %v5149, %v5151
        %v5153 = vrot.slane %v4508, 4
        %v5154 = vrot.slane %v4509, 4
        %v5155 = vsel %vm795, %v5153, %v5154
        %v5156 = vrot.slane %v4510, 4
        %v5157 = vsel %vm795, %v5154, %v5156
        %v5158 = vrot.slane %v4511, 4
        %v5159 = vrot.slane %v4512, 4
        %v5160 = vsel %vm795, %v5158, %v5159
        %v5161 = vrot.slane %v4513, 4
        %v5162 = vsel %vm795, %v5159, %v5161
        %v5163 = vrot.slane %v4514, 4
        %v5164 = vrot.slane %v4515, 4
        %v5165 = vsel %vm795, %v5163, %v5164
        %v5166 = vrot.slane %v4516, 4
        %v5167 = vsel %vm795, %v5164, %v5166
        %v5168 = vrot.slane %v4517, 4
        %v5169 = vrot.slane %v4518, 4
        %v5170 = vsel %vm795, %v5168, %v5169
        %v5171 = vrot.slane %v4519, 4
        %v5172 = vsel %vm795, %v5169, %v5171
        %v5173 = vrot.slane %v4520, 4
        %v5174 = vrot.slane %v4521, 4
        %v5175 = vsel %vm795, %v5173, %v5174
        %v5176 = vrot.slane %v4522, 4
        %v5177 = vsel %vm795, %v5174, %v5176
        %v5178 = vrot.slane %v4523, 4
        %v5179 = vrot.slane %v4524, 4
        %v5180 = vsel %vm795, %v5178, %v5179
        %v5181 = vrot.slane %v4525, 4
        %v5182 = vsel %vm795, %v5179, %v5181
        %5183 = vrot.lane.b32.xlu0 %v5105, 8
        %v5184 = vpop.permute.xlu0 %5183
        %5185 = vrot.lane.b32.xlu0 %v5107, 8
        %v5186 = vpop.permute.xlu0 %5185
        %5187 = vrot.lane.b32.xlu0 %v5110, 8
        %v5188 = vpop.permute.xlu0 %5187
        %5189 = vrot.lane.b32.xlu0 %v5112, 8
        %v5190 = vpop.permute.xlu0 %5189
        %5191 = vrot.lane.b32.xlu0 %v5115, 8
        %v5192 = vpop.permute.xlu0 %5191
        %5193 = vrot.lane.b32.xlu0 %v5117, 8
        %v5194 = vpop.permute.xlu0 %5193
        %5195 = vrot.lane.b32.xlu0 %v5120, 8
        %v5196 = vpop.permute.xlu0 %5195
        %5197 = vrot.lane.b32.xlu0 %v5122, 8
        %v5198 = vpop.permute.xlu0 %5197
        %5199 = vrot.lane.b32.xlu0 %v5125, 8
        %v5200 = vpop.permute.xlu0 %5199
        %5201 = vrot.lane.b32.xlu0 %v5127, 8
        %v5202 = vpop.permute.xlu0 %5201
        %5203 = vrot.lane.b32.xlu0 %v5130, 8
        %v5204 = vpop.permute.xlu0 %5203
        %5205 = vrot.lane.b32.xlu0 %v5132, 8
        %v5206 = vpop.permute.xlu0 %5205
        %5207 = vrot.lane.b32.xlu0 %v5135, 8
        %v5208 = vpop.permute.xlu0 %5207
        %5209 = vrot.lane.b32.xlu0 %v5137, 8
        %v5210 = vpop.permute.xlu0 %5209
        %5211 = vrot.lane.b32.xlu0 %v5140, 8
        %v5212 = vpop.permute.xlu0 %5211
        %5213 = vrot.lane.b32.xlu0 %v5142, 8
        %v5214 = vpop.permute.xlu0 %5213
        %5215 = vrot.lane.b32.xlu0 %v5145, 8
        %v5216 = vpop.permute.xlu0 %5215
        %5217 = vrot.lane.b32.xlu0 %v5147, 8
        %v5218 = vpop.permute.xlu0 %5217
        %5219 = vrot.lane.b32.xlu0 %v5150, 8
        %v5220 = vpop.permute.xlu0 %5219
        %5221 = vrot.lane.b32.xlu0 %v5152, 8
        %v5222 = vpop.permute.xlu0 %5221
        %5223 = vrot.lane.b32.xlu0 %v5155, 8
        %v5224 = vpop.permute.xlu0 %5223
        %5225 = vrot.lane.b32.xlu0 %v5157, 8
        %v5226 = vpop.permute.xlu0 %5225
        %5227 = vrot.lane.b32.xlu0 %v5160, 8
        %v5228 = vpop.permute.xlu0 %5227
        %5229 = vrot.lane.b32.xlu0 %v5162, 8
        %v5230 = vpop.permute.xlu0 %5229
        %5231 = vrot.lane.b32.xlu0 %v5165, 8
        %v5232 = vpop.permute.xlu0 %5231
        %5233 = vrot.lane.b32.xlu0 %v5167, 8
        %v5234 = vpop.permute.xlu0 %5233
        %5235 = vrot.lane.b32.xlu0 %v5170, 8
        %v5236 = vpop.permute.xlu0 %5235
        %5237 = vrot.lane.b32.xlu0 %v5172, 8
        %v5238 = vpop.permute.xlu0 %5237
        %5239 = vrot.lane.b32.xlu0 %v5175, 8
        %v5240 = vpop.permute.xlu0 %5239
        %5241 = vrot.lane.b32.xlu0 %v5177, 8
        %v5242 = vpop.permute.xlu0 %5241
        %5243 = vrot.lane.b32.xlu0 %v5180, 8
        %v5244 = vpop.permute.xlu0 %5243
        %5245 = vrot.lane.b32.xlu0 %v5182, 8
        %v5246 = vpop.permute.xlu0 %5245
        %vm5279 = vcmask 15360
        %v5280 = vsel %vm5279, %v4478, %v4655
        %v5281 = vsel %vm5279, %v4479, %v4657
        %v5282 = vsel %vm5279, %v4481, %v4659
        %v5283 = vsel %vm5279, %v4482, %v4661
        %v5284 = vsel %vm5279, %v4484, %v4663
        %v5285 = vsel %vm5279, %v4485, %v4665
        %v5286 = vsel %vm5279, %v4487, %v4667
        %v5287 = vsel %vm5279, %v4488, %v4669
        %v5288 = vsel %vm5279, %v4490, %v4671
        %v5289 = vsel %vm5279, %v4491, %v4673
        %v5290 = vsel %vm5279, %v4493, %v4675
        %v5291 = vsel %vm5279, %v4494, %v4677
        %v5292 = vsel %vm5279, %v4496, %v4679
        %v5293 = vsel %vm5279, %v4497, %v4681
        %v5294 = vsel %vm5279, %v4499, %v4683
        %v5295 = vsel %vm5279, %v4500, %v4685
        %v5296 = vsel %vm5279, %v4502, %v4687
        %v5297 = vsel %vm5279, %v4503, %v4689
        %v5298 = vsel %vm5279, %v4505, %v4691
        %v5299 = vsel %vm5279, %v4506, %v4693
        %v5300 = vsel %vm5279, %v4508, %v4695
        %v5301 = vsel %vm5279, %v4509, %v4697
        %v5302 = vsel %vm5279, %v4511, %v4699
        %v5303 = vsel %vm5279, %v4512, %v4701
        %v5304 = vsel %vm5279, %v4514, %v4703
        %v5305 = vsel %vm5279, %v4515, %v4705
        %v5306 = vsel %vm5279, %v4517, %v4707
        %v5307 = vsel %vm5279, %v4518, %v4709
        %v5308 = vsel %vm5279, %v4520, %v4711
        %v5309 = vsel %vm5279, %v4521, %v4713
        %v5310 = vsel %vm5279, %v4523, %v4715
        %v5311 = vsel %vm5279, %v4524, %v4717
        %v5312 = vsel %vm730, %v5280, %v4831
        %v5313 = vsel %vm730, %v5281, %v4833
        %v5314 = vsel %vm730, %v5282, %v4835
        %v5315 = vsel %vm730, %v5283, %v4837
        %v5316 = vsel %vm730, %v5284, %v4839
        %v5317 = vsel %vm730, %v5285, %v4841
        %v5318 = vsel %vm730, %v5286, %v4843
        %v5319 = vsel %vm730, %v5287, %v4845
        %v5320 = vsel %vm730, %v5288, %v4847
        %v5321 = vsel %vm730, %v5289, %v4849
        %v5322 = vsel %vm730, %v5290, %v4851
        %v5323 = vsel %vm730, %v5291, %v4853
        %v5324 = vsel %vm730, %v5292, %v4855
        %v5325 = vsel %vm730, %v5293, %v4857
        %v5326 = vsel %vm730, %v5294, %v4859
        %v5327 = vsel %vm730, %v5295, %v4861
        %v5328 = vsel %vm730, %v5296, %v4863
        %v5329 = vsel %vm730, %v5297, %v4865
        %v5330 = vsel %vm730, %v5298, %v4867
        %v5331 = vsel %vm730, %v5299, %v4869
        %v5332 = vsel %vm730, %v5300, %v4871
        %v5333 = vsel %vm730, %v5301, %v4873
        %v5334 = vsel %vm730, %v5302, %v4875
        %v5335 = vsel %vm730, %v5303, %v4877
        %v5336 = vsel %vm730, %v5304, %v4879
        %v5337 = vsel %vm730, %v5305, %v4881
        %v5338 = vsel %vm730, %v5306, %v4883
        %v5339 = vsel %vm730, %v5307, %v4885
        %v5340 = vsel %vm730, %v5308, %v4887
        %v5341 = vsel %vm730, %v5309, %v4889
        %v5342 = vsel %vm730, %v5310, %v4891
        %v5343 = vsel %vm730, %v5311, %v4893
        %vm5344 = vcmask 48128
        %v5345 = vsel %vm5344, %v5312, %v5008
        %v5346 = vsel %vm5344, %v5313, %v5010
        %v5347 = vsel %vm5344, %v5314, %v5012
        %v5348 = vsel %vm5344, %v5315, %v5014
        %v5349 = vsel %vm5344, %v5316, %v5016
        %v5350 = vsel %vm5344, %v5317, %v5018
        %v5351 = vsel %vm5344, %v5318, %v5020
        %v5352 = vsel %vm5344, %v5319, %v5022
        %v5353 = vsel %vm5344, %v5320, %v5024
        %v5354 = vsel %vm5344, %v5321, %v5026
        %v5355 = vsel %vm5344, %v5322, %v5028
        %v5356 = vsel %vm5344, %v5323, %v5030
        %v5357 = vsel %vm5344, %v5324, %v5032
        %v5358 = vsel %vm5344, %v5325, %v5034
        %v5359 = vsel %vm5344, %v5326, %v5036
        %v5360 = vsel %vm5344, %v5327, %v5038
        %v5361 = vsel %vm5344, %v5328, %v5040
        %v5362 = vsel %vm5344, %v5329, %v5042
        %v5363 = vsel %vm5344, %v5330, %v5044
        %v5364 = vsel %vm5344, %v5331, %v5046
        %v5365 = vsel %vm5344, %v5332, %v5048
        %v5366 = vsel %vm5344, %v5333, %v5050
        %v5367 = vsel %vm5344, %v5334, %v5052
        %v5368 = vsel %vm5344, %v5335, %v5054
        %v5369 = vsel %vm5344, %v5336, %v5056
        %v5370 = vsel %vm5344, %v5337, %v5058
        %v5371 = vsel %vm5344, %v5338, %v5060
        %v5372 = vsel %vm5344, %v5339, %v5062
        %v5373 = vsel %vm5344, %v5340, %v5064
        %v5374 = vsel %vm5344, %v5341, %v5066
        %v5375 = vsel %vm5344, %v5342, %v5068
        %v5376 = vsel %vm5344, %v5343, %v5070
        %v5377 = vsel %vm2334, %v5345, %v5184
        %v5378 = vsel %vm2334, %v5346, %v5186
        %v5379 = vsel %vm2334, %v5347, %v5188
        %v5380 = vsel %vm2334, %v5348, %v5190
        %v5381 = vsel %vm2334, %v5349, %v5192
        %v5382 = vsel %vm2334, %v5350, %v5194
        %v5383 = vsel %vm2334, %v5351, %v5196
        %v5384 = vsel %vm2334, %v5352, %v5198
        %v5385 = vsel %vm2334, %v5353, %v5200
        %v5386 = vsel %vm2334, %v5354, %v5202
        %v5387 = vsel %vm2334, %v5355, %v5204
        %v5388 = vsel %vm2334, %v5356, %v5206
        %v5389 = vsel %vm2334, %v5357, %v5208
        %v5390 = vsel %vm2334, %v5358, %v5210
        %v5391 = vsel %vm2334, %v5359, %v5212
        %v5392 = vsel %vm2334, %v5360, %v5214
        %v5393 = vsel %vm2334, %v5361, %v5216
        %v5394 = vsel %vm2334, %v5362, %v5218
        %v5395 = vsel %vm2334, %v5363, %v5220
        %v5396 = vsel %vm2334, %v5364, %v5222
        %v5397 = vsel %vm2334, %v5365, %v5224
        %v5398 = vsel %vm2334, %v5366, %v5226
        %v5399 = vsel %vm2334, %v5367, %v5228
        %v5400 = vsel %vm2334, %v5368, %v5230
        %v5401 = vsel %vm2334, %v5369, %v5232
        %v5402 = vsel %vm2334, %v5370, %v5234
        %v5403 = vsel %vm2334, %v5371, %v5236
        %v5404 = vsel %vm2334, %v5372, %v5238
        %v5405 = vsel %vm2334, %v5373, %v5240
        %v5406 = vsel %vm2334, %v5374, %v5242
        %v5407 = vsel %vm2334, %v5375, %v5244
        %v5408 = vsel %vm2334, %v5376, %v5246
        %v5409 = vld [vmem:[%s7] sm:$0xff]
        %v5410 = vld [vmem:[%s7 + $0x8] sm:$0x3]
        %s5411 = scalar_lea.vmem %s438, %s492
        %v5412 = vld [vmem:[%s5411] sm:$0xff]
        %v5413 = vld [vmem:[%s5411 + $0x8] sm:$0xff]
        %v5414 = vld [vmem:[%s5411 + $0x10] sm:$0xf]
        %v5415 = vld [vmem:[%s5411 + $0x18] sm:$0xff]
        %v5416 = vld [vmem:[%s5411 + $0x20] sm:$0xff]
        %v5417 = vld [vmem:[%s5411 + $0x28] sm:$0xf]
        %v5418 = vld [vmem:[%s5411 + $0x30] sm:$0xff]
        %v5419 = vld [vmem:[%s5411 + $0x38] sm:$0xff]
        %v5420 = vld [vmem:[%s5411 + $0x40] sm:$0xf]
        %v5421 = vld [vmem:[%s5411 + $0x48] sm:$0xff]
        %v5422 = vld [vmem:[%s5411 + $0x50] sm:$0xff]
        %v5423 = vld [vmem:[%s5411 + $0x58] sm:$0xf]
        %v5424 = vld [vmem:[%s5411 + $0x60] sm:$0xff]
        %v5425 = vld [vmem:[%s5411 + $0x68] sm:$0xff]
        %v5426 = vld [vmem:[%s5411 + $0x70] sm:$0xf]
        %v5427 = vld [vmem:[%s5411 + $0x78] sm:$0xff]
        %v5428 = vld [vmem:[%s5411 + $0x80] sm:$0xff]
        %v5429 = vld [vmem:[%s5411 + $0x88] sm:$0xf]
        %v5430 = vld [vmem:[%s5411 + $0x90] sm:$0xff]
        %v5431 = vld [vmem:[%s5411 + $0x98] sm:$0xff]
        %v5432 = vld [vmem:[%s5411 + $0xa0] sm:$0xf]
        %v5433 = vld [vmem:[%s5411 + $0xa8] sm:$0xff]
        %v5434 = vld [vmem:[%s5411 + $0xb0] sm:$0xff]
        %v5435 = vld [vmem:[%s5411 + $0xb8] sm:$0xf]
        %v5436 = vld [vmem:[%s5411 + $0xc0] sm:$0xff]
        %v5437 = vld [vmem:[%s5411 + $0xc8] sm:$0xff]
        %v5438 = vld [vmem:[%s5411 + $0xd0] sm:$0xf]
        %v5439 = vld [vmem:[%s5411 + $0xd8] sm:$0xff]
        %v5440 = vld [vmem:[%s5411 + $0xe0] sm:$0xff]
        %v5441 = vld [vmem:[%s5411 + $0xe8] sm:$0xf]
        %v5442 = vld [vmem:[%s5411 + $0xf0] sm:$0xff]
        %v5443 = vld [vmem:[%s5411 + $0xf8] sm:$0xff]
        %v5444 = vld [vmem:[%s5411 + $0x100] sm:$0xf]
        %v5445 = vld [vmem:[%s5411 + $0x108] sm:$0xff]
        %v5446 = vld [vmem:[%s5411 + $0x110] sm:$0xff]
        %v5447 = vld [vmem:[%s5411 + $0x118] sm:$0xf]
        %v5448 = vld [vmem:[%s5411 + $0x120] sm:$0xff]
        %v5449 = vld [vmem:[%s5411 + $0x128] sm:$0xff]
        %v5450 = vld [vmem:[%s5411 + $0x130] sm:$0xf]
        %v5451 = vld [vmem:[%s5411 + $0x138] sm:$0xff]
        %v5452 = vld [vmem:[%s5411 + $0x140] sm:$0xff]
        %v5453 = vld [vmem:[%s5411 + $0x148] sm:$0xf]
        %v5454 = vld [vmem:[%s5411 + $0x150] sm:$0xff]
        %v5455 = vld [vmem:[%s5411 + $0x158] sm:$0xff]
        %v5456 = vld [vmem:[%s5411 + $0x160] sm:$0xf]
        %v5457 = vld [vmem:[%s5411 + $0x168] sm:$0xff]
        %v5458 = vld [vmem:[%s5411 + $0x170] sm:$0xff]
        %v5459 = vld [vmem:[%s5411 + $0x178] sm:$0xf]
        %v5508 = vrot.slane %v5412, 1
        %v5509 = vrot.slane %v5413, 1
        %v5510 = vsel %vm641, %v5508, %v5509
        %v5511 = vrot.slane %v5414, 1
        %v5512 = vsel %vm641, %v5509, %v5511
        %v5513 = vrot.slane %v5415, 1
        %v5514 = vrot.slane %v5416, 1
        %v5515 = vsel %vm641, %v5513, %v5514
        %v5516 = vrot.slane %v5417, 1
        %v5517 = vsel %vm641, %v5514, %v5516
        %v5518 = vrot.slane %v5418, 1
        %v5519 = vrot.slane %v5419, 1
        %v5520 = vsel %vm641, %v5518, %v5519
        %v5521 = vrot.slane %v5420, 1
        %v5522 = vsel %vm641, %v5519, %v5521
        %v5523 = vrot.slane %v5421, 1
        %v5524 = vrot.slane %v5422, 1
        %v5525 = vsel %vm641, %v5523, %v5524
        %v5526 = vrot.slane %v5423, 1
        %v5527 = vsel %vm641, %v5524, %v5526
        %v5528 = vrot.slane %v5424, 1
        %v5529 = vrot.slane %v5425, 1
        %v5530 = vsel %vm641, %v5528, %v5529
        %v5531 = vrot.slane %v5426, 1
        %v5532 = vsel %vm641, %v5529, %v5531
        %v5533 = vrot.slane %v5427, 1
        %v5534 = vrot.slane %v5428, 1
        %v5535 = vsel %vm641, %v5533, %v5534
        %v5536 = vrot.slane %v5429, 1
        %v5537 = vsel %vm641, %v5534, %v5536
        %v5538 = vrot.slane %v5430, 1
        %v5539 = vrot.slane %v5431, 1
        %v5540 = vsel %vm641, %v5538, %v5539
        %v5541 = vrot.slane %v5432, 1
        %v5542 = vsel %vm641, %v5539, %v5541
        %v5543 = vrot.slane %v5433, 1
        %v5544 = vrot.slane %v5434, 1
        %v5545 = vsel %vm641, %v5543, %v5544
        %v5546 = vrot.slane %v5435, 1
        %v5547 = vsel %vm641, %v5544, %v5546
        %v5548 = vrot.slane %v5436, 1
        %v5549 = vrot.slane %v5437, 1
        %v5550 = vsel %vm641, %v5548, %v5549
        %v5551 = vrot.slane %v5438, 1
        %v5552 = vsel %vm641, %v5549, %v5551
        %v5553 = vrot.slane %v5439, 1
        %v5554 = vrot.slane %v5440, 1
        %v5555 = vsel %vm641, %v5553, %v5554
        %v5556 = vrot.slane %v5441, 1
        %v5557 = vsel %vm641, %v5554, %v5556
        %v5558 = vrot.slane %v5442, 1
        %v5559 = vrot.slane %v5443, 1
        %v5560 = vsel %vm641, %v5558, %v5559
        %v5561 = vrot.slane %v5444, 1
        %v5562 = vsel %vm641, %v5559, %v5561
        %v5563 = vrot.slane %v5445, 1
        %v5564 = vrot.slane %v5446, 1
        %v5565 = vsel %vm641, %v5563, %v5564
        %v5566 = vrot.slane %v5447, 1
        %v5567 = vsel %vm641, %v5564, %v5566
        %v5568 = vrot.slane %v5448, 1
        %v5569 = vrot.slane %v5449, 1
        %v5570 = vsel %vm641, %v5568, %v5569
        %v5571 = vrot.slane %v5450, 1
        %v5572 = vsel %vm641, %v5569, %v5571
        %v5573 = vrot.slane %v5451, 1
        %v5574 = vrot.slane %v5452, 1
        %v5575 = vsel %vm641, %v5573, %v5574
        %v5576 = vrot.slane %v5453, 1
        %v5577 = vsel %vm641, %v5574, %v5576
        %v5578 = vrot.slane %v5454, 1
        %v5579 = vrot.slane %v5455, 1
        %v5580 = vsel %vm641, %v5578, %v5579
        %v5581 = vrot.slane %v5456, 1
        %v5582 = vsel %vm641, %v5579, %v5581
        %v5583 = vrot.slane %v5457, 1
        %v5584 = vrot.slane %v5458, 1
        %v5585 = vsel %vm641, %v5583, %v5584
        %v5586 = vrot.slane %v5459, 1
        %v5587 = vsel %vm641, %v5584, %v5586
        %5588 = vrot.lane.b32.xlu0 %v5510, 2
        %v5589 = vpop.permute.xlu0 %5588
        %5590 = vrot.lane.b32.xlu0 %v5512, 2
        %v5591 = vpop.permute.xlu0 %5590
        %5592 = vrot.lane.b32.xlu0 %v5515, 2
        %v5593 = vpop.permute.xlu0 %5592
        %5594 = vrot.lane.b32.xlu0 %v5517, 2
        %v5595 = vpop.permute.xlu0 %5594
        %5596 = vrot.lane.b32.xlu0 %v5520, 2
        %v5597 = vpop.permute.xlu0 %5596
        %5598 = vrot.lane.b32.xlu0 %v5522, 2
        %v5599 = vpop.permute.xlu0 %5598
        %5600 = vrot.lane.b32.xlu0 %v5525, 2
        %v5601 = vpop.permute.xlu0 %5600
        %5602 = vrot.lane.b32.xlu0 %v5527, 2
        %v5603 = vpop.permute.xlu0 %5602
        %5604 = vrot.lane.b32.xlu0 %v5530, 2
        %v5605 = vpop.permute.xlu0 %5604
        %5606 = vrot.lane.b32.xlu0 %v5532, 2
        %v5607 = vpop.permute.xlu0 %5606
        %5608 = vrot.lane.b32.xlu0 %v5535, 2
        %v5609 = vpop.permute.xlu0 %5608
        %5610 = vrot.lane.b32.xlu0 %v5537, 2
        %v5611 = vpop.permute.xlu0 %5610
        %5612 = vrot.lane.b32.xlu0 %v5540, 2
        %v5613 = vpop.permute.xlu0 %5612
        %5614 = vrot.lane.b32.xlu0 %v5542, 2
        %v5615 = vpop.permute.xlu0 %5614
        %5616 = vrot.lane.b32.xlu0 %v5545, 2
        %v5617 = vpop.permute.xlu0 %5616
        %5618 = vrot.lane.b32.xlu0 %v5547, 2
        %v5619 = vpop.permute.xlu0 %5618
        %5620 = vrot.lane.b32.xlu0 %v5550, 2
        %v5621 = vpop.permute.xlu0 %5620
        %5622 = vrot.lane.b32.xlu0 %v5552, 2
        %v5623 = vpop.permute.xlu0 %5622
        %5624 = vrot.lane.b32.xlu0 %v5555, 2
        %v5625 = vpop.permute.xlu0 %5624
        %5626 = vrot.lane.b32.xlu0 %v5557, 2
        %v5627 = vpop.permute.xlu0 %5626
        %5628 = vrot.lane.b32.xlu0 %v5560, 2
        %v5629 = vpop.permute.xlu0 %5628
        %5630 = vrot.lane.b32.xlu0 %v5562, 2
        %v5631 = vpop.permute.xlu0 %5630
        %5632 = vrot.lane.b32.xlu0 %v5565, 2
        %v5633 = vpop.permute.xlu0 %5632
        %5634 = vrot.lane.b32.xlu0 %v5567, 2
        %v5635 = vpop.permute.xlu0 %5634
        %5636 = vrot.lane.b32.xlu0 %v5570, 2
        %v5637 = vpop.permute.xlu0 %5636
        %5638 = vrot.lane.b32.xlu0 %v5572, 2
        %v5639 = vpop.permute.xlu0 %5638
        %5640 = vrot.lane.b32.xlu0 %v5575, 2
        %v5641 = vpop.permute.xlu0 %5640
        %5642 = vrot.lane.b32.xlu0 %v5577, 2
        %v5643 = vpop.permute.xlu0 %5642
        %5644 = vrot.lane.b32.xlu0 %v5580, 2
        %v5645 = vpop.permute.xlu0 %5644
        %5646 = vrot.lane.b32.xlu0 %v5582, 2
        %v5647 = vpop.permute.xlu0 %5646
        %5648 = vrot.lane.b32.xlu0 %v5585, 2
        %v5649 = vpop.permute.xlu0 %5648
        %5650 = vrot.lane.b32.xlu0 %v5587, 2
        %v5651 = vpop.permute.xlu0 %5650
        %v5684 = vrot.slane %v5412, 2
        %v5685 = vrot.slane %v5413, 2
        %v5686 = vsel %vm1344, %v5684, %v5685
        %v5687 = vrot.slane %v5414, 2
        %v5688 = vsel %vm1344, %v5685, %v5687
        %v5689 = vrot.slane %v5415, 2
        %v5690 = vrot.slane %v5416, 2
        %v5691 = vsel %vm1344, %v5689, %v5690
        %v5692 = vrot.slane %v5417, 2
        %v5693 = vsel %vm1344, %v5690, %v5692
        %v5694 = vrot.slane %v5418, 2
        %v5695 = vrot.slane %v5419, 2
        %v5696 = vsel %vm1344, %v5694, %v5695
        %v5697 = vrot.slane %v5420, 2
        %v5698 = vsel %vm1344, %v5695, %v5697
        %v5699 = vrot.slane %v5421, 2
        %v5700 = vrot.slane %v5422, 2
        %v5701 = vsel %vm1344, %v5699, %v5700
        %v5702 = vrot.slane %v5423, 2
        %v5703 = vsel %vm1344, %v5700, %v5702
        %v5704 = vrot.slane %v5424, 2
        %v5705 = vrot.slane %v5425, 2
        %v5706 = vsel %vm1344, %v5704, %v5705
        %v5707 = vrot.slane %v5426, 2
        %v5708 = vsel %vm1344, %v5705, %v5707
        %v5709 = vrot.slane %v5427, 2
        %v5710 = vrot.slane %v5428, 2
        %v5711 = vsel %vm1344, %v5709, %v5710
        %v5712 = vrot.slane %v5429, 2
        %v5713 = vsel %vm1344, %v5710, %v5712
        %v5714 = vrot.slane %v5430, 2
        %v5715 = vrot.slane %v5431, 2
        %v5716 = vsel %vm1344, %v5714, %v5715
        %v5717 = vrot.slane %v5432, 2
        %v5718 = vsel %vm1344, %v5715, %v5717
        %v5719 = vrot.slane %v5433, 2
        %v5720 = vrot.slane %v5434, 2
        %v5721 = vsel %vm1344, %v5719, %v5720
        %v5722 = vrot.slane %v5435, 2
        %v5723 = vsel %vm1344, %v5720, %v5722
        %v5724 = vrot.slane %v5436, 2
        %v5725 = vrot.slane %v5437, 2
        %v5726 = vsel %vm1344, %v5724, %v5725
        %v5727 = vrot.slane %v5438, 2
        %v5728 = vsel %vm1344, %v5725, %v5727
        %v5729 = vrot.slane %v5439, 2
        %v5730 = vrot.slane %v5440, 2
        %v5731 = vsel %vm1344, %v5729, %v5730
        %v5732 = vrot.slane %v5441, 2
        %v5733 = vsel %vm1344, %v5730, %v5732
        %v5734 = vrot.slane %v5442, 2
        %v5735 = vrot.slane %v5443, 2
        %v5736 = vsel %vm1344, %v5734, %v5735
        %v5737 = vrot.slane %v5444, 2
        %v5738 = vsel %vm1344, %v5735, %v5737
        %v5739 = vrot.slane %v5445, 2
        %v5740 = vrot.slane %v5446, 2
        %v5741 = vsel %vm1344, %v5739, %v5740
        %v5742 = vrot.slane %v5447, 2
        %v5743 = vsel %vm1344, %v5740, %v5742
        %v5744 = vrot.slane %v5448, 2
        %v5745 = vrot.slane %v5449, 2
        %v5746 = vsel %vm1344, %v5744, %v5745
        %v5747 = vrot.slane %v5450, 2
        %v5748 = vsel %vm1344, %v5745, %v5747
        %v5749 = vrot.slane %v5451, 2
        %v5750 = vrot.slane %v5452, 2
        %v5751 = vsel %vm1344, %v5749, %v5750
        %v5752 = vrot.slane %v5453, 2
        %v5753 = vsel %vm1344, %v5750, %v5752
        %v5754 = vrot.slane %v5454, 2
        %v5755 = vrot.slane %v5455, 2
        %v5756 = vsel %vm1344, %v5754, %v5755
        %v5757 = vrot.slane %v5456, 2
        %v5758 = vsel %vm1344, %v5755, %v5757
        %v5759 = vrot.slane %v5457, 2
        %v5760 = vrot.slane %v5458, 2
        %v5761 = vsel %vm1344, %v5759, %v5760
        %v5762 = vrot.slane %v5459, 2
        %v5763 = vsel %vm1344, %v5760, %v5762
        %5764 = vrot.lane.b32.xlu0 %v5686, 4
        %v5765 = vpop.permute.xlu0 %5764
        %5766 = vrot.lane.b32.xlu0 %v5688, 4
        %v5767 = vpop.permute.xlu0 %5766
        %5768 = vrot.lane.b32.xlu0 %v5691, 4
        %v5769 = vpop.permute.xlu0 %5768
        %5770 = vrot.lane.b32.xlu0 %v5693, 4
        %v5771 = vpop.permute.xlu0 %5770
        %5772 = vrot.lane.b32.xlu0 %v5696, 4
        %v5773 = vpop.permute.xlu0 %5772
        %5774 = vrot.lane.b32.xlu0 %v5698, 4
        %v5775 = vpop.permute.xlu0 %5774
        %5776 = vrot.lane.b32.xlu0 %v5701, 4
        %v5777 = vpop.permute.xlu0 %5776
        %5778 = vrot.lane.b32.xlu0 %v5703, 4
        %v5779 = vpop.permute.xlu0 %5778
        %5780 = vrot.lane.b32.xlu0 %v5706, 4
        %v5781 = vpop.permute.xlu0 %5780
        %5782 = vrot.lane.b32.xlu0 %v5708, 4
        %v5783 = vpop.permute.xlu0 %5782
        %5784 = vrot.lane.b32.xlu0 %v5711, 4
        %v5785 = vpop.permute.xlu0 %5784
        %5786 = vrot.lane.b32.xlu0 %v5713, 4
        %v5787 = vpop.permute.xlu0 %5786
        %5788 = vrot.lane.b32.xlu0 %v5716, 4
        %v5789 = vpop.permute.xlu0 %5788
        %5790 = vrot.lane.b32.xlu0 %v5718, 4
        %v5791 = vpop.permute.xlu0 %5790
        %5792 = vrot.lane.b32.xlu0 %v5721, 4
        %v5793 = vpop.permute.xlu0 %5792
        %5794 = vrot.lane.b32.xlu0 %v5723, 4
        %v5795 = vpop.permute.xlu0 %5794
        %5796 = vrot.lane.b32.xlu0 %v5726, 4
        %v5797 = vpop.permute.xlu0 %5796
        %5798 = vrot.lane.b32.xlu0 %v5728, 4
        %v5799 = vpop.permute.xlu0 %5798
        %5800 = vrot.lane.b32.xlu0 %v5731, 4
        %v5801 = vpop.permute.xlu0 %5800
        %5802 = vrot.lane.b32.xlu0 %v5733, 4
        %v5803 = vpop.permute.xlu0 %5802
        %5804 = vrot.lane.b32.xlu0 %v5736, 4
        %v5805 = vpop.permute.xlu0 %5804
        %5806 = vrot.lane.b32.xlu0 %v5738, 4
        %v5807 = vpop.permute.xlu0 %5806
        %5808 = vrot.lane.b32.xlu0 %v5741, 4
        %v5809 = vpop.permute.xlu0 %5808
        %5810 = vrot.lane.b32.xlu0 %v5743, 4
        %v5811 = vpop.permute.xlu0 %5810
        %5812 = vrot.lane.b32.xlu0 %v5746, 4
        %v5813 = vpop.permute.xlu0 %5812
        %5814 = vrot.lane.b32.xlu0 %v5748, 4
        %v5815 = vpop.permute.xlu0 %5814
        %5816 = vrot.lane.b32.xlu0 %v5751, 4
        %v5817 = vpop.permute.xlu0 %5816
        %5818 = vrot.lane.b32.xlu0 %v5753, 4
        %v5819 = vpop.permute.xlu0 %5818
        %5820 = vrot.lane.b32.xlu0 %v5756, 4
        %v5821 = vpop.permute.xlu0 %5820
        %5822 = vrot.lane.b32.xlu0 %v5758, 4
        %v5823 = vpop.permute.xlu0 %5822
        %5824 = vrot.lane.b32.xlu0 %v5761, 4
        %v5825 = vpop.permute.xlu0 %5824
        %5826 = vrot.lane.b32.xlu0 %v5763, 4
        %v5827 = vpop.permute.xlu0 %5826
        %v5860 = vrot.slane %v5412, 3
        %v5861 = vrot.slane %v5413, 3
        %v5862 = vsel %vm4926, %v5860, %v5861
        %v5863 = vrot.slane %v5414, 3
        %v5864 = vsel %vm4926, %v5861, %v5863
        %v5865 = vrot.slane %v5415, 3
        %v5866 = vrot.slane %v5416, 3
        %v5867 = vsel %vm4926, %v5865, %v5866
        %v5868 = vrot.slane %v5417, 3
        %v5869 = vsel %vm4926, %v5866, %v5868
        %v5870 = vrot.slane %v5418, 3
        %v5871 = vrot.slane %v5419, 3
        %v5872 = vsel %vm4926, %v5870, %v5871
        %v5873 = vrot.slane %v5420, 3
        %v5874 = vsel %vm4926, %v5871, %v5873
        %v5875 = vrot.slane %v5421, 3
        %v5876 = vrot.slane %v5422, 3
        %v5877 = vsel %vm4926, %v5875, %v5876
        %v5878 = vrot.slane %v5423, 3
        %v5879 = vsel %vm4926, %v5876, %v5878
        %v5880 = vrot.slane %v5424, 3
        %v5881 = vrot.slane %v5425, 3
        %v5882 = vsel %vm4926, %v5880, %v5881
        %v5883 = vrot.slane %v5426, 3
        %v5884 = vsel %vm4926, %v5881, %v5883
        %v5885 = vrot.slane %v5427, 3
        %v5886 = vrot.slane %v5428, 3
        %v5887 = vsel %vm4926, %v5885, %v5886
        %v5888 = vrot.slane %v5429, 3
        %v5889 = vsel %vm4926, %v5886, %v5888
        %v5890 = vrot.slane %v5430, 3
        %v5891 = vrot.slane %v5431, 3
        %v5892 = vsel %vm4926, %v5890, %v5891
        %v5893 = vrot.slane %v5432, 3
        %v5894 = vsel %vm4926, %v5891, %v5893
        %v5895 = vrot.slane %v5433, 3
        %v5896 = vrot.slane %v5434, 3
        %v5897 = vsel %vm4926, %v5895, %v5896
        %v5898 = vrot.slane %v5435, 3
        %v5899 = vsel %vm4926, %v5896, %v5898
        %v5900 = vrot.slane %v5436, 3
        %v5901 = vrot.slane %v5437, 3
        %v5902 = vsel %vm4926, %v5900, %v5901
        %v5903 = vrot.slane %v5438, 3
        %v5904 = vsel %vm4926, %v5901, %v5903
        %v5905 = vrot.slane %v5439, 3
        %v5906 = vrot.slane %v5440, 3
        %v5907 = vsel %vm4926, %v5905, %v5906
        %v5908 = vrot.slane %v5441, 3
        %v5909 = vsel %vm4926, %v5906, %v5908
        %v5910 = vrot.slane %v5442, 3
        %v5911 = vrot.slane %v5443, 3
        %v5912 = vsel %vm4926, %v5910, %v5911
        %v5913 = vrot.slane %v5444, 3
        %v5914 = vsel %vm4926, %v5911, %v5913
        %v5915 = vrot.slane %v5445, 3
        %v5916 = vrot.slane %v5446, 3
        %v5917 = vsel %vm4926, %v5915, %v5916
        %v5918 = vrot.slane %v5447, 3
        %v5919 = vsel %vm4926, %v5916, %v5918
        %v5920 = vrot.slane %v5448, 3
        %v5921 = vrot.slane %v5449, 3
        %v5922 = vsel %vm4926, %v5920, %v5921
        %v5923 = vrot.slane %v5450, 3
        %v5924 = vsel %vm4926, %v5921, %v5923
        %v5925 = vrot.slane %v5451, 3
        %v5926 = vrot.slane %v5452, 3
        %v5927 = vsel %vm4926, %v5925, %v5926
        %v5928 = vrot.slane %v5453, 3
        %v5929 = vsel %vm4926, %v5926, %v5928
        %v5930 = vrot.slane %v5454, 3
        %v5931 = vrot.slane %v5455, 3
        %v5932 = vsel %vm4926, %v5930, %v5931
        %v5933 = vrot.slane %v5456, 3
        %v5934 = vsel %vm4926, %v5931, %v5933
        %v5935 = vrot.slane %v5457, 3
        %v5936 = vrot.slane %v5458, 3
        %v5937 = vsel %vm4926, %v5935, %v5936
        %v5938 = vrot.slane %v5459, 3
        %v5939 = vsel %vm4926, %v5936, %v5938
        %5940 = vrot.lane.b32.xlu0 %v5862, 6
        %v5941 = vpop.permute.xlu0 %5940
        %5942 = vrot.lane.b32.xlu0 %v5864, 6
        %v5943 = vpop.permute.xlu0 %5942
        %5944 = vrot.lane.b32.xlu0 %v5867, 6
        %v5945 = vpop.permute.xlu0 %5944
        %5946 = vrot.lane.b32.xlu0 %v5869, 6
        %v5947 = vpop.permute.xlu0 %5946
        %5948 = vrot.lane.b32.xlu0 %v5872, 6
        %v5949 = vpop.permute.xlu0 %5948
        %5950 = vrot.lane.b32.xlu0 %v5874, 6
        %v5951 = vpop.permute.xlu0 %5950
        %5952 = vrot.lane.b32.xlu0 %v5877, 6
        %v5953 = vpop.permute.xlu0 %5952
        %5954 = vrot.lane.b32.xlu0 %v5879, 6
        %v5955 = vpop.permute.xlu0 %5954
        %5956 = vrot.lane.b32.xlu0 %v5882, 6
        %v5957 = vpop.permute.xlu0 %5956
        %5958 = vrot.lane.b32.xlu0 %v5884, 6
        %v5959 = vpop.permute.xlu0 %5958
        %5960 = vrot.lane.b32.xlu0 %v5887, 6
        %v5961 = vpop.permute.xlu0 %5960
        %5962 = vrot.lane.b32.xlu0 %v5889, 6
        %v5963 = vpop.permute.xlu0 %5962
        %5964 = vrot.lane.b32.xlu0 %v5892, 6
        %v5965 = vpop.permute.xlu0 %5964
        %5966 = vrot.lane.b32.xlu0 %v5894, 6
        %v5967 = vpop.permute.xlu0 %5966
        %5968 = vrot.lane.b32.xlu0 %v5897, 6
        %v5969 = vpop.permute.xlu0 %5968
        %5970 = vrot.lane.b32.xlu0 %v5899, 6
        %v5971 = vpop.permute.xlu0 %5970
        %5972 = vrot.lane.b32.xlu0 %v5902, 6
        %v5973 = vpop.permute.xlu0 %5972
        %5974 = vrot.lane.b32.xlu0 %v5904, 6
        %v5975 = vpop.permute.xlu0 %5974
        %5976 = vrot.lane.b32.xlu0 %v5907, 6
        %v5977 = vpop.permute.xlu0 %5976
        %5978 = vrot.lane.b32.xlu0 %v5909, 6
        %v5979 = vpop.permute.xlu0 %5978
        %5980 = vrot.lane.b32.xlu0 %v5912, 6
        %v5981 = vpop.permute.xlu0 %5980
        %5982 = vrot.lane.b32.xlu0 %v5914, 6
        %v5983 = vpop.permute.xlu0 %5982
        %5984 = vrot.lane.b32.xlu0 %v5917, 6
        %v5985 = vpop.permute.xlu0 %5984
        %5986 = vrot.lane.b32.xlu0 %v5919, 6
        %v5987 = vpop.permute.xlu0 %5986
        %5988 = vrot.lane.b32.xlu0 %v5922, 6
        %v5989 = vpop.permute.xlu0 %5988
        %5990 = vrot.lane.b32.xlu0 %v5924, 6
        %v5991 = vpop.permute.xlu0 %5990
        %5992 = vrot.lane.b32.xlu0 %v5927, 6
        %v5993 = vpop.permute.xlu0 %5992
        %5994 = vrot.lane.b32.xlu0 %v5929, 6
        %v5995 = vpop.permute.xlu0 %5994
        %5996 = vrot.lane.b32.xlu0 %v5932, 6
        %v5997 = vpop.permute.xlu0 %5996
        %5998 = vrot.lane.b32.xlu0 %v5934, 6
        %v5999 = vpop.permute.xlu0 %5998
        %6000 = vrot.lane.b32.xlu0 %v5937, 6
        %v6001 = vpop.permute.xlu0 %6000
        %6002 = vrot.lane.b32.xlu0 %v5939, 6
        %v6003 = vpop.permute.xlu0 %6002
        %v6036 = vrot.slane %v5412, 4
        %v6037 = vrot.slane %v5413, 4
        %v6038 = vsel %vm795, %v6036, %v6037
        %v6039 = vrot.slane %v5414, 4
        %v6040 = vsel %vm795, %v6037, %v6039
        %v6041 = vrot.slane %v5415, 4
        %v6042 = vrot.slane %v5416, 4
        %v6043 = vsel %vm795, %v6041, %v6042
        %v6044 = vrot.slane %v5417, 4
        %v6045 = vsel %vm795, %v6042, %v6044
        %v6046 = vrot.slane %v5418, 4
        %v6047 = vrot.slane %v5419, 4
        %v6048 = vsel %vm795, %v6046, %v6047
        %v6049 = vrot.slane %v5420, 4
        %v6050 = vsel %vm795, %v6047, %v6049
        %v6051 = vrot.slane %v5421, 4
        %v6052 = vrot.slane %v5422, 4
        %v6053 = vsel %vm795, %v6051, %v6052
        %v6054 = vrot.slane %v5423, 4
        %v6055 = vsel %vm795, %v6052, %v6054
        %v6056 = vrot.slane %v5424, 4
        %v6057 = vrot.slane %v5425, 4
        %v6058 = vsel %vm795, %v6056, %v6057
        %v6059 = vrot.slane %v5426, 4
        %v6060 = vsel %vm795, %v6057, %v6059
        %v6061 = vrot.slane %v5427, 4
        %v6062 = vrot.slane %v5428, 4
        %v6063 = vsel %vm795, %v6061, %v6062
        %v6064 = vrot.slane %v5429, 4
        %v6065 = vsel %vm795, %v6062, %v6064
        %v6066 = vrot.slane %v5430, 4
        %v6067 = vrot.slane %v5431, 4
        %v6068 = vsel %vm795, %v6066, %v6067
        %v6069 = vrot.slane %v5432, 4
        %v6070 = vsel %vm795, %v6067, %v6069
        %v6071 = vrot.slane %v5433, 4
        %v6072 = vrot.slane %v5434, 4
        %v6073 = vsel %vm795, %v6071, %v6072
        %v6074 = vrot.slane %v5435, 4
        %v6075 = vsel %vm795, %v6072, %v6074
        %v6076 = vrot.slane %v5436, 4
        %v6077 = vrot.slane %v5437, 4
        %v6078 = vsel %vm795, %v6076, %v6077
        %v6079 = vrot.slane %v5438, 4
        %v6080 = vsel %vm795, %v6077, %v6079
        %v6081 = vrot.slane %v5439, 4
        %v6082 = vrot.slane %v5440, 4
        %v6083 = vsel %vm795, %v6081, %v6082
        %v6084 = vrot.slane %v5441, 4
        %v6085 = vsel %vm795, %v6082, %v6084
        %v6086 = vrot.slane %v5442, 4
        %v6087 = vrot.slane %v5443, 4
        %v6088 = vsel %vm795, %v6086, %v6087
        %v6089 = vrot.slane %v5444, 4
        %v6090 = vsel %vm795, %v6087, %v6089
        %v6091 = vrot.slane %v5445, 4
        %v6092 = vrot.slane %v5446, 4
        %v6093 = vsel %vm795, %v6091, %v6092
        %v6094 = vrot.slane %v5447, 4
        %v6095 = vsel %vm795, %v6092, %v6094
        %v6096 = vrot.slane %v5448, 4
        %v6097 = vrot.slane %v5449, 4
        %v6098 = vsel %vm795, %v6096, %v6097
        %v6099 = vrot.slane %v5450, 4
        %v6100 = vsel %vm795, %v6097, %v6099
        %v6101 = vrot.slane %v5451, 4
        %v6102 = vrot.slane %v5452, 4
        %v6103 = vsel %vm795, %v6101, %v6102
        %v6104 = vrot.slane %v5453, 4
        %v6105 = vsel %vm795, %v6102, %v6104
        %v6106 = vrot.slane %v5454, 4
        %v6107 = vrot.slane %v5455, 4
        %v6108 = vsel %vm795, %v6106, %v6107
        %v6109 = vrot.slane %v5456, 4
        %v6110 = vsel %vm795, %v6107, %v6109
        %v6111 = vrot.slane %v5457, 4
        %v6112 = vrot.slane %v5458, 4
        %v6113 = vsel %vm795, %v6111, %v6112
        %v6114 = vrot.slane %v5459, 4
        %v6115 = vsel %vm795, %v6112, %v6114
        %6116 = vrot.lane.b32.xlu0 %v6038, 8
        %v6117 = vpop.permute.xlu0 %6116
        %6118 = vrot.lane.b32.xlu0 %v6040, 8
        %v6119 = vpop.permute.xlu0 %6118
        %6120 = vrot.lane.b32.xlu0 %v6043, 8
        %v6121 = vpop.permute.xlu0 %6120
        %6122 = vrot.lane.b32.xlu0 %v6045, 8
        %v6123 = vpop.permute.xlu0 %6122
        %6124 = vrot.lane.b32.xlu0 %v6048, 8
        %v6125 = vpop.permute.xlu0 %6124
        %6126 = vrot.lane.b32.xlu0 %v6050, 8
        %v6127 = vpop.permute.xlu0 %6126
        %6128 = vrot.lane.b32.xlu0 %v6053, 8
        %v6129 = vpop.permute.xlu0 %6128
        %6130 = vrot.lane.b32.xlu0 %v6055, 8
        %v6131 = vpop.permute.xlu0 %6130
        %6132 = vrot.lane.b32.xlu0 %v6058, 8
        %v6133 = vpop.permute.xlu0 %6132
        %6134 = vrot.lane.b32.xlu0 %v6060, 8
        %v6135 = vpop.permute.xlu0 %6134
        %6136 = vrot.lane.b32.xlu0 %v6063, 8
        %v6137 = vpop.permute.xlu0 %6136
        %6138 = vrot.lane.b32.xlu0 %v6065, 8
        %v6139 = vpop.permute.xlu0 %6138
        %6140 = vrot.lane.b32.xlu0 %v6068, 8
        %v6141 = vpop.permute.xlu0 %6140
        %6142 = vrot.lane.b32.xlu0 %v6070, 8
        %v6143 = vpop.permute.xlu0 %6142
        %6144 = vrot.lane.b32.xlu0 %v6073, 8
        %v6145 = vpop.permute.xlu0 %6144
        %6146 = vrot.lane.b32.xlu0 %v6075, 8
        %v6147 = vpop.permute.xlu0 %6146
        %6148 = vrot.lane.b32.xlu0 %v6078, 8
        %v6149 = vpop.permute.xlu0 %6148
        %6150 = vrot.lane.b32.xlu0 %v6080, 8
        %v6151 = vpop.permute.xlu0 %6150
        %6152 = vrot.lane.b32.xlu0 %v6083, 8
        %v6153 = vpop.permute.xlu0 %6152
        %6154 = vrot.lane.b32.xlu0 %v6085, 8
        %v6155 = vpop.permute.xlu0 %6154
        %6156 = vrot.lane.b32.xlu0 %v6088, 8
        %v6157 = vpop.permute.xlu0 %6156
        %6158 = vrot.lane.b32.xlu0 %v6090, 8
        %v6159 = vpop.permute.xlu0 %6158
        %6160 = vrot.lane.b32.xlu0 %v6093, 8
        %v6161 = vpop.permute.xlu0 %6160
        %6162 = vrot.lane.b32.xlu0 %v6095, 8
        %v6163 = vpop.permute.xlu0 %6162
        %6164 = vrot.lane.b32.xlu0 %v6098, 8
        %v6165 = vpop.permute.xlu0 %6164
        %6166 = vrot.lane.b32.xlu0 %v6100, 8
        %v6167 = vpop.permute.xlu0 %6166
        %6168 = vrot.lane.b32.xlu0 %v6103, 8
        %v6169 = vpop.permute.xlu0 %6168
        %6170 = vrot.lane.b32.xlu0 %v6105, 8
        %v6171 = vpop.permute.xlu0 %6170
        %6172 = vrot.lane.b32.xlu0 %v6108, 8
        %v6173 = vpop.permute.xlu0 %6172
        %6174 = vrot.lane.b32.xlu0 %v6110, 8
        %v6175 = vpop.permute.xlu0 %6174
        %6176 = vrot.lane.b32.xlu0 %v6113, 8
        %v6177 = vpop.permute.xlu0 %6176
        %6178 = vrot.lane.b32.xlu0 %v6115, 8
        %v6179 = vpop.permute.xlu0 %6178
        %v6212 = vsel %vm5279, %v5412, %v5589
        %v6213 = vsel %vm5279, %v5413, %v5591
        %v6214 = vsel %vm5279, %v5415, %v5593
        %v6215 = vsel %vm5279, %v5416, %v5595
        %v6216 = vsel %vm5279, %v5418, %v5597
        %v6217 = vsel %vm5279, %v5419, %v5599
        %v6218 = vsel %vm5279, %v5421, %v5601
        %v6219 = vsel %vm5279, %v5422, %v5603
        %v6220 = vsel %vm5279, %v5424, %v5605
        %v6221 = vsel %vm5279, %v5425, %v5607
        %v6222 = vsel %vm5279, %v5427, %v5609
        %v6223 = vsel %vm5279, %v5428, %v5611
        %v6224 = vsel %vm5279, %v5430, %v5613
        %v6225 = vsel %vm5279, %v5431, %v5615
        %v6226 = vsel %vm5279, %v5433, %v5617
        %v6227 = vsel %vm5279, %v5434, %v5619
        %v6228 = vsel %vm5279, %v5436, %v5621
        %v6229 = vsel %vm5279, %v5437, %v5623
        %v6230 = vsel %vm5279, %v5439, %v5625
        %v6231 = vsel %vm5279, %v5440, %v5627
        %v6232 = vsel %vm5279, %v5442, %v5629
        %v6233 = vsel %vm5279, %v5443, %v5631
        %v6234 = vsel %vm5279, %v5445, %v5633
        %v6235 = vsel %vm5279, %v5446, %v5635
        %v6236 = vsel %vm5279, %v5448, %v5637
        %v6237 = vsel %vm5279, %v5449, %v5639
        %v6238 = vsel %vm5279, %v5451, %v5641
        %v6239 = vsel %vm5279, %v5452, %v5643
        %v6240 = vsel %vm5279, %v5454, %v5645
        %v6241 = vsel %vm5279, %v5455, %v5647
        %v6242 = vsel %vm5279, %v5457, %v5649
        %v6243 = vsel %vm5279, %v5458, %v5651
        %v6244 = vsel %vm730, %v6212, %v5765
        %v6245 = vsel %vm730, %v6213, %v5767
        %v6246 = vsel %vm730, %v6214, %v5769
        %v6247 = vsel %vm730, %v6215, %v5771
        %v6248 = vsel %vm730, %v6216, %v5773
        %v6249 = vsel %vm730, %v6217, %v5775
        %v6250 = vsel %vm730, %v6218, %v5777
        %v6251 = vsel %vm730, %v6219, %v5779
        %v6252 = vsel %vm730, %v6220, %v5781
        %v6253 = vsel %vm730, %v6221, %v5783
        %v6254 = vsel %vm730, %v6222, %v5785
        %v6255 = vsel %vm730, %v6223, %v5787
        %v6256 = vsel %vm730, %v6224, %v5789
        %v6257 = vsel %vm730, %v6225, %v5791
        %v6258 = vsel %vm730, %v6226, %v5793
        %v6259 = vsel %vm730, %v6227, %v5795
        %v6260 = vsel %vm730, %v6228, %v5797
        %v6261 = vsel %vm730, %v6229, %v5799
        %v6262 = vsel %vm730, %v6230, %v5801
        %v6263 = vsel %vm730, %v6231, %v5803
        %v6264 = vsel %vm730, %v6232, %v5805
        %v6265 = vsel %vm730, %v6233, %v5807
        %v6266 = vsel %vm730, %v6234, %v5809
        %v6267 = vsel %vm730, %v6235, %v5811
        %v6268 = vsel %vm730, %v6236, %v5813
        %v6269 = vsel %vm730, %v6237, %v5815
        %v6270 = vsel %vm730, %v6238, %v5817
        %v6271 = vsel %vm730, %v6239, %v5819
        %v6272 = vsel %vm730, %v6240, %v5821
        %v6273 = vsel %vm730, %v6241, %v5823
        %v6274 = vsel %vm730, %v6242, %v5825
        %v6275 = vsel %vm730, %v6243, %v5827
        %v6276 = vsel %vm5344, %v6244, %v5941
        %v6277 = vsel %vm5344, %v6245, %v5943
        %v6278 = vsel %vm5344, %v6246, %v5945
        %v6279 = vsel %vm5344, %v6247, %v5947
        %v6280 = vsel %vm5344, %v6248, %v5949
        %v6281 = vsel %vm5344, %v6249, %v5951
        %v6282 = vsel %vm5344, %v6250, %v5953
        %v6283 = vsel %vm5344, %v6251, %v5955
        %v6284 = vsel %vm5344, %v6252, %v5957
        %v6285 = vsel %vm5344, %v6253, %v5959
        %v6286 = vsel %vm5344, %v6254, %v5961
        %v6287 = vsel %vm5344, %v6255, %v5963
        %v6288 = vsel %vm5344, %v6256, %v5965
        %v6289 = vsel %vm5344, %v6257, %v5967
        %v6290 = vsel %vm5344, %v6258, %v5969
        %v6291 = vsel %vm5344, %v6259, %v5971
        %v6292 = vsel %vm5344, %v6260, %v5973
        %v6293 = vsel %vm5344, %v6261, %v5975
        %v6294 = vsel %vm5344, %v6262, %v5977
        %v6295 = vsel %vm5344, %v6263, %v5979
        %v6296 = vsel %vm5344, %v6264, %v5981
        %v6297 = vsel %vm5344, %v6265, %v5983
        %v6298 = vsel %vm5344, %v6266, %v5985
        %v6299 = vsel %vm5344, %v6267, %v5987
        %v6300 = vsel %vm5344, %v6268, %v5989
        %v6301 = vsel %vm5344, %v6269, %v5991
        %v6302 = vsel %vm5344, %v6270, %v5993
        %v6303 = vsel %vm5344, %v6271, %v5995
        %v6304 = vsel %vm5344, %v6272, %v5997
        %v6305 = vsel %vm5344, %v6273, %v5999
        %v6306 = vsel %vm5344, %v6274, %v6001
        %v6307 = vsel %vm5344, %v6275, %v6003
        %v6308 = vsel %vm2334, %v6276, %v6117
        %v6309 = vsel %vm2334, %v6277, %v6119
        %v6310 = vsel %vm2334, %v6278, %v6121
        %v6311 = vsel %vm2334, %v6279, %v6123
        %v6312 = vsel %vm2334, %v6280, %v6125
        %v6313 = vsel %vm2334, %v6281, %v6127
        %v6314 = vsel %vm2334, %v6282, %v6129
        %v6315 = vsel %vm2334, %v6283, %v6131
        %v6316 = vsel %vm2334, %v6284, %v6133
        %v6317 = vsel %vm2334, %v6285, %v6135
        %v6318 = vsel %vm2334, %v6286, %v6137
        %v6319 = vsel %vm2334, %v6287, %v6139
        %v6320 = vsel %vm2334, %v6288, %v6141
        %v6321 = vsel %vm2334, %v6289, %v6143
        %v6322 = vsel %vm2334, %v6290, %v6145
        %v6323 = vsel %vm2334, %v6291, %v6147
        %v6324 = vsel %vm2334, %v6292, %v6149
        %v6325 = vsel %vm2334, %v6293, %v6151
        %v6326 = vsel %vm2334, %v6294, %v6153
        %v6327 = vsel %vm2334, %v6295, %v6155
        %v6328 = vsel %vm2334, %v6296, %v6157
        %v6329 = vsel %vm2334, %v6297, %v6159
        %v6330 = vsel %vm2334, %v6298, %v6161
        %v6331 = vsel %vm2334, %v6299, %v6163
        %v6332 = vsel %vm2334, %v6300, %v6165
        %v6333 = vsel %vm2334, %v6301, %v6167
        %v6334 = vsel %vm2334, %v6302, %v6169
        %v6335 = vsel %vm2334, %v6303, %v6171
        %v6336 = vsel %vm2334, %v6304, %v6173
        %v6337 = vsel %vm2334, %v6305, %v6175
        %v6338 = vsel %vm2334, %v6306, %v6177
        %v6339 = vsel %vm2334, %v6307, %v6179
        %s6340 = scalar_lea.vmem %s7, 16
        %v6341 = vld [vmem:[%s6340] sm:$0xff]
        %v6342 = vld [vmem:[%s6340 + $0x8] sm:$0x3]
        %vm6343 = vcmask 80896
        %v6345 = vsel %vm6343, %v6308, 0
        %v6348 = vsel %vm6343, %v6309, 0
        %v6351 = vsel %vm6343, %v6310, 0
        %v6354 = vsel %vm6343, %v6311, 0
        %v6357 = vsel %vm6343, %v6312, 0
        %v6360 = vsel %vm6343, %v6313, 0
        %v6363 = vsel %vm6343, %v6314, 0
        %v6366 = vsel %vm6343, %v6315, 0
        %v6369 = vsel %vm6343, %v6316, 0
        %v6372 = vsel %vm6343, %v6317, 0
        %v6375 = vsel %vm6343, %v6318, 0
        %v6378 = vsel %vm6343, %v6319, 0
        %v6381 = vsel %vm6343, %v6320, 0
        %v6384 = vsel %vm6343, %v6321, 0
        %v6387 = vsel %vm6343, %v6322, 0
        %v6390 = vsel %vm6343, %v6323, 0
        %v6393 = vsel %vm6343, %v6324, 0
        %v6396 = vsel %vm6343, %v6325, 0
        %v6399 = vsel %vm6343, %v6326, 0
        %v6402 = vsel %vm6343, %v6327, 0
        %v6405 = vsel %vm6343, %v6328, 0
        %v6408 = vsel %vm6343, %v6329, 0
        %v6411 = vsel %vm6343, %v6330, 0
        %v6414 = vsel %vm6343, %v6331, 0
        %v6417 = vsel %vm6343, %v6332, 0
        %v6420 = vsel %vm6343, %v6333, 0
        %v6423 = vsel %vm6343, %v6334, 0
        %v6426 = vsel %vm6343, %v6335, 0
        %v6429 = vsel %vm6343, %v6336, 0
        %v6432 = vsel %vm6343, %v6337, 0
        %v6435 = vsel %vm6343, %v6338, 0
        %v6438 = vsel %vm6343, %v6339, 0
        %vm6440 = vcmask 1041408
        %v6442 = vsel %vm6440, %v6342, 0
        %6444 = vmatprep.subr.mxu0 0.0
        %6445 = vmatpush1.msra.mxu0 %v6341
        %6446 = vmatprep.subr.mxu0 0.0
        %6447 = vmatpush1.msra.mxu0 %v6442
        %6448 = vmatprep.subr.mxu0 0.0
        %6449 = vmatpush1.msra.mxu0 0.0
        %6450 = vmatprep.subr.mxu0 0.0
        %6451 = vmatpush1.msra.mxu0 0.0
        %6452 = vmatprep.subr.mxu0 0.0
        %6453 = vmatpush1.msra.mxu0 0.0
        %6454 = vmatprep.subr.mxu0 0.0
        %6455 = vmatpush1.msra.mxu0 0.0
        %6456 = vmatprep.subr.mxu0 0.0
        %6457 = vmatpush1.msra.mxu0 0.0
        %6458 = vmatprep.subr.mxu0 0.0
        %6459 = vmatpush1.msra.mxu0 0.0
        %6460 = vmatprep.subr.mxu0 0.0
        %6461 = vmatpush1.msra.mxu0 0.0
        %6462 = vmatprep.subr.mxu0 0.0
        %6463 = vmatpush1.msra.mxu0 0.0
        %6464 = vmatprep.subr.mxu0 0.0
        %6465 = vmatpush1.msra.mxu0 0.0
        %6466 = vmatprep.subr.mxu0 0.0
        %6467 = vmatpush1.msra.mxu0 0.0
        %6468 = vmatprep.subr.mxu0 0.0
        %6469 = vmatpush1.msra.mxu0 0.0
        %6470 = vmatprep.subr.mxu0 0.0
        %6471 = vmatpush1.msra.mxu0 0.0
        %6472 = vmatprep.subr.mxu0 0.0
        %6473 = vmatpush1.msra.mxu0 0.0
        %6474 = vmatprep.subr.mxu0 0.0
        %6475 = vmatpush1.msra.mxu0 0.0
        %6476 = vmatprep.subr.mxu0 0.0
        %6477 = vmatpush1.msra.mxu0 0.0
        %6478 = vmatprep.subr.mxu0 0.0
        %6479 = vmatpush1.msra.mxu0 0.0
        %6480 = vmatprep.subr.mxu0 0.0
        %6481 = vmatpush1.msra.mxu0 0.0
        %6482 = vmatprep.subr.mxu0 0.0
        %6483 = vmatpush1.msra.mxu0 0.0
        %6484 = vmatprep.subr.mxu0 0.0
        %6485 = vmatpush1.msra.mxu0 0.0
        %6486 = vmatprep.subr.mxu0 0.0
        %6487 = vmatpush1.msra.mxu0 0.0
        %6488 = vmatprep.subr.mxu0 0.0
        %6489 = vmatpush1.msra.mxu0 0.0
        %6490 = vmatprep.subr.mxu0 0.0
        %6491 = vmatpush1.msra.mxu0 0.0
        %6492 = vmatprep.subr.mxu0 0.0
        %6493 = vmatpush1.msra.mxu0 0.0
        %6494 = vmatprep.subr.mxu0 0.0
        %6495 = vmatpush1.msra.mxu0 0.0
        %6496 = vmatprep.subr.mxu0 0.0
        %6497 = vmatpush1.msra.mxu0 0.0
        %6498 = vmatprep.subr.mxu0 0.0
        %6499 = vmatpush1.msra.mxu0 0.0
        %6500 = vmatprep.subr.mxu0 0.0
        %6501 = vmatpush1.msra.mxu0 0.0
        %6502 = vmatprep.subr.mxu0 0.0
        %6503 = vmatpush1.msra.mxu0 0.0
        %6504 = vmatprep.subr.mxu0 0.0
        %6505 = vmatpush1.msra.mxu0 0.0
        %6506 = vmatprep.subr.mxu0 0.0
        %6507 = vmatpush1.msra.mxu0 0.0
        %6508 = vmatprep.mubr.f32.mxu0 0.0
        %6509 = vmatmul.mubr.f32.gmra.mrb[0].mxu0 %v6345
        %v6510 = vpop.f32.mrb[0].mxu0
        %v6511 = vadd.f32 0.0, %v6510
        %v6512 = vpop.f32.mrb[0].mxu0
        %6513 = vmatprep.mubr.f32.mxu0 0.0
        %6514 = vmatmul.mubr.f32.gmra.mrb[0].mxu0 %v6348
        %v6515 = vpop.f32.mrb[0].mxu0
        %v6516 = vadd.f32 0.0, %v6515
        %v6517 = vpop.f32.mrb[0].mxu0
        %6518 = vmatprep.mubr.f32.mxu0 0.0
        %6519 = vmatmul.mubr.f32.gmra.mrb[0].mxu0 %v6351
        %v6520 = vpop.f32.mrb[0].mxu0
        %v6521 = vadd.f32 0.0, %v6520
        %v6522 = vpop.f32.mrb[0].mxu0
        %6523 = vmatprep.mubr.f32.mxu0 0.0
        %6524 = vmatmul.mubr.f32.gmra.mrb[0].mxu0 %v6354
        %v6525 = vpop.f32.mrb[0].mxu0
        %v6526 = vadd.f32 0.0, %v6525
        %v6527 = vpop.f32.mrb[0].mxu0
        %6528 = vmatprep.mubr.f32.mxu0 0.0
        %6529 = vmatmul.mubr.f32.gmra.mrb[0].mxu0 %v6357
        %v6530 = vpop.f32.mrb[0].mxu0
        %v6531 = vadd.f32 0.0, %v6530
        %v6532 = vpop.f32.mrb[0].mxu0
        %6533 = vmatprep.mubr.f32.mxu0 0.0
        %6534 = vmatmul.mubr.f32.gmra.mrb[0].mxu0 %v6360
        %v6535 = vpop.f32.mrb[0].mxu0
        %v6536 = vadd.f32 0.0, %v6535
        %v6537 = vpop.f32.mrb[0].mxu0
        %6538 = vmatprep.mubr.f32.mxu0 0.0
        %6539 = vmatmul.mubr.f32.gmra.mrb[0].mxu0 %v6363
        %v6540 = vpop.f32.mrb[0].mxu0
        %v6541 = vadd.f32 0.0, %v6540
        %v6542 = vpop.f32.mrb[0].mxu0
        %6543 = vmatprep.mubr.f32.mxu0 0.0
        %6544 = vmatmul.mubr.f32.gmra.mrb[0].mxu0 %v6366
        %v6545 = vpop.f32.mrb[0].mxu0
        %v6546 = vadd.f32 0.0, %v6545
        %v6547 = vpop.f32.mrb[0].mxu0
        %6548 = vmatprep.mubr.f32.mxu0 0.0
        %6549 = vmatmul.mubr.f32.gmra.mrb[0].mxu0 %v6369
        %v6550 = vpop.f32.mrb[0].mxu0
        %v6551 = vadd.f32 0.0, %v6550
        %v6552 = vpop.f32.mrb[0].mxu0
        %6553 = vmatprep.mubr.f32.mxu0 0.0
        %6554 = vmatmul.mubr.f32.gmra.mrb[0].mxu0 %v6372
        %v6555 = vpop.f32.mrb[0].mxu0
        %v6556 = vadd.f32 0.0, %v6555
        %v6557 = vpop.f32.mrb[0].mxu0
        %6558 = vmatprep.mubr.f32.mxu0 0.0
        %6559 = vmatmul.mubr.f32.gmra.mrb[0].mxu0 %v6375
        %v6560 = vpop.f32.mrb[0].mxu0
        %v6561 = vadd.f32 0.0, %v6560
        %v6562 = vpop.f32.mrb[0].mxu0
        %6563 = vmatprep.mubr.f32.mxu0 0.0
        %6564 = vmatmul.mubr.f32.gmra.mrb[0].mxu0 %v6378
        %v6565 = vpop.f32.mrb[0].mxu0
        %v6566 = vadd.f32 0.0, %v6565
        %v6567 = vpop.f32.mrb[0].mxu0
        %6568 = vmatprep.mubr.f32.mxu0 0.0
        %6569 = vmatmul.mubr.f32.gmra.mrb[0].mxu0 %v6381
        %v6570 = vpop.f32.mrb[0].mxu0
        %v6571 = vadd.f32 0.0, %v6570
        %v6572 = vpop.f32.mrb[0].mxu0
        %6573 = vmatprep.mubr.f32.mxu0 0.0
        %6574 = vmatmul.mubr.f32.gmra.mrb[0].mxu0 %v6384
        %v6575 = vpop.f32.mrb[0].mxu0
        %v6576 = vadd.f32 0.0, %v6575
        %v6577 = vpop.f32.mrb[0].mxu0
        %6578 = vmatprep.mubr.f32.mxu0 0.0
        %6579 = vmatmul.mubr.f32.gmra.mrb[0].mxu0 %v6387
        %v6580 = vpop.f32.mrb[0].mxu0
        %v6581 = vadd.f32 0.0, %v6580
        %v6582 = vpop.f32.mrb[0].mxu0
        %6583 = vmatprep.mubr.f32.mxu0 0.0
        %6584 = vmatmul.mubr.f32.gmra.mrb[0].mxu0 %v6390
        %v6585 = vpop.f32.mrb[0].mxu0
        %v6586 = vadd.f32 0.0, %v6585
        %v6587 = vpop.f32.mrb[0].mxu0
        %6588 = vmatprep.mubr.f32.mxu0 0.0
        %6589 = vmatmul.mubr.f32.gmra.mrb[0].mxu0 %v6393
        %v6590 = vpop.f32.mrb[0].mxu0
        %v6591 = vadd.f32 0.0, %v6590
        %v6592 = vpop.f32.mrb[0].mxu0
        %6593 = vmatprep.mubr.f32.mxu0 0.0
        %6594 = vmatmul.mubr.f32.gmra.mrb[0].mxu0 %v6396
        %v6595 = vpop.f32.mrb[0].mxu0
        %v6596 = vadd.f32 0.0, %v6595
        %v6597 = vpop.f32.mrb[0].mxu0
        %6598 = vmatprep.mubr.f32.mxu0 0.0
        %6599 = vmatmul.mubr.f32.gmra.mrb[0].mxu0 %v6399
        %v6600 = vpop.f32.mrb[0].mxu0
        %v6601 = vadd.f32 0.0, %v6600
        %v6602 = vpop.f32.mrb[0].mxu0
        %6603 = vmatprep.mubr.f32.mxu0 0.0
        %6604 = vmatmul.mubr.f32.gmra.mrb[0].mxu0 %v6402
        %v6605 = vpop.f32.mrb[0].mxu0
        %v6606 = vadd.f32 0.0, %v6605
        %v6607 = vpop.f32.mrb[0].mxu0
        %6608 = vmatprep.mubr.f32.mxu0 0.0
        %6609 = vmatmul.mubr.f32.gmra.mrb[0].mxu0 %v6405
        %v6610 = vpop.f32.mrb[0].mxu0
        %v6611 = vadd.f32 0.0, %v6610
        %v6612 = vpop.f32.mrb[0].mxu0
        %6613 = vmatprep.mubr.f32.mxu0 0.0
        %6614 = vmatmul.mubr.f32.gmra.mrb[0].mxu0 %v6408
        %v6615 = vpop.f32.mrb[0].mxu0
        %v6616 = vadd.f32 0.0, %v6615
        %v6617 = vpop.f32.mrb[0].mxu0
        %6618 = vmatprep.mubr.f32.mxu0 0.0
        %6619 = vmatmul.mubr.f32.gmra.mrb[0].mxu0 %v6411
        %v6620 = vpop.f32.mrb[0].mxu0
        %v6621 = vadd.f32 0.0, %v6620
        %v6622 = vpop.f32.mrb[0].mxu0
        %6623 = vmatprep.mubr.f32.mxu0 0.0
        %6624 = vmatmul.mubr.f32.gmra.mrb[0].mxu0 %v6414
        %v6625 = vpop.f32.mrb[0].mxu0
        %v6626 = vadd.f32 0.0, %v6625
        %v6627 = vpop.f32.mrb[0].mxu0
        %6628 = vmatprep.mubr.f32.mxu0 0.0
        %6629 = vmatmul.mubr.f32.gmra.mrb[0].mxu0 %v6417
        %v6630 = vpop.f32.mrb[0].mxu0
        %v6631 = vadd.f32 0.0, %v6630
        %v6632 = vpop.f32.mrb[0].mxu0
        %6633 = vmatprep.mubr.f32.mxu0 0.0
        %6634 = vmatmul.mubr.f32.gmra.mrb[0].mxu0 %v6420
        %v6635 = vpop.f32.mrb[0].mxu0
        %v6636 = vadd.f32 0.0, %v6635
        %v6637 = vpop.f32.mrb[0].mxu0
        %6638 = vmatprep.mubr.f32.mxu0 0.0
        %6639 = vmatmul.mubr.f32.gmra.mrb[0].mxu0 %v6423
        %v6640 = vpop.f32.mrb[0].mxu0
        %v6641 = vadd.f32 0.0, %v6640
        %v6642 = vpop.f32.mrb[0].mxu0
        %6643 = vmatprep.mubr.f32.mxu0 0.0
        %6644 = vmatmul.mubr.f32.gmra.mrb[0].mxu0 %v6426
        %v6645 = vpop.f32.mrb[0].mxu0
        %v6646 = vadd.f32 0.0, %v6645
        %v6647 = vpop.f32.mrb[0].mxu0
        %6648 = vmatprep.mubr.f32.mxu0 0.0
        %6649 = vmatmul.mubr.f32.gmra.mrb[0].mxu0 %v6429
        %v6650 = vpop.f32.mrb[0].mxu0
        %v6651 = vadd.f32 0.0, %v6650
        %v6652 = vpop.f32.mrb[0].mxu0
        %6653 = vmatprep.mubr.f32.mxu0 0.0
        %6654 = vmatmul.mubr.f32.gmra.mrb[0].mxu0 %v6432
        %v6655 = vpop.f32.mrb[0].mxu0
        %v6656 = vadd.f32 0.0, %v6655
        %v6657 = vpop.f32.mrb[0].mxu0
        %6658 = vmatprep.mubr.f32.mxu0 0.0
        %6659 = vmatmul.mubr.f32.gmra.mrb[0].mxu0 %v6435
        %v6660 = vpop.f32.mrb[0].mxu0
        %v6661 = vadd.f32 0.0, %v6660
        %v6662 = vpop.f32.mrb[0].mxu0
        %6663 = vmatprep.mubr.f32.mxu0 0.0
        %6664 = vmatmul.mubr.f32.gmra.mrb[0].mxu0 %v6438
        %v6665 = vpop.f32.mrb[0].mxu0
        %v6666 = vadd.f32 0.0, %v6665
        %v6667 = vpop.f32.mrb[0].mxu0
        %6668 = vdwg.mxu0
        %v6670 = vsel %vm6343, %v5377, 0
        %v6673 = vsel %vm6343, %v5378, 0
        %v6676 = vsel %vm6343, %v5379, 0
        %v6679 = vsel %vm6343, %v5380, 0
        %v6682 = vsel %vm6343, %v5381, 0
        %v6685 = vsel %vm6343, %v5382, 0
        %v6688 = vsel %vm6343, %v5383, 0
        %v6691 = vsel %vm6343, %v5384, 0
        %v6694 = vsel %vm6343, %v5385, 0
        %v6697 = vsel %vm6343, %v5386, 0
        %v6700 = vsel %vm6343, %v5387, 0
        %v6703 = vsel %vm6343, %v5388, 0
        %v6706 = vsel %vm6343, %v5389, 0
        %v6709 = vsel %vm6343, %v5390, 0
        %v6712 = vsel %vm6343, %v5391, 0
        %v6715 = vsel %vm6343, %v5392, 0
        %v6718 = vsel %vm6343, %v5393, 0
        %v6721 = vsel %vm6343, %v5394, 0
        %v6724 = vsel %vm6343, %v5395, 0
        %v6727 = vsel %vm6343, %v5396, 0
        %v6730 = vsel %vm6343, %v5397, 0
        %v6733 = vsel %vm6343, %v5398, 0
        %v6736 = vsel %vm6343, %v5399, 0
        %v6739 = vsel %vm6343, %v5400, 0
        %v6742 = vsel %vm6343, %v5401, 0
        %v6745 = vsel %vm6343, %v5402, 0
        %v6748 = vsel %vm6343, %v5403, 0
        %v6751 = vsel %vm6343, %v5404, 0
        %v6754 = vsel %vm6343, %v5405, 0
        %v6757 = vsel %vm6343, %v5406, 0
        %v6760 = vsel %vm6343, %v5407, 0
        %v6763 = vsel %vm6343, %v5408, 0
        %v6766 = vsel %vm6440, %v5410, 0
        %6768 = vmatprep.subr.mxu0 0.0
        %6769 = vmatpush1.msra.mxu0 %v5409
        %6770 = vmatprep.subr.mxu0 0.0
        %6771 = vmatpush1.msra.mxu0 %v6766
        %6772 = vmatprep.subr.mxu0 0.0
        %6773 = vmatpush1.msra.mxu0 0.0
        %6774 = vmatprep.subr.mxu0 0.0
        %6775 = vmatpush1.msra.mxu0 0.0
        %6776 = vmatprep.subr.mxu0 0.0
        %6777 = vmatpush1.msra.mxu0 0.0
        %6778 = vmatprep.subr.mxu0 0.0
        %6779 = vmatpush1.msra.mxu0 0.0
        %6780 = vmatprep.subr.mxu0 0.0
        %6781 = vmatpush1.msra.mxu0 0.0
        %6782 = vmatprep.subr.mxu0 0.0
        %6783 = vmatpush1.msra.mxu0 0.0
        %6784 = vmatprep.subr.mxu0 0.0
        %6785 = vmatpush1.msra.mxu0 0.0
        %6786 = vmatprep.subr.mxu0 0.0
        %6787 = vmatpush1.msra.mxu0 0.0
        %6788 = vmatprep.subr.mxu0 0.0
        %6789 = vmatpush1.msra.mxu0 0.0
        %6790 = vmatprep.subr.mxu0 0.0
        %6791 = vmatpush1.msra.mxu0 0.0
        %6792 = vmatprep.subr.mxu0 0.0
        %6793 = vmatpush1.msra.mxu0 0.0
        %6794 = vmatprep.subr.mxu0 0.0
        %6795 = vmatpush1.msra.mxu0 0.0
        %6796 = vmatprep.subr.mxu0 0.0
        %6797 = vmatpush1.msra.mxu0 0.0
        %6798 = vmatprep.subr.mxu0 0.0
        %6799 = vmatpush1.msra.mxu0 0.0
        %6800 = vmatprep.subr.mxu0 0.0
        %6801 = vmatpush1.msra.mxu0 0.0
        %6802 = vmatprep.subr.mxu0 0.0
        %6803 = vmatpush1.msra.mxu0 0.0
        %6804 = vmatprep.subr.mxu0 0.0
        %6805 = vmatpush1.msra.mxu0 0.0
        %6806 = vmatprep.subr.mxu0 0.0
        %6807 = vmatpush1.msra.mxu0 0.0
        %6808 = vmatprep.subr.mxu0 0.0
        %6809 = vmatpush1.msra.mxu0 0.0
        %6810 = vmatprep.subr.mxu0 0.0
        %6811 = vmatpush1.msra.mxu0 0.0
        %6812 = vmatprep.subr.mxu0 0.0
        %6813 = vmatpush1.msra.mxu0 0.0
        %6814 = vmatprep.subr.mxu0 0.0
        %6815 = vmatpush1.msra.mxu0 0.0
        %6816 = vmatprep.subr.mxu0 0.0
        %6817 = vmatpush1.msra.mxu0 0.0
        %6818 = vmatprep.subr.mxu0 0.0
        %6819 = vmatpush1.msra.mxu0 0.0
        %6820 = vmatprep.subr.mxu0 0.0
        %6821 = vmatpush1.msra.mxu0 0.0
        %6822 = vmatprep.subr.mxu0 0.0
        %6823 = vmatpush1.msra.mxu0 0.0
        %6824 = vmatprep.subr.mxu0 0.0
        %6825 = vmatpush1.msra.mxu0 0.0
        %6826 = vmatprep.subr.mxu0 0.0
        %6827 = vmatpush1.msra.mxu0 0.0
        %6828 = vmatprep.subr.mxu0 0.0
        %6829 = vmatpush1.msra.mxu0 0.0
        %6830 = vmatprep.subr.mxu0 0.0
        %6831 = vmatpush1.msra.mxu0 0.0
        %6832 = vmatprep.mubr.f32.mxu0 0.0
        %6833 = vmatmul.mubr.f32.gmra.mrb[0].mxu0 %v6670
        %v6834 = vpop.f32.mrb[0].mxu0
        %v6835 = vadd.f32 %v6511, %v6834
        %v6836 = vpop.f32.mrb[0].mxu0
        %6837 = vmatprep.mubr.f32.mxu0 0.0
        %6838 = vmatmul.mubr.f32.gmra.mrb[0].mxu0 %v6673
        %v6839 = vpop.f32.mrb[0].mxu0
        %v6840 = vadd.f32 %v6516, %v6839
        %v6841 = vpop.f32.mrb[0].mxu0
        %6842 = vmatprep.mubr.f32.mxu0 0.0
        %6843 = vmatmul.mubr.f32.gmra.mrb[0].mxu0 %v6676
        %v6844 = vpop.f32.mrb[0].mxu0
        %v6845 = vadd.f32 %v6521, %v6844
        %v6846 = vpop.f32.mrb[0].mxu0
        %6847 = vmatprep.mubr.f32.mxu0 0.0
        %6848 = vmatmul.mubr.f32.gmra.mrb[0].mxu0 %v6679
        %v6849 = vpop.f32.mrb[0].mxu0
        %v6850 = vadd.f32 %v6526, %v6849
        %v6851 = vpop.f32.mrb[0].mxu0
        %6852 = vmatprep.mubr.f32.mxu0 0.0
        %6853 = vmatmul.mubr.f32.gmra.mrb[0].mxu0 %v6682
        %v6854 = vpop.f32.mrb[0].mxu0
        %v6855 = vadd.f32 %v6531, %v6854
        %v6856 = vpop.f32.mrb[0].mxu0
        %6857 = vmatprep.mubr.f32.mxu0 0.0
        %6858 = vmatmul.mubr.f32.gmra.mrb[0].mxu0 %v6685
        %v6859 = vpop.f32.mrb[0].mxu0
        %v6860 = vadd.f32 %v6536, %v6859
        %v6861 = vpop.f32.mrb[0].mxu0
        %6862 = vmatprep.mubr.f32.mxu0 0.0
        %6863 = vmatmul.mubr.f32.gmra.mrb[0].mxu0 %v6688
        %v6864 = vpop.f32.mrb[0].mxu0
        %v6865 = vadd.f32 %v6541, %v6864
        %v6866 = vpop.f32.mrb[0].mxu0
        %6867 = vmatprep.mubr.f32.mxu0 0.0
        %6868 = vmatmul.mubr.f32.gmra.mrb[0].mxu0 %v6691
        %v6869 = vpop.f32.mrb[0].mxu0
        %v6870 = vadd.f32 %v6546, %v6869
        %v6871 = vpop.f32.mrb[0].mxu0
        %6872 = vmatprep.mubr.f32.mxu0 0.0
        %6873 = vmatmul.mubr.f32.gmra.mrb[0].mxu0 %v6694
        %v6874 = vpop.f32.mrb[0].mxu0
        %v6875 = vadd.f32 %v6551, %v6874
        %v6876 = vpop.f32.mrb[0].mxu0
        %6877 = vmatprep.mubr.f32.mxu0 0.0
        %6878 = vmatmul.mubr.f32.gmra.mrb[0].mxu0 %v6697
        %v6879 = vpop.f32.mrb[0].mxu0
        %v6880 = vadd.f32 %v6556, %v6879
        %v6881 = vpop.f32.mrb[0].mxu0
        %6882 = vmatprep.mubr.f32.mxu0 0.0
        %6883 = vmatmul.mubr.f32.gmra.mrb[0].mxu0 %v6700
        %v6884 = vpop.f32.mrb[0].mxu0
        %v6885 = vadd.f32 %v6561, %v6884
        %v6886 = vpop.f32.mrb[0].mxu0
        %6887 = vmatprep.mubr.f32.mxu0 0.0
        %6888 = vmatmul.mubr.f32.gmra.mrb[0].mxu0 %v6703
        %v6889 = vpop.f32.mrb[0].mxu0
        %v6890 = vadd.f32 %v6566, %v6889
        %v6891 = vpop.f32.mrb[0].mxu0
        %6892 = vmatprep.mubr.f32.mxu0 0.0
        %6893 = vmatmul.mubr.f32.gmra.mrb[0].mxu0 %v6706
        %v6894 = vpop.f32.mrb[0].mxu0
        %v6895 = vadd.f32 %v6571, %v6894
        %v6896 = vpop.f32.mrb[0].mxu0
        %6897 = vmatprep.mubr.f32.mxu0 0.0
        %6898 = vmatmul.mubr.f32.gmra.mrb[0].mxu0 %v6709
        %v6899 = vpop.f32.mrb[0].mxu0
        %v6900 = vadd.f32 %v6576, %v6899
        %v6901 = vpop.f32.mrb[0].mxu0
        %6902 = vmatprep.mubr.f32.mxu0 0.0
        %6903 = vmatmul.mubr.f32.gmra.mrb[0].mxu0 %v6712
        %v6904 = vpop.f32.mrb[0].mxu0
        %v6905 = vadd.f32 %v6581, %v6904
        %v6906 = vpop.f32.mrb[0].mxu0
        %6907 = vmatprep.mubr.f32.mxu0 0.0
        %6908 = vmatmul.mubr.f32.gmra.mrb[0].mxu0 %v6715
        %v6909 = vpop.f32.mrb[0].mxu0
        %v6910 = vadd.f32 %v6586, %v6909
        %v6911 = vpop.f32.mrb[0].mxu0
        %6912 = vmatprep.mubr.f32.mxu0 0.0
        %6913 = vmatmul.mubr.f32.gmra.mrb[0].mxu0 %v6718
        %v6914 = vpop.f32.mrb[0].mxu0
        %v6915 = vadd.f32 %v6591, %v6914
        %v6916 = vpop.f32.mrb[0].mxu0
        %6917 = vmatprep.mubr.f32.mxu0 0.0
        %6918 = vmatmul.mubr.f32.gmra.mrb[0].mxu0 %v6721
        %v6919 = vpop.f32.mrb[0].mxu0
        %v6920 = vadd.f32 %v6596, %v6919
        %v6921 = vpop.f32.mrb[0].mxu0
        %6922 = vmatprep.mubr.f32.mxu0 0.0
        %6923 = vmatmul.mubr.f32.gmra.mrb[0].mxu0 %v6724
        %v6924 = vpop.f32.mrb[0].mxu0
        %v6925 = vadd.f32 %v6601, %v6924
        %v6926 = vpop.f32.mrb[0].mxu0
        %6927 = vmatprep.mubr.f32.mxu0 0.0
        %6928 = vmatmul.mubr.f32.gmra.mrb[0].mxu0 %v6727
        %v6929 = vpop.f32.mrb[0].mxu0
        %v6930 = vadd.f32 %v6606, %v6929
        %v6931 = vpop.f32.mrb[0].mxu0
        %6932 = vmatprep.mubr.f32.mxu0 0.0
        %6933 = vmatmul.mubr.f32.gmra.mrb[0].mxu0 %v6730
        %v6934 = vpop.f32.mrb[0].mxu0
        %v6935 = vadd.f32 %v6611, %v6934
        %v6936 = vpop.f32.mrb[0].mxu0
        %6937 = vmatprep.mubr.f32.mxu0 0.0
        %6938 = vmatmul.mubr.f32.gmra.mrb[0].mxu0 %v6733
        %v6939 = vpop.f32.mrb[0].mxu0
        %v6940 = vadd.f32 %v6616, %v6939
        %v6941 = vpop.f32.mrb[0].mxu0
        %6942 = vmatprep.mubr.f32.mxu0 0.0
        %6943 = vmatmul.mubr.f32.gmra.mrb[0].mxu0 %v6736
        %v6944 = vpop.f32.mrb[0].mxu0
        %v6945 = vadd.f32 %v6621, %v6944
        %v6946 = vpop.f32.mrb[0].mxu0
        %6947 = vmatprep.mubr.f32.mxu0 0.0
        %6948 = vmatmul.mubr.f32.gmra.mrb[0].mxu0 %v6739
        %v6949 = vpop.f32.mrb[0].mxu0
        %v6950 = vadd.f32 %v6626, %v6949
        %v6951 = vpop.f32.mrb[0].mxu0
        %6952 = vmatprep.mubr.f32.mxu0 0.0
        %6953 = vmatmul.mubr.f32.gmra.mrb[0].mxu0 %v6742
        %v6954 = vpop.f32.mrb[0].mxu0
        %v6955 = vadd.f32 %v6631, %v6954
        %v6956 = vpop.f32.mrb[0].mxu0
        %6957 = vmatprep.mubr.f32.mxu0 0.0
        %6958 = vmatmul.mubr.f32.gmra.mrb[0].mxu0 %v6745
        %v6959 = vpop.f32.mrb[0].mxu0
        %v6960 = vadd.f32 %v6636, %v6959
        %v6961 = vpop.f32.mrb[0].mxu0
        %6962 = vmatprep.mubr.f32.mxu0 0.0
        %6963 = vmatmul.mubr.f32.gmra.mrb[0].mxu0 %v6748
        %v6964 = vpop.f32.mrb[0].mxu0
        %v6965 = vadd.f32 %v6641, %v6964
        %v6966 = vpop.f32.mrb[0].mxu0
        %6967 = vmatprep.mubr.f32.mxu0 0.0
        %6968 = vmatmul.mubr.f32.gmra.mrb[0].mxu0 %v6751
        %v6969 = vpop.f32.mrb[0].mxu0
        %v6970 = vadd.f32 %v6646, %v6969
        %v6971 = vpop.f32.mrb[0].mxu0
        %6972 = vmatprep.mubr.f32.mxu0 0.0
        %6973 = vmatmul.mubr.f32.gmra.mrb[0].mxu0 %v6754
        %v6974 = vpop.f32.mrb[0].mxu0
        %v6975 = vadd.f32 %v6651, %v6974
        %v6976 = vpop.f32.mrb[0].mxu0
        %6977 = vmatprep.mubr.f32.mxu0 0.0
        %6978 = vmatmul.mubr.f32.gmra.mrb[0].mxu0 %v6757
        %v6979 = vpop.f32.mrb[0].mxu0
        %v6980 = vadd.f32 %v6656, %v6979
        %v6981 = vpop.f32.mrb[0].mxu0
        %6982 = vmatprep.mubr.f32.mxu0 0.0
        %6983 = vmatmul.mubr.f32.gmra.mrb[0].mxu0 %v6760
        %v6984 = vpop.f32.mrb[0].mxu0
        %v6985 = vadd.f32 %v6661, %v6984
        %v6986 = vpop.f32.mrb[0].mxu0
        %6987 = vmatprep.mubr.f32.mxu0 0.0
        %6988 = vmatmul.mubr.f32.gmra.mrb[0].mxu0 %v6763
        %v6989 = vpop.f32.mrb[0].mxu0
        %v6990 = vadd.f32 %v6666, %v6989
        %v6991 = vpop.f32.mrb[0].mxu0
        %6992 = vdwg.mxu0
        %s6993 = scalar_lea.vmem %s438, %s543
        %v6994 = vld [vmem:[%s6993] sm:$0xff]
        %v6995 = vld [vmem:[%s6993 + $0x8] sm:$0xff]
        %v6996 = vld [vmem:[%s6993 + $0x10] sm:$0xf]
        %v6997 = vld [vmem:[%s6993 + $0x18] sm:$0xff]
        %v6998 = vld [vmem:[%s6993 + $0x20] sm:$0xff]
        %v6999 = vld [vmem:[%s6993 + $0x28] sm:$0xf]
        %v7000 = vld [vmem:[%s6993 + $0x30] sm:$0xff]
        %v7001 = vld [vmem:[%s6993 + $0x38] sm:$0xff]
        %v7002 = vld [vmem:[%s6993 + $0x40] sm:$0xf]
        %v7003 = vld [vmem:[%s6993 + $0x48] sm:$0xff]
        %v7004 = vld [vmem:[%s6993 + $0x50] sm:$0xff]
        %v7005 = vld [vmem:[%s6993 + $0x58] sm:$0xf]
        %v7006 = vld [vmem:[%s6993 + $0x60] sm:$0xff]
        %v7007 = vld [vmem:[%s6993 + $0x68] sm:$0xff]
        %v7008 = vld [vmem:[%s6993 + $0x70] sm:$0xf]
        %v7009 = vld [vmem:[%s6993 + $0x78] sm:$0xff]
        %v7010 = vld [vmem:[%s6993 + $0x80] sm:$0xff]
        %v7011 = vld [vmem:[%s6993 + $0x88] sm:$0xf]
        %v7012 = vld [vmem:[%s6993 + $0x90] sm:$0xff]
        %v7013 = vld [vmem:[%s6993 + $0x98] sm:$0xff]
        %v7014 = vld [vmem:[%s6993 + $0xa0] sm:$0xf]
        %v7015 = vld [vmem:[%s6993 + $0xa8] sm:$0xff]
        %v7016 = vld [vmem:[%s6993 + $0xb0] sm:$0xff]
        %v7017 = vld [vmem:[%s6993 + $0xb8] sm:$0xf]
        %v7018 = vld [vmem:[%s6993 + $0xc0] sm:$0xff]
        %v7019 = vld [vmem:[%s6993 + $0xc8] sm:$0xff]
        %v7020 = vld [vmem:[%s6993 + $0xd0] sm:$0xf]
        %v7021 = vld [vmem:[%s6993 + $0xd8] sm:$0xff]
        %v7022 = vld [vmem:[%s6993 + $0xe0] sm:$0xff]
        %v7023 = vld [vmem:[%s6993 + $0xe8] sm:$0xf]
        %v7024 = vld [vmem:[%s6993 + $0xf0] sm:$0xff]
        %v7025 = vld [vmem:[%s6993 + $0xf8] sm:$0xff]
        %v7026 = vld [vmem:[%s6993 + $0x100] sm:$0xf]
        %v7027 = vld [vmem:[%s6993 + $0x108] sm:$0xff]
        %v7028 = vld [vmem:[%s6993 + $0x110] sm:$0xff]
        %v7029 = vld [vmem:[%s6993 + $0x118] sm:$0xf]
        %v7030 = vld [vmem:[%s6993 + $0x120] sm:$0xff]
        %v7031 = vld [vmem:[%s6993 + $0x128] sm:$0xff]
        %v7032 = vld [vmem:[%s6993 + $0x130] sm:$0xf]
        %v7033 = vld [vmem:[%s6993 + $0x138] sm:$0xff]
        %v7034 = vld [vmem:[%s6993 + $0x140] sm:$0xff]
        %v7035 = vld [vmem:[%s6993 + $0x148] sm:$0xf]
        %v7036 = vld [vmem:[%s6993 + $0x150] sm:$0xff]
        %v7037 = vld [vmem:[%s6993 + $0x158] sm:$0xff]
        %v7038 = vld [vmem:[%s6993 + $0x160] sm:$0xf]
        %v7039 = vld [vmem:[%s6993 + $0x168] sm:$0xff]
        %v7040 = vld [vmem:[%s6993 + $0x170] sm:$0xff]
        %v7041 = vld [vmem:[%s6993 + $0x178] sm:$0xf]
        %v7090 = vrot.slane %v6994, 1
        %v7091 = vrot.slane %v6995, 1
        %v7092 = vsel %vm641, %v7090, %v7091
        %v7093 = vrot.slane %v6996, 1
        %v7094 = vsel %vm641, %v7091, %v7093
        %v7095 = vrot.slane %v6997, 1
        %v7096 = vrot.slane %v6998, 1
        %v7097 = vsel %vm641, %v7095, %v7096
        %v7098 = vrot.slane %v6999, 1
        %v7099 = vsel %vm641, %v7096, %v7098
        %v7100 = vrot.slane %v7000, 1
        %v7101 = vrot.slane %v7001, 1
        %v7102 = vsel %vm641, %v7100, %v7101
        %v7103 = vrot.slane %v7002, 1
        %v7104 = vsel %vm641, %v7101, %v7103
        %v7105 = vrot.slane %v7003, 1
        %v7106 = vrot.slane %v7004, 1
        %v7107 = vsel %vm641, %v7105, %v7106
        %v7108 = vrot.slane %v7005, 1
        %v7109 = vsel %vm641, %v7106, %v7108
        %v7110 = vrot.slane %v7006, 1
        %v7111 = vrot.slane %v7007, 1
        %v7112 = vsel %vm641, %v7110, %v7111
        %v7113 = vrot.slane %v7008, 1
        %v7114 = vsel %vm641, %v7111, %v7113
        %v7115 = vrot.slane %v7009, 1
        %v7116 = vrot.slane %v7010, 1
        %v7117 = vsel %vm641, %v7115, %v7116
        %v7118 = vrot.slane %v7011, 1
        %v7119 = vsel %vm641, %v7116, %v7118
        %v7120 = vrot.slane %v7012, 1
        %v7121 = vrot.slane %v7013, 1
        %v7122 = vsel %vm641, %v7120, %v7121
        %v7123 = vrot.slane %v7014, 1
        %v7124 = vsel %vm641, %v7121, %v7123
        %v7125 = vrot.slane %v7015, 1
        %v7126 = vrot.slane %v7016, 1
        %v7127 = vsel %vm641, %v7125, %v7126
        %v7128 = vrot.slane %v7017, 1
        %v7129 = vsel %vm641, %v7126, %v7128
        %v7130 = vrot.slane %v7018, 1
        %v7131 = vrot.slane %v7019, 1
        %v7132 = vsel %vm641, %v7130, %v7131
        %v7133 = vrot.slane %v7020, 1
        %v7134 = vsel %vm641, %v7131, %v7133
        %v7135 = vrot.slane %v7021, 1
        %v7136 = vrot.slane %v7022, 1
        %v7137 = vsel %vm641, %v7135, %v7136
        %v7138 = vrot.slane %v7023, 1
        %v7139 = vsel %vm641, %v7136, %v7138
        %v7140 = vrot.slane %v7024, 1
        %v7141 = vrot.slane %v7025, 1
        %v7142 = vsel %vm641, %v7140, %v7141
        %v7143 = vrot.slane %v7026, 1
        %v7144 = vsel %vm641, %v7141, %v7143
        %v7145 = vrot.slane %v7027, 1
        %v7146 = vrot.slane %v7028, 1
        %v7147 = vsel %vm641, %v7145, %v7146
        %v7148 = vrot.slane %v7029, 1
        %v7149 = vsel %vm641, %v7146, %v7148
        %v7150 = vrot.slane %v7030, 1
        %v7151 = vrot.slane %v7031, 1
        %v7152 = vsel %vm641, %v7150, %v7151
        %v7153 = vrot.slane %v7032, 1
        %v7154 = vsel %vm641, %v7151, %v7153
        %v7155 = vrot.slane %v7033, 1
        %v7156 = vrot.slane %v7034, 1
        %v7157 = vsel %vm641, %v7155, %v7156
        %v7158 = vrot.slane %v7035, 1
        %v7159 = vsel %vm641, %v7156, %v7158
        %v7160 = vrot.slane %v7036, 1
        %v7161 = vrot.slane %v7037, 1
        %v7162 = vsel %vm641, %v7160, %v7161
        %v7163 = vrot.slane %v7038, 1
        %v7164 = vsel %vm641, %v7161, %v7163
        %v7165 = vrot.slane %v7039, 1
        %v7166 = vrot.slane %v7040, 1
        %v7167 = vsel %vm641, %v7165, %v7166
        %v7168 = vrot.slane %v7041, 1
        %v7169 = vsel %vm641, %v7166, %v7168
        %7170 = vrot.lane.b32.xlu0 %v7092, 2
        %v7171 = vpop.permute.xlu0 %7170
        %7172 = vrot.lane.b32.xlu0 %v7094, 2
        %v7173 = vpop.permute.xlu0 %7172
        %7174 = vrot.lane.b32.xlu0 %v7097, 2
        %v7175 = vpop.permute.xlu0 %7174
        %7176 = vrot.lane.b32.xlu0 %v7099, 2
        %v7177 = vpop.permute.xlu0 %7176
        %7178 = vrot.lane.b32.xlu0 %v7102, 2
        %v7179 = vpop.permute.xlu0 %7178
        %7180 = vrot.lane.b32.xlu0 %v7104, 2
        %v7181 = vpop.permute.xlu0 %7180
        %7182 = vrot.lane.b32.xlu0 %v7107, 2
        %v7183 = vpop.permute.xlu0 %7182
        %7184 = vrot.lane.b32.xlu0 %v7109, 2
        %v7185 = vpop.permute.xlu0 %7184
        %7186 = vrot.lane.b32.xlu0 %v7112, 2
        %v7187 = vpop.permute.xlu0 %7186
        %7188 = vrot.lane.b32.xlu0 %v7114, 2
        %v7189 = vpop.permute.xlu0 %7188
        %7190 = vrot.lane.b32.xlu0 %v7117, 2
        %v7191 = vpop.permute.xlu0 %7190
        %7192 = vrot.lane.b32.xlu0 %v7119, 2
        %v7193 = vpop.permute.xlu0 %7192
        %7194 = vrot.lane.b32.xlu0 %v7122, 2
        %v7195 = vpop.permute.xlu0 %7194
        %7196 = vrot.lane.b32.xlu0 %v7124, 2
        %v7197 = vpop.permute.xlu0 %7196
        %7198 = vrot.lane.b32.xlu0 %v7127, 2
        %v7199 = vpop.permute.xlu0 %7198
        %7200 = vrot.lane.b32.xlu0 %v7129, 2
        %v7201 = vpop.permute.xlu0 %7200
        %7202 = vrot.lane.b32.xlu0 %v7132, 2
        %v7203 = vpop.permute.xlu0 %7202
        %7204 = vrot.lane.b32.xlu0 %v7134, 2
        %v7205 = vpop.permute.xlu0 %7204
        %7206 = vrot.lane.b32.xlu0 %v7137, 2
        %v7207 = vpop.permute.xlu0 %7206
        %7208 = vrot.lane.b32.xlu0 %v7139, 2
        %v7209 = vpop.permute.xlu0 %7208
        %7210 = vrot.lane.b32.xlu0 %v7142, 2
        %v7211 = vpop.permute.xlu0 %7210
        %7212 = vrot.lane.b32.xlu0 %v7144, 2
        %v7213 = vpop.permute.xlu0 %7212
        %7214 = vrot.lane.b32.xlu0 %v7147, 2
        %v7215 = vpop.permute.xlu0 %7214
        %7216 = vrot.lane.b32.xlu0 %v7149, 2
        %v7217 = vpop.permute.xlu0 %7216
        %7218 = vrot.lane.b32.xlu0 %v7152, 2
        %v7219 = vpop.permute.xlu0 %7218
        %7220 = vrot.lane.b32.xlu0 %v7154, 2
        %v7221 = vpop.permute.xlu0 %7220
        %7222 = vrot.lane.b32.xlu0 %v7157, 2
        %v7223 = vpop.permute.xlu0 %7222
        %7224 = vrot.lane.b32.xlu0 %v7159, 2
        %v7225 = vpop.permute.xlu0 %7224
        %7226 = vrot.lane.b32.xlu0 %v7162, 2
        %v7227 = vpop.permute.xlu0 %7226
        %7228 = vrot.lane.b32.xlu0 %v7164, 2
        %v7229 = vpop.permute.xlu0 %7228
        %7230 = vrot.lane.b32.xlu0 %v7167, 2
        %v7231 = vpop.permute.xlu0 %7230
        %7232 = vrot.lane.b32.xlu0 %v7169, 2
        %v7233 = vpop.permute.xlu0 %7232
        %v7266 = vrot.slane %v6994, 2
        %v7267 = vrot.slane %v6995, 2
        %v7268 = vsel %vm1344, %v7266, %v7267
        %v7269 = vrot.slane %v6996, 2
        %v7270 = vsel %vm1344, %v7267, %v7269
        %v7271 = vrot.slane %v6997, 2
        %v7272 = vrot.slane %v6998, 2
        %v7273 = vsel %vm1344, %v7271, %v7272
        %v7274 = vrot.slane %v6999, 2
        %v7275 = vsel %vm1344, %v7272, %v7274
        %v7276 = vrot.slane %v7000, 2
        %v7277 = vrot.slane %v7001, 2
        %v7278 = vsel %vm1344, %v7276, %v7277
        %v7279 = vrot.slane %v7002, 2
        %v7280 = vsel %vm1344, %v7277, %v7279
        %v7281 = vrot.slane %v7003, 2
        %v7282 = vrot.slane %v7004, 2
        %v7283 = vsel %vm1344, %v7281, %v7282
        %v7284 = vrot.slane %v7005, 2
        %v7285 = vsel %vm1344, %v7282, %v7284
        %v7286 = vrot.slane %v7006, 2
        %v7287 = vrot.slane %v7007, 2
        %v7288 = vsel %vm1344, %v7286, %v7287
        %v7289 = vrot.slane %v7008, 2
        %v7290 = vsel %vm1344, %v7287, %v7289
        %v7291 = vrot.slane %v7009, 2
        %v7292 = vrot.slane %v7010, 2
        %v7293 = vsel %vm1344, %v7291, %v7292
        %v7294 = vrot.slane %v7011, 2
        %v7295 = vsel %vm1344, %v7292, %v7294
        %v7296 = vrot.slane %v7012, 2
        %v7297 = vrot.slane %v7013, 2
        %v7298 = vsel %vm1344, %v7296, %v7297
        %v7299 = vrot.slane %v7014, 2
        %v7300 = vsel %vm1344, %v7297, %v7299
        %v7301 = vrot.slane %v7015, 2
        %v7302 = vrot.slane %v7016, 2
        %v7303 = vsel %vm1344, %v7301, %v7302
        %v7304 = vrot.slane %v7017, 2
        %v7305 = vsel %vm1344, %v7302, %v7304
        %v7306 = vrot.slane %v7018, 2
        %v7307 = vrot.slane %v7019, 2
        %v7308 = vsel %vm1344, %v7306, %v7307
        %v7309 = vrot.slane %v7020, 2
        %v7310 = vsel %vm1344, %v7307, %v7309
        %v7311 = vrot.slane %v7021, 2
        %v7312 = vrot.slane %v7022, 2
        %v7313 = vsel %vm1344, %v7311, %v7312
        %v7314 = vrot.slane %v7023, 2
        %v7315 = vsel %vm1344, %v7312, %v7314
        %v7316 = vrot.slane %v7024, 2
        %v7317 = vrot.slane %v7025, 2
        %v7318 = vsel %vm1344, %v7316, %v7317
        %v7319 = vrot.slane %v7026, 2
        %v7320 = vsel %vm1344, %v7317, %v7319
        %v7321 = vrot.slane %v7027, 2
        %v7322 = vrot.slane %v7028, 2
        %v7323 = vsel %vm1344, %v7321, %v7322
        %v7324 = vrot.slane %v7029, 2
        %v7325 = vsel %vm1344, %v7322, %v7324
        %v7326 = vrot.slane %v7030, 2
        %v7327 = vrot.slane %v7031, 2
        %v7328 = vsel %vm1344, %v7326, %v7327
        %v7329 = vrot.slane %v7032, 2
        %v7330 = vsel %vm1344, %v7327, %v7329
        %v7331 = vrot.slane %v7033, 2
        %v7332 = vrot.slane %v7034, 2
        %v7333 = vsel %vm1344, %v7331, %v7332
        %v7334 = vrot.slane %v7035, 2
        %v7335 = vsel %vm1344, %v7332, %v7334
        %v7336 = vrot.slane %v7036, 2
        %v7337 = vrot.slane %v7037, 2
        %v7338 = vsel %vm1344, %v7336, %v7337
        %v7339 = vrot.slane %v7038, 2
        %v7340 = vsel %vm1344, %v7337, %v7339
        %v7341 = vrot.slane %v7039, 2
        %v7342 = vrot.slane %v7040, 2
        %v7343 = vsel %vm1344, %v7341, %v7342
        %v7344 = vrot.slane %v7041, 2
        %v7345 = vsel %vm1344, %v7342, %v7344
        %7346 = vrot.lane.b32.xlu0 %v7268, 4
        %v7347 = vpop.permute.xlu0 %7346
        %7348 = vrot.lane.b32.xlu0 %v7270, 4
        %v7349 = vpop.permute.xlu0 %7348
        %7350 = vrot.lane.b32.xlu0 %v7273, 4
        %v7351 = vpop.permute.xlu0 %7350
        %7352 = vrot.lane.b32.xlu0 %v7275, 4
        %v7353 = vpop.permute.xlu0 %7352
        %7354 = vrot.lane.b32.xlu0 %v7278, 4
        %v7355 = vpop.permute.xlu0 %7354
        %7356 = vrot.lane.b32.xlu0 %v7280, 4
        %v7357 = vpop.permute.xlu0 %7356
        %7358 = vrot.lane.b32.xlu0 %v7283, 4
        %v7359 = vpop.permute.xlu0 %7358
        %7360 = vrot.lane.b32.xlu0 %v7285, 4
        %v7361 = vpop.permute.xlu0 %7360
        %7362 = vrot.lane.b32.xlu0 %v7288, 4
        %v7363 = vpop.permute.xlu0 %7362
        %7364 = vrot.lane.b32.xlu0 %v7290, 4
        %v7365 = vpop.permute.xlu0 %7364
        %7366 = vrot.lane.b32.xlu0 %v7293, 4
        %v7367 = vpop.permute.xlu0 %7366
        %7368 = vrot.lane.b32.xlu0 %v7295, 4
        %v7369 = vpop.permute.xlu0 %7368
        %7370 = vrot.lane.b32.xlu0 %v7298, 4
        %v7371 = vpop.permute.xlu0 %7370
        %7372 = vrot.lane.b32.xlu0 %v7300, 4
        %v7373 = vpop.permute.xlu0 %7372
        %7374 = vrot.lane.b32.xlu0 %v7303, 4
        %v7375 = vpop.permute.xlu0 %7374
        %7376 = vrot.lane.b32.xlu0 %v7305, 4
        %v7377 = vpop.permute.xlu0 %7376
        %7378 = vrot.lane.b32.xlu0 %v7308, 4
        %v7379 = vpop.permute.xlu0 %7378
        %7380 = vrot.lane.b32.xlu0 %v7310, 4
        %v7381 = vpop.permute.xlu0 %7380
        %7382 = vrot.lane.b32.xlu0 %v7313, 4
        %v7383 = vpop.permute.xlu0 %7382
        %7384 = vrot.lane.b32.xlu0 %v7315, 4
        %v7385 = vpop.permute.xlu0 %7384
        %7386 = vrot.lane.b32.xlu0 %v7318, 4
        %v7387 = vpop.permute.xlu0 %7386
        %7388 = vrot.lane.b32.xlu0 %v7320, 4
        %v7389 = vpop.permute.xlu0 %7388
        %7390 = vrot.lane.b32.xlu0 %v7323, 4
        %v7391 = vpop.permute.xlu0 %7390
        %7392 = vrot.lane.b32.xlu0 %v7325, 4
        %v7393 = vpop.permute.xlu0 %7392
        %7394 = vrot.lane.b32.xlu0 %v7328, 4
        %v7395 = vpop.permute.xlu0 %7394
        %7396 = vrot.lane.b32.xlu0 %v7330, 4
        %v7397 = vpop.permute.xlu0 %7396
        %7398 = vrot.lane.b32.xlu0 %v7333, 4
        %v7399 = vpop.permute.xlu0 %7398
        %7400 = vrot.lane.b32.xlu0 %v7335, 4
        %v7401 = vpop.permute.xlu0 %7400
        %7402 = vrot.lane.b32.xlu0 %v7338, 4
        %v7403 = vpop.permute.xlu0 %7402
        %7404 = vrot.lane.b32.xlu0 %v7340, 4
        %v7405 = vpop.permute.xlu0 %7404
        %7406 = vrot.lane.b32.xlu0 %v7343, 4
        %v7407 = vpop.permute.xlu0 %7406
        %7408 = vrot.lane.b32.xlu0 %v7345, 4
        %v7409 = vpop.permute.xlu0 %7408
        %v7442 = vrot.slane %v6994, 3
        %v7443 = vrot.slane %v6995, 3
        %v7444 = vsel %vm4926, %v7442, %v7443
        %v7445 = vrot.slane %v6996, 3
        %v7446 = vsel %vm4926, %v7443, %v7445
        %v7447 = vrot.slane %v6997, 3
        %v7448 = vrot.slane %v6998, 3
        %v7449 = vsel %vm4926, %v7447, %v7448
        %v7450 = vrot.slane %v6999, 3
        %v7451 = vsel %vm4926, %v7448, %v7450
        %v7452 = vrot.slane %v7000, 3
        %v7453 = vrot.slane %v7001, 3
        %v7454 = vsel %vm4926, %v7452, %v7453
        %v7455 = vrot.slane %v7002, 3
        %v7456 = vsel %vm4926, %v7453, %v7455
        %v7457 = vrot.slane %v7003, 3
        %v7458 = vrot.slane %v7004, 3
        %v7459 = vsel %vm4926, %v7457, %v7458
        %v7460 = vrot.slane %v7005, 3
        %v7461 = vsel %vm4926, %v7458, %v7460
        %v7462 = vrot.slane %v7006, 3
        %v7463 = vrot.slane %v7007, 3
        %v7464 = vsel %vm4926, %v7462, %v7463
        %v7465 = vrot.slane %v7008, 3
        %v7466 = vsel %vm4926, %v7463, %v7465
        %v7467 = vrot.slane %v7009, 3
        %v7468 = vrot.slane %v7010, 3
        %v7469 = vsel %vm4926, %v7467, %v7468
        %v7470 = vrot.slane %v7011, 3
        %v7471 = vsel %vm4926, %v7468, %v7470
        %v7472 = vrot.slane %v7012, 3
        %v7473 = vrot.slane %v7013, 3
        %v7474 = vsel %vm4926, %v7472, %v7473
        %v7475 = vrot.slane %v7014, 3
        %v7476 = vsel %vm4926, %v7473, %v7475
        %v7477 = vrot.slane %v7015, 3
        %v7478 = vrot.slane %v7016, 3
        %v7479 = vsel %vm4926, %v7477, %v7478
        %v7480 = vrot.slane %v7017, 3
        %v7481 = vsel %vm4926, %v7478, %v7480
        %v7482 = vrot.slane %v7018, 3
        %v7483 = vrot.slane %v7019, 3
        %v7484 = vsel %vm4926, %v7482, %v7483
        %v7485 = vrot.slane %v7020, 3
        %v7486 = vsel %vm4926, %v7483, %v7485
        %v7487 = vrot.slane %v7021, 3
        %v7488 = vrot.slane %v7022, 3
        %v7489 = vsel %vm4926, %v7487, %v7488
        %v7490 = vrot.slane %v7023, 3
        %v7491 = vsel %vm4926, %v7488, %v7490
        %v7492 = vrot.slane %v7024, 3
        %v7493 = vrot.slane %v7025, 3
        %v7494 = vsel %vm4926, %v7492, %v7493
        %v7495 = vrot.slane %v7026, 3
        %v7496 = vsel %vm4926, %v7493, %v7495
        %v7497 = vrot.slane %v7027, 3
        %v7498 = vrot.slane %v7028, 3
        %v7499 = vsel %vm4926, %v7497, %v7498
        %v7500 = vrot.slane %v7029, 3
        %v7501 = vsel %vm4926, %v7498, %v7500
        %v7502 = vrot.slane %v7030, 3
        %v7503 = vrot.slane %v7031, 3
        %v7504 = vsel %vm4926, %v7502, %v7503
        %v7505 = vrot.slane %v7032, 3
        %v7506 = vsel %vm4926, %v7503, %v7505
        %v7507 = vrot.slane %v7033, 3
        %v7508 = vrot.slane %v7034, 3
        %v7509 = vsel %vm4926, %v7507, %v7508
        %v7510 = vrot.slane %v7035, 3
        %v7511 = vsel %vm4926, %v7508, %v7510
        %v7512 = vrot.slane %v7036, 3
        %v7513 = vrot.slane %v7037, 3
        %v7514 = vsel %vm4926, %v7512, %v7513
        %v7515 = vrot.slane %v7038, 3
        %v7516 = vsel %vm4926, %v7513, %v7515
        %v7517 = vrot.slane %v7039, 3
        %v7518 = vrot.slane %v7040, 3
        %v7519 = vsel %vm4926, %v7517, %v7518
        %v7520 = vrot.slane %v7041, 3
        %v7521 = vsel %vm4926, %v7518, %v7520
        %7522 = vrot.lane.b32.xlu0 %v7444, 6
        %v7523 = vpop.permute.xlu0 %7522
        %7524 = vrot.lane.b32.xlu0 %v7446, 6
        %v7525 = vpop.permute.xlu0 %7524
        %7526 = vrot.lane.b32.xlu0 %v7449, 6
        %v7527 = vpop.permute.xlu0 %7526
        %7528 = vrot.lane.b32.xlu0 %v7451, 6
        %v7529 = vpop.permute.xlu0 %7528
        %7530 = vrot.lane.b32.xlu0 %v7454, 6
        %v7531 = vpop.permute.xlu0 %7530
        %7532 = vrot.lane.b32.xlu0 %v7456, 6
        %v7533 = vpop.permute.xlu0 %7532
        %7534 = vrot.lane.b32.xlu0 %v7459, 6
        %v7535 = vpop.permute.xlu0 %7534
        %7536 = vrot.lane.b32.xlu0 %v7461, 6
        %v7537 = vpop.permute.xlu0 %7536
        %7538 = vrot.lane.b32.xlu0 %v7464, 6
        %v7539 = vpop.permute.xlu0 %7538
        %7540 = vrot.lane.b32.xlu0 %v7466, 6
        %v7541 = vpop.permute.xlu0 %7540
        %7542 = vrot.lane.b32.xlu0 %v7469, 6
        %v7543 = vpop.permute.xlu0 %7542
        %7544 = vrot.lane.b32.xlu0 %v7471, 6
        %v7545 = vpop.permute.xlu0 %7544
        %7546 = vrot.lane.b32.xlu0 %v7474, 6
        %v7547 = vpop.permute.xlu0 %7546
        %7548 = vrot.lane.b32.xlu0 %v7476, 6
        %v7549 = vpop.permute.xlu0 %7548
        %7550 = vrot.lane.b32.xlu0 %v7479, 6
        %v7551 = vpop.permute.xlu0 %7550
        %7552 = vrot.lane.b32.xlu0 %v7481, 6
        %v7553 = vpop.permute.xlu0 %7552
        %7554 = vrot.lane.b32.xlu0 %v7484, 6
        %v7555 = vpop.permute.xlu0 %7554
        %7556 = vrot.lane.b32.xlu0 %v7486, 6
        %v7557 = vpop.permute.xlu0 %7556
        %7558 = vrot.lane.b32.xlu0 %v7489, 6
        %v7559 = vpop.permute.xlu0 %7558
        %7560 = vrot.lane.b32.xlu0 %v7491, 6
        %v7561 = vpop.permute.xlu0 %7560
        %7562 = vrot.lane.b32.xlu0 %v7494, 6
        %v7563 = vpop.permute.xlu0 %7562
        %7564 = vrot.lane.b32.xlu0 %v7496, 6
        %v7565 = vpop.permute.xlu0 %7564
        %7566 = vrot.lane.b32.xlu0 %v7499, 6
        %v7567 = vpop.permute.xlu0 %7566
        %7568 = vrot.lane.b32.xlu0 %v7501, 6
        %v7569 = vpop.permute.xlu0 %7568
        %7570 = vrot.lane.b32.xlu0 %v7504, 6
        %v7571 = vpop.permute.xlu0 %7570
        %7572 = vrot.lane.b32.xlu0 %v7506, 6
        %v7573 = vpop.permute.xlu0 %7572
        %7574 = vrot.lane.b32.xlu0 %v7509, 6
        %v7575 = vpop.permute.xlu0 %7574
        %7576 = vrot.lane.b32.xlu0 %v7511, 6
        %v7577 = vpop.permute.xlu0 %7576
        %7578 = vrot.lane.b32.xlu0 %v7514, 6
        %v7579 = vpop.permute.xlu0 %7578
        %7580 = vrot.lane.b32.xlu0 %v7516, 6
        %v7581 = vpop.permute.xlu0 %7580
        %7582 = vrot.lane.b32.xlu0 %v7519, 6
        %v7583 = vpop.permute.xlu0 %7582
        %7584 = vrot.lane.b32.xlu0 %v7521, 6
        %v7585 = vpop.permute.xlu0 %7584
        %v7618 = vrot.slane %v6994, 4
        %v7619 = vrot.slane %v6995, 4
        %v7620 = vsel %vm795, %v7618, %v7619
        %v7621 = vrot.slane %v6996, 4
        %v7622 = vsel %vm795, %v7619, %v7621
        %v7623 = vrot.slane %v6997, 4
        %v7624 = vrot.slane %v6998, 4
        %v7625 = vsel %vm795, %v7623, %v7624
        %v7626 = vrot.slane %v6999, 4
        %v7627 = vsel %vm795, %v7624, %v7626
        %v7628 = vrot.slane %v7000, 4
        %v7629 = vrot.slane %v7001, 4
        %v7630 = vsel %vm795, %v7628, %v7629
        %v7631 = vrot.slane %v7002, 4
        %v7632 = vsel %vm795, %v7629, %v7631
        %v7633 = vrot.slane %v7003, 4
        %v7634 = vrot.slane %v7004, 4
        %v7635 = vsel %vm795, %v7633, %v7634
        %v7636 = vrot.slane %v7005, 4
        %v7637 = vsel %vm795, %v7634, %v7636
        %v7638 = vrot.slane %v7006, 4
        %v7639 = vrot.slane %v7007, 4
        %v7640 = vsel %vm795, %v7638, %v7639
        %v7641 = vrot.slane %v7008, 4
        %v7642 = vsel %vm795, %v7639, %v7641
        %v7643 = vrot.slane %v7009, 4
        %v7644 = vrot.slane %v7010, 4
        %v7645 = vsel %vm795, %v7643, %v7644
        %v7646 = vrot.slane %v7011, 4
        %v7647 = vsel %vm795, %v7644, %v7646
        %v7648 = vrot.slane %v7012, 4
        %v7649 = vrot.slane %v7013, 4
        %v7650 = vsel %vm795, %v7648, %v7649
        %v7651 = vrot.slane %v7014, 4
        %v7652 = vsel %vm795, %v7649, %v7651
        %v7653 = vrot.slane %v7015, 4
        %v7654 = vrot.slane %v7016, 4
        %v7655 = vsel %vm795, %v7653, %v7654
        %v7656 = vrot.slane %v7017, 4
        %v7657 = vsel %vm795, %v7654, %v7656
        %v7658 = vrot.slane %v7018, 4
        %v7659 = vrot.slane %v7019, 4
        %v7660 = vsel %vm795, %v7658, %v7659
        %v7661 = vrot.slane %v7020, 4
        %v7662 = vsel %vm795, %v7659, %v7661
        %v7663 = vrot.slane %v7021, 4
        %v7664 = vrot.slane %v7022, 4
        %v7665 = vsel %vm795, %v7663, %v7664
        %v7666 = vrot.slane %v7023, 4
        %v7667 = vsel %vm795, %v7664, %v7666
        %v7668 = vrot.slane %v7024, 4
        %v7669 = vrot.slane %v7025, 4
        %v7670 = vsel %vm795, %v7668, %v7669
        %v7671 = vrot.slane %v7026, 4
        %v7672 = vsel %vm795, %v7669, %v7671
        %v7673 = vrot.slane %v7027, 4
        %v7674 = vrot.slane %v7028, 4
        %v7675 = vsel %vm795, %v7673, %v7674
        %v7676 = vrot.slane %v7029, 4
        %v7677 = vsel %vm795, %v7674, %v7676
        %v7678 = vrot.slane %v7030, 4
        %v7679 = vrot.slane %v7031, 4
        %v7680 = vsel %vm795, %v7678, %v7679
        %v7681 = vrot.slane %v7032, 4
        %v7682 = vsel %vm795, %v7679, %v7681
        %v7683 = vrot.slane %v7033, 4
        %v7684 = vrot.slane %v7034, 4
        %v7685 = vsel %vm795, %v7683, %v7684
        %v7686 = vrot.slane %v7035, 4
        %v7687 = vsel %vm795, %v7684, %v7686
        %v7688 = vrot.slane %v7036, 4
        %v7689 = vrot.slane %v7037, 4
        %v7690 = vsel %vm795, %v7688, %v7689
        %v7691 = vrot.slane %v7038, 4
        %v7692 = vsel %vm795, %v7689, %v7691
        %v7693 = vrot.slane %v7039, 4
        %v7694 = vrot.slane %v7040, 4
        %v7695 = vsel %vm795, %v7693, %v7694
        %v7696 = vrot.slane %v7041, 4
        %v7697 = vsel %vm795, %v7694, %v7696
        %7698 = vrot.lane.b32.xlu0 %v7620, 8
        %v7699 = vpop.permute.xlu0 %7698
        %7700 = vrot.lane.b32.xlu0 %v7622, 8
        %v7701 = vpop.permute.xlu0 %7700
        %7702 = vrot.lane.b32.xlu0 %v7625, 8
        %v7703 = vpop.permute.xlu0 %7702
        %7704 = vrot.lane.b32.xlu0 %v7627, 8
        %v7705 = vpop.permute.xlu0 %7704
        %7706 = vrot.lane.b32.xlu0 %v7630, 8
        %v7707 = vpop.permute.xlu0 %7706
        %7708 = vrot.lane.b32.xlu0 %v7632, 8
        %v7709 = vpop.permute.xlu0 %7708
        %7710 = vrot.lane.b32.xlu0 %v7635, 8
        %v7711 = vpop.permute.xlu0 %7710
        %7712 = vrot.lane.b32.xlu0 %v7637, 8
        %v7713 = vpop.permute.xlu0 %7712
        %7714 = vrot.lane.b32.xlu0 %v7640, 8
        %v7715 = vpop.permute.xlu0 %7714
        %7716 = vrot.lane.b32.xlu0 %v7642, 8
        %v7717 = vpop.permute.xlu0 %7716
        %7718 = vrot.lane.b32.xlu0 %v7645, 8
        %v7719 = vpop.permute.xlu0 %7718
        %7720 = vrot.lane.b32.xlu0 %v7647, 8
        %v7721 = vpop.permute.xlu0 %7720
        %7722 = vrot.lane.b32.xlu0 %v7650, 8
        %v7723 = vpop.permute.xlu0 %7722
        %7724 = vrot.lane.b32.xlu0 %v7652, 8
        %v7725 = vpop.permute.xlu0 %7724
        %7726 = vrot.lane.b32.xlu0 %v7655, 8
        %v7727 = vpop.permute.xlu0 %7726
        %7728 = vrot.lane.b32.xlu0 %v7657, 8
        %v7729 = vpop.permute.xlu0 %7728
        %7730 = vrot.lane.b32.xlu0 %v7660, 8
        %v7731 = vpop.permute.xlu0 %7730
        %7732 = vrot.lane.b32.xlu0 %v7662, 8
        %v7733 = vpop.permute.xlu0 %7732
        %7734 = vrot.lane.b32.xlu0 %v7665, 8
        %v7735 = vpop.permute.xlu0 %7734
        %7736 = vrot.lane.b32.xlu0 %v7667, 8
        %v7737 = vpop.permute.xlu0 %7736
        %7738 = vrot.lane.b32.xlu0 %v7670, 8
        %v7739 = vpop.permute.xlu0 %7738
        %7740 = vrot.lane.b32.xlu0 %v7672, 8
        %v7741 = vpop.permute.xlu0 %7740
        %7742 = vrot.lane.b32.xlu0 %v7675, 8
        %v7743 = vpop.permute.xlu0 %7742
        %7744 = vrot.lane.b32.xlu0 %v7677, 8
        %v7745 = vpop.permute.xlu0 %7744
        %7746 = vrot.lane.b32.xlu0 %v7680, 8
        %v7747 = vpop.permute.xlu0 %7746
        %7748 = vrot.lane.b32.xlu0 %v7682, 8
        %v7749 = vpop.permute.xlu0 %7748
        %7750 = vrot.lane.b32.xlu0 %v7685, 8
        %v7751 = vpop.permute.xlu0 %7750
        %7752 = vrot.lane.b32.xlu0 %v7687, 8
        %v7753 = vpop.permute.xlu0 %7752
        %7754 = vrot.lane.b32.xlu0 %v7690, 8
        %v7755 = vpop.permute.xlu0 %7754
        %7756 = vrot.lane.b32.xlu0 %v7692, 8
        %v7757 = vpop.permute.xlu0 %7756
        %7758 = vrot.lane.b32.xlu0 %v7695, 8
        %v7759 = vpop.permute.xlu0 %7758
        %7760 = vrot.lane.b32.xlu0 %v7697, 8
        %v7761 = vpop.permute.xlu0 %7760
        %v7794 = vsel %vm5279, %v6994, %v7171
        %v7795 = vsel %vm5279, %v6995, %v7173
        %v7796 = vsel %vm5279, %v6997, %v7175
        %v7797 = vsel %vm5279, %v6998, %v7177
        %v7798 = vsel %vm5279, %v7000, %v7179
        %v7799 = vsel %vm5279, %v7001, %v7181
        %v7800 = vsel %vm5279, %v7003, %v7183
        %v7801 = vsel %vm5279, %v7004, %v7185
        %v7802 = vsel %vm5279, %v7006, %v7187
        %v7803 = vsel %vm5279, %v7007, %v7189
        %v7804 = vsel %vm5279, %v7009, %v7191
        %v7805 = vsel %vm5279, %v7010, %v7193
        %v7806 = vsel %vm5279, %v7012, %v7195
        %v7807 = vsel %vm5279, %v7013, %v7197
        %v7808 = vsel %vm5279, %v7015, %v7199
        %v7809 = vsel %vm5279, %v7016, %v7201
        %v7810 = vsel %vm5279, %v7018, %v7203
        %v7811 = vsel %vm5279, %v7019, %v7205
        %v7812 = vsel %vm5279, %v7021, %v7207
        %v7813 = vsel %vm5279, %v7022, %v7209
        %v7814 = vsel %vm5279, %v7024, %v7211
        %v7815 = vsel %vm5279, %v7025, %v7213
        %v7816 = vsel %vm5279, %v7027, %v7215
        %v7817 = vsel %vm5279, %v7028, %v7217
        %v7818 = vsel %vm5279, %v7030, %v7219
        %v7819 = vsel %vm5279, %v7031, %v7221
        %v7820 = vsel %vm5279, %v7033, %v7223
        %v7821 = vsel %vm5279, %v7034, %v7225
        %v7822 = vsel %vm5279, %v7036, %v7227
        %v7823 = vsel %vm5279, %v7037, %v7229
        %v7824 = vsel %vm5279, %v7039, %v7231
        %v7825 = vsel %vm5279, %v7040, %v7233
        %v7826 = vsel %vm730, %v7794, %v7347
        %v7827 = vsel %vm730, %v7795, %v7349
        %v7828 = vsel %vm730, %v7796, %v7351
        %v7829 = vsel %vm730, %v7797, %v7353
        %v7830 = vsel %vm730, %v7798, %v7355
        %v7831 = vsel %vm730, %v7799, %v7357
        %v7832 = vsel %vm730, %v7800, %v7359
        %v7833 = vsel %vm730, %v7801, %v7361
        %v7834 = vsel %vm730, %v7802, %v7363
        %v7835 = vsel %vm730, %v7803, %v7365
        %v7836 = vsel %vm730, %v7804, %v7367
        %v7837 = vsel %vm730, %v7805, %v7369
        %v7838 = vsel %vm730, %v7806, %v7371
        %v7839 = vsel %vm730, %v7807, %v7373
        %v7840 = vsel %vm730, %v7808, %v7375
        %v7841 = vsel %vm730, %v7809, %v7377
        %v7842 = vsel %vm730, %v7810, %v7379
        %v7843 = vsel %vm730, %v7811, %v7381
        %v7844 = vsel %vm730, %v7812, %v7383
        %v7845 = vsel %vm730, %v7813, %v7385
        %v7846 = vsel %vm730, %v7814, %v7387
        %v7847 = vsel %vm730, %v7815, %v7389
        %v7848 = vsel %vm730, %v7816, %v7391
        %v7849 = vsel %vm730, %v7817, %v7393
        %v7850 = vsel %vm730, %v7818, %v7395
        %v7851 = vsel %vm730, %v7819, %v7397
        %v7852 = vsel %vm730, %v7820, %v7399
        %v7853 = vsel %vm730, %v7821, %v7401
        %v7854 = vsel %vm730, %v7822, %v7403
        %v7855 = vsel %vm730, %v7823, %v7405
        %v7856 = vsel %vm730, %v7824, %v7407
        %v7857 = vsel %vm730, %v7825, %v7409
        %v7858 = vsel %vm5344, %v7826, %v7523
        %v7859 = vsel %vm5344, %v7827, %v7525
        %v7860 = vsel %vm5344, %v7828, %v7527
        %v7861 = vsel %vm5344, %v7829, %v7529
        %v7862 = vsel %vm5344, %v7830, %v7531
        %v7863 = vsel %vm5344, %v7831, %v7533
        %v7864 = vsel %vm5344, %v7832, %v7535
        %v7865 = vsel %vm5344, %v7833, %v7537
        %v7866 = vsel %vm5344, %v7834, %v7539
        %v7867 = vsel %vm5344, %v7835, %v7541
        %v7868 = vsel %vm5344, %v7836, %v7543
        %v7869 = vsel %vm5344, %v7837, %v7545
        %v7870 = vsel %vm5344, %v7838, %v7547
        %v7871 = vsel %vm5344, %v7839, %v7549
        %v7872 = vsel %vm5344, %v7840, %v7551
        %v7873 = vsel %vm5344, %v7841, %v7553
        %v7874 = vsel %vm5344, %v7842, %v7555
        %v7875 = vsel %vm5344, %v7843, %v7557
        %v7876 = vsel %vm5344, %v7844, %v7559
        %v7877 = vsel %vm5344, %v7845, %v7561
        %v7878 = vsel %vm5344, %v7846, %v7563
        %v7879 = vsel %vm5344, %v7847, %v7565
        %v7880 = vsel %vm5344, %v7848, %v7567
        %v7881 = vsel %vm5344, %v7849, %v7569
        %v7882 = vsel %vm5344, %v7850, %v7571
        %v7883 = vsel %vm5344, %v7851, %v7573
        %v7884 = vsel %vm5344, %v7852, %v7575
        %v7885 = vsel %vm5344, %v7853, %v7577
        %v7886 = vsel %vm5344, %v7854, %v7579
        %v7887 = vsel %vm5344, %v7855, %v7581
        %v7888 = vsel %vm5344, %v7856, %v7583
        %v7889 = vsel %vm5344, %v7857, %v7585
        %v7890 = vsel %vm2334, %v7858, %v7699
        %v7891 = vsel %vm2334, %v7859, %v7701
        %v7892 = vsel %vm2334, %v7860, %v7703
        %v7893 = vsel %vm2334, %v7861, %v7705
        %v7894 = vsel %vm2334, %v7862, %v7707
        %v7895 = vsel %vm2334, %v7863, %v7709
        %v7896 = vsel %vm2334, %v7864, %v7711
        %v7897 = vsel %vm2334, %v7865, %v7713
        %v7898 = vsel %vm2334, %v7866, %v7715
        %v7899 = vsel %vm2334, %v7867, %v7717
        %v7900 = vsel %vm2334, %v7868, %v7719
        %v7901 = vsel %vm2334, %v7869, %v7721
        %v7902 = vsel %vm2334, %v7870, %v7723
        %v7903 = vsel %vm2334, %v7871, %v7725
        %v7904 = vsel %vm2334, %v7872, %v7727
        %v7905 = vsel %vm2334, %v7873, %v7729
        %v7906 = vsel %vm2334, %v7874, %v7731
        %v7907 = vsel %vm2334, %v7875, %v7733
        %v7908 = vsel %vm2334, %v7876, %v7735
        %v7909 = vsel %vm2334, %v7877, %v7737
        %v7910 = vsel %vm2334, %v7878, %v7739
        %v7911 = vsel %vm2334, %v7879, %v7741
        %v7912 = vsel %vm2334, %v7880, %v7743
        %v7913 = vsel %vm2334, %v7881, %v7745
        %v7914 = vsel %vm2334, %v7882, %v7747
        %v7915 = vsel %vm2334, %v7883, %v7749
        %v7916 = vsel %vm2334, %v7884, %v7751
        %v7917 = vsel %vm2334, %v7885, %v7753
        %v7918 = vsel %vm2334, %v7886, %v7755
        %v7919 = vsel %vm2334, %v7887, %v7757
        %v7920 = vsel %vm2334, %v7888, %v7759
        %v7921 = vsel %vm2334, %v7889, %v7761
        %s7922 = scalar_lea.vmem %s7, 32
        %v7923 = vld [vmem:[%s7922] sm:$0xff]
        %v7924 = vld [vmem:[%s7922 + $0x8] sm:$0x3]
        %v7926 = vsel %vm6343, %v7890, 0
        %v7929 = vsel %vm6343, %v7891, 0
        %v7932 = vsel %vm6343, %v7892, 0
        %v7935 = vsel %vm6343, %v7893, 0
        %v7938 = vsel %vm6343, %v7894, 0
        %v7941 = vsel %vm6343, %v7895, 0
        %v7944 = vsel %vm6343, %v7896, 0
        %v7947 = vsel %vm6343, %v7897, 0
        %v7950 = vsel %vm6343, %v7898, 0
        %v7953 = vsel %vm6343, %v7899, 0
        %v7956 = vsel %vm6343, %v7900, 0
        %v7959 = vsel %vm6343, %v7901, 0
        %v7962 = vsel %vm6343, %v7902, 0
        %v7965 = vsel %vm6343, %v7903, 0
        %v7968 = vsel %vm6343, %v7904, 0
        %v7971 = vsel %vm6343, %v7905, 0
        %v7974 = vsel %vm6343, %v7906, 0
        %v7977 = vsel %vm6343, %v7907, 0
        %v7980 = vsel %vm6343, %v7908, 0
        %v7983 = vsel %vm6343, %v7909, 0
        %v7986 = vsel %vm6343, %v7910, 0
        %v7989 = vsel %vm6343, %v7911, 0
        %v7992 = vsel %vm6343, %v7912, 0
        %v7995 = vsel %vm6343, %v7913, 0
        %v7998 = vsel %vm6343, %v7914, 0
        %v8001 = vsel %vm6343, %v7915, 0
        %v8004 = vsel %vm6343, %v7916, 0
        %v8007 = vsel %vm6343, %v7917, 0
        %v8010 = vsel %vm6343, %v7918, 0
        %v8013 = vsel %vm6343, %v7919, 0
        %v8016 = vsel %vm6343, %v7920, 0
        %v8019 = vsel %vm6343, %v7921, 0
        %v8022 = vsel %vm6440, %v7924, 0
        %8024 = vmatprep.subr.mxu0 0.0
        %8025 = vmatpush1.msra.mxu0 %v7923
        %8026 = vmatprep.subr.mxu0 0.0
        %8027 = vmatpush1.msra.mxu0 %v8022
        %8028 = vmatprep.subr.mxu0 0.0
        %8029 = vmatpush1.msra.mxu0 0.0
        %8030 = vmatprep.subr.mxu0 0.0
        %8031 = vmatpush1.msra.mxu0 0.0
        %8032 = vmatprep.subr.mxu0 0.0
        %8033 = vmatpush1.msra.mxu0 0.0
        %8034 = vmatprep.subr.mxu0 0.0
        %8035 = vmatpush1.msra.mxu0 0.0
        %8036 = vmatprep.subr.mxu0 0.0
        %8037 = vmatpush1.msra.mxu0 0.0
        %8038 = vmatprep.subr.mxu0 0.0
        %8039 = vmatpush1.msra.mxu0 0.0
        %8040 = vmatprep.subr.mxu0 0.0
        %8041 = vmatpush1.msra.mxu0 0.0
        %8042 = vmatprep.subr.mxu0 0.0
        %8043 = vmatpush1.msra.mxu0 0.0
        %8044 = vmatprep.subr.mxu0 0.0
        %8045 = vmatpush1.msra.mxu0 0.0
        %8046 = vmatprep.subr.mxu0 0.0
        %8047 = vmatpush1.msra.mxu0 0.0
        %8048 = vmatprep.subr.mxu0 0.0
        %8049 = vmatpush1.msra.mxu0 0.0
        %8050 = vmatprep.subr.mxu0 0.0
        %8051 = vmatpush1.msra.mxu0 0.0
        %8052 = vmatprep.subr.mxu0 0.0
        %8053 = vmatpush1.msra.mxu0 0.0
        %8054 = vmatprep.subr.mxu0 0.0
        %8055 = vmatpush1.msra.mxu0 0.0
        %8056 = vmatprep.subr.mxu0 0.0
        %8057 = vmatpush1.msra.mxu0 0.0
        %8058 = vmatprep.subr.mxu0 0.0
        %8059 = vmatpush1.msra.mxu0 0.0
        %8060 = vmatprep.subr.mxu0 0.0
        %8061 = vmatpush1.msra.mxu0 0.0
        %8062 = vmatprep.subr.mxu0 0.0
        %8063 = vmatpush1.msra.mxu0 0.0
        %8064 = vmatprep.subr.mxu0 0.0
        %8065 = vmatpush1.msra.mxu0 0.0
        %8066 = vmatprep.subr.mxu0 0.0
        %8067 = vmatpush1.msra.mxu0 0.0
        %8068 = vmatprep.subr.mxu0 0.0
        %8069 = vmatpush1.msra.mxu0 0.0
        %8070 = vmatprep.subr.mxu0 0.0
        %8071 = vmatpush1.msra.mxu0 0.0
        %8072 = vmatprep.subr.mxu0 0.0
        %8073 = vmatpush1.msra.mxu0 0.0
        %8074 = vmatprep.subr.mxu0 0.0
        %8075 = vmatpush1.msra.mxu0 0.0
        %8076 = vmatprep.subr.mxu0 0.0
        %8077 = vmatpush1.msra.mxu0 0.0
        %8078 = vmatprep.subr.mxu0 0.0
        %8079 = vmatpush1.msra.mxu0 0.0
        %8080 = vmatprep.subr.mxu0 0.0
        %8081 = vmatpush1.msra.mxu0 0.0
        %8082 = vmatprep.subr.mxu0 0.0
        %8083 = vmatpush1.msra.mxu0 0.0
        %8084 = vmatprep.subr.mxu0 0.0
        %8085 = vmatpush1.msra.mxu0 0.0
        %8086 = vmatprep.subr.mxu0 0.0
        %8087 = vmatpush1.msra.mxu0 0.0
        %8088 = vmatprep.mubr.f32.mxu0 0.0
        %8089 = vmatmul.mubr.f32.gmra.mrb[0].mxu0 %v7926
        %v8090 = vpop.f32.mrb[0].mxu0
        %v8091 = vadd.f32 0.0, %v8090
        %v8092 = vpop.f32.mrb[0].mxu0
        %8093 = vmatprep.mubr.f32.mxu0 0.0
        %8094 = vmatmul.mubr.f32.gmra.mrb[0].mxu0 %v7929
        %v8095 = vpop.f32.mrb[0].mxu0
        %v8096 = vadd.f32 0.0, %v8095
        %v8097 = vpop.f32.mrb[0].mxu0
        %8098 = vmatprep.mubr.f32.mxu0 0.0
        %8099 = vmatmul.mubr.f32.gmra.mrb[0].mxu0 %v7932
        %v8100 = vpop.f32.mrb[0].mxu0
        %v8101 = vadd.f32 0.0, %v8100
        %v8102 = vpop.f32.mrb[0].mxu0
        %8103 = vmatprep.mubr.f32.mxu0 0.0
        %8104 = vmatmul.mubr.f32.gmra.mrb[0].mxu0 %v7935
        %v8105 = vpop.f32.mrb[0].mxu0
        %v8106 = vadd.f32 0.0, %v8105
        %v8107 = vpop.f32.mrb[0].mxu0
        %8108 = vmatprep.mubr.f32.mxu0 0.0
        %8109 = vmatmul.mubr.f32.gmra.mrb[0].mxu0 %v7938
        %v8110 = vpop.f32.mrb[0].mxu0
        %v8111 = vadd.f32 0.0, %v8110
        %v8112 = vpop.f32.mrb[0].mxu0
        %8113 = vmatprep.mubr.f32.mxu0 0.0
        %8114 = vmatmul.mubr.f32.gmra.mrb[0].mxu0 %v7941
        %v8115 = vpop.f32.mrb[0].mxu0
        %v8116 = vadd.f32 0.0, %v8115
        %v8117 = vpop.f32.mrb[0].mxu0
        %8118 = vmatprep.mubr.f32.mxu0 0.0
        %8119 = vmatmul.mubr.f32.gmra.mrb[0].mxu0 %v7944
        %v8120 = vpop.f32.mrb[0].mxu0
        %v8121 = vadd.f32 0.0, %v8120
        %v8122 = vpop.f32.mrb[0].mxu0
        %8123 = vmatprep.mubr.f32.mxu0 0.0
        %8124 = vmatmul.mubr.f32.gmra.mrb[0].mxu0 %v7947
        %v8125 = vpop.f32.mrb[0].mxu0
        %v8126 = vadd.f32 0.0, %v8125
        %v8127 = vpop.f32.mrb[0].mxu0
        %8128 = vmatprep.mubr.f32.mxu0 0.0
        %8129 = vmatmul.mubr.f32.gmra.mrb[0].mxu0 %v7950
        %v8130 = vpop.f32.mrb[0].mxu0
        %v8131 = vadd.f32 0.0, %v8130
        %v8132 = vpop.f32.mrb[0].mxu0
        %8133 = vmatprep.mubr.f32.mxu0 0.0
        %8134 = vmatmul.mubr.f32.gmra.mrb[0].mxu0 %v7953
        %v8135 = vpop.f32.mrb[0].mxu0
        %v8136 = vadd.f32 0.0, %v8135
        %v8137 = vpop.f32.mrb[0].mxu0
        %8138 = vmatprep.mubr.f32.mxu0 0.0
        %8139 = vmatmul.mubr.f32.gmra.mrb[0].mxu0 %v7956
        %v8140 = vpop.f32.mrb[0].mxu0
        %v8141 = vadd.f32 0.0, %v8140
        %v8142 = vpop.f32.mrb[0].mxu0
        %8143 = vmatprep.mubr.f32.mxu0 0.0
        %8144 = vmatmul.mubr.f32.gmra.mrb[0].mxu0 %v7959
        %v8145 = vpop.f32.mrb[0].mxu0
        %v8146 = vadd.f32 0.0, %v8145
        %v8147 = vpop.f32.mrb[0].mxu0
        %8148 = vmatprep.mubr.f32.mxu0 0.0
        %8149 = vmatmul.mubr.f32.gmra.mrb[0].mxu0 %v7962
        %v8150 = vpop.f32.mrb[0].mxu0
        %v8151 = vadd.f32 0.0, %v8150
        %v8152 = vpop.f32.mrb[0].mxu0
        %8153 = vmatprep.mubr.f32.mxu0 0.0
        %8154 = vmatmul.mubr.f32.gmra.mrb[0].mxu0 %v7965
        %v8155 = vpop.f32.mrb[0].mxu0
        %v8156 = vadd.f32 0.0, %v8155
        %v8157 = vpop.f32.mrb[0].mxu0
        %8158 = vmatprep.mubr.f32.mxu0 0.0
        %8159 = vmatmul.mubr.f32.gmra.mrb[0].mxu0 %v7968
        %v8160 = vpop.f32.mrb[0].mxu0
        %v8161 = vadd.f32 0.0, %v8160
        %v8162 = vpop.f32.mrb[0].mxu0
        %8163 = vmatprep.mubr.f32.mxu0 0.0
        %8164 = vmatmul.mubr.f32.gmra.mrb[0].mxu0 %v7971
        %v8165 = vpop.f32.mrb[0].mxu0
        %v8166 = vadd.f32 0.0, %v8165
        %v8167 = vpop.f32.mrb[0].mxu0
        %8168 = vmatprep.mubr.f32.mxu0 0.0
        %8169 = vmatmul.mubr.f32.gmra.mrb[0].mxu0 %v7974
        %v8170 = vpop.f32.mrb[0].mxu0
        %v8171 = vadd.f32 0.0, %v8170
        %v8172 = vpop.f32.mrb[0].mxu0
        %8173 = vmatprep.mubr.f32.mxu0 0.0
        %8174 = vmatmul.mubr.f32.gmra.mrb[0].mxu0 %v7977
        %v8175 = vpop.f32.mrb[0].mxu0
        %v8176 = vadd.f32 0.0, %v8175
        %v8177 = vpop.f32.mrb[0].mxu0
        %8178 = vmatprep.mubr.f32.mxu0 0.0
        %8179 = vmatmul.mubr.f32.gmra.mrb[0].mxu0 %v7980
        %v8180 = vpop.f32.mrb[0].mxu0
        %v8181 = vadd.f32 0.0, %v8180
        %v8182 = vpop.f32.mrb[0].mxu0
        %8183 = vmatprep.mubr.f32.mxu0 0.0
        %8184 = vmatmul.mubr.f32.gmra.mrb[0].mxu0 %v7983
        %v8185 = vpop.f32.mrb[0].mxu0
        %v8186 = vadd.f32 0.0, %v8185
        %v8187 = vpop.f32.mrb[0].mxu0
        %8188 = vmatprep.mubr.f32.mxu0 0.0
        %8189 = vmatmul.mubr.f32.gmra.mrb[0].mxu0 %v7986
        %v8190 = vpop.f32.mrb[0].mxu0
        %v8191 = vadd.f32 0.0, %v8190
        %v8192 = vpop.f32.mrb[0].mxu0
        %8193 = vmatprep.mubr.f32.mxu0 0.0
        %8194 = vmatmul.mubr.f32.gmra.mrb[0].mxu0 %v7989
        %v8195 = vpop.f32.mrb[0].mxu0
        %v8196 = vadd.f32 0.0, %v8195
        %v8197 = vpop.f32.mrb[0].mxu0
        %8198 = vmatprep.mubr.f32.mxu0 0.0
        %8199 = vmatmul.mubr.f32.gmra.mrb[0].mxu0 %v7992
        %v8200 = vpop.f32.mrb[0].mxu0
        %v8201 = vadd.f32 0.0, %v8200
        %v8202 = vpop.f32.mrb[0].mxu0
        %8203 = vmatprep.mubr.f32.mxu0 0.0
        %8204 = vmatmul.mubr.f32.gmra.mrb[0].mxu0 %v7995
        %v8205 = vpop.f32.mrb[0].mxu0
        %v8206 = vadd.f32 0.0, %v8205
        %v8207 = vpop.f32.mrb[0].mxu0
        %8208 = vmatprep.mubr.f32.mxu0 0.0
        %8209 = vmatmul.mubr.f32.gmra.mrb[0].mxu0 %v7998
        %v8210 = vpop.f32.mrb[0].mxu0
        %v8211 = vadd.f32 0.0, %v8210
        %v8212 = vpop.f32.mrb[0].mxu0
        %8213 = vmatprep.mubr.f32.mxu0 0.0
        %8214 = vmatmul.mubr.f32.gmra.mrb[0].mxu0 %v8001
        %v8215 = vpop.f32.mrb[0].mxu0
        %v8216 = vadd.f32 0.0, %v8215
        %v8217 = vpop.f32.mrb[0].mxu0
        %8218 = vmatprep.mubr.f32.mxu0 0.0
        %8219 = vmatmul.mubr.f32.gmra.mrb[0].mxu0 %v8004
        %v8220 = vpop.f32.mrb[0].mxu0
        %v8221 = vadd.f32 0.0, %v8220
        %v8222 = vpop.f32.mrb[0].mxu0
        %8223 = vmatprep.mubr.f32.mxu0 0.0
        %8224 = vmatmul.mubr.f32.gmra.mrb[0].mxu0 %v8007
        %v8225 = vpop.f32.mrb[0].mxu0
        %v8226 = vadd.f32 0.0, %v8225
        %v8227 = vpop.f32.mrb[0].mxu0
        %8228 = vmatprep.mubr.f32.mxu0 0.0
        %8229 = vmatmul.mubr.f32.gmra.mrb[0].mxu0 %v8010
        %v8230 = vpop.f32.mrb[0].mxu0
        %v8231 = vadd.f32 0.0, %v8230
        %v8232 = vpop.f32.mrb[0].mxu0
        %8233 = vmatprep.mubr.f32.mxu0 0.0
        %8234 = vmatmul.mubr.f32.gmra.mrb[0].mxu0 %v8013
        %v8235 = vpop.f32.mrb[0].mxu0
        %v8236 = vadd.f32 0.0, %v8235
        %v8237 = vpop.f32.mrb[0].mxu0
        %8238 = vmatprep.mubr.f32.mxu0 0.0
        %8239 = vmatmul.mubr.f32.gmra.mrb[0].mxu0 %v8016
        %v8240 = vpop.f32.mrb[0].mxu0
        %v8241 = vadd.f32 0.0, %v8240
        %v8242 = vpop.f32.mrb[0].mxu0
        %8243 = vmatprep.mubr.f32.mxu0 0.0
        %8244 = vmatmul.mubr.f32.gmra.mrb[0].mxu0 %v8019
        %v8245 = vpop.f32.mrb[0].mxu0
        %v8246 = vadd.f32 0.0, %v8245
        %v8247 = vpop.f32.mrb[0].mxu0
        %8248 = vdwg.mxu0
        %v8249 = vadd.f32 %v6835, %v8091
        %v8250 = vadd.f32 %v6840, %v8096
        %v8251 = vadd.f32 %v6845, %v8101
        %v8252 = vadd.f32 %v6850, %v8106
        %v8253 = vadd.f32 %v6855, %v8111
        %v8254 = vadd.f32 %v6860, %v8116
        %v8255 = vadd.f32 %v6865, %v8121
        %v8256 = vadd.f32 %v6870, %v8126
        %v8257 = vadd.f32 %v6875, %v8131
        %v8258 = vadd.f32 %v6880, %v8136
        %v8259 = vadd.f32 %v6885, %v8141
        %v8260 = vadd.f32 %v6890, %v8146
        %v8261 = vadd.f32 %v6895, %v8151
        %v8262 = vadd.f32 %v6900, %v8156
        %v8263 = vadd.f32 %v6905, %v8161
        %v8264 = vadd.f32 %v6910, %v8166
        %v8265 = vadd.f32 %v6915, %v8171
        %v8266 = vadd.f32 %v6920, %v8176
        %v8267 = vadd.f32 %v6925, %v8181
        %v8268 = vadd.f32 %v6930, %v8186
        %v8269 = vadd.f32 %v6935, %v8191
        %v8270 = vadd.f32 %v6940, %v8196
        %v8271 = vadd.f32 %v6945, %v8201
        %v8272 = vadd.f32 %v6950, %v8206
        %v8273 = vadd.f32 %v6955, %v8211
        %v8274 = vadd.f32 %v6960, %v8216
        %v8275 = vadd.f32 %v6965, %v8221
        %v8276 = vadd.f32 %v6970, %v8226
        %v8277 = vadd.f32 %v6975, %v8231
        %v8278 = vadd.f32 %v6980, %v8236
        %v8279 = vadd.f32 %v6985, %v8241
        %v8280 = vadd.f32 %v6990, %v8246
        %s8281 = sadd.s32 %s440, 3
        %s8282 = smul.u32 %s8281, 24
        %s8283 = scalar_lea.vmem %s438, %s8282
        %v8284 = vld [vmem:[%s8283] sm:$0xff]
        %v8285 = vld [vmem:[%s8283 + $0x8] sm:$0xff]
        %v8286 = vld [vmem:[%s8283 + $0x10] sm:$0xf]
        %v8287 = vld [vmem:[%s8283 + $0x18] sm:$0xff]
        %v8288 = vld [vmem:[%s8283 + $0x20] sm:$0xff]
        %v8289 = vld [vmem:[%s8283 + $0x28] sm:$0xf]
        %v8290 = vld [vmem:[%s8283 + $0x30] sm:$0xff]
        %v8291 = vld [vmem:[%s8283 + $0x38] sm:$0xff]
        %v8292 = vld [vmem:[%s8283 + $0x40] sm:$0xf]
        %v8293 = vld [vmem:[%s8283 + $0x48] sm:$0xff]
        %v8294 = vld [vmem:[%s8283 + $0x50] sm:$0xff]
        %v8295 = vld [vmem:[%s8283 + $0x58] sm:$0xf]
        %v8296 = vld [vmem:[%s8283 + $0x60] sm:$0xff]
        %v8297 = vld [vmem:[%s8283 + $0x68] sm:$0xff]
        %v8298 = vld [vmem:[%s8283 + $0x70] sm:$0xf]
        %v8299 = vld [vmem:[%s8283 + $0x78] sm:$0xff]
        %v8300 = vld [vmem:[%s8283 + $0x80] sm:$0xff]
        %v8301 = vld [vmem:[%s8283 + $0x88] sm:$0xf]
        %v8302 = vld [vmem:[%s8283 + $0x90] sm:$0xff]
        %v8303 = vld [vmem:[%s8283 + $0x98] sm:$0xff]
        %v8304 = vld [vmem:[%s8283 + $0xa0] sm:$0xf]
        %v8305 = vld [vmem:[%s8283 + $0xa8] sm:$0xff]
        %v8306 = vld [vmem:[%s8283 + $0xb0] sm:$0xff]
        %v8307 = vld [vmem:[%s8283 + $0xb8] sm:$0xf]
        %v8308 = vld [vmem:[%s8283 + $0xc0] sm:$0xff]
        %v8309 = vld [vmem:[%s8283 + $0xc8] sm:$0xff]
        %v8310 = vld [vmem:[%s8283 + $0xd0] sm:$0xf]
        %v8311 = vld [vmem:[%s8283 + $0xd8] sm:$0xff]
        %v8312 = vld [vmem:[%s8283 + $0xe0] sm:$0xff]
        %v8313 = vld [vmem:[%s8283 + $0xe8] sm:$0xf]
        %v8314 = vld [vmem:[%s8283 + $0xf0] sm:$0xff]
        %v8315 = vld [vmem:[%s8283 + $0xf8] sm:$0xff]
        %v8316 = vld [vmem:[%s8283 + $0x100] sm:$0xf]
        %v8317 = vld [vmem:[%s8283 + $0x108] sm:$0xff]
        %v8318 = vld [vmem:[%s8283 + $0x110] sm:$0xff]
        %v8319 = vld [vmem:[%s8283 + $0x118] sm:$0xf]
        %v8320 = vld [vmem:[%s8283 + $0x120] sm:$0xff]
        %v8321 = vld [vmem:[%s8283 + $0x128] sm:$0xff]
        %v8322 = vld [vmem:[%s8283 + $0x130] sm:$0xf]
        %v8323 = vld [vmem:[%s8283 + $0x138] sm:$0xff]
        %v8324 = vld [vmem:[%s8283 + $0x140] sm:$0xff]
        %v8325 = vld [vmem:[%s8283 + $0x148] sm:$0xf]
        %v8326 = vld [vmem:[%s8283 + $0x150] sm:$0xff]
        %v8327 = vld [vmem:[%s8283 + $0x158] sm:$0xff]
        %v8328 = vld [vmem:[%s8283 + $0x160] sm:$0xf]
        %v8329 = vld [vmem:[%s8283 + $0x168] sm:$0xff]
        %v8330 = vld [vmem:[%s8283 + $0x170] sm:$0xff]
        %v8331 = vld [vmem:[%s8283 + $0x178] sm:$0xf]
        %v8380 = vrot.slane %v8284, 1
        %v8381 = vrot.slane %v8285, 1
        %v8382 = vsel %vm641, %v8380, %v8381
        %v8383 = vrot.slane %v8286, 1
        %v8384 = vsel %vm641, %v8381, %v8383
        %v8385 = vrot.slane %v8287, 1
        %v8386 = vrot.slane %v8288, 1
        %v8387 = vsel %vm641, %v8385, %v8386
        %v8388 = vrot.slane %v8289, 1
        %v8389 = vsel %vm641, %v8386, %v8388
        %v8390 = vrot.slane %v8290, 1
        %v8391 = vrot.slane %v8291, 1
        %v8392 = vsel %vm641, %v8390, %v8391
        %v8393 = vrot.slane %v8292, 1
        %v8394 = vsel %vm641, %v8391, %v8393
        %v8395 = vrot.slane %v8293, 1
        %v8396 = vrot.slane %v8294, 1
        %v8397 = vsel %vm641, %v8395, %v8396
        %v8398 = vrot.slane %v8295, 1
        %v8399 = vsel %vm641, %v8396, %v8398
        %v8400 = vrot.slane %v8296, 1
        %v8401 = vrot.slane %v8297, 1
        %v8402 = vsel %vm641, %v8400, %v8401
        %v8403 = vrot.slane %v8298, 1
        %v8404 = vsel %vm641, %v8401, %v8403
        %v8405 = vrot.slane %v8299, 1
        %v8406 = vrot.slane %v8300, 1
        %v8407 = vsel %vm641, %v8405, %v8406
        %v8408 = vrot.slane %v8301, 1
        %v8409 = vsel %vm641, %v8406, %v8408
        %v8410 = vrot.slane %v8302, 1
        %v8411 = vrot.slane %v8303, 1
        %v8412 = vsel %vm641, %v8410, %v8411
        %v8413 = vrot.slane %v8304, 1
        %v8414 = vsel %vm641, %v8411, %v8413
        %v8415 = vrot.slane %v8305, 1
        %v8416 = vrot.slane %v8306, 1
        %v8417 = vsel %vm641, %v8415, %v8416
        %v8418 = vrot.slane %v8307, 1
        %v8419 = vsel %vm641, %v8416, %v8418
        %v8420 = vrot.slane %v8308, 1
        %v8421 = vrot.slane %v8309, 1
        %v8422 = vsel %vm641, %v8420, %v8421
        %v8423 = vrot.slane %v8310, 1
        %v8424 = vsel %vm641, %v8421, %v8423
        %v8425 = vrot.slane %v8311, 1
        %v8426 = vrot.slane %v8312, 1
        %v8427 = vsel %vm641, %v8425, %v8426
        %v8428 = vrot.slane %v8313, 1
        %v8429 = vsel %vm641, %v8426, %v8428
        %v8430 = vrot.slane %v8314, 1
        %v8431 = vrot.slane %v8315, 1
        %v8432 = vsel %vm641, %v8430, %v8431
        %v8433 = vrot.slane %v8316, 1
        %v8434 = vsel %vm641, %v8431, %v8433
        %v8435 = vrot.slane %v8317, 1
        %v8436 = vrot.slane %v8318, 1
        %v8437 = vsel %vm641, %v8435, %v8436
        %v8438 = vrot.slane %v8319, 1
        %v8439 = vsel %vm641, %v8436, %v8438
        %v8440 = vrot.slane %v8320, 1
        %v8441 = vrot.slane %v8321, 1
        %v8442 = vsel %vm641, %v8440, %v8441
        %v8443 = vrot.slane %v8322, 1
        %v8444 = vsel %vm641, %v8441, %v8443
        %v8445 = vrot.slane %v8323, 1
        %v8446 = vrot.slane %v8324, 1
        %v8447 = vsel %vm641, %v8445, %v8446
        %v8448 = vrot.slane %v8325, 1
        %v8449 = vsel %vm641, %v8446, %v8448
        %v8450 = vrot.slane %v8326, 1
        %v8451 = vrot.slane %v8327, 1
        %v8452 = vsel %vm641, %v8450, %v8451
        %v8453 = vrot.slane %v8328, 1
        %v8454 = vsel %vm641, %v8451, %v8453
        %v8455 = vrot.slane %v8329, 1
        %v8456 = vrot.slane %v8330, 1
        %v8457 = vsel %vm641, %v8455, %v8456
        %v8458 = vrot.slane %v8331, 1
        %v8459 = vsel %vm641, %v8456, %v8458
        %8460 = vrot.lane.b32.xlu0 %v8382, 2
        %v8461 = vpop.permute.xlu0 %8460
        %8462 = vrot.lane.b32.xlu0 %v8384, 2
        %v8463 = vpop.permute.xlu0 %8462
        %8464 = vrot.lane.b32.xlu0 %v8387, 2
        %v8465 = vpop.permute.xlu0 %8464
        %8466 = vrot.lane.b32.xlu0 %v8389, 2
        %v8467 = vpop.permute.xlu0 %8466
        %8468 = vrot.lane.b32.xlu0 %v8392, 2
        %v8469 = vpop.permute.xlu0 %8468
        %8470 = vrot.lane.b32.xlu0 %v8394, 2
        %v8471 = vpop.permute.xlu0 %8470
        %8472 = vrot.lane.b32.xlu0 %v8397, 2
        %v8473 = vpop.permute.xlu0 %8472
        %8474 = vrot.lane.b32.xlu0 %v8399, 2
        %v8475 = vpop.permute.xlu0 %8474
        %8476 = vrot.lane.b32.xlu0 %v8402, 2
        %v8477 = vpop.permute.xlu0 %8476
        %8478 = vrot.lane.b32.xlu0 %v8404, 2
        %v8479 = vpop.permute.xlu0 %8478
        %8480 = vrot.lane.b32.xlu0 %v8407, 2
        %v8481 = vpop.permute.xlu0 %8480
        %8482 = vrot.lane.b32.xlu0 %v8409, 2
        %v8483 = vpop.permute.xlu0 %8482
        %8484 = vrot.lane.b32.xlu0 %v8412, 2
        %v8485 = vpop.permute.xlu0 %8484
        %8486 = vrot.lane.b32.xlu0 %v8414, 2
        %v8487 = vpop.permute.xlu0 %8486
        %8488 = vrot.lane.b32.xlu0 %v8417, 2
        %v8489 = vpop.permute.xlu0 %8488
        %8490 = vrot.lane.b32.xlu0 %v8419, 2
        %v8491 = vpop.permute.xlu0 %8490
        %8492 = vrot.lane.b32.xlu0 %v8422, 2
        %v8493 = vpop.permute.xlu0 %8492
        %8494 = vrot.lane.b32.xlu0 %v8424, 2
        %v8495 = vpop.permute.xlu0 %8494
        %8496 = vrot.lane.b32.xlu0 %v8427, 2
        %v8497 = vpop.permute.xlu0 %8496
        %8498 = vrot.lane.b32.xlu0 %v8429, 2
        %v8499 = vpop.permute.xlu0 %8498
        %8500 = vrot.lane.b32.xlu0 %v8432, 2
        %v8501 = vpop.permute.xlu0 %8500
        %8502 = vrot.lane.b32.xlu0 %v8434, 2
        %v8503 = vpop.permute.xlu0 %8502
        %8504 = vrot.lane.b32.xlu0 %v8437, 2
        %v8505 = vpop.permute.xlu0 %8504
        %8506 = vrot.lane.b32.xlu0 %v8439, 2
        %v8507 = vpop.permute.xlu0 %8506
        %8508 = vrot.lane.b32.xlu0 %v8442, 2
        %v8509 = vpop.permute.xlu0 %8508
        %8510 = vrot.lane.b32.xlu0 %v8444, 2
        %v8511 = vpop.permute.xlu0 %8510
        %8512 = vrot.lane.b32.xlu0 %v8447, 2
        %v8513 = vpop.permute.xlu0 %8512
        %8514 = vrot.lane.b32.xlu0 %v8449, 2
        %v8515 = vpop.permute.xlu0 %8514
        %8516 = vrot.lane.b32.xlu0 %v8452, 2
        %v8517 = vpop.permute.xlu0 %8516
        %8518 = vrot.lane.b32.xlu0 %v8454, 2
        %v8519 = vpop.permute.xlu0 %8518
        %8520 = vrot.lane.b32.xlu0 %v8457, 2
        %v8521 = vpop.permute.xlu0 %8520
        %8522 = vrot.lane.b32.xlu0 %v8459, 2
        %v8523 = vpop.permute.xlu0 %8522
        %v8556 = vrot.slane %v8284, 2
        %v8557 = vrot.slane %v8285, 2
        %v8558 = vsel %vm1344, %v8556, %v8557
        %v8559 = vrot.slane %v8286, 2
        %v8560 = vsel %vm1344, %v8557, %v8559
        %v8561 = vrot.slane %v8287, 2
        %v8562 = vrot.slane %v8288, 2
        %v8563 = vsel %vm1344, %v8561, %v8562
        %v8564 = vrot.slane %v8289, 2
        %v8565 = vsel %vm1344, %v8562, %v8564
        %v8566 = vrot.slane %v8290, 2
        %v8567 = vrot.slane %v8291, 2
        %v8568 = vsel %vm1344, %v8566, %v8567
        %v8569 = vrot.slane %v8292, 2
        %v8570 = vsel %vm1344, %v8567, %v8569
        %v8571 = vrot.slane %v8293, 2
        %v8572 = vrot.slane %v8294, 2
        %v8573 = vsel %vm1344, %v8571, %v8572
        %v8574 = vrot.slane %v8295, 2
        %v8575 = vsel %vm1344, %v8572, %v8574
        %v8576 = vrot.slane %v8296, 2
        %v8577 = vrot.slane %v8297, 2
        %v8578 = vsel %vm1344, %v8576, %v8577
        %v8579 = vrot.slane %v8298, 2
        %v8580 = vsel %vm1344, %v8577, %v8579
        %v8581 = vrot.slane %v8299, 2
        %v8582 = vrot.slane %v8300, 2
        %v8583 = vsel %vm1344, %v8581, %v8582
        %v8584 = vrot.slane %v8301, 2
        %v8585 = vsel %vm1344, %v8582, %v8584
        %v8586 = vrot.slane %v8302, 2
        %v8587 = vrot.slane %v8303, 2
        %v8588 = vsel %vm1344, %v8586, %v8587
        %v8589 = vrot.slane %v8304, 2
        %v8590 = vsel %vm1344, %v8587, %v8589
        %v8591 = vrot.slane %v8305, 2
        %v8592 = vrot.slane %v8306, 2
        %v8593 = vsel %vm1344, %v8591, %v8592
        %v8594 = vrot.slane %v8307, 2
        %v8595 = vsel %vm1344, %v8592, %v8594
        %v8596 = vrot.slane %v8308, 2
        %v8597 = vrot.slane %v8309, 2
        %v8598 = vsel %vm1344, %v8596, %v8597
        %v8599 = vrot.slane %v8310, 2
        %v8600 = vsel %vm1344, %v8597, %v8599
        %v8601 = vrot.slane %v8311, 2
        %v8602 = vrot.slane %v8312, 2
        %v8603 = vsel %vm1344, %v8601, %v8602
        %v8604 = vrot.slane %v8313, 2
        %v8605 = vsel %vm1344, %v8602, %v8604
        %v8606 = vrot.slane %v8314, 2
        %v8607 = vrot.slane %v8315, 2
        %v8608 = vsel %vm1344, %v8606, %v8607
        %v8609 = vrot.slane %v8316, 2
        %v8610 = vsel %vm1344, %v8607, %v8609
        %v8611 = vrot.slane %v8317, 2
        %v8612 = vrot.slane %v8318, 2
        %v8613 = vsel %vm1344, %v8611, %v8612
        %v8614 = vrot.slane %v8319, 2
        %v8615 = vsel %vm1344, %v8612, %v8614
        %v8616 = vrot.slane %v8320, 2
        %v8617 = vrot.slane %v8321, 2
        %v8618 = vsel %vm1344, %v8616, %v8617
        %v8619 = vrot.slane %v8322, 2
        %v8620 = vsel %vm1344, %v8617, %v8619
        %v8621 = vrot.slane %v8323, 2
        %v8622 = vrot.slane %v8324, 2
        %v8623 = vsel %vm1344, %v8621, %v8622
        %v8624 = vrot.slane %v8325, 2
        %v8625 = vsel %vm1344, %v8622, %v8624
        %v8626 = vrot.slane %v8326, 2
        %v8627 = vrot.slane %v8327, 2
        %v8628 = vsel %vm1344, %v8626, %v8627
        %v8629 = vrot.slane %v8328, 2
        %v8630 = vsel %vm1344, %v8627, %v8629
        %v8631 = vrot.slane %v8329, 2
        %v8632 = vrot.slane %v8330, 2
        %v8633 = vsel %vm1344, %v8631, %v8632
        %v8634 = vrot.slane %v8331, 2
        %v8635 = vsel %vm1344, %v8632, %v8634
        %8636 = vrot.lane.b32.xlu0 %v8558, 4
        %v8637 = vpop.permute.xlu0 %8636
        %8638 = vrot.lane.b32.xlu0 %v8560, 4
        %v8639 = vpop.permute.xlu0 %8638
        %8640 = vrot.lane.b32.xlu0 %v8563, 4
        %v8641 = vpop.permute.xlu0 %8640
        %8642 = vrot.lane.b32.xlu0 %v8565, 4
        %v8643 = vpop.permute.xlu0 %8642
        %8644 = vrot.lane.b32.xlu0 %v8568, 4
        %v8645 = vpop.permute.xlu0 %8644
        %8646 = vrot.lane.b32.xlu0 %v8570, 4
        %v8647 = vpop.permute.xlu0 %8646
        %8648 = vrot.lane.b32.xlu0 %v8573, 4
        %v8649 = vpop.permute.xlu0 %8648
        %8650 = vrot.lane.b32.xlu0 %v8575, 4
        %v8651 = vpop.permute.xlu0 %8650
        %8652 = vrot.lane.b32.xlu0 %v8578, 4
        %v8653 = vpop.permute.xlu0 %8652
        %8654 = vrot.lane.b32.xlu0 %v8580, 4
        %v8655 = vpop.permute.xlu0 %8654
        %8656 = vrot.lane.b32.xlu0 %v8583, 4
        %v8657 = vpop.permute.xlu0 %8656
        %8658 = vrot.lane.b32.xlu0 %v8585, 4
        %v8659 = vpop.permute.xlu0 %8658
        %8660 = vrot.lane.b32.xlu0 %v8588, 4
        %v8661 = vpop.permute.xlu0 %8660
        %8662 = vrot.lane.b32.xlu0 %v8590, 4
        %v8663 = vpop.permute.xlu0 %8662
        %8664 = vrot.lane.b32.xlu0 %v8593, 4
        %v8665 = vpop.permute.xlu0 %8664
        %8666 = vrot.lane.b32.xlu0 %v8595, 4
        %v8667 = vpop.permute.xlu0 %8666
        %8668 = vrot.lane.b32.xlu0 %v8598, 4
        %v8669 = vpop.permute.xlu0 %8668
        %8670 = vrot.lane.b32.xlu0 %v8600, 4
        %v8671 = vpop.permute.xlu0 %8670
        %8672 = vrot.lane.b32.xlu0 %v8603, 4
        %v8673 = vpop.permute.xlu0 %8672
        %8674 = vrot.lane.b32.xlu0 %v8605, 4
        %v8675 = vpop.permute.xlu0 %8674
        %8676 = vrot.lane.b32.xlu0 %v8608, 4
        %v8677 = vpop.permute.xlu0 %8676
        %8678 = vrot.lane.b32.xlu0 %v8610, 4
        %v8679 = vpop.permute.xlu0 %8678
        %8680 = vrot.lane.b32.xlu0 %v8613, 4
        %v8681 = vpop.permute.xlu0 %8680
        %8682 = vrot.lane.b32.xlu0 %v8615, 4
        %v8683 = vpop.permute.xlu0 %8682
        %8684 = vrot.lane.b32.xlu0 %v8618, 4
        %v8685 = vpop.permute.xlu0 %8684
        %8686 = vrot.lane.b32.xlu0 %v8620, 4
        %v8687 = vpop.permute.xlu0 %8686
        %8688 = vrot.lane.b32.xlu0 %v8623, 4
        %v8689 = vpop.permute.xlu0 %8688
        %8690 = vrot.lane.b32.xlu0 %v8625, 4
        %v8691 = vpop.permute.xlu0 %8690
        %8692 = vrot.lane.b32.xlu0 %v8628, 4
        %v8693 = vpop.permute.xlu0 %8692
        %8694 = vrot.lane.b32.xlu0 %v8630, 4
        %v8695 = vpop.permute.xlu0 %8694
        %8696 = vrot.lane.b32.xlu0 %v8633, 4
        %v8697 = vpop.permute.xlu0 %8696
        %8698 = vrot.lane.b32.xlu0 %v8635, 4
        %v8699 = vpop.permute.xlu0 %8698
        %v8732 = vrot.slane %v8284, 3
        %v8733 = vrot.slane %v8285, 3
        %v8734 = vsel %vm4926, %v8732, %v8733
        %v8735 = vrot.slane %v8286, 3
        %v8736 = vsel %vm4926, %v8733, %v8735
        %v8737 = vrot.slane %v8287, 3
        %v8738 = vrot.slane %v8288, 3
        %v8739 = vsel %vm4926, %v8737, %v8738
        %v8740 = vrot.slane %v8289, 3
        %v8741 = vsel %vm4926, %v8738, %v8740
        %v8742 = vrot.slane %v8290, 3
        %v8743 = vrot.slane %v8291, 3
        %v8744 = vsel %vm4926, %v8742, %v8743
        %v8745 = vrot.slane %v8292, 3
        %v8746 = vsel %vm4926, %v8743, %v8745
        %v8747 = vrot.slane %v8293, 3
        %v8748 = vrot.slane %v8294, 3
        %v8749 = vsel %vm4926, %v8747, %v8748
        %v8750 = vrot.slane %v8295, 3
        %v8751 = vsel %vm4926, %v8748, %v8750
        %v8752 = vrot.slane %v8296, 3
        %v8753 = vrot.slane %v8297, 3
        %v8754 = vsel %vm4926, %v8752, %v8753
        %v8755 = vrot.slane %v8298, 3
        %v8756 = vsel %vm4926, %v8753, %v8755
        %v8757 = vrot.slane %v8299, 3
        %v8758 = vrot.slane %v8300, 3
        %v8759 = vsel %vm4926, %v8757, %v8758
        %v8760 = vrot.slane %v8301, 3
        %v8761 = vsel %vm4926, %v8758, %v8760
        %v8762 = vrot.slane %v8302, 3
        %v8763 = vrot.slane %v8303, 3
        %v8764 = vsel %vm4926, %v8762, %v8763
        %v8765 = vrot.slane %v8304, 3
        %v8766 = vsel %vm4926, %v8763, %v8765
        %v8767 = vrot.slane %v8305, 3
        %v8768 = vrot.slane %v8306, 3
        %v8769 = vsel %vm4926, %v8767, %v8768
        %v8770 = vrot.slane %v8307, 3
        %v8771 = vsel %vm4926, %v8768, %v8770
        %v8772 = vrot.slane %v8308, 3
        %v8773 = vrot.slane %v8309, 3
        %v8774 = vsel %vm4926, %v8772, %v8773
        %v8775 = vrot.slane %v8310, 3
        %v8776 = vsel %vm4926, %v8773, %v8775
        %v8777 = vrot.slane %v8311, 3
        %v8778 = vrot.slane %v8312, 3
        %v8779 = vsel %vm4926, %v8777, %v8778
        %v8780 = vrot.slane %v8313, 3
        %v8781 = vsel %vm4926, %v8778, %v8780
        %v8782 = vrot.slane %v8314, 3
        %v8783 = vrot.slane %v8315, 3
        %v8784 = vsel %vm4926, %v8782, %v8783
        %v8785 = vrot.slane %v8316, 3
        %v8786 = vsel %vm4926, %v8783, %v8785
        %v8787 = vrot.slane %v8317, 3
        %v8788 = vrot.slane %v8318, 3
        %v8789 = vsel %vm4926, %v8787, %v8788
        %v8790 = vrot.slane %v8319, 3
        %v8791 = vsel %vm4926, %v8788, %v8790
        %v8792 = vrot.slane %v8320, 3
        %v8793 = vrot.slane %v8321, 3
        %v8794 = vsel %vm4926, %v8792, %v8793
        %v8795 = vrot.slane %v8322, 3
        %v8796 = vsel %vm4926, %v8793, %v8795
        %v8797 = vrot.slane %v8323, 3
        %v8798 = vrot.slane %v8324, 3
        %v8799 = vsel %vm4926, %v8797, %v8798
        %v8800 = vrot.slane %v8325, 3
        %v8801 = vsel %vm4926, %v8798, %v8800
        %v8802 = vrot.slane %v8326, 3
        %v8803 = vrot.slane %v8327, 3
        %v8804 = vsel %vm4926, %v8802, %v8803
        %v8805 = vrot.slane %v8328, 3
        %v8806 = vsel %vm4926, %v8803, %v8805
        %v8807 = vrot.slane %v8329, 3
        %v8808 = vrot.slane %v8330, 3
        %v8809 = vsel %vm4926, %v8807, %v8808
        %v8810 = vrot.slane %v8331, 3
        %v8811 = vsel %vm4926, %v8808, %v8810
        %8812 = vrot.lane.b32.xlu0 %v8734, 6
        %v8813 = vpop.permute.xlu0 %8812
        %8814 = vrot.lane.b32.xlu0 %v8736, 6
        %v8815 = vpop.permute.xlu0 %8814
        %8816 = vrot.lane.b32.xlu0 %v8739, 6
        %v8817 = vpop.permute.xlu0 %8816
        %8818 = vrot.lane.b32.xlu0 %v8741, 6
        %v8819 = vpop.permute.xlu0 %8818
        %8820 = vrot.lane.b32.xlu0 %v8744, 6
        %v8821 = vpop.permute.xlu0 %8820
        %8822 = vrot.lane.b32.xlu0 %v8746, 6
        %v8823 = vpop.permute.xlu0 %8822
        %8824 = vrot.lane.b32.xlu0 %v8749, 6
        %v8825 = vpop.permute.xlu0 %8824
        %8826 = vrot.lane.b32.xlu0 %v8751, 6
        %v8827 = vpop.permute.xlu0 %8826
        %8828 = vrot.lane.b32.xlu0 %v8754, 6
        %v8829 = vpop.permute.xlu0 %8828
        %8830 = vrot.lane.b32.xlu0 %v8756, 6
        %v8831 = vpop.permute.xlu0 %8830
        %8832 = vrot.lane.b32.xlu0 %v8759, 6
        %v8833 = vpop.permute.xlu0 %8832
        %8834 = vrot.lane.b32.xlu0 %v8761, 6
        %v8835 = vpop.permute.xlu0 %8834
        %8836 = vrot.lane.b32.xlu0 %v8764, 6
        %v8837 = vpop.permute.xlu0 %8836
        %8838 = vrot.lane.b32.xlu0 %v8766, 6
        %v8839 = vpop.permute.xlu0 %8838
        %8840 = vrot.lane.b32.xlu0 %v8769, 6
        %v8841 = vpop.permute.xlu0 %8840
        %8842 = vrot.lane.b32.xlu0 %v8771, 6
        %v8843 = vpop.permute.xlu0 %8842
        %8844 = vrot.lane.b32.xlu0 %v8774, 6
        %v8845 = vpop.permute.xlu0 %8844
        %8846 = vrot.lane.b32.xlu0 %v8776, 6
        %v8847 = vpop.permute.xlu0 %8846
        %8848 = vrot.lane.b32.xlu0 %v8779, 6
        %v8849 = vpop.permute.xlu0 %8848
        %8850 = vrot.lane.b32.xlu0 %v8781, 6
        %v8851 = vpop.permute.xlu0 %8850
        %8852 = vrot.lane.b32.xlu0 %v8784, 6
        %v8853 = vpop.permute.xlu0 %8852
        %8854 = vrot.lane.b32.xlu0 %v8786, 6
        %v8855 = vpop.permute.xlu0 %8854
        %8856 = vrot.lane.b32.xlu0 %v8789, 6
        %v8857 = vpop.permute.xlu0 %8856
        %8858 = vrot.lane.b32.xlu0 %v8791, 6
        %v8859 = vpop.permute.xlu0 %8858
        %8860 = vrot.lane.b32.xlu0 %v8794, 6
        %v8861 = vpop.permute.xlu0 %8860
        %8862 = vrot.lane.b32.xlu0 %v8796, 6
        %v8863 = vpop.permute.xlu0 %8862
        %8864 = vrot.lane.b32.xlu0 %v8799, 6
        %v8865 = vpop.permute.xlu0 %8864
        %8866 = vrot.lane.b32.xlu0 %v8801, 6
        %v8867 = vpop.permute.xlu0 %8866
        %8868 = vrot.lane.b32.xlu0 %v8804, 6
        %v8869 = vpop.permute.xlu0 %8868
        %8870 = vrot.lane.b32.xlu0 %v8806, 6
        %v8871 = vpop.permute.xlu0 %8870
        %8872 = vrot.lane.b32.xlu0 %v8809, 6
        %v8873 = vpop.permute.xlu0 %8872
        %8874 = vrot.lane.b32.xlu0 %v8811, 6
        %v8875 = vpop.permute.xlu0 %8874
        %v8908 = vrot.slane %v8284, 4
        %v8909 = vrot.slane %v8285, 4
        %v8910 = vsel %vm795, %v8908, %v8909
        %v8911 = vrot.slane %v8286, 4
        %v8912 = vsel %vm795, %v8909, %v8911
        %v8913 = vrot.slane %v8287, 4
        %v8914 = vrot.slane %v8288, 4
        %v8915 = vsel %vm795, %v8913, %v8914
        %v8916 = vrot.slane %v8289, 4
        %v8917 = vsel %vm795, %v8914, %v8916
        %v8918 = vrot.slane %v8290, 4
        %v8919 = vrot.slane %v8291, 4
        %v8920 = vsel %vm795, %v8918, %v8919
        %v8921 = vrot.slane %v8292, 4
        %v8922 = vsel %vm795, %v8919, %v8921
        %v8923 = vrot.slane %v8293, 4
        %v8924 = vrot.slane %v8294, 4
        %v8925 = vsel %vm795, %v8923, %v8924
        %v8926 = vrot.slane %v8295, 4
        %v8927 = vsel %vm795, %v8924, %v8926
        %v8928 = vrot.slane %v8296, 4
        %v8929 = vrot.slane %v8297, 4
        %v8930 = vsel %vm795, %v8928, %v8929
        %v8931 = vrot.slane %v8298, 4
        %v8932 = vsel %vm795, %v8929, %v8931
        %v8933 = vrot.slane %v8299, 4
        %v8934 = vrot.slane %v8300, 4
        %v8935 = vsel %vm795, %v8933, %v8934
        %v8936 = vrot.slane %v8301, 4
        %v8937 = vsel %vm795, %v8934, %v8936
        %v8938 = vrot.slane %v8302, 4
        %v8939 = vrot.slane %v8303, 4
        %v8940 = vsel %vm795, %v8938, %v8939
        %v8941 = vrot.slane %v8304, 4
        %v8942 = vsel %vm795, %v8939, %v8941
        %v8943 = vrot.slane %v8305, 4
        %v8944 = vrot.slane %v8306, 4
        %v8945 = vsel %vm795, %v8943, %v8944
        %v8946 = vrot.slane %v8307, 4
        %v8947 = vsel %vm795, %v8944, %v8946
        %v8948 = vrot.slane %v8308, 4
        %v8949 = vrot.slane %v8309, 4
        %v8950 = vsel %vm795, %v8948, %v8949
        %v8951 = vrot.slane %v8310, 4
        %v8952 = vsel %vm795, %v8949, %v8951
        %v8953 = vrot.slane %v8311, 4
        %v8954 = vrot.slane %v8312, 4
        %v8955 = vsel %vm795, %v8953, %v8954
        %v8956 = vrot.slane %v8313, 4
        %v8957 = vsel %vm795, %v8954, %v8956
        %v8958 = vrot.slane %v8314, 4
        %v8959 = vrot.slane %v8315, 4
        %v8960 = vsel %vm795, %v8958, %v8959
        %v8961 = vrot.slane %v8316, 4
        %v8962 = vsel %vm795, %v8959, %v8961
        %v8963 = vrot.slane %v8317, 4
        %v8964 = vrot.slane %v8318, 4
        %v8965 = vsel %vm795, %v8963, %v8964
        %v8966 = vrot.slane %v8319, 4
        %v8967 = vsel %vm795, %v8964, %v8966
        %v8968 = vrot.slane %v8320, 4
        %v8969 = vrot.slane %v8321, 4
        %v8970 = vsel %vm795, %v8968, %v8969
        %v8971 = vrot.slane %v8322, 4
        %v8972 = vsel %vm795, %v8969, %v8971
        %v8973 = vrot.slane %v8323, 4
        %v8974 = vrot.slane %v8324, 4
        %v8975 = vsel %vm795, %v8973, %v8974
        %v8976 = vrot.slane %v8325, 4
        %v8977 = vsel %vm795, %v8974, %v8976
        %v8978 = vrot.slane %v8326, 4
        %v8979 = vrot.slane %v8327, 4
        %v8980 = vsel %vm795, %v8978, %v8979
        %v8981 = vrot.slane %v8328, 4
        %v8982 = vsel %vm795, %v8979, %v8981
        %v8983 = vrot.slane %v8329, 4
        %v8984 = vrot.slane %v8330, 4
        %v8985 = vsel %vm795, %v8983, %v8984
        %v8986 = vrot.slane %v8331, 4
        %v8987 = vsel %vm795, %v8984, %v8986
        %8988 = vrot.lane.b32.xlu0 %v8910, 8
        %v8989 = vpop.permute.xlu0 %8988
        %8990 = vrot.lane.b32.xlu0 %v8912, 8
        %v8991 = vpop.permute.xlu0 %8990
        %8992 = vrot.lane.b32.xlu0 %v8915, 8
        %v8993 = vpop.permute.xlu0 %8992
        %8994 = vrot.lane.b32.xlu0 %v8917, 8
        %v8995 = vpop.permute.xlu0 %8994
        %8996 = vrot.lane.b32.xlu0 %v8920, 8
        %v8997 = vpop.permute.xlu0 %8996
        %8998 = vrot.lane.b32.xlu0 %v8922, 8
        %v8999 = vpop.permute.xlu0 %8998
        %9000 = vrot.lane.b32.xlu0 %v8925, 8
        %v9001 = vpop.permute.xlu0 %9000
        %9002 = vrot.lane.b32.xlu0 %v8927, 8
        %v9003 = vpop.permute.xlu0 %9002
        %9004 = vrot.lane.b32.xlu0 %v8930, 8
        %v9005 = vpop.permute.xlu0 %9004
        %9006 = vrot.lane.b32.xlu0 %v8932, 8
        %v9007 = vpop.permute.xlu0 %9006
        %9008 = vrot.lane.b32.xlu0 %v8935, 8
        %v9009 = vpop.permute.xlu0 %9008
        %9010 = vrot.lane.b32.xlu0 %v8937, 8
        %v9011 = vpop.permute.xlu0 %9010
        %9012 = vrot.lane.b32.xlu0 %v8940, 8
        %v9013 = vpop.permute.xlu0 %9012
        %9014 = vrot.lane.b32.xlu0 %v8942, 8
        %v9015 = vpop.permute.xlu0 %9014
        %9016 = vrot.lane.b32.xlu0 %v8945, 8
        %v9017 = vpop.permute.xlu0 %9016
        %9018 = vrot.lane.b32.xlu0 %v8947, 8
        %v9019 = vpop.permute.xlu0 %9018
        %9020 = vrot.lane.b32.xlu0 %v8950, 8
        %v9021 = vpop.permute.xlu0 %9020
        %9022 = vrot.lane.b32.xlu0 %v8952, 8
        %v9023 = vpop.permute.xlu0 %9022
        %9024 = vrot.lane.b32.xlu0 %v8955, 8
        %v9025 = vpop.permute.xlu0 %9024
        %9026 = vrot.lane.b32.xlu0 %v8957, 8
        %v9027 = vpop.permute.xlu0 %9026
        %9028 = vrot.lane.b32.xlu0 %v8960, 8
        %v9029 = vpop.permute.xlu0 %9028
        %9030 = vrot.lane.b32.xlu0 %v8962, 8
        %v9031 = vpop.permute.xlu0 %9030
        %9032 = vrot.lane.b32.xlu0 %v8965, 8
        %v9033 = vpop.permute.xlu0 %9032
        %9034 = vrot.lane.b32.xlu0 %v8967, 8
        %v9035 = vpop.permute.xlu0 %9034
        %9036 = vrot.lane.b32.xlu0 %v8970, 8
        %v9037 = vpop.permute.xlu0 %9036
        %9038 = vrot.lane.b32.xlu0 %v8972, 8
        %v9039 = vpop.permute.xlu0 %9038
        %9040 = vrot.lane.b32.xlu0 %v8975, 8
        %v9041 = vpop.permute.xlu0 %9040
        %9042 = vrot.lane.b32.xlu0 %v8977, 8
        %v9043 = vpop.permute.xlu0 %9042
        %9044 = vrot.lane.b32.xlu0 %v8980, 8
        %v9045 = vpop.permute.xlu0 %9044
        %9046 = vrot.lane.b32.xlu0 %v8982, 8
        %v9047 = vpop.permute.xlu0 %9046
        %9048 = vrot.lane.b32.xlu0 %v8985, 8
        %v9049 = vpop.permute.xlu0 %9048
        %9050 = vrot.lane.b32.xlu0 %v8987, 8
        %v9051 = vpop.permute.xlu0 %9050
        %v9084 = vsel %vm5279, %v8284, %v8461
        %v9085 = vsel %vm5279, %v8285, %v8463
        %v9086 = vsel %vm5279, %v8287, %v8465
        %v9087 = vsel %vm5279, %v8288, %v8467
        %v9088 = vsel %vm5279, %v8290, %v8469
        %v9089 = vsel %vm5279, %v8291, %v8471
        %v9090 = vsel %vm5279, %v8293, %v8473
        %v9091 = vsel %vm5279, %v8294, %v8475
        %v9092 = vsel %vm5279, %v8296, %v8477
        %v9093 = vsel %vm5279, %v8297, %v8479
        %v9094 = vsel %vm5279, %v8299, %v8481
        %v9095 = vsel %vm5279, %v8300, %v8483
        %v9096 = vsel %vm5279, %v8302, %v8485
        %v9097 = vsel %vm5279, %v8303, %v8487
        %v9098 = vsel %vm5279, %v8305, %v8489
        %v9099 = vsel %vm5279, %v8306, %v8491
        %v9100 = vsel %vm5279, %v8308, %v8493
        %v9101 = vsel %vm5279, %v8309, %v8495
        %v9102 = vsel %vm5279, %v8311, %v8497
        %v9103 = vsel %vm5279, %v8312, %v8499
        %v9104 = vsel %vm5279, %v8314, %v8501
        %v9105 = vsel %vm5279, %v8315, %v8503
        %v9106 = vsel %vm5279, %v8317, %v8505
        %v9107 = vsel %vm5279, %v8318, %v8507
        %v9108 = vsel %vm5279, %v8320, %v8509
        %v9109 = vsel %vm5279, %v8321, %v8511
        %v9110 = vsel %vm5279, %v8323, %v8513
        %v9111 = vsel %vm5279, %v8324, %v8515
        %v9112 = vsel %vm5279, %v8326, %v8517
        %v9113 = vsel %vm5279, %v8327, %v8519
        %v9114 = vsel %vm5279, %v8329, %v8521
        %v9115 = vsel %vm5279, %v8330, %v8523
        %v9116 = vsel %vm730, %v9084, %v8637
        %v9117 = vsel %vm730, %v9085, %v8639
        %v9118 = vsel %vm730, %v9086, %v8641
        %v9119 = vsel %vm730, %v9087, %v8643
        %v9120 = vsel %vm730, %v9088, %v8645
        %v9121 = vsel %vm730, %v9089, %v8647
        %v9122 = vsel %vm730, %v9090, %v8649
        %v9123 = vsel %vm730, %v9091, %v8651
        %v9124 = vsel %vm730, %v9092, %v8653
        %v9125 = vsel %vm730, %v9093, %v8655
        %v9126 = vsel %vm730, %v9094, %v8657
        %v9127 = vsel %vm730, %v9095, %v8659
        %v9128 = vsel %vm730, %v9096, %v8661
        %v9129 = vsel %vm730, %v9097, %v8663
        %v9130 = vsel %vm730, %v9098, %v8665
        %v9131 = vsel %vm730, %v9099, %v8667
        %v9132 = vsel %vm730, %v9100, %v8669
        %v9133 = vsel %vm730, %v9101, %v8671
        %v9134 = vsel %vm730, %v9102, %v8673
        %v9135 = vsel %vm730, %v9103, %v8675
        %v9136 = vsel %vm730, %v9104, %v8677
        %v9137 = vsel %vm730, %v9105, %v8679
        %v9138 = vsel %vm730, %v9106, %v8681
        %v9139 = vsel %vm730, %v9107, %v8683
        %v9140 = vsel %vm730, %v9108, %v8685
        %v9141 = vsel %vm730, %v9109, %v8687
        %v9142 = vsel %vm730, %v9110, %v8689
        %v9143 = vsel %vm730, %v9111, %v8691
        %v9144 = vsel %vm730, %v9112, %v8693
        %v9145 = vsel %vm730, %v9113, %v8695
        %v9146 = vsel %vm730, %v9114, %v8697
        %v9147 = vsel %vm730, %v9115, %v8699
        %v9148 = vsel %vm5344, %v9116, %v8813
        %v9149 = vsel %vm5344, %v9117, %v8815
        %v9150 = vsel %vm5344, %v9118, %v8817
        %v9151 = vsel %vm5344, %v9119, %v8819
        %v9152 = vsel %vm5344, %v9120, %v8821
        %v9153 = vsel %vm5344, %v9121, %v8823
        %v9154 = vsel %vm5344, %v9122, %v8825
        %v9155 = vsel %vm5344, %v9123, %v8827
        %v9156 = vsel %vm5344, %v9124, %v8829
        %v9157 = vsel %vm5344, %v9125, %v8831
        %v9158 = vsel %vm5344, %v9126, %v8833
        %v9159 = vsel %vm5344, %v9127, %v8835
        %v9160 = vsel %vm5344, %v9128, %v8837
        %v9161 = vsel %vm5344, %v9129, %v8839
        %v9162 = vsel %vm5344, %v9130, %v8841
        %v9163 = vsel %vm5344, %v9131, %v8843
        %v9164 = vsel %vm5344, %v9132, %v8845
        %v9165 = vsel %vm5344, %v9133, %v8847
        %v9166 = vsel %vm5344, %v9134, %v8849
        %v9167 = vsel %vm5344, %v9135, %v8851
        %v9168 = vsel %vm5344, %v9136, %v8853
        %v9169 = vsel %vm5344, %v9137, %v8855
        %v9170 = vsel %vm5344, %v9138, %v8857
        %v9171 = vsel %vm5344, %v9139, %v8859
        %v9172 = vsel %vm5344, %v9140, %v8861
        %v9173 = vsel %vm5344, %v9141, %v8863
        %v9174 = vsel %vm5344, %v9142, %v8865
        %v9175 = vsel %vm5344, %v9143, %v8867
        %v9176 = vsel %vm5344, %v9144, %v8869
        %v9177 = vsel %vm5344, %v9145, %v8871
        %v9178 = vsel %vm5344, %v9146, %v8873
        %v9179 = vsel %vm5344, %v9147, %v8875
        %v9180 = vsel %vm2334, %v9148, %v8989
        %v9181 = vsel %vm2334, %v9149, %v8991
        %v9182 = vsel %vm2334, %v9150, %v8993
        %v9183 = vsel %vm2334, %v9151, %v8995
        %v9184 = vsel %vm2334, %v9152, %v8997
        %v9185 = vsel %vm2334, %v9153, %v8999
        %v9186 = vsel %vm2334, %v9154, %v9001
        %v9187 = vsel %vm2334, %v9155, %v9003
        %v9188 = vsel %vm2334, %v9156, %v9005
        %v9189 = vsel %vm2334, %v9157, %v9007
        %v9190 = vsel %vm2334, %v9158, %v9009
        %v9191 = vsel %vm2334, %v9159, %v9011
        %v9192 = vsel %vm2334, %v9160, %v9013
        %v9193 = vsel %vm2334, %v9161, %v9015
        %v9194 = vsel %vm2334, %v9162, %v9017
        %v9195 = vsel %vm2334, %v9163, %v9019
        %v9196 = vsel %vm2334, %v9164, %v9021
        %v9197 = vsel %vm2334, %v9165, %v9023
        %v9198 = vsel %vm2334, %v9166, %v9025
        %v9199 = vsel %vm2334, %v9167, %v9027
        %v9200 = vsel %vm2334, %v9168, %v9029
        %v9201 = vsel %vm2334, %v9169, %v9031
        %v9202 = vsel %vm2334, %v9170, %v9033
        %v9203 = vsel %vm2334, %v9171, %v9035
        %v9204 = vsel %vm2334, %v9172, %v9037
        %v9205 = vsel %vm2334, %v9173, %v9039
        %v9206 = vsel %vm2334, %v9174, %v9041
        %v9207 = vsel %vm2334, %v9175, %v9043
        %v9208 = vsel %vm2334, %v9176, %v9045
        %v9209 = vsel %vm2334, %v9177, %v9047
        %v9210 = vsel %vm2334, %v9178, %v9049
        %v9211 = vsel %vm2334, %v9179, %v9051
        %s9212 = scalar_lea.vmem %s7, 48
        %v9213 = vld [vmem:[%s9212] sm:$0xff]
        %v9214 = vld [vmem:[%s9212 + $0x8] sm:$0x3]
        %v9216 = vsel %vm6343, %v9180, 0
        %v9219 = vsel %vm6343, %v9181, 0
        %v9222 = vsel %vm6343, %v9182, 0
        %v9225 = vsel %vm6343, %v9183, 0
        %v9228 = vsel %vm6343, %v9184, 0
        %v9231 = vsel %vm6343, %v9185, 0
        %v9234 = vsel %vm6343, %v9186, 0
        %v9237 = vsel %vm6343, %v9187, 0
        %v9240 = vsel %vm6343, %v9188, 0
        %v9243 = vsel %vm6343, %v9189, 0
        %v9246 = vsel %vm6343, %v9190, 0
        %v9249 = vsel %vm6343, %v9191, 0
        %v9252 = vsel %vm6343, %v9192, 0
        %v9255 = vsel %vm6343, %v9193, 0
        %v9258 = vsel %vm6343, %v9194, 0
        %v9261 = vsel %vm6343, %v9195, 0
        %v9264 = vsel %vm6343, %v9196, 0
        %v9267 = vsel %vm6343, %v9197, 0
        %v9270 = vsel %vm6343, %v9198, 0
        %v9273 = vsel %vm6343, %v9199, 0
        %v9276 = vsel %vm6343, %v9200, 0
        %v9279 = vsel %vm6343, %v9201, 0
        %v9282 = vsel %vm6343, %v9202, 0
        %v9285 = vsel %vm6343, %v9203, 0
        %v9288 = vsel %vm6343, %v9204, 0
        %v9291 = vsel %vm6343, %v9205, 0
        %v9294 = vsel %vm6343, %v9206, 0
        %v9297 = vsel %vm6343, %v9207, 0
        %v9300 = vsel %vm6343, %v9208, 0
        %v9303 = vsel %vm6343, %v9209, 0
        %v9306 = vsel %vm6343, %v9210, 0
        %v9309 = vsel %vm6343, %v9211, 0
        %v9312 = vsel %vm6440, %v9214, 0
        %9314 = vmatprep.subr.mxu0 0.0
        %9315 = vmatpush1.msra.mxu0 %v9213
        %9316 = vmatprep.subr.mxu0 0.0
        %9317 = vmatpush1.msra.mxu0 %v9312
        %9318 = vmatprep.subr.mxu0 0.0
        %9319 = vmatpush1.msra.mxu0 0.0
        %9320 = vmatprep.subr.mxu0 0.0
        %9321 = vmatpush1.msra.mxu0 0.0
        %9322 = vmatprep.subr.mxu0 0.0
        %9323 = vmatpush1.msra.mxu0 0.0
        %9324 = vmatprep.subr.mxu0 0.0
        %9325 = vmatpush1.msra.mxu0 0.0
        %9326 = vmatprep.subr.mxu0 0.0
        %9327 = vmatpush1.msra.mxu0 0.0
        %9328 = vmatprep.subr.mxu0 0.0
        %9329 = vmatpush1.msra.mxu0 0.0
        %9330 = vmatprep.subr.mxu0 0.0
        %9331 = vmatpush1.msra.mxu0 0.0
        %9332 = vmatprep.subr.mxu0 0.0
        %9333 = vmatpush1.msra.mxu0 0.0
        %9334 = vmatprep.subr.mxu0 0.0
        %9335 = vmatpush1.msra.mxu0 0.0
        %9336 = vmatprep.subr.mxu0 0.0
        %9337 = vmatpush1.msra.mxu0 0.0
        %9338 = vmatprep.subr.mxu0 0.0
        %9339 = vmatpush1.msra.mxu0 0.0
        %9340 = vmatprep.subr.mxu0 0.0
        %9341 = vmatpush1.msra.mxu0 0.0
        %9342 = vmatprep.subr.mxu0 0.0
        %9343 = vmatpush1.msra.mxu0 0.0
        %9344 = vmatprep.subr.mxu0 0.0
        %9345 = vmatpush1.msra.mxu0 0.0
        %9346 = vmatprep.subr.mxu0 0.0
        %9347 = vmatpush1.msra.mxu0 0.0
        %9348 = vmatprep.subr.mxu0 0.0
        %9349 = vmatpush1.msra.mxu0 0.0
        %9350 = vmatprep.subr.mxu0 0.0
        %9351 = vmatpush1.msra.mxu0 0.0
        %9352 = vmatprep.subr.mxu0 0.0
        %9353 = vmatpush1.msra.mxu0 0.0
        %9354 = vmatprep.subr.mxu0 0.0
        %9355 = vmatpush1.msra.mxu0 0.0
        %9356 = vmatprep.subr.mxu0 0.0
        %9357 = vmatpush1.msra.mxu0 0.0
        %9358 = vmatprep.subr.mxu0 0.0
        %9359 = vmatpush1.msra.mxu0 0.0
        %9360 = vmatprep.subr.mxu0 0.0
        %9361 = vmatpush1.msra.mxu0 0.0
        %9362 = vmatprep.subr.mxu0 0.0
        %9363 = vmatpush1.msra.mxu0 0.0
        %9364 = vmatprep.subr.mxu0 0.0
        %9365 = vmatpush1.msra.mxu0 0.0
        %9366 = vmatprep.subr.mxu0 0.0
        %9367 = vmatpush1.msra.mxu0 0.0
        %9368 = vmatprep.subr.mxu0 0.0
        %9369 = vmatpush1.msra.mxu0 0.0
        %9370 = vmatprep.subr.mxu0 0.0
        %9371 = vmatpush1.msra.mxu0 0.0
        %9372 = vmatprep.subr.mxu0 0.0
        %9373 = vmatpush1.msra.mxu0 0.0
        %9374 = vmatprep.subr.mxu0 0.0
        %9375 = vmatpush1.msra.mxu0 0.0
        %9376 = vmatprep.subr.mxu0 0.0
        %9377 = vmatpush1.msra.mxu0 0.0
        %9378 = vmatprep.mubr.f32.mxu0 0.0
        %9379 = vmatmul.mubr.f32.gmra.mrb[0].mxu0 %v9216
        %v9380 = vpop.f32.mrb[0].mxu0
        %v9381 = vadd.f32 0.0, %v9380
        %v9382 = vpop.f32.mrb[0].mxu0
        %9383 = vmatprep.mubr.f32.mxu0 0.0
        %9384 = vmatmul.mubr.f32.gmra.mrb[0].mxu0 %v9219
        %v9385 = vpop.f32.mrb[0].mxu0
        %v9386 = vadd.f32 0.0, %v9385
        %v9387 = vpop.f32.mrb[0].mxu0
        %9388 = vmatprep.mubr.f32.mxu0 0.0
        %9389 = vmatmul.mubr.f32.gmra.mrb[0].mxu0 %v9222
        %v9390 = vpop.f32.mrb[0].mxu0
        %v9391 = vadd.f32 0.0, %v9390
        %v9392 = vpop.f32.mrb[0].mxu0
        %9393 = vmatprep.mubr.f32.mxu0 0.0
        %9394 = vmatmul.mubr.f32.gmra.mrb[0].mxu0 %v9225
        %v9395 = vpop.f32.mrb[0].mxu0
        %v9396 = vadd.f32 0.0, %v9395
        %v9397 = vpop.f32.mrb[0].mxu0
        %9398 = vmatprep.mubr.f32.mxu0 0.0
        %9399 = vmatmul.mubr.f32.gmra.mrb[0].mxu0 %v9228
        %v9400 = vpop.f32.mrb[0].mxu0
        %v9401 = vadd.f32 0.0, %v9400
        %v9402 = vpop.f32.mrb[0].mxu0
        %9403 = vmatprep.mubr.f32.mxu0 0.0
        %9404 = vmatmul.mubr.f32.gmra.mrb[0].mxu0 %v9231
        %v9405 = vpop.f32.mrb[0].mxu0
        %v9406 = vadd.f32 0.0, %v9405
        %v9407 = vpop.f32.mrb[0].mxu0
        %9408 = vmatprep.mubr.f32.mxu0 0.0
        %9409 = vmatmul.mubr.f32.gmra.mrb[0].mxu0 %v9234
        %v9410 = vpop.f32.mrb[0].mxu0
        %v9411 = vadd.f32 0.0, %v9410
        %v9412 = vpop.f32.mrb[0].mxu0
        %9413 = vmatprep.mubr.f32.mxu0 0.0
        %9414 = vmatmul.mubr.f32.gmra.mrb[0].mxu0 %v9237
        %v9415 = vpop.f32.mrb[0].mxu0
        %v9416 = vadd.f32 0.0, %v9415
        %v9417 = vpop.f32.mrb[0].mxu0
        %9418 = vmatprep.mubr.f32.mxu0 0.0
        %9419 = vmatmul.mubr.f32.gmra.mrb[0].mxu0 %v9240
        %v9420 = vpop.f32.mrb[0].mxu0
        %v9421 = vadd.f32 0.0, %v9420
        %v9422 = vpop.f32.mrb[0].mxu0
        %9423 = vmatprep.mubr.f32.mxu0 0.0
        %9424 = vmatmul.mubr.f32.gmra.mrb[0].mxu0 %v9243
        %v9425 = vpop.f32.mrb[0].mxu0
        %v9426 = vadd.f32 0.0, %v9425
        %v9427 = vpop.f32.mrb[0].mxu0
        %9428 = vmatprep.mubr.f32.mxu0 0.0
        %9429 = vmatmul.mubr.f32.gmra.mrb[0].mxu0 %v9246
        %v9430 = vpop.f32.mrb[0].mxu0
        %v9431 = vadd.f32 0.0, %v9430
        %v9432 = vpop.f32.mrb[0].mxu0
        %9433 = vmatprep.mubr.f32.mxu0 0.0
        %9434 = vmatmul.mubr.f32.gmra.mrb[0].mxu0 %v9249
        %v9435 = vpop.f32.mrb[0].mxu0
        %v9436 = vadd.f32 0.0, %v9435
        %v9437 = vpop.f32.mrb[0].mxu0
        %9438 = vmatprep.mubr.f32.mxu0 0.0
        %9439 = vmatmul.mubr.f32.gmra.mrb[0].mxu0 %v9252
        %v9440 = vpop.f32.mrb[0].mxu0
        %v9441 = vadd.f32 0.0, %v9440
        %v9442 = vpop.f32.mrb[0].mxu0
        %9443 = vmatprep.mubr.f32.mxu0 0.0
        %9444 = vmatmul.mubr.f32.gmra.mrb[0].mxu0 %v9255
        %v9445 = vpop.f32.mrb[0].mxu0
        %v9446 = vadd.f32 0.0, %v9445
        %v9447 = vpop.f32.mrb[0].mxu0
        %9448 = vmatprep.mubr.f32.mxu0 0.0
        %9449 = vmatmul.mubr.f32.gmra.mrb[0].mxu0 %v9258
        %v9450 = vpop.f32.mrb[0].mxu0
        %v9451 = vadd.f32 0.0, %v9450
        %v9452 = vpop.f32.mrb[0].mxu0
        %9453 = vmatprep.mubr.f32.mxu0 0.0
        %9454 = vmatmul.mubr.f32.gmra.mrb[0].mxu0 %v9261
        %v9455 = vpop.f32.mrb[0].mxu0
        %v9456 = vadd.f32 0.0, %v9455
        %v9457 = vpop.f32.mrb[0].mxu0
        %9458 = vmatprep.mubr.f32.mxu0 0.0
        %9459 = vmatmul.mubr.f32.gmra.mrb[0].mxu0 %v9264
        %v9460 = vpop.f32.mrb[0].mxu0
        %v9461 = vadd.f32 0.0, %v9460
        %v9462 = vpop.f32.mrb[0].mxu0
        %9463 = vmatprep.mubr.f32.mxu0 0.0
        %9464 = vmatmul.mubr.f32.gmra.mrb[0].mxu0 %v9267
        %v9465 = vpop.f32.mrb[0].mxu0
        %v9466 = vadd.f32 0.0, %v9465
        %v9467 = vpop.f32.mrb[0].mxu0
        %9468 = vmatprep.mubr.f32.mxu0 0.0
        %9469 = vmatmul.mubr.f32.gmra.mrb[0].mxu0 %v9270
        %v9470 = vpop.f32.mrb[0].mxu0
        %v9471 = vadd.f32 0.0, %v9470
        %v9472 = vpop.f32.mrb[0].mxu0
        %9473 = vmatprep.mubr.f32.mxu0 0.0
        %9474 = vmatmul.mubr.f32.gmra.mrb[0].mxu0 %v9273
        %v9475 = vpop.f32.mrb[0].mxu0
        %v9476 = vadd.f32 0.0, %v9475
        %v9477 = vpop.f32.mrb[0].mxu0
        %9478 = vmatprep.mubr.f32.mxu0 0.0
        %9479 = vmatmul.mubr.f32.gmra.mrb[0].mxu0 %v9276
        %v9480 = vpop.f32.mrb[0].mxu0
        %v9481 = vadd.f32 0.0, %v9480
        %v9482 = vpop.f32.mrb[0].mxu0
        %9483 = vmatprep.mubr.f32.mxu0 0.0
        %9484 = vmatmul.mubr.f32.gmra.mrb[0].mxu0 %v9279
        %v9485 = vpop.f32.mrb[0].mxu0
        %v9486 = vadd.f32 0.0, %v9485
        %v9487 = vpop.f32.mrb[0].mxu0
        %9488 = vmatprep.mubr.f32.mxu0 0.0
        %9489 = vmatmul.mubr.f32.gmra.mrb[0].mxu0 %v9282
        %v9490 = vpop.f32.mrb[0].mxu0
        %v9491 = vadd.f32 0.0, %v9490
        %v9492 = vpop.f32.mrb[0].mxu0
        %9493 = vmatprep.mubr.f32.mxu0 0.0
        %9494 = vmatmul.mubr.f32.gmra.mrb[0].mxu0 %v9285
        %v9495 = vpop.f32.mrb[0].mxu0
        %v9496 = vadd.f32 0.0, %v9495
        %v9497 = vpop.f32.mrb[0].mxu0
        %9498 = vmatprep.mubr.f32.mxu0 0.0
        %9499 = vmatmul.mubr.f32.gmra.mrb[0].mxu0 %v9288
        %v9500 = vpop.f32.mrb[0].mxu0
        %v9501 = vadd.f32 0.0, %v9500
        %v9502 = vpop.f32.mrb[0].mxu0
        %9503 = vmatprep.mubr.f32.mxu0 0.0
        %9504 = vmatmul.mubr.f32.gmra.mrb[0].mxu0 %v9291
        %v9505 = vpop.f32.mrb[0].mxu0
        %v9506 = vadd.f32 0.0, %v9505
        %v9507 = vpop.f32.mrb[0].mxu0
        %9508 = vmatprep.mubr.f32.mxu0 0.0
        %9509 = vmatmul.mubr.f32.gmra.mrb[0].mxu0 %v9294
        %v9510 = vpop.f32.mrb[0].mxu0
        %v9511 = vadd.f32 0.0, %v9510
        %v9512 = vpop.f32.mrb[0].mxu0
        %9513 = vmatprep.mubr.f32.mxu0 0.0
        %9514 = vmatmul.mubr.f32.gmra.mrb[0].mxu0 %v9297
        %v9515 = vpop.f32.mrb[0].mxu0
        %v9516 = vadd.f32 0.0, %v9515
        %v9517 = vpop.f32.mrb[0].mxu0
        %9518 = vmatprep.mubr.f32.mxu0 0.0
        %9519 = vmatmul.mubr.f32.gmra.mrb[0].mxu0 %v9300
        %v9520 = vpop.f32.mrb[0].mxu0
        %v9521 = vadd.f32 0.0, %v9520
        %v9522 = vpop.f32.mrb[0].mxu0
        %9523 = vmatprep.mubr.f32.mxu0 0.0
        %9524 = vmatmul.mubr.f32.gmra.mrb[0].mxu0 %v9303
        %v9525 = vpop.f32.mrb[0].mxu0
        %v9526 = vadd.f32 0.0, %v9525
        %v9527 = vpop.f32.mrb[0].mxu0
        %9528 = vmatprep.mubr.f32.mxu0 0.0
        %9529 = vmatmul.mubr.f32.gmra.mrb[0].mxu0 %v9306
        %v9530 = vpop.f32.mrb[0].mxu0
        %v9531 = vadd.f32 0.0, %v9530
        %v9532 = vpop.f32.mrb[0].mxu0
        %9533 = vmatprep.mubr.f32.mxu0 0.0
        %9534 = vmatmul.mubr.f32.gmra.mrb[0].mxu0 %v9309
        %v9535 = vpop.f32.mrb[0].mxu0
        %v9536 = vadd.f32 0.0, %v9535
        %v9537 = vpop.f32.mrb[0].mxu0
        %9538 = vdwg.mxu0
        %v9539 = vadd.f32 %v8249, %v9381
        %v9540 = vadd.f32 %v8250, %v9386
        %v9541 = vadd.f32 %v8251, %v9391
        %v9542 = vadd.f32 %v8252, %v9396
        %v9543 = vadd.f32 %v8253, %v9401
        %v9544 = vadd.f32 %v8254, %v9406
        %v9545 = vadd.f32 %v8255, %v9411
        %v9546 = vadd.f32 %v8256, %v9416
        %v9547 = vadd.f32 %v8257, %v9421
        %v9548 = vadd.f32 %v8258, %v9426
        %v9549 = vadd.f32 %v8259, %v9431
        %v9550 = vadd.f32 %v8260, %v9436
        %v9551 = vadd.f32 %v8261, %v9441
        %v9552 = vadd.f32 %v8262, %v9446
        %v9553 = vadd.f32 %v8263, %v9451
        %v9554 = vadd.f32 %v8264, %v9456
        %v9555 = vadd.f32 %v8265, %v9461
        %v9556 = vadd.f32 %v8266, %v9466
        %v9557 = vadd.f32 %v8267, %v9471
        %v9558 = vadd.f32 %v8268, %v9476
        %v9559 = vadd.f32 %v8269, %v9481
        %v9560 = vadd.f32 %v8270, %v9486
        %v9561 = vadd.f32 %v8271, %v9491
        %v9562 = vadd.f32 %v8272, %v9496
        %v9563 = vadd.f32 %v8273, %v9501
        %v9564 = vadd.f32 %v8274, %v9506
        %v9565 = vadd.f32 %v8275, %v9511
        %v9566 = vadd.f32 %v8276, %v9516
        %v9567 = vadd.f32 %v8277, %v9521
        %v9568 = vadd.f32 %v8278, %v9526
        %v9569 = vadd.f32 %v8279, %v9531
        %v9570 = vadd.f32 %v8280, %v9536
        %s9571 = sadd.s32 %s440, 4
        %s9572 = smul.u32 %s9571, 24
        %s9573 = scalar_lea.vmem %s438, %s9572
        %v9574 = vld [vmem:[%s9573] sm:$0xff]
        %v9575 = vld [vmem:[%s9573 + $0x8] sm:$0xff]
        %v9576 = vld [vmem:[%s9573 + $0x10] sm:$0xf]
        %v9577 = vld [vmem:[%s9573 + $0x18] sm:$0xff]
        %v9578 = vld [vmem:[%s9573 + $0x20] sm:$0xff]
        %v9579 = vld [vmem:[%s9573 + $0x28] sm:$0xf]
        %v9580 = vld [vmem:[%s9573 + $0x30] sm:$0xff]
        %v9581 = vld [vmem:[%s9573 + $0x38] sm:$0xff]
        %v9582 = vld [vmem:[%s9573 + $0x40] sm:$0xf]
        %v9583 = vld [vmem:[%s9573 + $0x48] sm:$0xff]
        %v9584 = vld [vmem:[%s9573 + $0x50] sm:$0xff]
        %v9585 = vld [vmem:[%s9573 + $0x58] sm:$0xf]
        %v9586 = vld [vmem:[%s9573 + $0x60] sm:$0xff]
        %v9587 = vld [vmem:[%s9573 + $0x68] sm:$0xff]
        %v9588 = vld [vmem:[%s9573 + $0x70] sm:$0xf]
        %v9589 = vld [vmem:[%s9573 + $0x78] sm:$0xff]
        %v9590 = vld [vmem:[%s9573 + $0x80] sm:$0xff]
        %v9591 = vld [vmem:[%s9573 + $0x88] sm:$0xf]
        %v9592 = vld [vmem:[%s9573 + $0x90] sm:$0xff]
        %v9593 = vld [vmem:[%s9573 + $0x98] sm:$0xff]
        %v9594 = vld [vmem:[%s9573 + $0xa0] sm:$0xf]
        %v9595 = vld [vmem:[%s9573 + $0xa8] sm:$0xff]
        %v9596 = vld [vmem:[%s9573 + $0xb0] sm:$0xff]
        %v9597 = vld [vmem:[%s9573 + $0xb8] sm:$0xf]
        %v9598 = vld [vmem:[%s9573 + $0xc0] sm:$0xff]
        %v9599 = vld [vmem:[%s9573 + $0xc8] sm:$0xff]
        %v9600 = vld [vmem:[%s9573 + $0xd0] sm:$0xf]
        %v9601 = vld [vmem:[%s9573 + $0xd8] sm:$0xff]
        %v9602 = vld [vmem:[%s9573 + $0xe0] sm:$0xff]
        %v9603 = vld [vmem:[%s9573 + $0xe8] sm:$0xf]
        %v9604 = vld [vmem:[%s9573 + $0xf0] sm:$0xff]
        %v9605 = vld [vmem:[%s9573 + $0xf8] sm:$0xff]
        %v9606 = vld [vmem:[%s9573 + $0x100] sm:$0xf]
        %v9607 = vld [vmem:[%s9573 + $0x108] sm:$0xff]
        %v9608 = vld [vmem:[%s9573 + $0x110] sm:$0xff]
        %v9609 = vld [vmem:[%s9573 + $0x118] sm:$0xf]
        %v9610 = vld [vmem:[%s9573 + $0x120] sm:$0xff]
        %v9611 = vld [vmem:[%s9573 + $0x128] sm:$0xff]
        %v9612 = vld [vmem:[%s9573 + $0x130] sm:$0xf]
        %v9613 = vld [vmem:[%s9573 + $0x138] sm:$0xff]
        %v9614 = vld [vmem:[%s9573 + $0x140] sm:$0xff]
        %v9615 = vld [vmem:[%s9573 + $0x148] sm:$0xf]
        %v9616 = vld [vmem:[%s9573 + $0x150] sm:$0xff]
        %v9617 = vld [vmem:[%s9573 + $0x158] sm:$0xff]
        %v9618 = vld [vmem:[%s9573 + $0x160] sm:$0xf]
        %v9619 = vld [vmem:[%s9573 + $0x168] sm:$0xff]
        %v9620 = vld [vmem:[%s9573 + $0x170] sm:$0xff]
        %v9621 = vld [vmem:[%s9573 + $0x178] sm:$0xf]
        %v9670 = vrot.slane %v9574, 1
        %v9671 = vrot.slane %v9575, 1
        %v9672 = vsel %vm641, %v9670, %v9671
        %v9673 = vrot.slane %v9576, 1
        %v9674 = vsel %vm641, %v9671, %v9673
        %v9675 = vrot.slane %v9577, 1
        %v9676 = vrot.slane %v9578, 1
        %v9677 = vsel %vm641, %v9675, %v9676
        %v9678 = vrot.slane %v9579, 1
        %v9679 = vsel %vm641, %v9676, %v9678
        %v9680 = vrot.slane %v9580, 1
        %v9681 = vrot.slane %v9581, 1
        %v9682 = vsel %vm641, %v9680, %v9681
        %v9683 = vrot.slane %v9582, 1
        %v9684 = vsel %vm641, %v9681, %v9683
        %v9685 = vrot.slane %v9583, 1
        %v9686 = vrot.slane %v9584, 1
        %v9687 = vsel %vm641, %v9685, %v9686
        %v9688 = vrot.slane %v9585, 1
        %v9689 = vsel %vm641, %v9686, %v9688
        %v9690 = vrot.slane %v9586, 1
        %v9691 = vrot.slane %v9587, 1
        %v9692 = vsel %vm641, %v9690, %v9691
        %v9693 = vrot.slane %v9588, 1
        %v9694 = vsel %vm641, %v9691, %v9693
        %v9695 = vrot.slane %v9589, 1
        %v9696 = vrot.slane %v9590, 1
        %v9697 = vsel %vm641, %v9695, %v9696
        %v9698 = vrot.slane %v9591, 1
        %v9699 = vsel %vm641, %v9696, %v9698
        %v9700 = vrot.slane %v9592, 1
        %v9701 = vrot.slane %v9593, 1
        %v9702 = vsel %vm641, %v9700, %v9701
        %v9703 = vrot.slane %v9594, 1
        %v9704 = vsel %vm641, %v9701, %v9703
        %v9705 = vrot.slane %v9595, 1
        %v9706 = vrot.slane %v9596, 1
        %v9707 = vsel %vm641, %v9705, %v9706
        %v9708 = vrot.slane %v9597, 1
        %v9709 = vsel %vm641, %v9706, %v9708
        %v9710 = vrot.slane %v9598, 1
        %v9711 = vrot.slane %v9599, 1
        %v9712 = vsel %vm641, %v9710, %v9711
        %v9713 = vrot.slane %v9600, 1
        %v9714 = vsel %vm641, %v9711, %v9713
        %v9715 = vrot.slane %v9601, 1
        %v9716 = vrot.slane %v9602, 1
        %v9717 = vsel %vm641, %v9715, %v9716
        %v9718 = vrot.slane %v9603, 1
        %v9719 = vsel %vm641, %v9716, %v9718
        %v9720 = vrot.slane %v9604, 1
        %v9721 = vrot.slane %v9605, 1
        %v9722 = vsel %vm641, %v9720, %v9721
        %v9723 = vrot.slane %v9606, 1
        %v9724 = vsel %vm641, %v9721, %v9723
        %v9725 = vrot.slane %v9607, 1
        %v9726 = vrot.slane %v9608, 1
        %v9727 = vsel %vm641, %v9725, %v9726
        %v9728 = vrot.slane %v9609, 1
        %v9729 = vsel %vm641, %v9726, %v9728
        %v9730 = vrot.slane %v9610, 1
        %v9731 = vrot.slane %v9611, 1
        %v9732 = vsel %vm641, %v9730, %v9731
        %v9733 = vrot.slane %v9612, 1
        %v9734 = vsel %vm641, %v9731, %v9733
        %v9735 = vrot.slane %v9613, 1
        %v9736 = vrot.slane %v9614, 1
        %v9737 = vsel %vm641, %v9735, %v9736
        %v9738 = vrot.slane %v9615, 1
        %v9739 = vsel %vm641, %v9736, %v9738
        %v9740 = vrot.slane %v9616, 1
        %v9741 = vrot.slane %v9617, 1
        %v9742 = vsel %vm641, %v9740, %v9741
        %v9743 = vrot.slane %v9618, 1
        %v9744 = vsel %vm641, %v9741, %v9743
        %v9745 = vrot.slane %v9619, 1
        %v9746 = vrot.slane %v9620, 1
        %v9747 = vsel %vm641, %v9745, %v9746
        %v9748 = vrot.slane %v9621, 1
        %v9749 = vsel %vm641, %v9746, %v9748
        %9750 = vrot.lane.b32.xlu0 %v9672, 2
        %v9751 = vpop.permute.xlu0 %9750
        %9752 = vrot.lane.b32.xlu0 %v9674, 2
        %v9753 = vpop.permute.xlu0 %9752
        %9754 = vrot.lane.b32.xlu0 %v9677, 2
        %v9755 = vpop.permute.xlu0 %9754
        %9756 = vrot.lane.b32.xlu0 %v9679, 2
        %v9757 = vpop.permute.xlu0 %9756
        %9758 = vrot.lane.b32.xlu0 %v9682, 2
        %v9759 = vpop.permute.xlu0 %9758
        %9760 = vrot.lane.b32.xlu0 %v9684, 2
        %v9761 = vpop.permute.xlu0 %9760
        %9762 = vrot.lane.b32.xlu0 %v9687, 2
        %v9763 = vpop.permute.xlu0 %9762
        %9764 = vrot.lane.b32.xlu0 %v9689, 2
        %v9765 = vpop.permute.xlu0 %9764
        %9766 = vrot.lane.b32.xlu0 %v9692, 2
        %v9767 = vpop.permute.xlu0 %9766
        %9768 = vrot.lane.b32.xlu0 %v9694, 2
        %v9769 = vpop.permute.xlu0 %9768
        %9770 = vrot.lane.b32.xlu0 %v9697, 2
        %v9771 = vpop.permute.xlu0 %9770
        %9772 = vrot.lane.b32.xlu0 %v9699, 2
        %v9773 = vpop.permute.xlu0 %9772
        %9774 = vrot.lane.b32.xlu0 %v9702, 2
        %v9775 = vpop.permute.xlu0 %9774
        %9776 = vrot.lane.b32.xlu0 %v9704, 2
        %v9777 = vpop.permute.xlu0 %9776
        %9778 = vrot.lane.b32.xlu0 %v9707, 2
        %v9779 = vpop.permute.xlu0 %9778
        %9780 = vrot.lane.b32.xlu0 %v9709, 2
        %v9781 = vpop.permute.xlu0 %9780
        %9782 = vrot.lane.b32.xlu0 %v9712, 2
        %v9783 = vpop.permute.xlu0 %9782
        %9784 = vrot.lane.b32.xlu0 %v9714, 2
        %v9785 = vpop.permute.xlu0 %9784
        %9786 = vrot.lane.b32.xlu0 %v9717, 2
        %v9787 = vpop.permute.xlu0 %9786
        %9788 = vrot.lane.b32.xlu0 %v9719, 2
        %v9789 = vpop.permute.xlu0 %9788
        %9790 = vrot.lane.b32.xlu0 %v9722, 2
        %v9791 = vpop.permute.xlu0 %9790
        %9792 = vrot.lane.b32.xlu0 %v9724, 2
        %v9793 = vpop.permute.xlu0 %9792
        %9794 = vrot.lane.b32.xlu0 %v9727, 2
        %v9795 = vpop.permute.xlu0 %9794
        %9796 = vrot.lane.b32.xlu0 %v9729, 2
        %v9797 = vpop.permute.xlu0 %9796
        %9798 = vrot.lane.b32.xlu0 %v9732, 2
        %v9799 = vpop.permute.xlu0 %9798
        %9800 = vrot.lane.b32.xlu0 %v9734, 2
        %v9801 = vpop.permute.xlu0 %9800
        %9802 = vrot.lane.b32.xlu0 %v9737, 2
        %v9803 = vpop.permute.xlu0 %9802
        %9804 = vrot.lane.b32.xlu0 %v9739, 2
        %v9805 = vpop.permute.xlu0 %9804
        %9806 = vrot.lane.b32.xlu0 %v9742, 2
        %v9807 = vpop.permute.xlu0 %9806
        %9808 = vrot.lane.b32.xlu0 %v9744, 2
        %v9809 = vpop.permute.xlu0 %9808
        %9810 = vrot.lane.b32.xlu0 %v9747, 2
        %v9811 = vpop.permute.xlu0 %9810
        %9812 = vrot.lane.b32.xlu0 %v9749, 2
        %v9813 = vpop.permute.xlu0 %9812
        %v9846 = vrot.slane %v9574, 2
        %v9847 = vrot.slane %v9575, 2
        %v9848 = vsel %vm1344, %v9846, %v9847
        %v9849 = vrot.slane %v9576, 2
        %v9850 = vsel %vm1344, %v9847, %v9849
        %v9851 = vrot.slane %v9577, 2
        %v9852 = vrot.slane %v9578, 2
        %v9853 = vsel %vm1344, %v9851, %v9852
        %v9854 = vrot.slane %v9579, 2
        %v9855 = vsel %vm1344, %v9852, %v9854
        %v9856 = vrot.slane %v9580, 2
        %v9857 = vrot.slane %v9581, 2
        %v9858 = vsel %vm1344, %v9856, %v9857
        %v9859 = vrot.slane %v9582, 2
        %v9860 = vsel %vm1344, %v9857, %v9859
        %v9861 = vrot.slane %v9583, 2
        %v9862 = vrot.slane %v9584, 2
        %v9863 = vsel %vm1344, %v9861, %v9862
        %v9864 = vrot.slane %v9585, 2
        %v9865 = vsel %vm1344, %v9862, %v9864
        %v9866 = vrot.slane %v9586, 2
        %v9867 = vrot.slane %v9587, 2
        %v9868 = vsel %vm1344, %v9866, %v9867
        %v9869 = vrot.slane %v9588, 2
        %v9870 = vsel %vm1344, %v9867, %v9869
        %v9871 = vrot.slane %v9589, 2
        %v9872 = vrot.slane %v9590, 2
        %v9873 = vsel %vm1344, %v9871, %v9872
        %v9874 = vrot.slane %v9591, 2
        %v9875 = vsel %vm1344, %v9872, %v9874
        %v9876 = vrot.slane %v9592, 2
        %v9877 = vrot.slane %v9593, 2
        %v9878 = vsel %vm1344, %v9876, %v9877
        %v9879 = vrot.slane %v9594, 2
        %v9880 = vsel %vm1344, %v9877, %v9879
        %v9881 = vrot.slane %v9595, 2
        %v9882 = vrot.slane %v9596, 2
        %v9883 = vsel %vm1344, %v9881, %v9882
        %v9884 = vrot.slane %v9597, 2
        %v9885 = vsel %vm1344, %v9882, %v9884
        %v9886 = vrot.slane %v9598, 2
        %v9887 = vrot.slane %v9599, 2
        %v9888 = vsel %vm1344, %v9886, %v9887
        %v9889 = vrot.slane %v9600, 2
        %v9890 = vsel %vm1344, %v9887, %v9889
        %v9891 = vrot.slane %v9601, 2
        %v9892 = vrot.slane %v9602, 2
        %v9893 = vsel %vm1344, %v9891, %v9892
        %v9894 = vrot.slane %v9603, 2
        %v9895 = vsel %vm1344, %v9892, %v9894
        %v9896 = vrot.slane %v9604, 2
        %v9897 = vrot.slane %v9605, 2
        %v9898 = vsel %vm1344, %v9896, %v9897
        %v9899 = vrot.slane %v9606, 2
        %v9900 = vsel %vm1344, %v9897, %v9899
        %v9901 = vrot.slane %v9607, 2
        %v9902 = vrot.slane %v9608, 2
        %v9903 = vsel %vm1344, %v9901, %v9902
        %v9904 = vrot.slane %v9609, 2
        %v9905 = vsel %vm1344, %v9902, %v9904
        %v9906 = vrot.slane %v9610, 2
        %v9907 = vrot.slane %v9611, 2
        %v9908 = vsel %vm1344, %v9906, %v9907
        %v9909 = vrot.slane %v9612, 2
        %v9910 = vsel %vm1344, %v9907, %v9909
        %v9911 = vrot.slane %v9613, 2
        %v9912 = vrot.slane %v9614, 2
        %v9913 = vsel %vm1344, %v9911, %v9912
        %v9914 = vrot.slane %v9615, 2
        %v9915 = vsel %vm1344, %v9912, %v9914
        %v9916 = vrot.slane %v9616, 2
        %v9917 = vrot.slane %v9617, 2
        %v9918 = vsel %vm1344, %v9916, %v9917
        %v9919 = vrot.slane %v9618, 2
        %v9920 = vsel %vm1344, %v9917, %v9919
        %v9921 = vrot.slane %v9619, 2
        %v9922 = vrot.slane %v9620, 2
        %v9923 = vsel %vm1344, %v9921, %v9922
        %v9924 = vrot.slane %v9621, 2
        %v9925 = vsel %vm1344, %v9922, %v9924
        %9926 = vrot.lane.b32.xlu0 %v9848, 4
        %v9927 = vpop.permute.xlu0 %9926
        %9928 = vrot.lane.b32.xlu0 %v9850, 4
        %v9929 = vpop.permute.xlu0 %9928
        %9930 = vrot.lane.b32.xlu0 %v9853, 4
        %v9931 = vpop.permute.xlu0 %9930
        %9932 = vrot.lane.b32.xlu0 %v9855, 4
        %v9933 = vpop.permute.xlu0 %9932
        %9934 = vrot.lane.b32.xlu0 %v9858, 4
        %v9935 = vpop.permute.xlu0 %9934
        %9936 = vrot.lane.b32.xlu0 %v9860, 4
        %v9937 = vpop.permute.xlu0 %9936
        %9938 = vrot.lane.b32.xlu0 %v9863, 4
        %v9939 = vpop.permute.xlu0 %9938
        %9940 = vrot.lane.b32.xlu0 %v9865, 4
        %v9941 = vpop.permute.xlu0 %9940
        %9942 = vrot.lane.b32.xlu0 %v9868, 4
        %v9943 = vpop.permute.xlu0 %9942
        %9944 = vrot.lane.b32.xlu0 %v9870, 4
        %v9945 = vpop.permute.xlu0 %9944
        %9946 = vrot.lane.b32.xlu0 %v9873, 4
        %v9947 = vpop.permute.xlu0 %9946
        %9948 = vrot.lane.b32.xlu0 %v9875, 4
        %v9949 = vpop.permute.xlu0 %9948
        %9950 = vrot.lane.b32.xlu0 %v9878, 4
        %v9951 = vpop.permute.xlu0 %9950
        %9952 = vrot.lane.b32.xlu0 %v9880, 4
        %v9953 = vpop.permute.xlu0 %9952
        %9954 = vrot.lane.b32.xlu0 %v9883, 4
        %v9955 = vpop.permute.xlu0 %9954
        %9956 = vrot.lane.b32.xlu0 %v9885, 4
        %v9957 = vpop.permute.xlu0 %9956
        %9958 = vrot.lane.b32.xlu0 %v9888, 4
        %v9959 = vpop.permute.xlu0 %9958
        %9960 = vrot.lane.b32.xlu0 %v9890, 4
        %v9961 = vpop.permute.xlu0 %9960
        %9962 = vrot.lane.b32.xlu0 %v9893, 4
        %v9963 = vpop.permute.xlu0 %9962
        %9964 = vrot.lane.b32.xlu0 %v9895, 4
        %v9965 = vpop.permute.xlu0 %9964
        %9966 = vrot.lane.b32.xlu0 %v9898, 4
        %v9967 = vpop.permute.xlu0 %9966
        %9968 = vrot.lane.b32.xlu0 %v9900, 4
        %v9969 = vpop.permute.xlu0 %9968
        %9970 = vrot.lane.b32.xlu0 %v9903, 4
        %v9971 = vpop.permute.xlu0 %9970
        %9972 = vrot.lane.b32.xlu0 %v9905, 4
        %v9973 = vpop.permute.xlu0 %9972
        %9974 = vrot.lane.b32.xlu0 %v9908, 4
        %v9975 = vpop.permute.xlu0 %9974
        %9976 = vrot.lane.b32.xlu0 %v9910, 4
        %v9977 = vpop.permute.xlu0 %9976
        %9978 = vrot.lane.b32.xlu0 %v9913, 4
        %v9979 = vpop.permute.xlu0 %9978
        %9980 = vrot.lane.b32.xlu0 %v9915, 4
        %v9981 = vpop.permute.xlu0 %9980
        %9982 = vrot.lane.b32.xlu0 %v9918, 4
        %v9983 = vpop.permute.xlu0 %9982
        %9984 = vrot.lane.b32.xlu0 %v9920, 4
        %v9985 = vpop.permute.xlu0 %9984
        %9986 = vrot.lane.b32.xlu0 %v9923, 4
        %v9987 = vpop.permute.xlu0 %9986
        %9988 = vrot.lane.b32.xlu0 %v9925, 4
        %v9989 = vpop.permute.xlu0 %9988
        %v10022 = vrot.slane %v9574, 3
        %v10023 = vrot.slane %v9575, 3
        %v10024 = vsel %vm4926, %v10022, %v10023
        %v10025 = vrot.slane %v9576, 3
        %v10026 = vsel %vm4926, %v10023, %v10025
        %v10027 = vrot.slane %v9577, 3
        %v10028 = vrot.slane %v9578, 3
        %v10029 = vsel %vm4926, %v10027, %v10028
        %v10030 = vrot.slane %v9579, 3
        %v10031 = vsel %vm4926, %v10028, %v10030
        %v10032 = vrot.slane %v9580, 3
        %v10033 = vrot.slane %v9581, 3
        %v10034 = vsel %vm4926, %v10032, %v10033
        %v10035 = vrot.slane %v9582, 3
        %v10036 = vsel %vm4926, %v10033, %v10035
        %v10037 = vrot.slane %v9583, 3
        %v10038 = vrot.slane %v9584, 3
        %v10039 = vsel %vm4926, %v10037, %v10038
        %v10040 = vrot.slane %v9585, 3
        %v10041 = vsel %vm4926, %v10038, %v10040
        %v10042 = vrot.slane %v9586, 3
        %v10043 = vrot.slane %v9587, 3
        %v10044 = vsel %vm4926, %v10042, %v10043
        %v10045 = vrot.slane %v9588, 3
        %v10046 = vsel %vm4926, %v10043, %v10045
        %v10047 = vrot.slane %v9589, 3
        %v10048 = vrot.slane %v9590, 3
        %v10049 = vsel %vm4926, %v10047, %v10048
        %v10050 = vrot.slane %v9591, 3
        %v10051 = vsel %vm4926, %v10048, %v10050
        %v10052 = vrot.slane %v9592, 3
        %v10053 = vrot.slane %v9593, 3
        %v10054 = vsel %vm4926, %v10052, %v10053
        %v10055 = vrot.slane %v9594, 3
        %v10056 = vsel %vm4926, %v10053, %v10055
        %v10057 = vrot.slane %v9595, 3
        %v10058 = vrot.slane %v9596, 3
        %v10059 = vsel %vm4926, %v10057, %v10058
        %v10060 = vrot.slane %v9597, 3
        %v10061 = vsel %vm4926, %v10058, %v10060
        %v10062 = vrot.slane %v9598, 3
        %v10063 = vrot.slane %v9599, 3
        %v10064 = vsel %vm4926, %v10062, %v10063
        %v10065 = vrot.slane %v9600, 3
        %v10066 = vsel %vm4926, %v10063, %v10065
        %v10067 = vrot.slane %v9601, 3
        %v10068 = vrot.slane %v9602, 3
        %v10069 = vsel %vm4926, %v10067, %v10068
        %v10070 = vrot.slane %v9603, 3
        %v10071 = vsel %vm4926, %v10068, %v10070
        %v10072 = vrot.slane %v9604, 3
        %v10073 = vrot.slane %v9605, 3
        %v10074 = vsel %vm4926, %v10072, %v10073
        %v10075 = vrot.slane %v9606, 3
        %v10076 = vsel %vm4926, %v10073, %v10075
        %v10077 = vrot.slane %v9607, 3
        %v10078 = vrot.slane %v9608, 3
        %v10079 = vsel %vm4926, %v10077, %v10078
        %v10080 = vrot.slane %v9609, 3
        %v10081 = vsel %vm4926, %v10078, %v10080
        %v10082 = vrot.slane %v9610, 3
        %v10083 = vrot.slane %v9611, 3
        %v10084 = vsel %vm4926, %v10082, %v10083
        %v10085 = vrot.slane %v9612, 3
        %v10086 = vsel %vm4926, %v10083, %v10085
        %v10087 = vrot.slane %v9613, 3
        %v10088 = vrot.slane %v9614, 3
        %v10089 = vsel %vm4926, %v10087, %v10088
        %v10090 = vrot.slane %v9615, 3
        %v10091 = vsel %vm4926, %v10088, %v10090
        %v10092 = vrot.slane %v9616, 3
        %v10093 = vrot.slane %v9617, 3
        %v10094 = vsel %vm4926, %v10092, %v10093
        %v10095 = vrot.slane %v9618, 3
        %v10096 = vsel %vm4926, %v10093, %v10095
        %v10097 = vrot.slane %v9619, 3
        %v10098 = vrot.slane %v9620, 3
        %v10099 = vsel %vm4926, %v10097, %v10098
        %v10100 = vrot.slane %v9621, 3
        %v10101 = vsel %vm4926, %v10098, %v10100
        %10102 = vrot.lane.b32.xlu0 %v10024, 6
        %v10103 = vpop.permute.xlu0 %10102
        %10104 = vrot.lane.b32.xlu0 %v10026, 6
        %v10105 = vpop.permute.xlu0 %10104
        %10106 = vrot.lane.b32.xlu0 %v10029, 6
        %v10107 = vpop.permute.xlu0 %10106
        %10108 = vrot.lane.b32.xlu0 %v10031, 6
        %v10109 = vpop.permute.xlu0 %10108
        %10110 = vrot.lane.b32.xlu0 %v10034, 6
        %v10111 = vpop.permute.xlu0 %10110
        %10112 = vrot.lane.b32.xlu0 %v10036, 6
        %v10113 = vpop.permute.xlu0 %10112
        %10114 = vrot.lane.b32.xlu0 %v10039, 6
        %v10115 = vpop.permute.xlu0 %10114
        %10116 = vrot.lane.b32.xlu0 %v10041, 6
        %v10117 = vpop.permute.xlu0 %10116
        %10118 = vrot.lane.b32.xlu0 %v10044, 6
        %v10119 = vpop.permute.xlu0 %10118
        %10120 = vrot.lane.b32.xlu0 %v10046, 6
        %v10121 = vpop.permute.xlu0 %10120
        %10122 = vrot.lane.b32.xlu0 %v10049, 6
        %v10123 = vpop.permute.xlu0 %10122
        %10124 = vrot.lane.b32.xlu0 %v10051, 6
        %v10125 = vpop.permute.xlu0 %10124
        %10126 = vrot.lane.b32.xlu0 %v10054, 6
        %v10127 = vpop.permute.xlu0 %10126
        %10128 = vrot.lane.b32.xlu0 %v10056, 6
        %v10129 = vpop.permute.xlu0 %10128
        %10130 = vrot.lane.b32.xlu0 %v10059, 6
        %v10131 = vpop.permute.xlu0 %10130
        %10132 = vrot.lane.b32.xlu0 %v10061, 6
        %v10133 = vpop.permute.xlu0 %10132
        %10134 = vrot.lane.b32.xlu0 %v10064, 6
        %v10135 = vpop.permute.xlu0 %10134
        %10136 = vrot.lane.b32.xlu0 %v10066, 6
        %v10137 = vpop.permute.xlu0 %10136
        %10138 = vrot.lane.b32.xlu0 %v10069, 6
        %v10139 = vpop.permute.xlu0 %10138
        %10140 = vrot.lane.b32.xlu0 %v10071, 6
        %v10141 = vpop.permute.xlu0 %10140
        %10142 = vrot.lane.b32.xlu0 %v10074, 6
        %v10143 = vpop.permute.xlu0 %10142
        %10144 = vrot.lane.b32.xlu0 %v10076, 6
        %v10145 = vpop.permute.xlu0 %10144
        %10146 = vrot.lane.b32.xlu0 %v10079, 6
        %v10147 = vpop.permute.xlu0 %10146
        %10148 = vrot.lane.b32.xlu0 %v10081, 6
        %v10149 = vpop.permute.xlu0 %10148
        %10150 = vrot.lane.b32.xlu0 %v10084, 6
        %v10151 = vpop.permute.xlu0 %10150
        %10152 = vrot.lane.b32.xlu0 %v10086, 6
        %v10153 = vpop.permute.xlu0 %10152
        %10154 = vrot.lane.b32.xlu0 %v10089, 6
        %v10155 = vpop.permute.xlu0 %10154
        %10156 = vrot.lane.b32.xlu0 %v10091, 6
        %v10157 = vpop.permute.xlu0 %10156
        %10158 = vrot.lane.b32.xlu0 %v10094, 6
        %v10159 = vpop.permute.xlu0 %10158
        %10160 = vrot.lane.b32.xlu0 %v10096, 6
        %v10161 = vpop.permute.xlu0 %10160
        %10162 = vrot.lane.b32.xlu0 %v10099, 6
        %v10163 = vpop.permute.xlu0 %10162
        %10164 = vrot.lane.b32.xlu0 %v10101, 6
        %v10165 = vpop.permute.xlu0 %10164
        %v10198 = vrot.slane %v9574, 4
        %v10199 = vrot.slane %v9575, 4
        %v10200 = vsel %vm795, %v10198, %v10199
        %v10201 = vrot.slane %v9576, 4
        %v10202 = vsel %vm795, %v10199, %v10201
        %v10203 = vrot.slane %v9577, 4
        %v10204 = vrot.slane %v9578, 4
        %v10205 = vsel %vm795, %v10203, %v10204
        %v10206 = vrot.slane %v9579, 4
        %v10207 = vsel %vm795, %v10204, %v10206
        %v10208 = vrot.slane %v9580, 4
        %v10209 = vrot.slane %v9581, 4
        %v10210 = vsel %vm795, %v10208, %v10209
        %v10211 = vrot.slane %v9582, 4
        %v10212 = vsel %vm795, %v10209, %v10211
        %v10213 = vrot.slane %v9583, 4
        %v10214 = vrot.slane %v9584, 4
        %v10215 = vsel %vm795, %v10213, %v10214
        %v10216 = vrot.slane %v9585, 4
        %v10217 = vsel %vm795, %v10214, %v10216
        %v10218 = vrot.slane %v9586, 4
        %v10219 = vrot.slane %v9587, 4
        %v10220 = vsel %vm795, %v10218, %v10219
        %v10221 = vrot.slane %v9588, 4
        %v10222 = vsel %vm795, %v10219, %v10221
        %v10223 = vrot.slane %v9589, 4
        %v10224 = vrot.slane %v9590, 4
        %v10225 = vsel %vm795, %v10223, %v10224
        %v10226 = vrot.slane %v9591, 4
        %v10227 = vsel %vm795, %v10224, %v10226
        %v10228 = vrot.slane %v9592, 4
        %v10229 = vrot.slane %v9593, 4
        %v10230 = vsel %vm795, %v10228, %v10229
        %v10231 = vrot.slane %v9594, 4
        %v10232 = vsel %vm795, %v10229, %v10231
        %v10233 = vrot.slane %v9595, 4
        %v10234 = vrot.slane %v9596, 4
        %v10235 = vsel %vm795, %v10233, %v10234
        %v10236 = vrot.slane %v9597, 4
        %v10237 = vsel %vm795, %v10234, %v10236
        %v10238 = vrot.slane %v9598, 4
        %v10239 = vrot.slane %v9599, 4
        %v10240 = vsel %vm795, %v10238, %v10239
        %v10241 = vrot.slane %v9600, 4
        %v10242 = vsel %vm795, %v10239, %v10241
        %v10243 = vrot.slane %v9601, 4
        %v10244 = vrot.slane %v9602, 4
        %v10245 = vsel %vm795, %v10243, %v10244
        %v10246 = vrot.slane %v9603, 4
        %v10247 = vsel %vm795, %v10244, %v10246
        %v10248 = vrot.slane %v9604, 4
        %v10249 = vrot.slane %v9605, 4
        %v10250 = vsel %vm795, %v10248, %v10249
        %v10251 = vrot.slane %v9606, 4
        %v10252 = vsel %vm795, %v10249, %v10251
        %v10253 = vrot.slane %v9607, 4
        %v10254 = vrot.slane %v9608, 4
        %v10255 = vsel %vm795, %v10253, %v10254
        %v10256 = vrot.slane %v9609, 4
        %v10257 = vsel %vm795, %v10254, %v10256
        %v10258 = vrot.slane %v9610, 4
        %v10259 = vrot.slane %v9611, 4
        %v10260 = vsel %vm795, %v10258, %v10259
        %v10261 = vrot.slane %v9612, 4
        %v10262 = vsel %vm795, %v10259, %v10261
        %v10263 = vrot.slane %v9613, 4
        %v10264 = vrot.slane %v9614, 4
        %v10265 = vsel %vm795, %v10263, %v10264
        %v10266 = vrot.slane %v9615, 4
        %v10267 = vsel %vm795, %v10264, %v10266
        %v10268 = vrot.slane %v9616, 4
        %v10269 = vrot.slane %v9617, 4
        %v10270 = vsel %vm795, %v10268, %v10269
        %v10271 = vrot.slane %v9618, 4
        %v10272 = vsel %vm795, %v10269, %v10271
        %v10273 = vrot.slane %v9619, 4
        %v10274 = vrot.slane %v9620, 4
        %v10275 = vsel %vm795, %v10273, %v10274
        %v10276 = vrot.slane %v9621, 4
        %v10277 = vsel %vm795, %v10274, %v10276
        %10278 = vrot.lane.b32.xlu0 %v10200, 8
        %v10279 = vpop.permute.xlu0 %10278
        %10280 = vrot.lane.b32.xlu0 %v10202, 8
        %v10281 = vpop.permute.xlu0 %10280
        %10282 = vrot.lane.b32.xlu0 %v10205, 8
        %v10283 = vpop.permute.xlu0 %10282
        %10284 = vrot.lane.b32.xlu0 %v10207, 8
        %v10285 = vpop.permute.xlu0 %10284
        %10286 = vrot.lane.b32.xlu0 %v10210, 8
        %v10287 = vpop.permute.xlu0 %10286
        %10288 = vrot.lane.b32.xlu0 %v10212, 8
        %v10289 = vpop.permute.xlu0 %10288
        %10290 = vrot.lane.b32.xlu0 %v10215, 8
        %v10291 = vpop.permute.xlu0 %10290
        %10292 = vrot.lane.b32.xlu0 %v10217, 8
        %v10293 = vpop.permute.xlu0 %10292
        %10294 = vrot.lane.b32.xlu0 %v10220, 8
        %v10295 = vpop.permute.xlu0 %10294
        %10296 = vrot.lane.b32.xlu0 %v10222, 8
        %v10297 = vpop.permute.xlu0 %10296
        %10298 = vrot.lane.b32.xlu0 %v10225, 8
        %v10299 = vpop.permute.xlu0 %10298
        %10300 = vrot.lane.b32.xlu0 %v10227, 8
        %v10301 = vpop.permute.xlu0 %10300
        %10302 = vrot.lane.b32.xlu0 %v10230, 8
        %v10303 = vpop.permute.xlu0 %10302
        %10304 = vrot.lane.b32.xlu0 %v10232, 8
        %v10305 = vpop.permute.xlu0 %10304
        %10306 = vrot.lane.b32.xlu0 %v10235, 8
        %v10307 = vpop.permute.xlu0 %10306
        %10308 = vrot.lane.b32.xlu0 %v10237, 8
        %v10309 = vpop.permute.xlu0 %10308
        %10310 = vrot.lane.b32.xlu0 %v10240, 8
        %v10311 = vpop.permute.xlu0 %10310
        %10312 = vrot.lane.b32.xlu0 %v10242, 8
        %v10313 = vpop.permute.xlu0 %10312
        %10314 = vrot.lane.b32.xlu0 %v10245, 8
        %v10315 = vpop.permute.xlu0 %10314
        %10316 = vrot.lane.b32.xlu0 %v10247, 8
        %v10317 = vpop.permute.xlu0 %10316
        %10318 = vrot.lane.b32.xlu0 %v10250, 8
        %v10319 = vpop.permute.xlu0 %10318
        %10320 = vrot.lane.b32.xlu0 %v10252, 8
        %v10321 = vpop.permute.xlu0 %10320
        %10322 = vrot.lane.b32.xlu0 %v10255, 8
        %v10323 = vpop.permute.xlu0 %10322
        %10324 = vrot.lane.b32.xlu0 %v10257, 8
        %v10325 = vpop.permute.xlu0 %10324
        %10326 = vrot.lane.b32.xlu0 %v10260, 8
        %v10327 = vpop.permute.xlu0 %10326
        %10328 = vrot.lane.b32.xlu0 %v10262, 8
        %v10329 = vpop.permute.xlu0 %10328
        %10330 = vrot.lane.b32.xlu0 %v10265, 8
        %v10331 = vpop.permute.xlu0 %10330
        %10332 = vrot.lane.b32.xlu0 %v10267, 8
        %v10333 = vpop.permute.xlu0 %10332
        %10334 = vrot.lane.b32.xlu0 %v10270, 8
        %v10335 = vpop.permute.xlu0 %10334
        %10336 = vrot.lane.b32.xlu0 %v10272, 8
        %v10337 = vpop.permute.xlu0 %10336
        %10338 = vrot.lane.b32.xlu0 %v10275, 8
        %v10339 = vpop.permute.xlu0 %10338
        %10340 = vrot.lane.b32.xlu0 %v10277, 8
        %v10341 = vpop.permute.xlu0 %10340
        %v10374 = vsel %vm5279, %v9574, %v9751
        %v10375 = vsel %vm5279, %v9575, %v9753
        %v10376 = vsel %vm5279, %v9577, %v9755
        %v10377 = vsel %vm5279, %v9578, %v9757
        %v10378 = vsel %vm5279, %v9580, %v9759
        %v10379 = vsel %vm5279, %v9581, %v9761
        %v10380 = vsel %vm5279, %v9583, %v9763
        %v10381 = vsel %vm5279, %v9584, %v9765
        %v10382 = vsel %vm5279, %v9586, %v9767
        %v10383 = vsel %vm5279, %v9587, %v9769
        %v10384 = vsel %vm5279, %v9589, %v9771
        %v10385 = vsel %vm5279, %v9590, %v9773
        %v10386 = vsel %vm5279, %v9592, %v9775
        %v10387 = vsel %vm5279, %v9593, %v9777
        %v10388 = vsel %vm5279, %v9595, %v9779
        %v10389 = vsel %vm5279, %v9596, %v9781
        %v10390 = vsel %vm5279, %v9598, %v9783
        %v10391 = vsel %vm5279, %v9599, %v9785
        %v10392 = vsel %vm5279, %v9601, %v9787
        %v10393 = vsel %vm5279, %v9602, %v9789
        %v10394 = vsel %vm5279, %v9604, %v9791
        %v10395 = vsel %vm5279, %v9605, %v9793
        %v10396 = vsel %vm5279, %v9607, %v9795
        %v10397 = vsel %vm5279, %v9608, %v9797
        %v10398 = vsel %vm5279, %v9610, %v9799
        %v10399 = vsel %vm5279, %v9611, %v9801
        %v10400 = vsel %vm5279, %v9613, %v9803
        %v10401 = vsel %vm5279, %v9614, %v9805
        %v10402 = vsel %vm5279, %v9616, %v9807
        %v10403 = vsel %vm5279, %v9617, %v9809
        %v10404 = vsel %vm5279, %v9619, %v9811
        %v10405 = vsel %vm5279, %v9620, %v9813
        %v10406 = vsel %vm730, %v10374, %v9927
        %v10407 = vsel %vm730, %v10375, %v9929
        %v10408 = vsel %vm730, %v10376, %v9931
        %v10409 = vsel %vm730, %v10377, %v9933
        %v10410 = vsel %vm730, %v10378, %v9935
        %v10411 = vsel %vm730, %v10379, %v9937
        %v10412 = vsel %vm730, %v10380, %v9939
        %v10413 = vsel %vm730, %v10381, %v9941
        %v10414 = vsel %vm730, %v10382, %v9943
        %v10415 = vsel %vm730, %v10383, %v9945
        %v10416 = vsel %vm730, %v10384, %v9947
        %v10417 = vsel %vm730, %v10385, %v9949
        %v10418 = vsel %vm730, %v10386, %v9951
        %v10419 = vsel %vm730, %v10387, %v9953
        %v10420 = vsel %vm730, %v10388, %v9955
        %v10421 = vsel %vm730, %v10389, %v9957
        %v10422 = vsel %vm730, %v10390, %v9959
        %v10423 = vsel %vm730, %v10391, %v9961
        %v10424 = vsel %vm730, %v10392, %v9963
        %v10425 = vsel %vm730, %v10393, %v9965
        %v10426 = vsel %vm730, %v10394, %v9967
        %v10427 = vsel %vm730, %v10395, %v9969
        %v10428 = vsel %vm730, %v10396, %v9971
        %v10429 = vsel %vm730, %v10397, %v9973
        %v10430 = vsel %vm730, %v10398, %v9975
        %v10431 = vsel %vm730, %v10399, %v9977
        %v10432 = vsel %vm730, %v10400, %v9979
        %v10433 = vsel %vm730, %v10401, %v9981
        %v10434 = vsel %vm730, %v10402, %v9983
        %v10435 = vsel %vm730, %v10403, %v9985
        %v10436 = vsel %vm730, %v10404, %v9987
        %v10437 = vsel %vm730, %v10405, %v9989
        %v10438 = vsel %vm5344, %v10406, %v10103
        %v10439 = vsel %vm5344, %v10407, %v10105
        %v10440 = vsel %vm5344, %v10408, %v10107
        %v10441 = vsel %vm5344, %v10409, %v10109
        %v10442 = vsel %vm5344, %v10410, %v10111
        %v10443 = vsel %vm5344, %v10411, %v10113
        %v10444 = vsel %vm5344, %v10412, %v10115
        %v10445 = vsel %vm5344, %v10413, %v10117
        %v10446 = vsel %vm5344, %v10414, %v10119
        %v10447 = vsel %vm5344, %v10415, %v10121
        %v10448 = vsel %vm5344, %v10416, %v10123
        %v10449 = vsel %vm5344, %v10417, %v10125
        %v10450 = vsel %vm5344, %v10418, %v10127
        %v10451 = vsel %vm5344, %v10419, %v10129
        %v10452 = vsel %vm5344, %v10420, %v10131
        %v10453 = vsel %vm5344, %v10421, %v10133
        %v10454 = vsel %vm5344, %v10422, %v10135
        %v10455 = vsel %vm5344, %v10423, %v10137
        %v10456 = vsel %vm5344, %v10424, %v10139
        %v10457 = vsel %vm5344, %v10425, %v10141
        %v10458 = vsel %vm5344, %v10426, %v10143
        %v10459 = vsel %vm5344, %v10427, %v10145
        %v10460 = vsel %vm5344, %v10428, %v10147
        %v10461 = vsel %vm5344, %v10429, %v10149
        %v10462 = vsel %vm5344, %v10430, %v10151
        %v10463 = vsel %vm5344, %v10431, %v10153
        %v10464 = vsel %vm5344, %v10432, %v10155
        %v10465 = vsel %vm5344, %v10433, %v10157
        %v10466 = vsel %vm5344, %v10434, %v10159
        %v10467 = vsel %vm5344, %v10435, %v10161
        %v10468 = vsel %vm5344, %v10436, %v10163
        %v10469 = vsel %vm5344, %v10437, %v10165
        %v10470 = vsel %vm2334, %v10438, %v10279
        %v10471 = vsel %vm2334, %v10439, %v10281
        %v10472 = vsel %vm2334, %v10440, %v10283
        %v10473 = vsel %vm2334, %v10441, %v10285
        %v10474 = vsel %vm2334, %v10442, %v10287
        %v10475 = vsel %vm2334, %v10443, %v10289
        %v10476 = vsel %vm2334, %v10444, %v10291
        %v10477 = vsel %vm2334, %v10445, %v10293
        %v10478 = vsel %vm2334, %v10446, %v10295
        %v10479 = vsel %vm2334, %v10447, %v10297
        %v10480 = vsel %vm2334, %v10448, %v10299
        %v10481 = vsel %vm2334, %v10449, %v10301
        %v10482 = vsel %vm2334, %v10450, %v10303
        %v10483 = vsel %vm2334, %v10451, %v10305
        %v10484 = vsel %vm2334, %v10452, %v10307
        %v10485 = vsel %vm2334, %v10453, %v10309
        %v10486 = vsel %vm2334, %v10454, %v10311
        %v10487 = vsel %vm2334, %v10455, %v10313
        %v10488 = vsel %vm2334, %v10456, %v10315
        %v10489 = vsel %vm2334, %v10457, %v10317
        %v10490 = vsel %vm2334, %v10458, %v10319
        %v10491 = vsel %vm2334, %v10459, %v10321
        %v10492 = vsel %vm2334, %v10460, %v10323
        %v10493 = vsel %vm2334, %v10461, %v10325
        %v10494 = vsel %vm2334, %v10462, %v10327
        %v10495 = vsel %vm2334, %v10463, %v10329
        %v10496 = vsel %vm2334, %v10464, %v10331
        %v10497 = vsel %vm2334, %v10465, %v10333
        %v10498 = vsel %vm2334, %v10466, %v10335
        %v10499 = vsel %vm2334, %v10467, %v10337
        %v10500 = vsel %vm2334, %v10468, %v10339
        %v10501 = vsel %vm2334, %v10469, %v10341
        %s10502 = scalar_lea.vmem %s7, 64
        %v10503 = vld [vmem:[%s10502] sm:$0xff]
        %v10504 = vld [vmem:[%s10502 + $0x8] sm:$0x3]
        %v10506 = vsel %vm6343, %v10470, 0
        %v10509 = vsel %vm6343, %v10471, 0
        %v10512 = vsel %vm6343, %v10472, 0
        %v10515 = vsel %vm6343, %v10473, 0
        %v10518 = vsel %vm6343, %v10474, 0
        %v10521 = vsel %vm6343, %v10475, 0
        %v10524 = vsel %vm6343, %v10476, 0
        %v10527 = vsel %vm6343, %v10477, 0
        %v10530 = vsel %vm6343, %v10478, 0
        %v10533 = vsel %vm6343, %v10479, 0
        %v10536 = vsel %vm6343, %v10480, 0
        %v10539 = vsel %vm6343, %v10481, 0
        %v10542 = vsel %vm6343, %v10482, 0
        %v10545 = vsel %vm6343, %v10483, 0
        %v10548 = vsel %vm6343, %v10484, 0
        %v10551 = vsel %vm6343, %v10485, 0
        %v10554 = vsel %vm6343, %v10486, 0
        %v10557 = vsel %vm6343, %v10487, 0
        %v10560 = vsel %vm6343, %v10488, 0
        %v10563 = vsel %vm6343, %v10489, 0
        %v10566 = vsel %vm6343, %v10490, 0
        %v10569 = vsel %vm6343, %v10491, 0
        %v10572 = vsel %vm6343, %v10492, 0
        %v10575 = vsel %vm6343, %v10493, 0
        %v10578 = vsel %vm6343, %v10494, 0
        %v10581 = vsel %vm6343, %v10495, 0
        %v10584 = vsel %vm6343, %v10496, 0
        %v10587 = vsel %vm6343, %v10497, 0
        %v10590 = vsel %vm6343, %v10498, 0
        %v10593 = vsel %vm6343, %v10499, 0
        %v10596 = vsel %vm6343, %v10500, 0
        %v10599 = vsel %vm6343, %v10501, 0
        %v10602 = vsel %vm6440, %v10504, 0
        %10604 = vmatprep.subr.mxu0 0.0
        %10605 = vmatpush1.msra.mxu0 %v10503
        %10606 = vmatprep.subr.mxu0 0.0
        %10607 = vmatpush1.msra.mxu0 %v10602
        %10608 = vmatprep.subr.mxu0 0.0
        %10609 = vmatpush1.msra.mxu0 0.0
        %10610 = vmatprep.subr.mxu0 0.0
        %10611 = vmatpush1.msra.mxu0 0.0
        %10612 = vmatprep.subr.mxu0 0.0
        %10613 = vmatpush1.msra.mxu0 0.0
        %10614 = vmatprep.subr.mxu0 0.0
        %10615 = vmatpush1.msra.mxu0 0.0
        %10616 = vmatprep.subr.mxu0 0.0
        %10617 = vmatpush1.msra.mxu0 0.0
        %10618 = vmatprep.subr.mxu0 0.0
        %10619 = vmatpush1.msra.mxu0 0.0
        %10620 = vmatprep.subr.mxu0 0.0
        %10621 = vmatpush1.msra.mxu0 0.0
        %10622 = vmatprep.subr.mxu0 0.0
        %10623 = vmatpush1.msra.mxu0 0.0
        %10624 = vmatprep.subr.mxu0 0.0
        %10625 = vmatpush1.msra.mxu0 0.0
        %10626 = vmatprep.subr.mxu0 0.0
        %10627 = vmatpush1.msra.mxu0 0.0
        %10628 = vmatprep.subr.mxu0 0.0
        %10629 = vmatpush1.msra.mxu0 0.0
        %10630 = vmatprep.subr.mxu0 0.0
        %10631 = vmatpush1.msra.mxu0 0.0
        %10632 = vmatprep.subr.mxu0 0.0
        %10633 = vmatpush1.msra.mxu0 0.0
        %10634 = vmatprep.subr.mxu0 0.0
        %10635 = vmatpush1.msra.mxu0 0.0
        %10636 = vmatprep.subr.mxu0 0.0
        %10637 = vmatpush1.msra.mxu0 0.0
        %10638 = vmatprep.subr.mxu0 0.0
        %10639 = vmatpush1.msra.mxu0 0.0
        %10640 = vmatprep.subr.mxu0 0.0
        %10641 = vmatpush1.msra.mxu0 0.0
        %10642 = vmatprep.subr.mxu0 0.0
        %10643 = vmatpush1.msra.mxu0 0.0
        %10644 = vmatprep.subr.mxu0 0.0
        %10645 = vmatpush1.msra.mxu0 0.0
        %10646 = vmatprep.subr.mxu0 0.0
        %10647 = vmatpush1.msra.mxu0 0.0
        %10648 = vmatprep.subr.mxu0 0.0
        %10649 = vmatpush1.msra.mxu0 0.0
        %10650 = vmatprep.subr.mxu0 0.0
        %10651 = vmatpush1.msra.mxu0 0.0
        %10652 = vmatprep.subr.mxu0 0.0
        %10653 = vmatpush1.msra.mxu0 0.0
        %10654 = vmatprep.subr.mxu0 0.0
        %10655 = vmatpush1.msra.mxu0 0.0
        %10656 = vmatprep.subr.mxu0 0.0
        %10657 = vmatpush1.msra.mxu0 0.0
        %10658 = vmatprep.subr.mxu0 0.0
        %10659 = vmatpush1.msra.mxu0 0.0
        %10660 = vmatprep.subr.mxu0 0.0
        %10661 = vmatpush1.msra.mxu0 0.0
        %10662 = vmatprep.subr.mxu0 0.0
        %10663 = vmatpush1.msra.mxu0 0.0
        %10664 = vmatprep.subr.mxu0 0.0
        %10665 = vmatpush1.msra.mxu0 0.0
        %10666 = vmatprep.subr.mxu0 0.0
        %10667 = vmatpush1.msra.mxu0 0.0
        %10668 = vmatprep.mubr.f32.mxu0 0.0
        %10669 = vmatmul.mubr.f32.gmra.mrb[0].mxu0 %v10506
        %v10670 = vpop.f32.mrb[0].mxu0
        %v10671 = vadd.f32 0.0, %v10670
        %v10672 = vpop.f32.mrb[0].mxu0
        %10673 = vmatprep.mubr.f32.mxu0 0.0
        %10674 = vmatmul.mubr.f32.gmra.mrb[0].mxu0 %v10509
        %v10675 = vpop.f32.mrb[0].mxu0
        %v10676 = vadd.f32 0.0, %v10675
        %v10677 = vpop.f32.mrb[0].mxu0
        %10678 = vmatprep.mubr.f32.mxu0 0.0
        %10679 = vmatmul.mubr.f32.gmra.mrb[0].mxu0 %v10512
        %v10680 = vpop.f32.mrb[0].mxu0
        %v10681 = vadd.f32 0.0, %v10680
        %v10682 = vpop.f32.mrb[0].mxu0
        %10683 = vmatprep.mubr.f32.mxu0 0.0
        %10684 = vmatmul.mubr.f32.gmra.mrb[0].mxu0 %v10515
        %v10685 = vpop.f32.mrb[0].mxu0
        %v10686 = vadd.f32 0.0, %v10685
        %v10687 = vpop.f32.mrb[0].mxu0
        %10688 = vmatprep.mubr.f32.mxu0 0.0
        %10689 = vmatmul.mubr.f32.gmra.mrb[0].mxu0 %v10518
        %v10690 = vpop.f32.mrb[0].mxu0
        %v10691 = vadd.f32 0.0, %v10690
        %v10692 = vpop.f32.mrb[0].mxu0
        %10693 = vmatprep.mubr.f32.mxu0 0.0
        %10694 = vmatmul.mubr.f32.gmra.mrb[0].mxu0 %v10521
        %v10695 = vpop.f32.mrb[0].mxu0
        %v10696 = vadd.f32 0.0, %v10695
        %v10697 = vpop.f32.mrb[0].mxu0
        %10698 = vmatprep.mubr.f32.mxu0 0.0
        %10699 = vmatmul.mubr.f32.gmra.mrb[0].mxu0 %v10524
        %v10700 = vpop.f32.mrb[0].mxu0
        %v10701 = vadd.f32 0.0, %v10700
        %v10702 = vpop.f32.mrb[0].mxu0
        %10703 = vmatprep.mubr.f32.mxu0 0.0
        %10704 = vmatmul.mubr.f32.gmra.mrb[0].mxu0 %v10527
        %v10705 = vpop.f32.mrb[0].mxu0
        %v10706 = vadd.f32 0.0, %v10705
        %v10707 = vpop.f32.mrb[0].mxu0
        %10708 = vmatprep.mubr.f32.mxu0 0.0
        %10709 = vmatmul.mubr.f32.gmra.mrb[0].mxu0 %v10530
        %v10710 = vpop.f32.mrb[0].mxu0
        %v10711 = vadd.f32 0.0, %v10710
        %v10712 = vpop.f32.mrb[0].mxu0
        %10713 = vmatprep.mubr.f32.mxu0 0.0
        %10714 = vmatmul.mubr.f32.gmra.mrb[0].mxu0 %v10533
        %v10715 = vpop.f32.mrb[0].mxu0
        %v10716 = vadd.f32 0.0, %v10715
        %v10717 = vpop.f32.mrb[0].mxu0
        %10718 = vmatprep.mubr.f32.mxu0 0.0
        %10719 = vmatmul.mubr.f32.gmra.mrb[0].mxu0 %v10536
        %v10720 = vpop.f32.mrb[0].mxu0
        %v10721 = vadd.f32 0.0, %v10720
        %v10722 = vpop.f32.mrb[0].mxu0
        %10723 = vmatprep.mubr.f32.mxu0 0.0
        %10724 = vmatmul.mubr.f32.gmra.mrb[0].mxu0 %v10539
        %v10725 = vpop.f32.mrb[0].mxu0
        %v10726 = vadd.f32 0.0, %v10725
        %v10727 = vpop.f32.mrb[0].mxu0
        %10728 = vmatprep.mubr.f32.mxu0 0.0
        %10729 = vmatmul.mubr.f32.gmra.mrb[0].mxu0 %v10542
        %v10730 = vpop.f32.mrb[0].mxu0
        %v10731 = vadd.f32 0.0, %v10730
        %v10732 = vpop.f32.mrb[0].mxu0
        %10733 = vmatprep.mubr.f32.mxu0 0.0
        %10734 = vmatmul.mubr.f32.gmra.mrb[0].mxu0 %v10545
        %v10735 = vpop.f32.mrb[0].mxu0
        %v10736 = vadd.f32 0.0, %v10735
        %v10737 = vpop.f32.mrb[0].mxu0
        %10738 = vmatprep.mubr.f32.mxu0 0.0
        %10739 = vmatmul.mubr.f32.gmra.mrb[0].mxu0 %v10548
        %v10740 = vpop.f32.mrb[0].mxu0
        %v10741 = vadd.f32 0.0, %v10740
        %v10742 = vpop.f32.mrb[0].mxu0
        %10743 = vmatprep.mubr.f32.mxu0 0.0
        %10744 = vmatmul.mubr.f32.gmra.mrb[0].mxu0 %v10551
        %v10745 = vpop.f32.mrb[0].mxu0
        %v10746 = vadd.f32 0.0, %v10745
        %v10747 = vpop.f32.mrb[0].mxu0
        %10748 = vmatprep.mubr.f32.mxu0 0.0
        %10749 = vmatmul.mubr.f32.gmra.mrb[0].mxu0 %v10554
        %v10750 = vpop.f32.mrb[0].mxu0
        %v10751 = vadd.f32 0.0, %v10750
        %v10752 = vpop.f32.mrb[0].mxu0
        %10753 = vmatprep.mubr.f32.mxu0 0.0
        %10754 = vmatmul.mubr.f32.gmra.mrb[0].mxu0 %v10557
        %v10755 = vpop.f32.mrb[0].mxu0
        %v10756 = vadd.f32 0.0, %v10755
        %v10757 = vpop.f32.mrb[0].mxu0
        %10758 = vmatprep.mubr.f32.mxu0 0.0
        %10759 = vmatmul.mubr.f32.gmra.mrb[0].mxu0 %v10560
        %v10760 = vpop.f32.mrb[0].mxu0
        %v10761 = vadd.f32 0.0, %v10760
        %v10762 = vpop.f32.mrb[0].mxu0
        %10763 = vmatprep.mubr.f32.mxu0 0.0
        %10764 = vmatmul.mubr.f32.gmra.mrb[0].mxu0 %v10563
        %v10765 = vpop.f32.mrb[0].mxu0
        %v10766 = vadd.f32 0.0, %v10765
        %v10767 = vpop.f32.mrb[0].mxu0
        %10768 = vmatprep.mubr.f32.mxu0 0.0
        %10769 = vmatmul.mubr.f32.gmra.mrb[0].mxu0 %v10566
        %v10770 = vpop.f32.mrb[0].mxu0
        %v10771 = vadd.f32 0.0, %v10770
        %v10772 = vpop.f32.mrb[0].mxu0
        %10773 = vmatprep.mubr.f32.mxu0 0.0
        %10774 = vmatmul.mubr.f32.gmra.mrb[0].mxu0 %v10569
        %v10775 = vpop.f32.mrb[0].mxu0
        %v10776 = vadd.f32 0.0, %v10775
        %v10777 = vpop.f32.mrb[0].mxu0
        %10778 = vmatprep.mubr.f32.mxu0 0.0
        %10779 = vmatmul.mubr.f32.gmra.mrb[0].mxu0 %v10572
        %v10780 = vpop.f32.mrb[0].mxu0
        %v10781 = vadd.f32 0.0, %v10780
        %v10782 = vpop.f32.mrb[0].mxu0
        %10783 = vmatprep.mubr.f32.mxu0 0.0
        %10784 = vmatmul.mubr.f32.gmra.mrb[0].mxu0 %v10575
        %v10785 = vpop.f32.mrb[0].mxu0
        %v10786 = vadd.f32 0.0, %v10785
        %v10787 = vpop.f32.mrb[0].mxu0
        %10788 = vmatprep.mubr.f32.mxu0 0.0
        %10789 = vmatmul.mubr.f32.gmra.mrb[0].mxu0 %v10578
        %v10790 = vpop.f32.mrb[0].mxu0
        %v10791 = vadd.f32 0.0, %v10790
        %v10792 = vpop.f32.mrb[0].mxu0
        %10793 = vmatprep.mubr.f32.mxu0 0.0
        %10794 = vmatmul.mubr.f32.gmra.mrb[0].mxu0 %v10581
        %v10795 = vpop.f32.mrb[0].mxu0
        %v10796 = vadd.f32 0.0, %v10795
        %v10797 = vpop.f32.mrb[0].mxu0
        %10798 = vmatprep.mubr.f32.mxu0 0.0
        %10799 = vmatmul.mubr.f32.gmra.mrb[0].mxu0 %v10584
        %v10800 = vpop.f32.mrb[0].mxu0
        %v10801 = vadd.f32 0.0, %v10800
        %v10802 = vpop.f32.mrb[0].mxu0
        %10803 = vmatprep.mubr.f32.mxu0 0.0
        %10804 = vmatmul.mubr.f32.gmra.mrb[0].mxu0 %v10587
        %v10805 = vpop.f32.mrb[0].mxu0
        %v10806 = vadd.f32 0.0, %v10805
        %v10807 = vpop.f32.mrb[0].mxu0
        %10808 = vmatprep.mubr.f32.mxu0 0.0
        %10809 = vmatmul.mubr.f32.gmra.mrb[0].mxu0 %v10590
        %v10810 = vpop.f32.mrb[0].mxu0
        %v10811 = vadd.f32 0.0, %v10810
        %v10812 = vpop.f32.mrb[0].mxu0
        %10813 = vmatprep.mubr.f32.mxu0 0.0
        %10814 = vmatmul.mubr.f32.gmra.mrb[0].mxu0 %v10593
        %v10815 = vpop.f32.mrb[0].mxu0
        %v10816 = vadd.f32 0.0, %v10815
        %v10817 = vpop.f32.mrb[0].mxu0
        %10818 = vmatprep.mubr.f32.mxu0 0.0
        %10819 = vmatmul.mubr.f32.gmra.mrb[0].mxu0 %v10596
        %v10820 = vpop.f32.mrb[0].mxu0
        %v10821 = vadd.f32 0.0, %v10820
        %v10822 = vpop.f32.mrb[0].mxu0
        %10823 = vmatprep.mubr.f32.mxu0 0.0
        %10824 = vmatmul.mubr.f32.gmra.mrb[0].mxu0 %v10599
        %v10825 = vpop.f32.mrb[0].mxu0
        %v10826 = vadd.f32 0.0, %v10825
        %v10827 = vpop.f32.mrb[0].mxu0
        %10828 = vdwg.mxu0
        %v10829 = vadd.f32 %v9539, %v10671
        %v10830 = vadd.f32 %v9540, %v10676
        %v10831 = vadd.f32 %v9541, %v10681
        %v10832 = vadd.f32 %v9542, %v10686
        %v10833 = vadd.f32 %v9543, %v10691
        %v10834 = vadd.f32 %v9544, %v10696
        %v10835 = vadd.f32 %v9545, %v10701
        %v10836 = vadd.f32 %v9546, %v10706
        %v10837 = vadd.f32 %v9547, %v10711
        %v10838 = vadd.f32 %v9548, %v10716
        %v10839 = vadd.f32 %v9549, %v10721
        %v10840 = vadd.f32 %v9550, %v10726
        %v10841 = vadd.f32 %v9551, %v10731
        %v10842 = vadd.f32 %v9552, %v10736
        %v10843 = vadd.f32 %v9553, %v10741
        %v10844 = vadd.f32 %v9554, %v10746
        %v10845 = vadd.f32 %v9555, %v10751
        %v10846 = vadd.f32 %v9556, %v10756
        %v10847 = vadd.f32 %v9557, %v10761
        %v10848 = vadd.f32 %v9558, %v10766
        %v10849 = vadd.f32 %v9559, %v10771
        %v10850 = vadd.f32 %v9560, %v10776
        %v10851 = vadd.f32 %v9561, %v10781
        %v10852 = vadd.f32 %v9562, %v10786
        %v10853 = vadd.f32 %v9563, %v10791
        %v10854 = vadd.f32 %v9564, %v10796
        %v10855 = vadd.f32 %v9565, %v10801
        %v10856 = vadd.f32 %v9566, %v10806
        %v10857 = vadd.f32 %v9567, %v10811
        %v10858 = vadd.f32 %v9568, %v10816
        %v10859 = vadd.f32 %v9569, %v10821
        %v10860 = vadd.f32 %v9570, %v10826
        %v10861 = vld [vmem:[%s8] sm:$0x1]
        %v10863 = vlaneseq
        %v10864 = vshrl.u32 %v10863, 7
        %v10865 = vsub.s32 0, %v10864
        %v10866 = vrot.slane %v10861, %v10865
        %v10868 = vadd.f32 %v10829, %v10866
        %v10869 = vadd.f32 %v10830, %v10866
        %v10870 = vadd.f32 %v10831, %v10866
        %v10871 = vadd.f32 %v10832, %v10866
        %v10872 = vadd.f32 %v10833, %v10866
        %v10873 = vadd.f32 %v10834, %v10866
        %v10874 = vadd.f32 %v10835, %v10866
        %v10875 = vadd.f32 %v10836, %v10866
        %v10876 = vadd.f32 %v10837, %v10866
        %v10877 = vadd.f32 %v10838, %v10866
        %v10878 = vadd.f32 %v10839, %v10866
        %v10879 = vadd.f32 %v10840, %v10866
        %v10880 = vadd.f32 %v10841, %v10866
        %v10881 = vadd.f32 %v10842, %v10866
        %v10882 = vadd.f32 %v10843, %v10866
        %v10883 = vadd.f32 %v10844, %v10866
        %v10884 = vadd.f32 %v10845, %v10866
        %v10885 = vadd.f32 %v10846, %v10866
        %v10886 = vadd.f32 %v10847, %v10866
        %v10887 = vadd.f32 %v10848, %v10866
        %v10888 = vadd.f32 %v10849, %v10866
        %v10889 = vadd.f32 %v10850, %v10866
        %v10890 = vadd.f32 %v10851, %v10866
        %v10891 = vadd.f32 %v10852, %v10866
        %v10892 = vadd.f32 %v10853, %v10866
        %v10893 = vadd.f32 %v10854, %v10866
        %v10894 = vadd.f32 %v10855, %v10866
        %v10895 = vadd.f32 %v10856, %v10866
        %v10896 = vadd.f32 %v10857, %v10866
        %v10897 = vadd.f32 %v10858, %v10866
        %v10898 = vadd.f32 %v10859, %v10866
        %v10899 = vadd.f32 %v10860, %v10866
        %v10900 = vmax.f32 %v10868, 0.0
        %v10901 = vmax.f32 %v10869, 0.0
        %v10902 = vmax.f32 %v10870, 0.0
        %v10903 = vmax.f32 %v10871, 0.0
        %v10904 = vmax.f32 %v10872, 0.0
        %v10905 = vmax.f32 %v10873, 0.0
        %v10906 = vmax.f32 %v10874, 0.0
        %v10907 = vmax.f32 %v10875, 0.0
        %v10908 = vmax.f32 %v10876, 0.0
        %v10909 = vmax.f32 %v10877, 0.0
        %v10910 = vmax.f32 %v10878, 0.0
        %v10911 = vmax.f32 %v10879, 0.0
        %v10912 = vmax.f32 %v10880, 0.0
        %v10913 = vmax.f32 %v10881, 0.0
        %v10914 = vmax.f32 %v10882, 0.0
        %v10915 = vmax.f32 %v10883, 0.0
        %v10916 = vmax.f32 %v10884, 0.0
        %v10917 = vmax.f32 %v10885, 0.0
        %v10918 = vmax.f32 %v10886, 0.0
        %v10919 = vmax.f32 %v10887, 0.0
        %v10920 = vmax.f32 %v10888, 0.0
        %v10921 = vmax.f32 %v10889, 0.0
        %v10922 = vmax.f32 %v10890, 0.0
        %v10923 = vmax.f32 %v10891, 0.0
        %v10924 = vmax.f32 %v10892, 0.0
        %v10925 = vmax.f32 %v10893, 0.0
        %v10926 = vmax.f32 %v10894, 0.0
        %v10927 = vmax.f32 %v10895, 0.0
        %v10928 = vmax.f32 %v10896, 0.0
        %v10929 = vmax.f32 %v10897, 0.0
        %v10930 = vmax.f32 %v10898, 0.0
        %v10931 = vmax.f32 %v10899, 0.0
        %10964 = vrot.lane.b32.xlu0 %v4445, 4
        %v10965 = vpop.permute.xlu0 %10964
        %10966 = vrot.lane.b32.xlu0 %v4446, 4
        %v10967 = vpop.permute.xlu0 %10966
        %10968 = vrot.lane.b32.xlu0 %v4447, 4
        %v10969 = vpop.permute.xlu0 %10968
        %10970 = vrot.lane.b32.xlu0 %v4448, 4
        %v10971 = vpop.permute.xlu0 %10970
        %10972 = vrot.lane.b32.xlu0 %v4449, 4
        %v10973 = vpop.permute.xlu0 %10972
        %10974 = vrot.lane.b32.xlu0 %v4450, 4
        %v10975 = vpop.permute.xlu0 %10974
        %10976 = vrot.lane.b32.xlu0 %v4451, 4
        %v10977 = vpop.permute.xlu0 %10976
        %10978 = vrot.lane.b32.xlu0 %v4452, 4
        %v10979 = vpop.permute.xlu0 %10978
        %10980 = vrot.lane.b32.xlu0 %v4453, 4
        %v10981 = vpop.permute.xlu0 %10980
        %10982 = vrot.lane.b32.xlu0 %v4454, 4
        %v10983 = vpop.permute.xlu0 %10982
        %10984 = vrot.lane.b32.xlu0 %v4455, 4
        %v10985 = vpop.permute.xlu0 %10984
        %10986 = vrot.lane.b32.xlu0 %v4456, 4
        %v10987 = vpop.permute.xlu0 %10986
        %10988 = vrot.lane.b32.xlu0 %v4457, 4
        %v10989 = vpop.permute.xlu0 %10988
        %10990 = vrot.lane.b32.xlu0 %v4458, 4
        %v10991 = vpop.permute.xlu0 %10990
        %10992 = vrot.lane.b32.xlu0 %v4459, 4
        %v10993 = vpop.permute.xlu0 %10992
        %10994 = vrot.lane.b32.xlu0 %v4460, 4
        %v10995 = vpop.permute.xlu0 %10994
        %10996 = vrot.lane.b32.xlu0 %v4461, 4
        %v10997 = vpop.permute.xlu0 %10996
        %10998 = vrot.lane.b32.xlu0 %v4462, 4
        %v10999 = vpop.permute.xlu0 %10998
        %11000 = vrot.lane.b32.xlu0 %v4463, 4
        %v11001 = vpop.permute.xlu0 %11000
        %11002 = vrot.lane.b32.xlu0 %v4464, 4
        %v11003 = vpop.permute.xlu0 %11002
        %11004 = vrot.lane.b32.xlu0 %v4465, 4
        %v11005 = vpop.permute.xlu0 %11004
        %11006 = vrot.lane.b32.xlu0 %v4466, 4
        %v11007 = vpop.permute.xlu0 %11006
        %11008 = vrot.lane.b32.xlu0 %v4467, 4
        %v11009 = vpop.permute.xlu0 %11008
        %11010 = vrot.lane.b32.xlu0 %v4468, 4
        %v11011 = vpop.permute.xlu0 %11010
        %11012 = vrot.lane.b32.xlu0 %v4469, 4
        %v11013 = vpop.permute.xlu0 %11012
        %11014 = vrot.lane.b32.xlu0 %v4470, 4
        %v11015 = vpop.permute.xlu0 %11014
        %11016 = vrot.lane.b32.xlu0 %v4471, 4
        %v11017 = vpop.permute.xlu0 %11016
        %11018 = vrot.lane.b32.xlu0 %v4472, 4
        %v11019 = vpop.permute.xlu0 %11018
        %11020 = vrot.lane.b32.xlu0 %v4473, 4
        %v11021 = vpop.permute.xlu0 %11020
        %11022 = vrot.lane.b32.xlu0 %v4474, 4
        %v11023 = vpop.permute.xlu0 %11022
        %11024 = vrot.lane.b32.xlu0 %v4475, 4
        %v11025 = vpop.permute.xlu0 %11024
        %11026 = vrot.lane.b32.xlu0 %v4476, 4
        %v11027 = vpop.permute.xlu0 %11026
        %11092 = vrot.lane.b32.xlu0 %v10900, 12
        %v11093 = vpop.permute.xlu0 %11092
        %11094 = vrot.lane.b32.xlu0 %v10901, 12
        %v11095 = vpop.permute.xlu0 %11094
        %11096 = vrot.lane.b32.xlu0 %v10902, 12
        %v11097 = vpop.permute.xlu0 %11096
        %11098 = vrot.lane.b32.xlu0 %v10903, 12
        %v11099 = vpop.permute.xlu0 %11098
        %11100 = vrot.lane.b32.xlu0 %v10904, 12
        %v11101 = vpop.permute.xlu0 %11100
        %11102 = vrot.lane.b32.xlu0 %v10905, 12
        %v11103 = vpop.permute.xlu0 %11102
        %11104 = vrot.lane.b32.xlu0 %v10906, 12
        %v11105 = vpop.permute.xlu0 %11104
        %11106 = vrot.lane.b32.xlu0 %v10907, 12
        %v11107 = vpop.permute.xlu0 %11106
        %11108 = vrot.lane.b32.xlu0 %v10908, 12
        %v11109 = vpop.permute.xlu0 %11108
        %11110 = vrot.lane.b32.xlu0 %v10909, 12
        %v11111 = vpop.permute.xlu0 %11110
        %11112 = vrot.lane.b32.xlu0 %v10910, 12
        %v11113 = vpop.permute.xlu0 %11112
        %11114 = vrot.lane.b32.xlu0 %v10911, 12
        %v11115 = vpop.permute.xlu0 %11114
        %11116 = vrot.lane.b32.xlu0 %v10912, 12
        %v11117 = vpop.permute.xlu0 %11116
        %11118 = vrot.lane.b32.xlu0 %v10913, 12
        %v11119 = vpop.permute.xlu0 %11118
        %11120 = vrot.lane.b32.xlu0 %v10914, 12
        %v11121 = vpop.permute.xlu0 %11120
        %11122 = vrot.lane.b32.xlu0 %v10915, 12
        %v11123 = vpop.permute.xlu0 %11122
        %11124 = vrot.lane.b32.xlu0 %v10916, 12
        %v11125 = vpop.permute.xlu0 %11124
        %11126 = vrot.lane.b32.xlu0 %v10917, 12
        %v11127 = vpop.permute.xlu0 %11126
        %11128 = vrot.lane.b32.xlu0 %v10918, 12
        %v11129 = vpop.permute.xlu0 %11128
        %11130 = vrot.lane.b32.xlu0 %v10919, 12
        %v11131 = vpop.permute.xlu0 %11130
        %11132 = vrot.lane.b32.xlu0 %v10920, 12
        %v11133 = vpop.permute.xlu0 %11132
        %11134 = vrot.lane.b32.xlu0 %v10921, 12
        %v11135 = vpop.permute.xlu0 %11134
        %11136 = vrot.lane.b32.xlu0 %v10922, 12
        %v11137 = vpop.permute.xlu0 %11136
        %11138 = vrot.lane.b32.xlu0 %v10923, 12
        %v11139 = vpop.permute.xlu0 %11138
        %11140 = vrot.lane.b32.xlu0 %v10924, 12
        %v11141 = vpop.permute.xlu0 %11140
        %11142 = vrot.lane.b32.xlu0 %v10925, 12
        %v11143 = vpop.permute.xlu0 %11142
        %11144 = vrot.lane.b32.xlu0 %v10926, 12
        %v11145 = vpop.permute.xlu0 %11144
        %11146 = vrot.lane.b32.xlu0 %v10927, 12
        %v11147 = vpop.permute.xlu0 %11146
        %11148 = vrot.lane.b32.xlu0 %v10928, 12
        %v11149 = vpop.permute.xlu0 %11148
        %11150 = vrot.lane.b32.xlu0 %v10929, 12
        %v11151 = vpop.permute.xlu0 %11150
        %11152 = vrot.lane.b32.xlu0 %v10930, 12
        %v11153 = vpop.permute.xlu0 %11152
        %11154 = vrot.lane.b32.xlu0 %v10931, 12
        %v11155 = vpop.permute.xlu0 %11154
        %11220 = vrot.lane.b32.xlu0 %v1821, 16
        %v11221 = vpop.permute.xlu0 %11220
        %11222 = vrot.lane.b32.xlu0 %v1822, 16
        %v11223 = vpop.permute.xlu0 %11222
        %11224 = vrot.lane.b32.xlu0 %v1823, 16
        %v11225 = vpop.permute.xlu0 %11224
        %11226 = vrot.lane.b32.xlu0 %v1824, 16
        %v11227 = vpop.permute.xlu0 %11226
        %11228 = vrot.lane.b32.xlu0 %v1825, 16
        %v11229 = vpop.permute.xlu0 %11228
        %11230 = vrot.lane.b32.xlu0 %v1826, 16
        %v11231 = vpop.permute.xlu0 %11230
        %11232 = vrot.lane.b32.xlu0 %v1827, 16
        %v11233 = vpop.permute.xlu0 %11232
        %11234 = vrot.lane.b32.xlu0 %v1828, 16
        %v11235 = vpop.permute.xlu0 %11234
        %11236 = vrot.lane.b32.xlu0 %v1829, 16
        %v11237 = vpop.permute.xlu0 %11236
        %11238 = vrot.lane.b32.xlu0 %v1830, 16
        %v11239 = vpop.permute.xlu0 %11238
        %11240 = vrot.lane.b32.xlu0 %v1831, 16
        %v11241 = vpop.permute.xlu0 %11240
        %11242 = vrot.lane.b32.xlu0 %v1832, 16
        %v11243 = vpop.permute.xlu0 %11242
        %11244 = vrot.lane.b32.xlu0 %v1833, 16
        %v11245 = vpop.permute.xlu0 %11244
        %11246 = vrot.lane.b32.xlu0 %v1834, 16
        %v11247 = vpop.permute.xlu0 %11246
        %11248 = vrot.lane.b32.xlu0 %v1835, 16
        %v11249 = vpop.permute.xlu0 %11248
        %11250 = vrot.lane.b32.xlu0 %v1836, 16
        %v11251 = vpop.permute.xlu0 %11250
        %11252 = vrot.lane.b32.xlu0 %v1837, 16
        %v11253 = vpop.permute.xlu0 %11252
        %11254 = vrot.lane.b32.xlu0 %v1838, 16
        %v11255 = vpop.permute.xlu0 %11254
        %11256 = vrot.lane.b32.xlu0 %v1839, 16
        %v11257 = vpop.permute.xlu0 %11256
        %11258 = vrot.lane.b32.xlu0 %v1840, 16
        %v11259 = vpop.permute.xlu0 %11258
        %11260 = vrot.lane.b32.xlu0 %v1841, 16
        %v11261 = vpop.permute.xlu0 %11260
        %11262 = vrot.lane.b32.xlu0 %v1842, 16
        %v11263 = vpop.permute.xlu0 %11262
        %11264 = vrot.lane.b32.xlu0 %v1843, 16
        %v11265 = vpop.permute.xlu0 %11264
        %11266 = vrot.lane.b32.xlu0 %v1844, 16
        %v11267 = vpop.permute.xlu0 %11266
        %11268 = vrot.lane.b32.xlu0 %v1845, 16
        %v11269 = vpop.permute.xlu0 %11268
        %11270 = vrot.lane.b32.xlu0 %v1846, 16
        %v11271 = vpop.permute.xlu0 %11270
        %11272 = vrot.lane.b32.xlu0 %v1847, 16
        %v11273 = vpop.permute.xlu0 %11272
        %11274 = vrot.lane.b32.xlu0 %v1848, 16
        %v11275 = vpop.permute.xlu0 %11274
        %11276 = vrot.lane.b32.xlu0 %v1849, 16
        %v11277 = vpop.permute.xlu0 %11276
        %11278 = vrot.lane.b32.xlu0 %v1850, 16
        %v11279 = vpop.permute.xlu0 %11278
        %11280 = vrot.lane.b32.xlu0 %v1851, 16
        %v11281 = vpop.permute.xlu0 %11280
        %11282 = vrot.lane.b32.xlu0 %v1852, 16
        %v11283 = vpop.permute.xlu0 %11282
        %v11316 = vsel %vm730, %v1024, %v10965
        %v11317 = vsel %vm730, %v1025, %v10967
        %v11318 = vsel %vm730, %v1026, %v10969
        %v11319 = vsel %vm730, %v1027, %v10971
        %v11320 = vsel %vm730, %v1028, %v10973
        %v11321 = vsel %vm730, %v1029, %v10975
        %v11322 = vsel %vm730, %v1030, %v10977
        %v11323 = vsel %vm730, %v1031, %v10979
        %v11324 = vsel %vm730, %v1032, %v10981
        %v11325 = vsel %vm730, %v1033, %v10983
        %v11326 = vsel %vm730, %v1034, %v10985
        %v11327 = vsel %vm730, %v1035, %v10987
        %v11328 = vsel %vm730, %v1036, %v10989
        %v11329 = vsel %vm730, %v1037, %v10991
        %v11330 = vsel %vm730, %v1038, %v10993
        %v11331 = vsel %vm730, %v1039, %v10995
        %v11332 = vsel %vm730, %v1040, %v10997
        %v11333 = vsel %vm730, %v1041, %v10999
        %v11334 = vsel %vm730, %v1042, %v11001
        %v11335 = vsel %vm730, %v1043, %v11003
        %v11336 = vsel %vm730, %v1044, %v11005
        %v11337 = vsel %vm730, %v1045, %v11007
        %v11338 = vsel %vm730, %v1046, %v11009
        %v11339 = vsel %vm730, %v1047, %v11011
        %v11340 = vsel %vm730, %v1048, %v11013
        %v11341 = vsel %vm730, %v1049, %v11015
        %v11342 = vsel %vm730, %v1050, %v11017
        %v11343 = vsel %vm730, %v1051, %v11019
        %v11344 = vsel %vm730, %v1052, %v11021
        %v11345 = vsel %vm730, %v1053, %v11023
        %v11346 = vsel %vm730, %v1054, %v11025
        %v11347 = vsel %vm730, %v1055, %v11027
        %v11348 = vsel %vm2885, %v11316, %v11093
        %v11349 = vsel %vm2885, %v11317, %v11095
        %v11350 = vsel %vm2885, %v11318, %v11097
        %v11351 = vsel %vm2885, %v11319, %v11099
        %v11352 = vsel %vm2885, %v11320, %v11101
        %v11353 = vsel %vm2885, %v11321, %v11103
        %v11354 = vsel %vm2885, %v11322, %v11105
        %v11355 = vsel %vm2885, %v11323, %v11107
        %v11356 = vsel %vm2885, %v11324, %v11109
        %v11357 = vsel %vm2885, %v11325, %v11111
        %v11358 = vsel %vm2885, %v11326, %v11113
        %v11359 = vsel %vm2885, %v11327, %v11115
        %v11360 = vsel %vm2885, %v11328, %v11117
        %v11361 = vsel %vm2885, %v11329, %v11119
        %v11362 = vsel %vm2885, %v11330, %v11121
        %v11363 = vsel %vm2885, %v11331, %v11123
        %v11364 = vsel %vm2885, %v11332, %v11125
        %v11365 = vsel %vm2885, %v11333, %v11127
        %v11366 = vsel %vm2885, %v11334, %v11129
        %v11367 = vsel %vm2885, %v11335, %v11131
        %v11368 = vsel %vm2885, %v11336, %v11133
        %v11369 = vsel %vm2885, %v11337, %v11135
        %v11370 = vsel %vm2885, %v11338, %v11137
        %v11371 = vsel %vm2885, %v11339, %v11139
        %v11372 = vsel %vm2885, %v11340, %v11141
        %v11373 = vsel %vm2885, %v11341, %v11143
        %v11374 = vsel %vm2885, %v11342, %v11145
        %v11375 = vsel %vm2885, %v11343, %v11147
        %v11376 = vsel %vm2885, %v11344, %v11149
        %v11377 = vsel %vm2885, %v11345, %v11151
        %v11378 = vsel %vm2885, %v11346, %v11153
        %v11379 = vsel %vm2885, %v11347, %v11155
        %vm11380 = vcmask 130048
        %v11381 = vsel %vm11380, %v11348, %v11221
        %v11382 = vsel %vm11380, %v11349, %v11223
        %v11383 = vsel %vm11380, %v11350, %v11225
        %v11384 = vsel %vm11380, %v11351, %v11227
        %v11385 = vsel %vm11380, %v11352, %v11229
        %v11386 = vsel %vm11380, %v11353, %v11231
        %v11387 = vsel %vm11380, %v11354, %v11233
        %v11388 = vsel %vm11380, %v11355, %v11235
        %v11389 = vsel %vm11380, %v11356, %v11237
        %v11390 = vsel %vm11380, %v11357, %v11239
        %v11391 = vsel %vm11380, %v11358, %v11241
        %v11392 = vsel %vm11380, %v11359, %v11243
        %v11393 = vsel %vm11380, %v11360, %v11245
        %v11394 = vsel %vm11380, %v11361, %v11247
        %v11395 = vsel %vm11380, %v11362, %v11249
        %v11396 = vsel %vm11380, %v11363, %v11251
        %v11397 = vsel %vm11380, %v11364, %v11253
        %v11398 = vsel %vm11380, %v11365, %v11255
        %v11399 = vsel %vm11380, %v11366, %v11257
        %v11400 = vsel %vm11380, %v11367, %v11259
        %v11401 = vsel %vm11380, %v11368, %v11261
        %v11402 = vsel %vm11380, %v11369, %v11263
        %v11403 = vsel %vm11380, %v11370, %v11265
        %v11404 = vsel %vm11380, %v11371, %v11267
        %v11405 = vsel %vm11380, %v11372, %v11269
        %v11406 = vsel %vm11380, %v11373, %v11271
        %v11407 = vsel %vm11380, %v11374, %v11273
        %v11408 = vsel %vm11380, %v11375, %v11275
        %v11409 = vsel %vm11380, %v11376, %v11277
        %v11410 = vsel %vm11380, %v11377, %v11279
        %v11411 = vsel %vm11380, %v11378, %v11281
        %v11412 = vsel %vm11380, %v11379, %v11283
        %vm11413 = vcmask 162816
        %11414 = vst.msk [vmem:[%s423] sm:$0xff] %vm11413, %v11381
        %11415 = vst.msk [vmem:[%s423 + $0x8] sm:$0xff] %vm11413, %v11382
        %11416 = vst.msk [vmem:[%s423 + $0x10] sm:$0xff] %vm11413, %v11383
        %11417 = vst.msk [vmem:[%s423 + $0x18] sm:$0xff] %vm11413, %v11384
        %11418 = vst.msk [vmem:[%s423 + $0x20] sm:$0xff] %vm11413, %v11385
        %11419 = vst.msk [vmem:[%s423 + $0x28] sm:$0xff] %vm11413, %v11386
        %11420 = vst.msk [vmem:[%s423 + $0x30] sm:$0xff] %vm11413, %v11387
        %11421 = vst.msk [vmem:[%s423 + $0x38] sm:$0xff] %vm11413, %v11388
        %11422 = vst.msk [vmem:[%s423 + $0x40] sm:$0xff] %vm11413, %v11389
        %11423 = vst.msk [vmem:[%s423 + $0x48] sm:$0xff] %vm11413, %v11390
        %11424 = vst.msk [vmem:[%s423 + $0x50] sm:$0xff] %vm11413, %v11391
        %11425 = vst.msk [vmem:[%s423 + $0x58] sm:$0xff] %vm11413, %v11392
        %11426 = vst.msk [vmem:[%s423 + $0x60] sm:$0xff] %vm11413, %v11393
        %11427 = vst.msk [vmem:[%s423 + $0x68] sm:$0xff] %vm11413, %v11394
        %11428 = vst.msk [vmem:[%s423 + $0x70] sm:$0xff] %vm11413, %v11395
        %11429 = vst.msk [vmem:[%s423 + $0x78] sm:$0xff] %vm11413, %v11396
        %11430 = vst.msk [vmem:[%s423 + $0x80] sm:$0xff] %vm11413, %v11397
        %11431 = vst.msk [vmem:[%s423 + $0x88] sm:$0xff] %vm11413, %v11398
        %11432 = vst.msk [vmem:[%s423 + $0x90] sm:$0xff] %vm11413, %v11399
        %11433 = vst.msk [vmem:[%s423 + $0x98] sm:$0xff] %vm11413, %v11400
        %11434 = vst.msk [vmem:[%s423 + $0xa0] sm:$0xff] %vm11413, %v11401
        %11435 = vst.msk [vmem:[%s423 + $0xa8] sm:$0xff] %vm11413, %v11402
        %11436 = vst.msk [vmem:[%s423 + $0xb0] sm:$0xff] %vm11413, %v11403
        %11437 = vst.msk [vmem:[%s423 + $0xb8] sm:$0xff] %vm11413, %v11404
        %11438 = vst.msk [vmem:[%s423 + $0xc0] sm:$0xff] %vm11413, %v11405
        %11439 = vst.msk [vmem:[%s423 + $0xc8] sm:$0xff] %vm11413, %v11406
        %11440 = vst.msk [vmem:[%s423 + $0xd0] sm:$0xff] %vm11413, %v11407
        %11441 = vst.msk [vmem:[%s423 + $0xd8] sm:$0xff] %vm11413, %v11408
        %11442 = vst.msk [vmem:[%s423 + $0xe0] sm:$0xff] %vm11413, %v11409
        %11443 = vst.msk [vmem:[%s423 + $0xe8] sm:$0xff] %vm11413, %v11410
        %11444 = vst.msk [vmem:[%s423 + $0xf0] sm:$0xff] %vm11413, %v11411
        %11445 = vst.msk [vmem:[%s423 + $0xf8] sm:$0xff] %vm11413, %v11412
        %s11446 = sand.u32 %s293, 1
        %s11447 = scalar_lea.sflag [#allocation3], %s11446
        %s11448 = sand.u32 %s293, 1
        %s11449 = smul.addr %s11448, 256
        %s11450 = scalar_lea.vmem [#allocation2], %s11449
        // Predicated region
        $region65: #{inception_forward.3} parent=63 // pred_check
          %p11451 = pneg %p303
        $region66: #{inception_forward.3} parent=63 // pred_check_branch
          %11453 = sbr.rel (%p11451) target = $region68
        $region67: #{inception_forward.3} parent=63 // pred_region
          %s11454 = smul.u32 16, %s30
          %s11456 = ssub.s32 4096, 4096
          %11457 = vsyncadd %s11447, %s11456
          %s11458 = smul.addr %s11454, 2
          %s11459 = smul.addr %s29, 32
          %s11460 = sadd.s32 %s11458, %s11459
          %s11461 = smul.addr %s11460, 128
          %s11462 = scalar_lea.hbm %s11, %s11461
          %s11463 = sshll.u32 %s11450, 4
          %s11464 = int_to_ptr.vmem [resolvable:$true] %s11463
          %11469 = dma.vmem_to_hbm [thread:$0]  %s11464, 4096, %s11462, %s11447, 128, 128, 8
        $region68: #{inception_forward.3} parent=63 // pred_fallthru
          _
      $region64: #{inception_forward.3} parent=5 // pred_fallthru
        _
      %p11470 = scmp.le.s32.totalorder 2, %s20
      // Predicated region
      $region69: #{inception_forward.3} parent=5 // pred_check
        %p11471 = pneg %p11470
      $region70: #{inception_forward.3} parent=5 // pred_check_branch
        %11473 = sbr.rel (%p11471) target = $region72
      $region71: #{inception_forward.3} parent=5 // pred_region
        %s11474 = ssub.s32 %s20, 2
        // Predicated region
        $region73: #{inception_forward.3} parent=71 // pred_check
          %p11475 = pneg %p309
        $region74: #{inception_forward.3} parent=71 // pred_check_branch
          %11477 = sbr.rel (%p11475) target = $region76
        $region75: #{inception_forward.3} parent=71 // pred_region
          %s11478 = sand.u32 %s294, 1
          %s11479 = scalar_lea.sflag [#allocation3], %s11478
          %s11480 = sand.u32 %s294, 1
          %s11481 = smul.addr %s11480, 256
          %s11482 = scalar_lea.vmem [#allocation2], %s11481
          %11483 = dma.done %s11479, 4096
        $region76: #{inception_forward.3} parent=71 // pred_fallthru
          _
      $region72: #{inception_forward.3} parent=5 // pred_fallthru
        _
    $region6: #{inception_forward.3} parent=1 // loop_footer
      %s24 = sadd.s32 1, %s20
    $region7: #{inception_forward.3} parent=1 // loop_footer_branch
      %19 = sbr.rel target = $region3
    $region8: #{inception_forward.3} parent=1 // loop_exit
      _
    %11484 = vsyncpa [#allocation3], 1
    %s11485 = scalar_lea.sflag [#allocation3], 1
    %11486 = vsyncpa %s11485, 1

</llo_original>
